<compile_context>
chip_gen: v5e
topology: v5e:2x2
jax: 0.10.0
libtpu: 0.0.40
codegen_flags: <defaults>
</compile_context>

<pallas_src>
import functools
import math

import jax
import jax.numpy as jnp
from jax.experimental import pallas as pl
from jax.experimental.pallas import tpu as pltpu

# ----------------------------- config ---------------------------------------
D = 32                    # hidden size (stand-in for 768)
NH = 4                    # attention heads
DH = D // NH
MLP = 4 * D               # 128 (already lane-dense)
QKV_PAD = 128             # fused QKV output padded 3*D=96 -> 128 lanes
PATCH = 4
IMG_C, IMG_H, IMG_W = 3, 16, 24
N_PATCH = (IMG_H // PATCH) * (IMG_W // PATCH)     # 24 patches
SEQ_IMG = N_PATCH + 1                             # 25 tokens (cls + patches)
N_LOCAL = 6
STRIPE = N_PATCH // N_LOCAL                       # 4 patches per local stripe
VIT_DEPTH = 2
BERT_LAYERS = 2
VOCAB = 100
MAX_POS = 32
TXT_SEQ = 8
BATCH = 2

WEIGHT_FIELDS = ("ln1g", "ln1b", "wqkv", "bqkv", "wo", "bo",
                 "ln2g", "ln2b", "w1", "b1", "w2", "b2")
_W_SHAPES = dict(ln1g=(1, D), ln1b=(1, D), wqkv=(D, QKV_PAD), bqkv=(1, QKV_PAD),
                 wo=(D, D), bo=(1, D), ln2g=(1, D), ln2b=(1, D),
                 w1=(D, MLP), b1=(1, MLP), w2=(MLP, D), b2=(1, D))


# ------------------------- in-kernel helpers ---------------------------------
def _ln(t, g, b, eps):
    mu = jnp.mean(t, axis=-1, keepdims=True)
    var = jnp.mean(jnp.square(t - mu), axis=-1, keepdims=True)
    return (t - mu) * jax.lax.rsqrt(var + eps) * g + b


def _mm(a, b):
    """bf16 MXU operands, f32 accumulation."""
    return jnp.dot(a.astype(jnp.bfloat16), b.astype(jnp.bfloat16),
                   preferred_element_type=jnp.float32)


def _gelu_tanh(u):
    # TODO(synk): tanh-approx GELU; pretrained timm/HF models use exact erf GELU.
    return 0.5 * u * (1.0 + jnp.tanh(0.7978845608028654 * (u + 0.044715 * u * u * u)))


def _load_weights(refs):
    return {name: ref[...] for name, ref in zip(WEIGHT_FIELDS, refs)}


def _block_compute(h, bias, w, *, prenorm, eps, scale):
    """One transformer block on the whole-batch residual slab.

    h:    (R, D) f32 residual stream, R = batch * seq (batch folded into rows).
    bias: (R, R) f32 additive attention bias; carries the batch-isolation
          block-diagonal mask (and BERT's key mask), which is what lets the
          whole batch share one set of 2-D matmuls with no per-batch loop.
    """
    def attention(a):
        qkv = _mm(a, w["wqkv"]) + w["bqkv"]          # (R, 128) lane-dense slab
        out = None
        for hd in range(NH):                          # static head loop, NH=4
            q = qkv[:, hd * DH:(hd + 1) * DH]
            k = qkv[:, D + hd * DH:D + (hd + 1) * DH]
            v = qkv[:, 2 * D + hd * DH:2 * D + (hd + 1) * DH]
            # q @ k^T via contracting dims (no materialized transpose), bf16 MXU.
            s = jax.lax.dot_general(
                q.astype(jnp.bfloat16), k.astype(jnp.bfloat16),
                dimension_numbers=(((1,), (1,)), ((), ())),
                preferred_element_type=jnp.float32) * scale
            s = s + bias
            s = s - jnp.max(s, axis=-1, keepdims=True)
            p = jnp.exp(s)
            p = p * pl.reciprocal(jnp.sum(p, axis=-1, keepdims=True), approx=True)
            ctx = _mm(p, v)                           # (R, DH)
            # Fold output projection per head (no lane concat of contexts);
            # wo row slices are sublane-aligned (DH == 8).
            part = _mm(ctx, w["wo"][hd * DH:(hd + 1) * DH, :])
            out = part if out is None else out + part
        return out + w["bo"]

    def mlp(a):
        u = _mm(a, w["w1"]) + w["b1"]
        u = _gelu_tanh(u)
        return _mm(u, w["w2"]) + w["b2"]

    if prenorm:     # ViT (pre-norm, timm-style)
        y = h + attention(_ln(h, w["ln1g"], w["ln1b"], eps))
        y = y + mlp(_ln(y, w["ln2g"], w["ln2b"], eps))
    else:           # BERT (post-norm)
        y = _ln(h + attention(h), w["ln1g"], w["ln1b"], eps)
        y = _ln(y + mlp(y), w["ln2g"], w["ln2b"], eps)
    return y


# --------------------------- fused stack kernels -----------------------------
def _vit_stack_kernel(x_ref, bias_ref, ng_ref, nb_ref, *rest,
                      eps, scale, batch, seq):
    """All ViT blocks in one call: grid=(depth,), residual in VMEM scratch.
    Epilogue (last layer): write tokens + LayerNorm'ed cls rows."""
    w_refs = rest[:12]
    tok_ref, cls_ref, resid_ref = rest[12], rest[13], rest[14]
    l = pl.program_id(0)

    @pl.when(l == 0)
    def _():
        resid_ref[...] = x_ref[...]

    w = _load_weights(w_refs)
    y = _block_compute(resid_ref[...], bias_ref[...], w,
                       prenorm=True, eps=eps, scale=scale)
    resid_ref[...] = y

    @pl.when(l == pl.num_programs(0) - 1)
    def _():
        tok_ref[...] = y
        ng = ng_ref[...]
        nb = nb_ref[...]
        for b in range(batch):                       # static, batch=2
            cls_ref[b:b + 1, :] = _ln(y[b * seq:b * seq + 1, :], ng, nb, eps)


def _bert_stack_kernel(x_ref, bias_ref, pw_ref, pb_ref, lw_ref, lb_ref, *rest,
                       eps, scale, batch, seq):
    """All BERT layers in one call; pooler + 6 local tanh branches fused into
    the last-layer epilogue."""
    w_refs = rest[:12]
    pool_ref, loc_ref, resid_ref = rest[12], rest[13], rest[14]
    l = pl.program_id(0)

    @pl.when(l == 0)
    def _():
        resid_ref[...] = x_ref[...]

    w = _load_weights(w_refs)
    y = _block_compute(resid_ref[...], bias_ref[...], w,
                       prenorm=False, eps=eps, scale=scale)
    resid_ref[...] = y

    @pl.when(l == pl.num_programs(0) - 1)
    def _():
        pw = pw_ref[...]
        pb = pb_ref[...]
        lw = lw_ref[...]
        lb = lb_ref[...]
        for b in range(batch):                       # static, batch=2
            cls = y[b * seq:b * seq + 1, :]          # (1, D)
            pooled = jnp.tanh(_mm(cls, pw) + pb)
            pool_ref[b:b + 1, :] = pooled
            loc_ref[b:b + 1, :] = jnp.tanh(_mm(pooled, lw) + lb)


def _vit_local_kernel(x_ref, bias_ref, ng_ref, nb_ref, *rest,
                      eps, scale, batch, seq):
    """One of the 6 ViT local blocks per grid step (independent -> parallel).
    Emits only the LayerNorm'ed cls rows."""
    w_refs = rest[:12]
    cls_ref = rest[12]
    w = _load_weights(w_refs)
    y = _block_compute(x_ref[...], bias_ref[...], w,
                       prenorm=True, eps=eps, scale=scale)
    ng = ng_ref[...]
    nb = nb_ref[...]
    for b in range(batch):
        cls_ref[b:b + 1, :] = _ln(y[b * seq:b * seq + 1, :], ng, nb, eps)


# ------------------------------ spec helpers ---------------------------------
def _weight_specs():
    """Stacked per-layer weights: leading (squeezed) layer dim, one DMA per step."""
    return [pl.BlockSpec((pl.Squeezed(),) + _W_SHAPES[k], lambda g: (g, 0, 0))
            for k in WEIGHT_FIELDS]


def _const_spec(shape):
    """Layer-invariant input: constant index_map -> fetched once, stays resident."""
    return pl.BlockSpec(shape, lambda g, _n=len(shape): (0,) * _n)


def _batch_block_bias(batch, seq, key_mask=None):
    """(R, R) additive attention bias: block-diagonal batch isolation
    (enables folding the batch into the rows of one 2-D attention) plus an
    optional key padding mask (BERT)."""
    r = batch * seq
    rb = jnp.arange(r, dtype=jnp.int32) // seq
    bias = jnp.where(rb[:, None] == rb[None, :], 0.0, -1e9).astype(jnp.float32)
    if key_mask is not None:
        kb = jnp.where(key_mask.reshape(r) > 0, 0.0, -1e9).astype(jnp.float32)
        bias = bias + kb[None, :]
    return bias


# ------------------------------ branch forwards ------------------------------
def extract_patches(img):
    """img NCHW -> (B, N_PATCH, C*PATCH*PATCH). (pure reshape/transpose glue)"""
    b = img.shape[0]
    gh, gw = IMG_H // PATCH, IMG_W // PATCH
    x = img.reshape(b, IMG_C, gh, PATCH, gw, PATCH)
    x = x.transpose(0, 2, 4, 1, 3, 5)
    return x.reshape(b, gh * gw, IMG_C * PATCH * PATCH)


def vit_forward(img, p):
    """ViT_B_patch16.forward -> (global_out, [6 local outs])."""
    B = img.shape[0]
    scale = 1.0 / math.sqrt(DH)

    # Patch embed + cls + pos: tiny glue, left to XLA (no extra pallas_calls).
    patches = extract_patches(img)
    x = jnp.einsum("bpc,cd->bpd", patches, p["patch_w"]) + p["patch_b"]
    cls = jnp.broadcast_to(p["cls"], (B, 1, D))
    x = jnp.concatenate([cls, x], axis=1) + p["pos"]              # (B, 25, D)

    R = B * SEQ_IMG
    x2 = x.reshape(R, D).astype(jnp.float32)
    bias = _batch_block_bias(B, SEQ_IMG)

    wp = p["blocks"]
    tok, global_cls = pl.pallas_call(
        functools.partial(_vit_stack_kernel, eps=1e-6, scale=scale,
                          batch=B, seq=SEQ_IMG),
        out_shape=(jax.ShapeDtypeStruct((R, D), jnp.float32),
                   jax.ShapeDtypeStruct((B, D), jnp.float32)),
        grid=(VIT_DEPTH,),
        in_specs=[_const_spec((R, D)), _const_spec((R, R)),
                  _const_spec((1, D)), _const_spec((1, D))] + _weight_specs(),
        out_specs=(_const_spec((R, D)), _const_spec((B, D))),
        scratch_shapes=[pltpu.VMEM((R, D), jnp.float32)],
        compiler_params=pltpu.CompilerParams(
            dimension_semantics=("arbitrary",)),
    )(x2, bias, p["norm_g"], p["norm_b"], *[wp[k] for k in WEIGHT_FIELDS])

    tok = tok.reshape(B, SEQ_IMG, D)

    # 6 local branches (cls + contiguous stripe), one fused call, grid over the
    # local index (parallel: 6 independent steps for megacore on v7x).
    # TODO(synk): exact local-stripe partition of the original VisionTransformer
    # source is not provided; cls + contiguous stripe per local block is used.
    stripes = [jnp.concatenate([tok[:, :1], tok[:, 1 + i * STRIPE:1 + (i + 1) * STRIPE]],
                               axis=1) for i in range(N_LOCAL)]
    Sl = 1 + STRIPE
    Rl = B * Sl
    xl = jnp.stack(stripes, axis=0).reshape(N_LOCAL, Rl, D).astype(jnp.float32)
    bias_l = _batch_block_bias(B, Sl)

    wl = p["local_blocks"]
    loc_cls = pl.pallas_call(
        functools.partial(_vit_local_kernel, eps=1e-6, scale=scale,
                          batch=B, seq=Sl),
        out_shape=jax.ShapeDtypeStruct((N_LOCAL, B, D), jnp.float32),
        grid=(N_LOCAL,),
        in_specs=[pl.BlockSpec((pl.Squeezed(), Rl, D), lambda i: (i, 0, 0)),
                  _const_spec((Rl, Rl)),
                  _const_spec((1, D)), _const_spec((1, D))] + _weight_specs(),
        out_specs=pl.BlockSpec((pl.Squeezed(), B, D), lambda i: (i, 0, 0)),
        compiler_params=pltpu.CompilerParams(
            dimension_semantics=("parallel",)),
    )(xl, bias_l, p["norm_g"], p["norm_b"], *[wl[k] for k in WEIGHT_FIELDS])

    return global_cls, [loc_cls[i] for i in range(N_LOCAL)]


def bert_forward(txt, mask, p):
    """Bert_Linear_txt.forward -> (pooled, [6 local outs])."""
    B, S = txt.shape
    scale = 1.0 / math.sqrt(DH)

    # Embedding gather + embedding LayerNorm: plain jnp glue (XLA fuses).
    we = p["word_emb"][txt]
    pe = p["pos_emb"][:S][None, :, :]
    te = p["type_emb"][0][None, None, :]
    emb = we + pe + te
    mu = jnp.mean(emb, axis=-1, keepdims=True)
    var = jnp.mean(jnp.square(emb - mu), axis=-1, keepdims=True)
    x = (emb - mu) * jax.lax.rsqrt(var + 1e-12) * p["emb_ln_g"] + p["emb_ln_b"]

    R = B * S
    x2 = x.reshape(R, D).astype(jnp.float32)
    # Additive bias built ONCE per forward: batch isolation + key padding mask.
    bias = _batch_block_bias(B, S, key_mask=mask)

    wl = p["layers"]
    pooled, loc = pl.pallas_call(
        functools.partial(_bert_stack_kernel, eps=1e-12, scale=scale,
                          batch=B, seq=S),
        out_shape=(jax.ShapeDtypeStruct((B, D), jnp.float32),
                   jax.ShapeDtypeStruct((B, N_LOCAL * D), jnp.float32)),
        grid=(BERT_LAYERS,),
        in_specs=[_const_spec((R, D)), _const_spec((R, R)),
                  _const_spec((D, D)), _const_spec((1, D)),
                  _const_spec((D, N_LOCAL * D)), _const_spec((1, N_LOCAL * D))]
                 + _weight_specs(),
        out_specs=(_const_spec((B, D)), _const_spec((B, N_LOCAL * D))),
        scratch_shapes=[pltpu.VMEM((R, D), jnp.float32)],
        compiler_params=pltpu.CompilerParams(
            dimension_semantics=("arbitrary",)),
    )(x2, bias, p["pool_w"], p["pool_b"], p["loc_w"], p["loc_b"],
      *[wl[k] for k in WEIGHT_FIELDS])

    return pooled, [loc[:, i * D:(i + 1) * D] for i in range(N_LOCAL)]


@jax.jit
def vit_bert_plus_forward(img, txt, mask, params):
    img_f4, img_locals = vit_forward(img, params["vit"])
    txt_f4, txt_locals = bert_forward(txt, mask, params["bert"])
    return img_f4, txt_f4, img_locals, txt_locals


# ------------------------- deterministic init --------------------------------
def init_params():
    key = jax.random.PRNGKey(0)
    counter = [0]

    def nrm(shape, scale=0.02):
        counter[0] += 1
        return scale * jax.random.normal(jax.random.fold_in(key, counter[0]),
                                         shape, dtype=jnp.float32)

    zeros = lambda s: jnp.zeros(s, dtype=jnp.float32)
    ones = lambda s: jnp.ones(s, dtype=jnp.float32)

    def block_params():
        """Per-block parameters in the logical (separate wq/wk/wv) layout."""
        return dict(ln1_g=ones((D,)), ln1_b=zeros((D,)),
                    ln2_g=ones((D,)), ln2_b=zeros((D,)),
                    wq=nrm((D, D)), bq=zeros((D,)),
                    wk=nrm((D, D)), bk=zeros((D,)),
                    wv=nrm((D, D)), bv=zeros((D,)),
                    wo=nrm((D, D)), bo=zeros((D,)),
                    fc1_w=nrm((D, MLP)), fc1_b=zeros((MLP,)),
                    fc2_w=nrm((MLP, D)), fc2_b=zeros((D,)))

    def pack_blocks(blocks):
        """Stack logical blocks (leading layer/local dim) into the fused-kernel
        layout.  Matmul RHS weights are bf16; QKV padded to 128 lanes; biases
        and LN params stay f32."""
        pad = QKV_PAD - 3 * D

        def stack(fn, dtype=None):
            a = jnp.stack([fn(b) for b in blocks], axis=0)
            return a.astype(dtype) if dtype is not None else a

        return dict(
            ln1g=stack(lambda b: b["ln1_g"].reshape(1, D)),
            ln1b=stack(lambda b: b["ln1_b"].reshape(1, D)),
            wqkv=stack(lambda b: jnp.pad(
                jnp.concatenate([b["wq"], b["wk"], b["wv"]], axis=1),
                ((0, 0), (0, pad))), jnp.bfloat16),
            bqkv=stack(lambda b: jnp.pad(
                jnp.concatenate([b["bq"], b["bk"], b["bv"]]).reshape(1, 3 * D),
                ((0, 0), (0, pad)))),
            wo=stack(lambda b: b["wo"], jnp.bfloat16),
            bo=stack(lambda b: b["bo"].reshape(1, D)),
            ln2g=stack(lambda b: b["ln2_g"].reshape(1, D)),
            ln2b=stack(lambda b: b["ln2_b"].reshape(1, D)),
            w1=stack(lambda b: b["fc1_w"], jnp.bfloat16),
            b1=stack(lambda b: b["fc1_b"].reshape(1, MLP)),
            w2=stack(lambda b: b["fc2_w"], jnp.bfloat16),
            b2=stack(lambda b: b["fc2_b"].reshape(1, D)),
        )

    vit_blocks_logical = [block_params() for _ in range(VIT_DEPTH)]
    # Local blocks load blocks[-1].state_dict() in the original model: separate
    # parameter tensors with identical values; stacked with leading dim 6.
    local_blocks_logical = [vit_blocks_logical[-1] for _ in range(N_LOCAL)]

    vit = dict(
        patch_w=nrm((IMG_C * PATCH * PATCH, D)), patch_b=zeros((D,)),
        cls=nrm((1, 1, D)), pos=nrm((1, SEQ_IMG, D)),
        blocks=pack_blocks(vit_blocks_logical),
        local_blocks=pack_blocks(local_blocks_logical),
        norm_g=ones((1, D)), norm_b=zeros((1, D)),
    )

    bert = dict(
        word_emb=nrm((VOCAB, D)), pos_emb=nrm((MAX_POS, D)), type_emb=nrm((2, D)),
        emb_ln_g=ones((D,)), emb_ln_b=zeros((D,)),
        layers=pack_blocks([block_params() for _ in range(BERT_LAYERS)]),
        pool_w=nrm((D, D)).astype(jnp.bfloat16), pool_b=zeros((1, D)),
        loc_w=jnp.concatenate([nrm((D, D)) for _ in range(N_LOCAL)],
                              axis=1).astype(jnp.bfloat16),       # (D, 6D) fused
        loc_b=zeros((1, N_LOCAL * D)),
    )
    return dict(vit=vit, bert=bert)


# --------------------------------- main ---------------------------------------
if __name__ == "__main__":
    params = init_params()

    key = jax.random.PRNGKey(0)
    k_img, k_txt = jax.random.split(key)
    img = jax.random.normal(k_img, (BATCH, IMG_C, IMG_H, IMG_W), dtype=jnp.float32)
    txt = jax.random.randint(k_txt, (BATCH, TXT_SEQ), 0, VOCAB, dtype=jnp.int32)
    mask = jnp.ones((BATCH, TXT_SEQ), dtype=jnp.int32).at[:, TXT_SEQ - 2:].set(0)

    img_f4, txt_f4, img_locals, txt_locals = vit_bert_plus_forward(
        img, txt, mask, params)

    jax.block_until_ready((img_f4, txt_f4, img_locals, txt_locals))
    assert img_f4.shape == (BATCH, D)
    assert txt_f4.shape == (BATCH, D)
    assert len(img_locals) == N_LOCAL and all(l.shape == (BATCH, D) for l in img_locals)
    assert len(txt_locals) == N_LOCAL and all(l.shape == (BATCH, D) for l in txt_locals)
    print("KERNEL_OK")
</pallas_src>

<mosaic_0001>
module attributes {stable_mosaic.version = 11 : i64} {
  func.func @_vit_stack_kernel(%arg0: i32, %arg1: memref<50x32xf32, #tpu.memory_space<vmem>>, %arg2: memref<50x50xf32, #tpu.memory_space<vmem>>, %arg3: memref<1x32xf32, #tpu.memory_space<vmem>>, %arg4: memref<1x32xf32, #tpu.memory_space<vmem>>, %arg5: memref<1x1x32xf32, #tpu.memory_space<vmem>>, %arg6: memref<1x1x32xf32, #tpu.memory_space<vmem>>, %arg7: memref<1x32x128xbf16, #tpu.memory_space<vmem>>, %arg8: memref<1x1x128xf32, #tpu.memory_space<vmem>>, %arg9: memref<1x32x32xbf16, #tpu.memory_space<vmem>>, %arg10: memref<1x1x32xf32, #tpu.memory_space<vmem>>, %arg11: memref<1x1x32xf32, #tpu.memory_space<vmem>>, %arg12: memref<1x1x32xf32, #tpu.memory_space<vmem>>, %arg13: memref<1x32x128xbf16, #tpu.memory_space<vmem>>, %arg14: memref<1x1x128xf32, #tpu.memory_space<vmem>>, %arg15: memref<1x128x32xbf16, #tpu.memory_space<vmem>>, %arg16: memref<1x1x32xf32, #tpu.memory_space<vmem>>, %arg17: memref<50x32xf32, #tpu.memory_space<vmem>>, %arg18: memref<2x32xf32, #tpu.memory_space<vmem>>, %arg19: memref<50x32xf32, #tpu.memory_space<vmem>>) attributes {dimension_semantics = [#tpu.dimension_semantics<arbitrary>], iteration_bounds = array<i64: 2>, scalar_prefetch = 0 : i64, scratch_operands = 1 : i64, tpu.core_type = #tpu.core_type<tc>, window_params = [{pipeline_mode = #tpu.pipeline_mode<synchronous>, transform_indices = @transform_0, window_bounds = array<i64: 50, 32>}, {pipeline_mode = #tpu.pipeline_mode<synchronous>, transform_indices = @transform_1, window_bounds = array<i64: 50, 50>}, {pipeline_mode = #tpu.pipeline_mode<synchronous>, transform_indices = @transform_2, window_bounds = array<i64: 1, 32>}, {pipeline_mode = #tpu.pipeline_mode<synchronous>, transform_indices = @transform_3, window_bounds = array<i64: 1, 32>}, {transform_indices = @transform_4, window_bounds = array<i64: 1, 1, 32>}, {transform_indices = @transform_5, window_bounds = array<i64: 1, 1, 32>}, {transform_indices = @transform_6, window_bounds = array<i64: 1, 32, 128>}, {transform_indices = @transform_7, window_bounds = array<i64: 1, 1, 128>}, {transform_indices = @transform_8, window_bounds = array<i64: 1, 32, 32>}, {transform_indices = @transform_9, window_bounds = array<i64: 1, 1, 32>}, {transform_indices = @transform_10, window_bounds = array<i64: 1, 1, 32>}, {transform_indices = @transform_11, window_bounds = array<i64: 1, 1, 32>}, {transform_indices = @transform_12, window_bounds = array<i64: 1, 32, 128>}, {transform_indices = @transform_13, window_bounds = array<i64: 1, 1, 128>}, {transform_indices = @transform_14, window_bounds = array<i64: 1, 128, 32>}, {transform_indices = @transform_15, window_bounds = array<i64: 1, 1, 32>}, {pipeline_mode = #tpu.pipeline_mode<synchronous>, transform_indices = @transform_16, window_bounds = array<i64: 50, 32>}, {pipeline_mode = #tpu.pipeline_mode<synchronous>, transform_indices = @transform_17, window_bounds = array<i64: 2, 32>}]} {
    %c0_i32 = arith.constant 0 : i32
    %0 = arith.cmpi eq, %arg0, %c0_i32 : i32
    %1 = arith.extui %0 : i1 to i32
    %c0_i32_0 = arith.constant 0 : i32
    %2 = arith.cmpi ne, %1, %c0_i32_0 : i32
    scf.if %2 {
      %c0_83 = arith.constant 0 : index
      %c0_84 = arith.constant 0 : index
      %209 = vector.load %arg1[%c0_83, %c0_84] : memref<50x32xf32, #tpu.memory_space<vmem>>, vector<50x32xf32>
      %c0_85 = arith.constant 0 : index
      %c0_86 = arith.constant 0 : index
      %210 = vector.load %arg19[%c0_85, %c0_86] : memref<50x32xf32, #tpu.memory_space<vmem>>, vector<50x32xf32>
      tpu.vector_store %arg19[%c0_85, %c0_86], %209 {strides = array<i32>} : memref<50x32xf32, #tpu.memory_space<vmem>>, vector<50x32xf32>,
    } else {
    }
    %c0 = arith.constant 0 : index
    %c0_1 = arith.constant 0 : index
    %c0_2 = arith.constant 0 : index
    %3 = vector.load %arg5[%c0, %c0_1, %c0_2] : memref<1x1x32xf32, #tpu.memory_space<vmem>>, vector<1x1x32xf32>
    %4 = vector.shape_cast %3 : vector<1x1x32xf32> to vector<1x32xf32>
    %c0_3 = arith.constant 0 : index
    %c0_4 = arith.constant 0 : index
    %c0_5 = arith.constant 0 : index
    %5 = vector.load %arg6[%c0_3, %c0_4, %c0_5] : memref<1x1x32xf32, #tpu.memory_space<vmem>>, vector<1x1x32xf32>
    %6 = vector.shape_cast %5 : vector<1x1x32xf32> to vector<1x32xf32>
    %c0_6 = arith.constant 0 : index
    %c0_7 = arith.constant 0 : index
    %c0_8 = arith.constant 0 : index
    %7 = vector.load %arg7[%c0_6, %c0_7, %c0_8] : memref<1x32x128xbf16, #tpu.memory_space<vmem>>, vector<1x32x128xbf16>
    %8 = vector.shape_cast %7 : vector<1x32x128xbf16> to vector<32x128xbf16>
    %c0_9 = arith.constant 0 : index
    %c0_10 = arith.constant 0 : index
    %c0_11 = arith.constant 0 : index
    %9 = vector.load %arg8[%c0_9, %c0_10, %c0_11] : memref<1x1x128xf32, #tpu.memory_space<vmem>>, vector<1x1x128xf32>
    %10 = vector.shape_cast %9 : vector<1x1x128xf32> to vector<1x128xf32>
    %c0_12 = arith.constant 0 : index
    %c0_13 = arith.constant 0 : index
    %c0_14 = arith.constant 0 : index
    %11 = vector.load %arg9[%c0_12, %c0_13, %c0_14] : memref<1x32x32xbf16, #tpu.memory_space<vmem>>, vector<1x32x32xbf16>
    %12 = vector.shape_cast %11 : vector<1x32x32xbf16> to vector<32x32xbf16>
    %c0_15 = arith.constant 0 : index
    %c0_16 = arith.constant 0 : index
    %c0_17 = arith.constant 0 : index
    %13 = vector.load %arg10[%c0_15, %c0_16, %c0_17] : memref<1x1x32xf32, #tpu.memory_space<vmem>>, vector<1x1x32xf32>
    %14 = vector.shape_cast %13 : vector<1x1x32xf32> to vector<1x32xf32>
    %c0_18 = arith.constant 0 : index
    %c0_19 = arith.constant 0 : index
    %c0_20 = arith.constant 0 : index
    %15 = vector.load %arg11[%c0_18, %c0_19, %c0_20] : memref<1x1x32xf32, #tpu.memory_space<vmem>>, vector<1x1x32xf32>
    %16 = vector.shape_cast %15 : vector<1x1x32xf32> to vector<1x32xf32>
    %c0_21 = arith.constant 0 : index
    %c0_22 = arith.constant 0 : index
    %c0_23 = arith.constant 0 : index
    %17 = vector.load %arg12[%c0_21, %c0_22, %c0_23] : memref<1x1x32xf32, #tpu.memory_space<vmem>>, vector<1x1x32xf32>
    %18 = vector.shape_cast %17 : vector<1x1x32xf32> to vector<1x32xf32>
    %c0_24 = arith.constant 0 : index
    %c0_25 = arith.constant 0 : index
    %c0_26 = arith.constant 0 : index
    %19 = vector.load %arg13[%c0_24, %c0_25, %c0_26] : memref<1x32x128xbf16, #tpu.memory_space<vmem>>, vector<1x32x128xbf16>
    %20 = vector.shape_cast %19 : vector<1x32x128xbf16> to vector<32x128xbf16>
    %c0_27 = arith.constant 0 : index
    %c0_28 = arith.constant 0 : index
    %c0_29 = arith.constant 0 : index
    %21 = vector.load %arg14[%c0_27, %c0_28, %c0_29] : memref<1x1x128xf32, #tpu.memory_space<vmem>>, vector<1x1x128xf32>
    %22 = vector.shape_cast %21 : vector<1x1x128xf32> to vector<1x128xf32>
    %c0_30 = arith.constant 0 : index
    %c0_31 = arith.constant 0 : index
    %c0_32 = arith.constant 0 : index
    %23 = vector.load %arg15[%c0_30, %c0_31, %c0_32] : memref<1x128x32xbf16, #tpu.memory_space<vmem>>, vector<1x128x32xbf16>
    %24 = vector.shape_cast %23 : vector<1x128x32xbf16> to vector<128x32xbf16>
    %c0_33 = arith.constant 0 : index
    %c0_34 = arith.constant 0 : index
    %c0_35 = arith.constant 0 : index
    %25 = vector.load %arg16[%c0_33, %c0_34, %c0_35] : memref<1x1x32xf32, #tpu.memory_space<vmem>>, vector<1x1x32xf32>
    %26 = vector.shape_cast %25 : vector<1x1x32xf32> to vector<1x32xf32>
    %c0_36 = arith.constant 0 : index
    %c0_37 = arith.constant 0 : index
    %27 = vector.load %arg19[%c0_36, %c0_37] : memref<50x32xf32, #tpu.memory_space<vmem>>, vector<50x32xf32>
    %c0_38 = arith.constant 0 : index
    %c0_39 = arith.constant 0 : index
    %28 = vector.load %arg2[%c0_38, %c0_39] : memref<50x50xf32, #tpu.memory_space<vmem>>, vector<50x50xf32>
    %cst = arith.constant dense<0.000000e+00> : vector<50xf32>
    %29 = vector.multi_reduction <add>, %27, %cst [1] : vector<50x32xf32> to vector<50xf32>
    %30 = vector.shape_cast %29 : vector<50xf32> to vector<50x1xf32>
    %cst_40 = arith.constant 3.200000e+01 : f32
    %31 = vector.broadcast %cst_40 : f32 to vector<50x1xf32>
    %32 = arith.divf %30, %31 : vector<50x1xf32>
    %33 = vector.broadcast %32 : vector<50x1xf32> to vector<50x32xf32>
    %34 = arith.subf %27, %33 : vector<50x32xf32>
    %35 = arith.mulf %34, %34 : vector<50x32xf32>
    %cst_41 = arith.constant dense<0.000000e+00> : vector<50xf32>
    %36 = vector.multi_reduction <add>, %35, %cst_41 [1] : vector<50x32xf32> to vector<50xf32>
    %37 = vector.shape_cast %36 : vector<50xf32> to vector<50x1xf32>
    %cst_42 = arith.constant 3.200000e+01 : f32
    %38 = vector.broadcast %cst_42 : f32 to vector<50x1xf32>
    %39 = arith.divf %37, %38 : vector<50x1xf32>
    %40 = vector.broadcast %32 : vector<50x1xf32> to vector<50x32xf32>
    %41 = arith.subf %27, %40 : vector<50x32xf32>
    %cst_43 = arith.constant 9.99999997E-7 : f32
    %42 = vector.broadcast %cst_43 : f32 to vector<50x1xf32>
    %43 = arith.addf %39, %42 : vector<50x1xf32>
    %44 = math.rsqrt %43 : vector<50x1xf32>
    %45 = vector.broadcast %44 : vector<50x1xf32> to vector<50x32xf32>
    %46 = arith.mulf %41, %45 : vector<50x32xf32>
    %47 = vector.broadcast %4 : vector<1x32xf32> to vector<50x32xf32>
    %48 = arith.mulf %46, %47 : vector<50x32xf32>
    %49 = vector.broadcast %6 : vector<1x32xf32> to vector<50x32xf32>
    %50 = arith.addf %48, %49 : vector<50x32xf32>
    %51 = arith.truncf %50 : vector<50x32xf32> to vector<50x32xbf16>
    %cst_44 = arith.constant dense<0.000000e+00> : vector<50x128xf32>
    %52 = tpu.matmul %51, %8, %cst_44 {dimension_numbers = #tpu.dot_dimension_numbers<[1], [0], [0], [1], [0, 0, 1, 1], [], []>} : vector<50x32xbf16>, vector<32x128xbf16>, vector<50x128xf32> -> vector<50x128xf32>
    %53 = vector.broadcast %10 : vector<1x128xf32> to vector<50x128xf32>
    %54 = arith.addf %52, %53 : vector<50x128xf32>
    %55 = vector.extract_strided_slice %54 {offsets = [0, 0], sizes = [50, 8], strides = [1, 1]} : vector<50x128xf32> to vector<50x8xf32>
    %56 = vector.extract_strided_slice %54 {offsets = [0, 32], sizes = [50, 8], strides = [1, 1]} : vector<50x128xf32> to vector<50x8xf32>
    %57 = vector.extract_strided_slice %54 {offsets = [0, 64], sizes = [50, 8], strides = [1, 1]} : vector<50x128xf32> to vector<50x8xf32>
    %58 = arith.truncf %55 : vector<50x8xf32> to vector<50x8xbf16>
    %59 = arith.truncf %56 : vector<50x8xf32> to vector<50x8xbf16>
    %cst_45 = arith.constant dense<0.000000e+00> : vector<50x50xf32>
    %60 = tpu.matmul %58, %59, %cst_45 {dimension_numbers = #tpu.dot_dimension_numbers<[1], [1], [0], [0], [0, 0, 1, 0], [], []>} : vector<50x8xbf16>, vector<50x8xbf16>, vector<50x50xf32> -> vector<50x50xf32>
    %cst_46 = arith.constant 0.353553385 : f32
    %61 = vector.broadcast %cst_46 : f32 to vector<50x50xf32>
    %62 = arith.mulf %60, %61 : vector<50x50xf32>
    %63 = arith.addf %62, %28 : vector<50x50xf32>
    %cst_47 = arith.constant dense<0xFF800000> : vector<50xf32>
    %64 = vector.multi_reduction <maximumf>, %63, %cst_47 [1] : vector<50x50xf32> to vector<50xf32>
    %65 = vector.shape_cast %64 : vector<50xf32> to vector<50x1xf32>
    %66 = vector.broadcast %65 : vector<50x1xf32> to vector<50x50xf32>
    %67 = arith.subf %63, %66 : vector<50x50xf32>
    %68 = math.exp %67 : vector<50x50xf32>
    %cst_48 = arith.constant dense<0.000000e+00> : vector<50xf32>
    %69 = vector.multi_reduction <add>, %68, %cst_48 [1] : vector<50x50xf32> to vector<50xf32>
    %70 = vector.shape_cast %69 : vector<50xf32> to vector<50x1xf32>
    %71 = tpu.reciprocal %70 {approx = true} : vector<50x1xf32> -> vector<50x1xf32>
    %72 = vector.broadcast %71 : vector<50x1xf32> to vector<50x50xf32>
    %73 = arith.mulf %68, %72 : vector<50x50xf32>
    %74 = arith.truncf %73 : vector<50x50xf32> to vector<50x50xbf16>
    %75 = arith.truncf %57 : vector<50x8xf32> to vector<50x8xbf16>
    %cst_49 = arith.constant dense<0.000000e+00> : vector<50x8xf32>
    %76 = tpu.matmul %74, %75, %cst_49 {dimension_numbers = #tpu.dot_dimension_numbers<[1], [0], [0], [1], [0, 0, 1, 1], [], []>} : vector<50x50xbf16>, vector<50x8xbf16>, vector<50x8xf32> -> vector<50x8xf32>
    %77 = vector.extract_strided_slice %12 {offsets = [0, 0], sizes = [8, 32], strides = [1, 1]} : vector<32x32xbf16> to vector<8x32xbf16>
    %78 = arith.truncf %76 : vector<50x8xf32> to vector<50x8xbf16>
    %cst_50 = arith.constant dense<0.000000e+00> : vector<50x32xf32>
    %79 = tpu.matmul %78, %77, %cst_50 {dimension_numbers = #tpu.dot_dimension_numbers<[1], [0], [0], [1], [0, 0, 1, 1], [], []>} : vector<50x8xbf16>, vector<8x32xbf16>, vector<50x32xf32> -> vector<50x32xf32>
    %80 = vector.extract_strided_slice %54 {offsets = [0, 8], sizes = [50, 8], strides = [1, 1]} : vector<50x128xf32> to vector<50x8xf32>
    %81 = vector.extract_strided_slice %54 {offsets = [0, 40], sizes = [50, 8], strides = [1, 1]} : vector<50x128xf32> to vector<50x8xf32>
    %82 = vector.extract_strided_slice %54 {offsets = [0, 72], sizes = [50, 8], strides = [1, 1]} : vector<50x128xf32> to vector<50x8xf32>
    %83 = arith.truncf %80 : vector<50x8xf32> to vector<50x8xbf16>
    %84 = arith.truncf %81 : vector<50x8xf32> to vector<50x8xbf16>
    %cst_51 = arith.constant dense<0.000000e+00> : vector<50x50xf32>
    %85 = tpu.matmul %83, %84, %cst_51 {dimension_numbers = #tpu.dot_dimension_numbers<[1], [1], [0], [0], [0, 0, 1, 0], [], []>} : vector<50x8xbf16>, vector<50x8xbf16>, vector<50x50xf32> -> vector<50x50xf32>
    %cst_52 = arith.constant 0.353553385 : f32
    %86 = vector.broadcast %cst_52 : f32 to vector<50x50xf32>
    %87 = arith.mulf %85, %86 : vector<50x50xf32>
    %88 = arith.addf %87, %28 : vector<50x50xf32>
    %cst_53 = arith.constant dense<0xFF800000> : vector<50xf32>
    %89 = vector.multi_reduction <maximumf>, %88, %cst_53 [1] : vector<50x50xf32> to vector<50xf32>
    %90 = vector.shape_cast %89 : vector<50xf32> to vector<50x1xf32>
    %91 = vector.broadcast %90 : vector<50x1xf32> to vector<50x50xf32>
    %92 = arith.subf %88, %91 : vector<50x50xf32>
    %93 = math.exp %92 : vector<50x50xf32>
    %cst_54 = arith.constant dense<0.000000e+00> : vector<50xf32>
    %94 = vector.multi_reduction <add>, %93, %cst_54 [1] : vector<50x50xf32> to vector<50xf32>
    %95 = vector.shape_cast %94 : vector<50xf32> to vector<50x1xf32>
    %96 = tpu.reciprocal %95 {approx = true} : vector<50x1xf32> -> vector<50x1xf32>
    %97 = vector.broadcast %96 : vector<50x1xf32> to vector<50x50xf32>
    %98 = arith.mulf %93, %97 : vector<50x50xf32>
    %99 = arith.truncf %98 : vector<50x50xf32> to vector<50x50xbf16>
    %100 = arith.truncf %82 : vector<50x8xf32> to vector<50x8xbf16>
    %cst_55 = arith.constant dense<0.000000e+00> : vector<50x8xf32>
    %101 = tpu.matmul %99, %100, %cst_55 {dimension_numbers = #tpu.dot_dimension_numbers<[1], [0], [0], [1], [0, 0, 1, 1], [], []>} : vector<50x50xbf16>, vector<50x8xbf16>, vector<50x8xf32> -> vector<50x8xf32>
    %102 = vector.extract_strided_slice %12 {offsets = [8, 0], sizes = [8, 32], strides = [1, 1]} : vector<32x32xbf16> to vector<8x32xbf16>
    %103 = arith.truncf %101 : vector<50x8xf32> to vector<50x8xbf16>
    %cst_56 = arith.constant dense<0.000000e+00> : vector<50x32xf32>
    %104 = tpu.matmul %103, %102, %cst_56 {dimension_numbers = #tpu.dot_dimension_numbers<[1], [0], [0], [1], [0, 0, 1, 1], [], []>} : vector<50x8xbf16>, vector<8x32xbf16>, vector<50x32xf32> -> vector<50x32xf32>
    %105 = arith.addf %79, %104 : vector<50x32xf32>
    %106 = vector.extract_strided_slice %54 {offsets = [0, 16], sizes = [50, 8], strides = [1, 1]} : vector<50x128xf32> to vector<50x8xf32>
    %107 = vector.extract_strided_slice %54 {offsets = [0, 48], sizes = [50, 8], strides = [1, 1]} : vector<50x128xf32> to vector<50x8xf32>
    %108 = vector.extract_strided_slice %54 {offsets = [0, 80], sizes = [50, 8], strides = [1, 1]} : vector<50x128xf32> to vector<50x8xf32>
    %109 = arith.truncf %106 : vector<50x8xf32> to vector<50x8xbf16>
    %110 = arith.truncf %107 : vector<50x8xf32> to vector<50x8xbf16>
    %cst_57 = arith.constant dense<0.000000e+00> : vector<50x50xf32>
    %111 = tpu.matmul %109, %110, %cst_57 {dimension_numbers = #tpu.dot_dimension_numbers<[1], [1], [0], [0], [0, 0, 1, 0], [], []>} : vector<50x8xbf16>, vector<50x8xbf16>, vector<50x50xf32> -> vector<50x50xf32>
    %cst_58 = arith.constant 0.353553385 : f32
    %112 = vector.broadcast %cst_58 : f32 to vector<50x50xf32>
    %113 = arith.mulf %111, %112 : vector<50x50xf32>
    %114 = arith.addf %113, %28 : vector<50x50xf32>
    %cst_59 = arith.constant dense<0xFF800000> : vector<50xf32>
    %115 = vector.multi_reduction <maximumf>, %114, %cst_59 [1] : vector<50x50xf32> to vector<50xf32>
    %116 = vector.shape_cast %115 : vector<50xf32> to vector<50x1xf32>
    %117 = vector.broadcast %116 : vector<50x1xf32> to vector<50x50xf32>
    %118 = arith.subf %114, %117 : vector<50x50xf32>
    %119 = math.exp %118 : vector<50x50xf32>
    %cst_60 = arith.constant dense<0.000000e+00> : vector<50xf32>
    %120 = vector.multi_reduction <add>, %119, %cst_60 [1] : vector<50x50xf32> to vector<50xf32>
    %121 = vector.shape_cast %120 : vector<50xf32> to vector<50x1xf32>
    %122 = tpu.reciprocal %121 {approx = true} : vector<50x1xf32> -> vector<50x1xf32>
    %123 = vector.broadcast %122 : vector<50x1xf32> to vector<50x50xf32>
    %124 = arith.mulf %119, %123 : vector<50x50xf32>
    %125 = arith.truncf %124 : vector<50x50xf32> to vector<50x50xbf16>
    %126 = arith.truncf %108 : vector<50x8xf32> to vector<50x8xbf16>
    %cst_61 = arith.constant dense<0.000000e+00> : vector<50x8xf32>
    %127 = tpu.matmul %125, %126, %cst_61 {dimension_numbers = #tpu.dot_dimension_numbers<[1], [0], [0], [1], [0, 0, 1, 1], [], []>} : vector<50x50xbf16>, vector<50x8xbf16>, vector<50x8xf32> -> vector<50x8xf32>
    %128 = vector.extract_strided_slice %12 {offsets = [16, 0], sizes = [8, 32], strides = [1, 1]} : vector<32x32xbf16> to vector<8x32xbf16>
    %129 = arith.truncf %127 : vector<50x8xf32> to vector<50x8xbf16>
    %cst_62 = arith.constant dense<0.000000e+00> : vector<50x32xf32>
    %130 = tpu.matmul %129, %128, %cst_62 {dimension_numbers = #tpu.dot_dimension_numbers<[1], [0], [0], [1], [0, 0, 1, 1], [], []>} : vector<50x8xbf16>, vector<8x32xbf16>, vector<50x32xf32> -> vector<50x32xf32>
    %131 = arith.addf %105, %130 : vector<50x32xf32>
    %132 = vector.extract_strided_slice %54 {offsets = [0, 24], sizes = [50, 8], strides = [1, 1]} : vector<50x128xf32> to vector<50x8xf32>
    %133 = vector.extract_strided_slice %54 {offsets = [0, 56], sizes = [50, 8], strides = [1, 1]} : vector<50x128xf32> to vector<50x8xf32>
    %134 = vector.extract_strided_slice %54 {offsets = [0, 88], sizes = [50, 8], strides = [1, 1]} : vector<50x128xf32> to vector<50x8xf32>
    %135 = arith.truncf %132 : vector<50x8xf32> to vector<50x8xbf16>
    %136 = arith.truncf %133 : vector<50x8xf32> to vector<50x8xbf16>
    %cst_63 = arith.constant dense<0.000000e+00> : vector<50x50xf32>
    %137 = tpu.matmul %135, %136, %cst_63 {dimension_numbers = #tpu.dot_dimension_numbers<[1], [1], [0], [0], [0, 0, 1, 0], [], []>} : vector<50x8xbf16>, vector<50x8xbf16>, vector<50x50xf32> -> vector<50x50xf32>
    %cst_64 = arith.constant 0.353553385 : f32
    %138 = vector.broadcast %cst_64 : f32 to vector<50x50xf32>
    %139 = arith.mulf %137, %138 : vector<50x50xf32>
    %140 = arith.addf %139, %28 : vector<50x50xf32>
    %cst_65 = arith.constant dense<0xFF800000> : vector<50xf32>
    %141 = vector.multi_reduction <maximumf>, %140, %cst_65 [1] : vector<50x50xf32> to vector<50xf32>
    %142 = vector.shape_cast %141 : vector<50xf32> to vector<50x1xf32>
    %143 = vector.broadcast %142 : vector<50x1xf32> to vector<50x50xf32>
    %144 = arith.subf %140, %143 : vector<50x50xf32>
    %145 = math.exp %144 : vector<50x50xf32>
    %cst_66 = arith.constant dense<0.000000e+00> : vector<50xf32>
    %146 = vector.multi_reduction <add>, %145, %cst_66 [1] : vector<50x50xf32> to vector<50xf32>
    %147 = vector.shape_cast %146 : vector<50xf32> to vector<50x1xf32>
    %148 = tpu.reciprocal %147 {approx = true} : vector<50x1xf32> -> vector<50x1xf32>
    %149 = vector.broadcast %148 : vector<50x1xf32> to vector<50x50xf32>
    %150 = arith.mulf %145, %149 : vector<50x50xf32>
    %151 = arith.truncf %150 : vector<50x50xf32> to vector<50x50xbf16>
    %152 = arith.truncf %134 : vector<50x8xf32> to vector<50x8xbf16>
    %cst_67 = arith.constant dense<0.000000e+00> : vector<50x8xf32>
    %153 = tpu.matmul %151, %152, %cst_67 {dimension_numbers = #tpu.dot_dimension_numbers<[1], [0], [0], [1], [0, 0, 1, 1], [], []>} : vector<50x50xbf16>, vector<50x8xbf16>, vector<50x8xf32> -> vector<50x8xf32>
    %154 = vector.extract_strided_slice %12 {offsets = [24, 0], sizes = [8, 32], strides = [1, 1]} : vector<32x32xbf16> to vector<8x32xbf16>
    %155 = arith.truncf %153 : vector<50x8xf32> to vector<50x8xbf16>
    %cst_68 = arith.constant dense<0.000000e+00> : vector<50x32xf32>
    %156 = tpu.matmul %155, %154, %cst_68 {dimension_numbers = #tpu.dot_dimension_numbers<[1], [0], [0], [1], [0, 0, 1, 1], [], []>} : vector<50x8xbf16>, vector<8x32xbf16>, vector<50x32xf32> -> vector<50x32xf32>
    %157 = arith.addf %131, %156 : vector<50x32xf32>
    %158 = vector.broadcast %14 : vector<1x32xf32> to vector<50x32xf32>
    %159 = arith.addf %157, %158 : vector<50x32xf32>
    %160 = arith.addf %27, %159 : vector<50x32xf32>
    %cst_69 = arith.constant dense<0.000000e+00> : vector<50xf32>
    %161 = vector.multi_reduction <add>, %160, %cst_69 [1] : vector<50x32xf32> to vector<50xf32>
    %162 = vector.shape_cast %161 : vector<50xf32> to vector<50x1xf32>
    %cst_70 = arith.constant 3.200000e+01 : f32
    %163 = vector.broadcast %cst_70 : f32 to vector<50x1xf32>
    %164 = arith.divf %162, %163 : vector<50x1xf32>
    %165 = vector.broadcast %164 : vector<50x1xf32> to vector<50x32xf32>
    %166 = arith.subf %160, %165 : vector<50x32xf32>
    %167 = arith.mulf %166, %166 : vector<50x32xf32>
    %cst_71 = arith.constant dense<0.000000e+00> : vector<50xf32>
    %168 = vector.multi_reduction <add>, %167, %cst_71 [1] : vector<50x32xf32> to vector<50xf32>
    %169 = vector.shape_cast %168 : vector<50xf32> to vector<50x1xf32>
    %cst_72 = arith.constant 3.200000e+01 : f32
    %170 = vector.broadcast %cst_72 : f32 to vector<50x1xf32>
    %171 = arith.divf %169, %170 : vector<50x1xf32>
    %172 = vector.broadcast %164 : vector<50x1xf32> to vector<50x32xf32>
    %173 = arith.subf %160, %172 : vector<50x32xf32>
    %cst_73 = arith.constant 9.99999997E-7 : f32
    %174 = vector.broadcast %cst_73 : f32 to vector<50x1xf32>
    %175 = arith.addf %171, %174 : vector<50x1xf32>
    %176 = math.rsqrt %175 : vector<50x1xf32>
    %177 = vector.broadcast %176 : vector<50x1xf32> to vector<50x32xf32>
    %178 = arith.mulf %173, %177 : vector<50x32xf32>
    %179 = vector.broadcast %16 : vector<1x32xf32> to vector<50x32xf32>
    %180 = arith.mulf %178, %179 : vector<50x32xf32>
    %181 = vector.broadcast %18 : vector<1x32xf32> to vector<50x32xf32>
    %182 = arith.addf %180, %181 : vector<50x32xf32>
    %183 = arith.truncf %182 : vector<50x32xf32> to vector<50x32xbf16>
    %cst_74 = arith.constant dense<0.000000e+00> : vector<50x128xf32>
    %184 = tpu.matmul %183, %20, %cst_74 {dimension_numbers = #tpu.dot_dimension_numbers<[1], [0], [0], [1], [0, 0, 1, 1], [], []>} : vector<50x32xbf16>, vector<32x128xbf16>, vector<50x128xf32> -> vector<50x128xf32>
    %185 = vector.broadcast %22 : vector<1x128xf32> to vector<50x128xf32>
    %186 = arith.addf %184, %185 : vector<50x128xf32>
    %cst_75 = arith.constant 5.000000e-01 : f32
    %187 = vector.broadcast %cst_75 : f32 to vector<50x128xf32>
    %188 = arith.mulf %187, %186 : vector<50x128xf32>
    %cst_76 = arith.constant 4.471500e-02 : f32
    %189 = vector.broadcast %cst_76 : f32 to vector<50x128xf32>
    %190 = arith.mulf %189, %186 : vector<50x128xf32>
    %191 = arith.mulf %190, %186 : vector<50x128xf32>
    %192 = arith.mulf %191, %186 : vector<50x128xf32>
    %193 = arith.addf %186, %192 : vector<50x128xf32>
    %cst_77 = arith.constant 0.797884583 : f32
    %194 = vector.broadcast %cst_77 : f32 to vector<50x128xf32>
    %195 = arith.mulf %194, %193 : vector<50x128xf32>
    %196 = math.tanh %195 : vector<50x128xf32>
    %cst_78 = arith.constant 1.000000e+00 : f32
    %197 = vector.broadcast %cst_78 : f32 to vector<50x128xf32>
    %198 = arith.addf %197, %196 : vector<50x128xf32>
    %199 = arith.mulf %188, %198 : vector<50x128xf32>
    %200 = arith.truncf %199 : vector<50x128xf32> to vector<50x128xbf16>
    %cst_79 = arith.constant dense<0.000000e+00> : vector<50x32xf32>
    %201 = tpu.matmul %200, %24, %cst_79 {dimension_numbers = #tpu.dot_dimension_numbers<[1], [0], [0], [1], [0, 0, 1, 1], [], []>} : vector<50x128xbf16>, vector<128x32xbf16>, vector<50x32xf32> -> vector<50x32xf32>
    %202 = vector.broadcast %26 : vector<1x32xf32> to vector<50x32xf32>
    %203 = arith.addf %201, %202 : vector<50x32xf32>
    %204 = arith.addf %160, %203 : vector<50x32xf32>
    %c0_80 = arith.constant 0 : index
    %c0_81 = arith.constant 0 : index
    %205 = vector.load %arg19[%c0_80, %c0_81] : memref<50x32xf32, #tpu.memory_space<vmem>>, vector<50x32xf32>
    tpu.vector_store %arg19[%c0_80, %c0_81], %204 {strides = array<i32>} : memref<50x32xf32, #tpu.memory_space<vmem>>, vector<50x32xf32>,
    %c1_i32 = arith.constant 1 : i32
    %206 = arith.cmpi eq, %arg0, %c1_i32 : i32
    %207 = arith.extui %206 : i1 to i32
    %c0_i32_82 = arith.constant 0 : i32
    %208 = arith.cmpi ne, %207, %c0_i32_82 : i32
    scf.if %208 {
      %c0_83 = arith.constant 0 : index
      %c0_84 = arith.constant 0 : index
      %209 = vector.load %arg17[%c0_83, %c0_84] : memref<50x32xf32, #tpu.memory_space<vmem>>, vector<50x32xf32>
      tpu.vector_store %arg17[%c0_83, %c0_84], %204 {strides = array<i32>} : memref<50x32xf32, #tpu.memory_space<vmem>>, vector<50x32xf32>,
      %c0_85 = arith.constant 0 : index
      %c0_86 = arith.constant 0 : index
      %210 = vector.load %arg3[%c0_85, %c0_86] : memref<1x32xf32, #tpu.memory_space<vmem>>, vector<1x32xf32>
      %c0_87 = arith.constant 0 : index
      %c0_88 = arith.constant 0 : index
      %211 = vector.load %arg4[%c0_87, %c0_88] : memref<1x32xf32, #tpu.memory_space<vmem>>, vector<1x32xf32>
      %212 = vector.extract_strided_slice %204 {offsets = [0, 0], sizes = [1, 32], strides = [1, 1]} : vector<50x32xf32> to vector<1x32xf32>
      %cst_89 = arith.constant dense<0.000000e+00> : vector<1xf32>
      %213 = vector.multi_reduction <add>, %212, %cst_89 [1] : vector<1x32xf32> to vector<1xf32>
      %214 = vector.shape_cast %213 : vector<1xf32> to vector<1x1xf32>
      %cst_90 = arith.constant 3.200000e+01 : f32
      %215 = vector.broadcast %cst_90 : f32 to vector<1x1xf32>
      %216 = arith.divf %214, %215 : vector<1x1xf32>
      %217 = vector.broadcast %216 : vector<1x1xf32> to vector<1x32xf32>
      %218 = arith.subf %212, %217 : vector<1x32xf32>
      %219 = arith.mulf %218, %218 : vector<1x32xf32>
      %cst_91 = arith.constant dense<0.000000e+00> : vector<1xf32>
      %220 = vector.multi_reduction <add>, %219, %cst_91 [1] : vector<1x32xf32> to vector<1xf32>
      %221 = vector.shape_cast %220 : vector<1xf32> to vector<1x1xf32>
      %cst_92 = arith.constant 3.200000e+01 : f32
      %222 = vector.broadcast %cst_92 : f32 to vector<1x1xf32>
      %223 = arith.divf %221, %222 : vector<1x1xf32>
      %224 = vector.broadcast %216 : vector<1x1xf32> to vector<1x32xf32>
      %225 = arith.subf %212, %224 : vector<1x32xf32>
      %cst_93 = arith.constant 9.99999997E-7 : f32
      %226 = vector.broadcast %cst_93 : f32 to vector<1x1xf32>
      %227 = arith.addf %223, %226 : vector<1x1xf32>
      %228 = math.rsqrt %227 : vector<1x1xf32>
      %229 = vector.broadcast %228 : vector<1x1xf32> to vector<1x32xf32>
      %230 = arith.mulf %225, %229 : vector<1x32xf32>
      %231 = arith.mulf %230, %210 : vector<1x32xf32>
      %232 = arith.addf %231, %211 : vector<1x32xf32>
      %c0_94 = arith.constant 0 : index
      %c0_95 = arith.constant 0 : index
      %233 = vector.load %arg18[%c0_94, %c0_95] : memref<2x32xf32, #tpu.memory_space<vmem>>, vector<1x32xf32>
      tpu.vector_store %arg18[%c0_94, %c0_95], %232 {strides = array<i32>} : memref<2x32xf32, #tpu.memory_space<vmem>>, vector<1x32xf32>,
      %234 = vector.extract_strided_slice %204 {offsets = [25, 0], sizes = [1, 32], strides = [1, 1]} : vector<50x32xf32> to vector<1x32xf32>
      %cst_96 = arith.constant dense<0.000000e+00> : vector<1xf32>
      %235 = vector.multi_reduction <add>, %234, %cst_96 [1] : vector<1x32xf32> to vector<1xf32>
      %236 = vector.shape_cast %235 : vector<1xf32> to vector<1x1xf32>
      %cst_97 = arith.constant 3.200000e+01 : f32
      %237 = vector.broadcast %cst_97 : f32 to vector<1x1xf32>
      %238 = arith.divf %236, %237 : vector<1x1xf32>
      %239 = vector.broadcast %238 : vector<1x1xf32> to vector<1x32xf32>
      %240 = arith.subf %234, %239 : vector<1x32xf32>
      %241 = arith.mulf %240, %240 : vector<1x32xf32>
      %cst_98 = arith.constant dense<0.000000e+00> : vector<1xf32>
      %242 = vector.multi_reduction <add>, %241, %cst_98 [1] : vector<1x32xf32> to vector<1xf32>
      %243 = vector.shape_cast %242 : vector<1xf32> to vector<1x1xf32>
      %cst_99 = arith.constant 3.200000e+01 : f32
      %244 = vector.broadcast %cst_99 : f32 to vector<1x1xf32>
      %245 = arith.divf %243, %244 : vector<1x1xf32>
      %246 = vector.broadcast %238 : vector<1x1xf32> to vector<1x32xf32>
      %247 = arith.subf %234, %246 : vector<1x32xf32>
      %cst_100 = arith.constant 9.99999997E-7 : f32
      %248 = vector.broadcast %cst_100 : f32 to vector<1x1xf32>
      %249 = arith.addf %245, %248 : vector<1x1xf32>
      %250 = math.rsqrt %249 : vector<1x1xf32>
      %251 = vector.broadcast %250 : vector<1x1xf32> to vector<1x32xf32>
      %252 = arith.mulf %247, %251 : vector<1x32xf32>
      %253 = arith.mulf %252, %210 : vector<1x32xf32>
      %254 = arith.addf %253, %211 : vector<1x32xf32>
      %c1 = arith.constant 1 : index
      %c0_101 = arith.constant 0 : index
      %255 = vector.load %arg18[%c1, %c0_101] : memref<2x32xf32, #tpu.memory_space<vmem>>, vector<1x32xf32>
      tpu.vector_store %arg18[%c1, %c0_101], %254 {strides = array<i32>} : memref<2x32xf32, #tpu.memory_space<vmem>>, vector<1x32xf32>,
    } else {
    }
    return
  }
  func.func @transform_0(%arg0: i32) -> (i32, i32) {
    %c0_i32 = arith.constant 0 : i32
    %c0_i32_0 = arith.constant 0 : i32
    %c0_i32_1 = arith.constant 0 : i32
    return %c0_i32, %c0_i32_0 : i32, i32
  }
  func.func @transform_1(%arg0: i32) -> (i32, i32) {
    %c0_i32 = arith.constant 0 : i32
    %c0_i32_0 = arith.constant 0 : i32
    %c0_i32_1 = arith.constant 0 : i32
    return %c0_i32, %c0_i32_0 : i32, i32
  }
  func.func @transform_2(%arg0: i32) -> (i32, i32) {
    %c0_i32 = arith.constant 0 : i32
    %c0_i32_0 = arith.constant 0 : i32
    %c0_i32_1 = arith.constant 0 : i32
    return %c0_i32, %c0_i32_0 : i32, i32
  }
  func.func @transform_3(%arg0: i32) -> (i32, i32) {
    %c0_i32 = arith.constant 0 : i32
    %c0_i32_0 = arith.constant 0 : i32
    %c0_i32_1 = arith.constant 0 : i32
    return %c0_i32, %c0_i32_0 : i32, i32
  }
  func.func @transform_4(%arg0: i32) -> (i32, i32, i32) {
    %c0_i32 = arith.constant 0 : i32
    %c0_i32_0 = arith.constant 0 : i32
    %c0_i32_1 = arith.constant 0 : i32
    return %arg0, %c0_i32, %c0_i32_0 : i32, i32, i32
  }
  func.func @transform_5(%arg0: i32) -> (i32, i32, i32) {
    %c0_i32 = arith.constant 0 : i32
    %c0_i32_0 = arith.constant 0 : i32
    %c0_i32_1 = arith.constant 0 : i32
    return %arg0, %c0_i32, %c0_i32_0 : i32, i32, i32
  }
  func.func @transform_6(%arg0: i32) -> (i32, i32, i32) {
    %c0_i32 = arith.constant 0 : i32
    %c0_i32_0 = arith.constant 0 : i32
    %c0_i32_1 = arith.constant 0 : i32
    return %arg0, %c0_i32, %c0_i32_0 : i32, i32, i32
  }
  func.func @transform_7(%arg0: i32) -> (i32, i32, i32) {
    %c0_i32 = arith.constant 0 : i32
    %c0_i32_0 = arith.constant 0 : i32
    %c0_i32_1 = arith.constant 0 : i32
    return %arg0, %c0_i32, %c0_i32_0 : i32, i32, i32
  }
  func.func @transform_8(%arg0: i32) -> (i32, i32, i32) {
    %c0_i32 = arith.constant 0 : i32
    %c0_i32_0 = arith.constant 0 : i32
    %c0_i32_1 = arith.constant 0 : i32
    return %arg0, %c0_i32, %c0_i32_0 : i32, i32, i32
  }
  func.func @transform_9(%arg0: i32) -> (i32, i32, i32) {
    %c0_i32 = arith.constant 0 : i32
    %c0_i32_0 = arith.constant 0 : i32
    %c0_i32_1 = arith.constant 0 : i32
    return %arg0, %c0_i32, %c0_i32_0 : i32, i32, i32
  }
  func.func @transform_10(%arg0: i32) -> (i32, i32, i32) {
    %c0_i32 = arith.constant 0 : i32
    %c0_i32_0 = arith.constant 0 : i32
    %c0_i32_1 = arith.constant 0 : i32
    return %arg0, %c0_i32, %c0_i32_0 : i32, i32, i32
  }
  func.func @transform_11(%arg0: i32) -> (i32, i32, i32) {
    %c0_i32 = arith.constant 0 : i32
    %c0_i32_0 = arith.constant 0 : i32
    %c0_i32_1 = arith.constant 0 : i32
    return %arg0, %c0_i32, %c0_i32_0 : i32, i32, i32
  }
  func.func @transform_12(%arg0: i32) -> (i32, i32, i32) {
    %c0_i32 = arith.constant 0 : i32
    %c0_i32_0 = arith.constant 0 : i32
    %c0_i32_1 = arith.constant 0 : i32
    return %arg0, %c0_i32, %c0_i32_0 : i32, i32, i32
  }
  func.func @transform_13(%arg0: i32) -> (i32, i32, i32) {
    %c0_i32 = arith.constant 0 : i32
    %c0_i32_0 = arith.constant 0 : i32
    %c0_i32_1 = arith.constant 0 : i32
    return %arg0, %c0_i32, %c0_i32_0 : i32, i32, i32
  }
  func.func @transform_14(%arg0: i32) -> (i32, i32, i32) {
    %c0_i32 = arith.constant 0 : i32
    %c0_i32_0 = arith.constant 0 : i32
    %c0_i32_1 = arith.constant 0 : i32
    return %arg0, %c0_i32, %c0_i32_0 : i32, i32, i32
  }
  func.func @transform_15(%arg0: i32) -> (i32, i32, i32) {
    %c0_i32 = arith.constant 0 : i32
    %c0_i32_0 = arith.constant 0 : i32
    %c0_i32_1 = arith.constant 0 : i32
    return %arg0, %c0_i32, %c0_i32_0 : i32, i32, i32
  }
  func.func @transform_16(%arg0: i32) -> (i32, i32) {
    %c0_i32 = arith.constant 0 : i32
    %c0_i32_0 = arith.constant 0 : i32
    %c0_i32_1 = arith.constant 0 : i32
    return %c0_i32, %c0_i32_0 : i32, i32
  }
  func.func @transform_17(%arg0: i32) -> (i32, i32) {
    %c0_i32 = arith.constant 0 : i32
    %c0_i32_0 = arith.constant 0 : i32
    %c0_i32_1 = arith.constant 0 : i32
    return %c0_i32, %c0_i32_0 : i32, i32
  }
}

module attributes {stable_mosaic.version = 11 : i64} {
  func.func @_vit_local_kernel(%arg0: i32, %arg1: memref<1x10x32xf32, #tpu.memory_space<vmem>>, %arg2: memref<10x10xf32, #tpu.memory_space<vmem>>, %arg3: memref<1x32xf32, #tpu.memory_space<vmem>>, %arg4: memref<1x32xf32, #tpu.memory_space<vmem>>, %arg5: memref<1x1x32xf32, #tpu.memory_space<vmem>>, %arg6: memref<1x1x32xf32, #tpu.memory_space<vmem>>, %arg7: memref<1x32x128xbf16, #tpu.memory_space<vmem>>, %arg8: memref<1x1x128xf32, #tpu.memory_space<vmem>>, %arg9: memref<1x32x32xbf16, #tpu.memory_space<vmem>>, %arg10: memref<1x1x32xf32, #tpu.memory_space<vmem>>, %arg11: memref<1x1x32xf32, #tpu.memory_space<vmem>>, %arg12: memref<1x1x32xf32, #tpu.memory_space<vmem>>, %arg13: memref<1x32x128xbf16, #tpu.memory_space<vmem>>, %arg14: memref<1x1x128xf32, #tpu.memory_space<vmem>>, %arg15: memref<1x128x32xbf16, #tpu.memory_space<vmem>>, %arg16: memref<1x1x32xf32, #tpu.memory_space<vmem>>, %arg17: memref<1x2x32xf32, #tpu.memory_space<vmem>>) attributes {dimension_semantics = [#tpu.dimension_semantics<parallel>], iteration_bounds = array<i64: 6>, scalar_prefetch = 0 : i64, scratch_operands = 0 : i64, tpu.core_type = #tpu.core_type<tc>, window_params = [{transform_indices = @transform_0, window_bounds = array<i64: 1, 10, 32>}, {pipeline_mode = #tpu.pipeline_mode<synchronous>, transform_indices = @transform_1, window_bounds = array<i64: 10, 10>}, {pipeline_mode = #tpu.pipeline_mode<synchronous>, transform_indices = @transform_2, window_bounds = array<i64: 1, 32>}, {pipeline_mode = #tpu.pipeline_mode<synchronous>, transform_indices = @transform_3, window_bounds = array<i64: 1, 32>}, {transform_indices = @transform_4, window_bounds = array<i64: 1, 1, 32>}, {transform_indices = @transform_5, window_bounds = array<i64: 1, 1, 32>}, {transform_indices = @transform_6, window_bounds = array<i64: 1, 32, 128>}, {transform_indices = @transform_7, window_bounds = array<i64: 1, 1, 128>}, {transform_indices = @transform_8, window_bounds = array<i64: 1, 32, 32>}, {transform_indices = @transform_9, window_bounds = array<i64: 1, 1, 32>}, {transform_indices = @transform_10, window_bounds = array<i64: 1, 1, 32>}, {transform_indices = @transform_11, window_bounds = array<i64: 1, 1, 32>}, {transform_indices = @transform_12, window_bounds = array<i64: 1, 32, 128>}, {transform_indices = @transform_13, window_bounds = array<i64: 1, 1, 128>}, {transform_indices = @transform_14, window_bounds = array<i64: 1, 128, 32>}, {transform_indices = @transform_15, window_bounds = array<i64: 1, 1, 32>}, {transform_indices = @transform_16, window_bounds = array<i64: 1, 2, 32>}]} {
    %c0 = arith.constant 0 : index
    %c0_0 = arith.constant 0 : index
    %c0_1 = arith.constant 0 : index
    %0 = vector.load %arg5[%c0, %c0_0, %c0_1] : memref<1x1x32xf32, #tpu.memory_space<vmem>>, vector<1x1x32xf32>
    %1 = vector.shape_cast %0 : vector<1x1x32xf32> to vector<1x32xf32>
    %c0_2 = arith.constant 0 : index
    %c0_3 = arith.constant 0 : index
    %c0_4 = arith.constant 0 : index
    %2 = vector.load %arg6[%c0_2, %c0_3, %c0_4] : memref<1x1x32xf32, #tpu.memory_space<vmem>>, vector<1x1x32xf32>
    %3 = vector.shape_cast %2 : vector<1x1x32xf32> to vector<1x32xf32>
    %c0_5 = arith.constant 0 : index
    %c0_6 = arith.constant 0 : index
    %c0_7 = arith.constant 0 : index
    %4 = vector.load %arg7[%c0_5, %c0_6, %c0_7] : memref<1x32x128xbf16, #tpu.memory_space<vmem>>, vector<1x32x128xbf16>
    %5 = vector.shape_cast %4 : vector<1x32x128xbf16> to vector<32x128xbf16>
    %c0_8 = arith.constant 0 : index
    %c0_9 = arith.constant 0 : index
    %c0_10 = arith.constant 0 : index
    %6 = vector.load %arg8[%c0_8, %c0_9, %c0_10] : memref<1x1x128xf32, #tpu.memory_space<vmem>>, vector<1x1x128xf32>
    %7 = vector.shape_cast %6 : vector<1x1x128xf32> to vector<1x128xf32>
    %c0_11 = arith.constant 0 : index
    %c0_12 = arith.constant 0 : index
    %c0_13 = arith.constant 0 : index
    %8 = vector.load %arg9[%c0_11, %c0_12, %c0_13] : memref<1x32x32xbf16, #tpu.memory_space<vmem>>, vector<1x32x32xbf16>
    %9 = vector.shape_cast %8 : vector<1x32x32xbf16> to vector<32x32xbf16>
    %c0_14 = arith.constant 0 : index
    %c0_15 = arith.constant 0 : index
    %c0_16 = arith.constant 0 : index
    %10 = vector.load %arg10[%c0_14, %c0_15, %c0_16] : memref<1x1x32xf32, #tpu.memory_space<vmem>>, vector<1x1x32xf32>
    %11 = vector.shape_cast %10 : vector<1x1x32xf32> to vector<1x32xf32>
    %c0_17 = arith.constant 0 : index
    %c0_18 = arith.constant 0 : index
    %c0_19 = arith.constant 0 : index
    %12 = vector.load %arg11[%c0_17, %c0_18, %c0_19] : memref<1x1x32xf32, #tpu.memory_space<vmem>>, vector<1x1x32xf32>
    %13 = vector.shape_cast %12 : vector<1x1x32xf32> to vector<1x32xf32>
    %c0_20 = arith.constant 0 : index
    %c0_21 = arith.constant 0 : index
    %c0_22 = arith.constant 0 : index
    %14 = vector.load %arg12[%c0_20, %c0_21, %c0_22] : memref<1x1x32xf32, #tpu.memory_space<vmem>>, vector<1x1x32xf32>
    %15 = vector.shape_cast %14 : vector<1x1x32xf32> to vector<1x32xf32>
    %c0_23 = arith.constant 0 : index
    %c0_24 = arith.constant 0 : index
    %c0_25 = arith.constant 0 : index
    %16 = vector.load %arg13[%c0_23, %c0_24, %c0_25] : memref<1x32x128xbf16, #tpu.memory_space<vmem>>, vector<1x32x128xbf16>
    %17 = vector.shape_cast %16 : vector<1x32x128xbf16> to vector<32x128xbf16>
    %c0_26 = arith.constant 0 : index
    %c0_27 = arith.constant 0 : index
    %c0_28 = arith.constant 0 : index
    %18 = vector.load %arg14[%c0_26, %c0_27, %c0_28] : memref<1x1x128xf32, #tpu.memory_space<vmem>>, vector<1x1x128xf32>
    %19 = vector.shape_cast %18 : vector<1x1x128xf32> to vector<1x128xf32>
    %c0_29 = arith.constant 0 : index
    %c0_30 = arith.constant 0 : index
    %c0_31 = arith.constant 0 : index
    %20 = vector.load %arg15[%c0_29, %c0_30, %c0_31] : memref<1x128x32xbf16, #tpu.memory_space<vmem>>, vector<1x128x32xbf16>
    %21 = vector.shape_cast %20 : vector<1x128x32xbf16> to vector<128x32xbf16>
    %c0_32 = arith.constant 0 : index
    %c0_33 = arith.constant 0 : index
    %c0_34 = arith.constant 0 : index
    %22 = vector.load %arg16[%c0_32, %c0_33, %c0_34] : memref<1x1x32xf32, #tpu.memory_space<vmem>>, vector<1x1x32xf32>
    %23 = vector.shape_cast %22 : vector<1x1x32xf32> to vector<1x32xf32>
    %c0_35 = arith.constant 0 : index
    %c0_36 = arith.constant 0 : index
    %c0_37 = arith.constant 0 : index
    %24 = vector.load %arg1[%c0_35, %c0_36, %c0_37] : memref<1x10x32xf32, #tpu.memory_space<vmem>>, vector<1x10x32xf32>
    %25 = vector.shape_cast %24 : vector<1x10x32xf32> to vector<10x32xf32>
    %c0_38 = arith.constant 0 : index
    %c0_39 = arith.constant 0 : index
    %26 = vector.load %arg2[%c0_38, %c0_39] : memref<10x10xf32, #tpu.memory_space<vmem>>, vector<10x10xf32>
    %cst = arith.constant dense<0.000000e+00> : vector<10xf32>
    %27 = vector.multi_reduction <add>, %25, %cst [1] : vector<10x32xf32> to vector<10xf32>
    %28 = vector.shape_cast %27 : vector<10xf32> to vector<10x1xf32>
    %cst_40 = arith.constant 3.200000e+01 : f32
    %29 = vector.broadcast %cst_40 : f32 to vector<10x1xf32>
    %30 = arith.divf %28, %29 : vector<10x1xf32>
    %31 = vector.broadcast %30 : vector<10x1xf32> to vector<10x32xf32>
    %32 = arith.subf %25, %31 : vector<10x32xf32>
    %33 = arith.mulf %32, %32 : vector<10x32xf32>
    %cst_41 = arith.constant dense<0.000000e+00> : vector<10xf32>
    %34 = vector.multi_reduction <add>, %33, %cst_41 [1] : vector<10x32xf32> to vector<10xf32>
    %35 = vector.shape_cast %34 : vector<10xf32> to vector<10x1xf32>
    %cst_42 = arith.constant 3.200000e+01 : f32
    %36 = vector.broadcast %cst_42 : f32 to vector<10x1xf32>
    %37 = arith.divf %35, %36 : vector<10x1xf32>
    %38 = vector.broadcast %30 : vector<10x1xf32> to vector<10x32xf32>
    %39 = arith.subf %25, %38 : vector<10x32xf32>
    %cst_43 = arith.constant 9.99999997E-7 : f32
    %40 = vector.broadcast %cst_43 : f32 to vector<10x1xf32>
    %41 = arith.addf %37, %40 : vector<10x1xf32>
    %42 = math.rsqrt %41 : vector<10x1xf32>
    %43 = vector.broadcast %42 : vector<10x1xf32> to vector<10x32xf32>
    %44 = arith.mulf %39, %43 : vector<10x32xf32>
    %45 = vector.broadcast %1 : vector<1x32xf32> to vector<10x32xf32>
    %46 = arith.mulf %44, %45 : vector<10x32xf32>
    %47 = vector.broadcast %3 : vector<1x32xf32> to vector<10x32xf32>
    %48 = arith.addf %46, %47 : vector<10x32xf32>
    %49 = arith.truncf %48 : vector<10x32xf32> to vector<10x32xbf16>
    %cst_44 = arith.constant dense<0.000000e+00> : vector<10x128xf32>
    %50 = tpu.matmul %49, %5, %cst_44 {dimension_numbers = #tpu.dot_dimension_numbers<[1], [0], [0], [1], [0, 0, 1, 1], [], []>} : vector<10x32xbf16>, vector<32x128xbf16>, vector<10x128xf32> -> vector<10x128xf32>
    %51 = vector.broadcast %7 : vector<1x128xf32> to vector<10x128xf32>
    %52 = arith.addf %50, %51 : vector<10x128xf32>
    %53 = vector.extract_strided_slice %52 {offsets = [0, 0], sizes = [10, 8], strides = [1, 1]} : vector<10x128xf32> to vector<10x8xf32>
    %54 = vector.extract_strided_slice %52 {offsets = [0, 32], sizes = [10, 8], strides = [1, 1]} : vector<10x128xf32> to vector<10x8xf32>
    %55 = vector.extract_strided_slice %52 {offsets = [0, 64], sizes = [10, 8], strides = [1, 1]} : vector<10x128xf32> to vector<10x8xf32>
    %56 = arith.truncf %53 : vector<10x8xf32> to vector<10x8xbf16>
    %57 = arith.truncf %54 : vector<10x8xf32> to vector<10x8xbf16>
    %cst_45 = arith.constant dense<0.000000e+00> : vector<10x10xf32>
    %58 = tpu.matmul %56, %57, %cst_45 {dimension_numbers = #tpu.dot_dimension_numbers<[1], [1], [0], [0], [0, 0, 1, 0], [], []>} : vector<10x8xbf16>, vector<10x8xbf16>, vector<10x10xf32> -> vector<10x10xf32>
    %cst_46 = arith.constant 0.353553385 : f32
    %59 = vector.broadcast %cst_46 : f32 to vector<10x10xf32>
    %60 = arith.mulf %58, %59 : vector<10x10xf32>
    %61 = arith.addf %60, %26 : vector<10x10xf32>
    %cst_47 = arith.constant dense<0xFF800000> : vector<10xf32>
    %62 = vector.multi_reduction <maximumf>, %61, %cst_47 [1] : vector<10x10xf32> to vector<10xf32>
    %63 = vector.shape_cast %62 : vector<10xf32> to vector<10x1xf32>
    %64 = vector.broadcast %63 : vector<10x1xf32> to vector<10x10xf32>
    %65 = arith.subf %61, %64 : vector<10x10xf32>
    %66 = math.exp %65 : vector<10x10xf32>
    %cst_48 = arith.constant dense<0.000000e+00> : vector<10xf32>
    %67 = vector.multi_reduction <add>, %66, %cst_48 [1] : vector<10x10xf32> to vector<10xf32>
    %68 = vector.shape_cast %67 : vector<10xf32> to vector<10x1xf32>
    %69 = tpu.reciprocal %68 {approx = true} : vector<10x1xf32> -> vector<10x1xf32>
    %70 = vector.broadcast %69 : vector<10x1xf32> to vector<10x10xf32>
    %71 = arith.mulf %66, %70 : vector<10x10xf32>
    %72 = arith.truncf %71 : vector<10x10xf32> to vector<10x10xbf16>
    %73 = arith.truncf %55 : vector<10x8xf32> to vector<10x8xbf16>
    %cst_49 = arith.constant dense<0.000000e+00> : vector<10x8xf32>
    %74 = tpu.matmul %72, %73, %cst_49 {dimension_numbers = #tpu.dot_dimension_numbers<[1], [0], [0], [1], [0, 0, 1, 1], [], []>} : vector<10x10xbf16>, vector<10x8xbf16>, vector<10x8xf32> -> vector<10x8xf32>
    %75 = vector.extract_strided_slice %9 {offsets = [0, 0], sizes = [8, 32], strides = [1, 1]} : vector<32x32xbf16> to vector<8x32xbf16>
    %76 = arith.truncf %74 : vector<10x8xf32> to vector<10x8xbf16>
    %cst_50 = arith.constant dense<0.000000e+00> : vector<10x32xf32>
    %77 = tpu.matmul %76, %75, %cst_50 {dimension_numbers = #tpu.dot_dimension_numbers<[1], [0], [0], [1], [0, 0, 1, 1], [], []>} : vector<10x8xbf16>, vector<8x32xbf16>, vector<10x32xf32> -> vector<10x32xf32>
    %78 = vector.extract_strided_slice %52 {offsets = [0, 8], sizes = [10, 8], strides = [1, 1]} : vector<10x128xf32> to vector<10x8xf32>
    %79 = vector.extract_strided_slice %52 {offsets = [0, 40], sizes = [10, 8], strides = [1, 1]} : vector<10x128xf32> to vector<10x8xf32>
    %80 = vector.extract_strided_slice %52 {offsets = [0, 72], sizes = [10, 8], strides = [1, 1]} : vector<10x128xf32> to vector<10x8xf32>
    %81 = arith.truncf %78 : vector<10x8xf32> to vector<10x8xbf16>
    %82 = arith.truncf %79 : vector<10x8xf32> to vector<10x8xbf16>
    %cst_51 = arith.constant dense<0.000000e+00> : vector<10x10xf32>
    %83 = tpu.matmul %81, %82, %cst_51 {dimension_numbers = #tpu.dot_dimension_numbers<[1], [1], [0], [0], [0, 0, 1, 0], [], []>} : vector<10x8xbf16>, vector<10x8xbf16>, vector<10x10xf32> -> vector<10x10xf32>
    %cst_52 = arith.constant 0.353553385 : f32
    %84 = vector.broadcast %cst_52 : f32 to vector<10x10xf32>
    %85 = arith.mulf %83, %84 : vector<10x10xf32>
    %86 = arith.addf %85, %26 : vector<10x10xf32>
    %cst_53 = arith.constant dense<0xFF800000> : vector<10xf32>
    %87 = vector.multi_reduction <maximumf>, %86, %cst_53 [1] : vector<10x10xf32> to vector<10xf32>
    %88 = vector.shape_cast %87 : vector<10xf32> to vector<10x1xf32>
    %89 = vector.broadcast %88 : vector<10x1xf32> to vector<10x10xf32>
    %90 = arith.subf %86, %89 : vector<10x10xf32>
    %91 = math.exp %90 : vector<10x10xf32>
    %cst_54 = arith.constant dense<0.000000e+00> : vector<10xf32>
    %92 = vector.multi_reduction <add>, %91, %cst_54 [1] : vector<10x10xf32> to vector<10xf32>
    %93 = vector.shape_cast %92 : vector<10xf32> to vector<10x1xf32>
    %94 = tpu.reciprocal %93 {approx = true} : vector<10x1xf32> -> vector<10x1xf32>
    %95 = vector.broadcast %94 : vector<10x1xf32> to vector<10x10xf32>
    %96 = arith.mulf %91, %95 : vector<10x10xf32>
    %97 = arith.truncf %96 : vector<10x10xf32> to vector<10x10xbf16>
    %98 = arith.truncf %80 : vector<10x8xf32> to vector<10x8xbf16>
    %cst_55 = arith.constant dense<0.000000e+00> : vector<10x8xf32>
    %99 = tpu.matmul %97, %98, %cst_55 {dimension_numbers = #tpu.dot_dimension_numbers<[1], [0], [0], [1], [0, 0, 1, 1], [], []>} : vector<10x10xbf16>, vector<10x8xbf16>, vector<10x8xf32> -> vector<10x8xf32>
    %100 = vector.extract_strided_slice %9 {offsets = [8, 0], sizes = [8, 32], strides = [1, 1]} : vector<32x32xbf16> to vector<8x32xbf16>
    %101 = arith.truncf %99 : vector<10x8xf32> to vector<10x8xbf16>
    %cst_56 = arith.constant dense<0.000000e+00> : vector<10x32xf32>
    %102 = tpu.matmul %101, %100, %cst_56 {dimension_numbers = #tpu.dot_dimension_numbers<[1], [0], [0], [1], [0, 0, 1, 1], [], []>} : vector<10x8xbf16>, vector<8x32xbf16>, vector<10x32xf32> -> vector<10x32xf32>
    %103 = arith.addf %77, %102 : vector<10x32xf32>
    %104 = vector.extract_strided_slice %52 {offsets = [0, 16], sizes = [10, 8], strides = [1, 1]} : vector<10x128xf32> to vector<10x8xf32>
    %105 = vector.extract_strided_slice %52 {offsets = [0, 48], sizes = [10, 8], strides = [1, 1]} : vector<10x128xf32> to vector<10x8xf32>
    %106 = vector.extract_strided_slice %52 {offsets = [0, 80], sizes = [10, 8], strides = [1, 1]} : vector<10x128xf32> to vector<10x8xf32>
    %107 = arith.truncf %104 : vector<10x8xf32> to vector<10x8xbf16>
    %108 = arith.truncf %105 : vector<10x8xf32> to vector<10x8xbf16>
    %cst_57 = arith.constant dense<0.000000e+00> : vector<10x10xf32>
    %109 = tpu.matmul %107, %108, %cst_57 {dimension_numbers = #tpu.dot_dimension_numbers<[1], [1], [0], [0], [0, 0, 1, 0], [], []>} : vector<10x8xbf16>, vector<10x8xbf16>, vector<10x10xf32> -> vector<10x10xf32>
    %cst_58 = arith.constant 0.353553385 : f32
    %110 = vector.broadcast %cst_58 : f32 to vector<10x10xf32>
    %111 = arith.mulf %109, %110 : vector<10x10xf32>
    %112 = arith.addf %111, %26 : vector<10x10xf32>
    %cst_59 = arith.constant dense<0xFF800000> : vector<10xf32>
    %113 = vector.multi_reduction <maximumf>, %112, %cst_59 [1] : vector<10x10xf32> to vector<10xf32>
    %114 = vector.shape_cast %113 : vector<10xf32> to vector<10x1xf32>
    %115 = vector.broadcast %114 : vector<10x1xf32> to vector<10x10xf32>
    %116 = arith.subf %112, %115 : vector<10x10xf32>
    %117 = math.exp %116 : vector<10x10xf32>
    %cst_60 = arith.constant dense<0.000000e+00> : vector<10xf32>
    %118 = vector.multi_reduction <add>, %117, %cst_60 [1] : vector<10x10xf32> to vector<10xf32>
    %119 = vector.shape_cast %118 : vector<10xf32> to vector<10x1xf32>
    %120 = tpu.reciprocal %119 {approx = true} : vector<10x1xf32> -> vector<10x1xf32>
    %121 = vector.broadcast %120 : vector<10x1xf32> to vector<10x10xf32>
    %122 = arith.mulf %117, %121 : vector<10x10xf32>
    %123 = arith.truncf %122 : vector<10x10xf32> to vector<10x10xbf16>
    %124 = arith.truncf %106 : vector<10x8xf32> to vector<10x8xbf16>
    %cst_61 = arith.constant dense<0.000000e+00> : vector<10x8xf32>
    %125 = tpu.matmul %123, %124, %cst_61 {dimension_numbers = #tpu.dot_dimension_numbers<[1], [0], [0], [1], [0, 0, 1, 1], [], []>} : vector<10x10xbf16>, vector<10x8xbf16>, vector<10x8xf32> -> vector<10x8xf32>
    %126 = vector.extract_strided_slice %9 {offsets = [16, 0], sizes = [8, 32], strides = [1, 1]} : vector<32x32xbf16> to vector<8x32xbf16>
    %127 = arith.truncf %125 : vector<10x8xf32> to vector<10x8xbf16>
    %cst_62 = arith.constant dense<0.000000e+00> : vector<10x32xf32>
    %128 = tpu.matmul %127, %126, %cst_62 {dimension_numbers = #tpu.dot_dimension_numbers<[1], [0], [0], [1], [0, 0, 1, 1], [], []>} : vector<10x8xbf16>, vector<8x32xbf16>, vector<10x32xf32> -> vector<10x32xf32>
    %129 = arith.addf %103, %128 : vector<10x32xf32>
    %130 = vector.extract_strided_slice %52 {offsets = [0, 24], sizes = [10, 8], strides = [1, 1]} : vector<10x128xf32> to vector<10x8xf32>
    %131 = vector.extract_strided_slice %52 {offsets = [0, 56], sizes = [10, 8], strides = [1, 1]} : vector<10x128xf32> to vector<10x8xf32>
    %132 = vector.extract_strided_slice %52 {offsets = [0, 88], sizes = [10, 8], strides = [1, 1]} : vector<10x128xf32> to vector<10x8xf32>
    %133 = arith.truncf %130 : vector<10x8xf32> to vector<10x8xbf16>
    %134 = arith.truncf %131 : vector<10x8xf32> to vector<10x8xbf16>
    %cst_63 = arith.constant dense<0.000000e+00> : vector<10x10xf32>
    %135 = tpu.matmul %133, %134, %cst_63 {dimension_numbers = #tpu.dot_dimension_numbers<[1], [1], [0], [0], [0, 0, 1, 0], [], []>} : vector<10x8xbf16>, vector<10x8xbf16>, vector<10x10xf32> -> vector<10x10xf32>
    %cst_64 = arith.constant 0.353553385 : f32
    %136 = vector.broadcast %cst_64 : f32 to vector<10x10xf32>
    %137 = arith.mulf %135, %136 : vector<10x10xf32>
    %138 = arith.addf %137, %26 : vector<10x10xf32>
    %cst_65 = arith.constant dense<0xFF800000> : vector<10xf32>
    %139 = vector.multi_reduction <maximumf>, %138, %cst_65 [1] : vector<10x10xf32> to vector<10xf32>
    %140 = vector.shape_cast %139 : vector<10xf32> to vector<10x1xf32>
    %141 = vector.broadcast %140 : vector<10x1xf32> to vector<10x10xf32>
    %142 = arith.subf %138, %141 : vector<10x10xf32>
    %143 = math.exp %142 : vector<10x10xf32>
    %cst_66 = arith.constant dense<0.000000e+00> : vector<10xf32>
    %144 = vector.multi_reduction <add>, %143, %cst_66 [1] : vector<10x10xf32> to vector<10xf32>
    %145 = vector.shape_cast %144 : vector<10xf32> to vector<10x1xf32>
    %146 = tpu.reciprocal %145 {approx = true} : vector<10x1xf32> -> vector<10x1xf32>
    %147 = vector.broadcast %146 : vector<10x1xf32> to vector<10x10xf32>
    %148 = arith.mulf %143, %147 : vector<10x10xf32>
    %149 = arith.truncf %148 : vector<10x10xf32> to vector<10x10xbf16>
    %150 = arith.truncf %132 : vector<10x8xf32> to vector<10x8xbf16>
    %cst_67 = arith.constant dense<0.000000e+00> : vector<10x8xf32>
    %151 = tpu.matmul %149, %150, %cst_67 {dimension_numbers = #tpu.dot_dimension_numbers<[1], [0], [0], [1], [0, 0, 1, 1], [], []>} : vector<10x10xbf16>, vector<10x8xbf16>, vector<10x8xf32> -> vector<10x8xf32>
    %152 = vector.extract_strided_slice %9 {offsets = [24, 0], sizes = [8, 32], strides = [1, 1]} : vector<32x32xbf16> to vector<8x32xbf16>
    %153 = arith.truncf %151 : vector<10x8xf32> to vector<10x8xbf16>
    %cst_68 = arith.constant dense<0.000000e+00> : vector<10x32xf32>
    %154 = tpu.matmul %153, %152, %cst_68 {dimension_numbers = #tpu.dot_dimension_numbers<[1], [0], [0], [1], [0, 0, 1, 1], [], []>} : vector<10x8xbf16>, vector<8x32xbf16>, vector<10x32xf32> -> vector<10x32xf32>
    %155 = arith.addf %129, %154 : vector<10x32xf32>
    %156 = vector.broadcast %11 : vector<1x32xf32> to vector<10x32xf32>
    %157 = arith.addf %155, %156 : vector<10x32xf32>
    %158 = arith.addf %25, %157 : vector<10x32xf32>
    %cst_69 = arith.constant dense<0.000000e+00> : vector<10xf32>
    %159 = vector.multi_reduction <add>, %158, %cst_69 [1] : vector<10x32xf32> to vector<10xf32>
    %160 = vector.shape_cast %159 : vector<10xf32> to vector<10x1xf32>
    %cst_70 = arith.constant 3.200000e+01 : f32
    %161 = vector.broadcast %cst_70 : f32 to vector<10x1xf32>
    %162 = arith.divf %160, %161 : vector<10x1xf32>
    %163 = vector.broadcast %162 : vector<10x1xf32> to vector<10x32xf32>
    %164 = arith.subf %158, %163 : vector<10x32xf32>
    %165 = arith.mulf %164, %164 : vector<10x32xf32>
    %cst_71 = arith.constant dense<0.000000e+00> : vector<10xf32>
    %166 = vector.multi_reduction <add>, %165, %cst_71 [1] : vector<10x32xf32> to vector<10xf32>
    %167 = vector.shape_cast %166 : vector<10xf32> to vector<10x1xf32>
    %cst_72 = arith.constant 3.200000e+01 : f32
    %168 = vector.broadcast %cst_72 : f32 to vector<10x1xf32>
    %169 = arith.divf %167, %168 : vector<10x1xf32>
    %170 = vector.broadcast %162 : vector<10x1xf32> to vector<10x32xf32>
    %171 = arith.subf %158, %170 : vector<10x32xf32>
    %cst_73 = arith.constant 9.99999997E-7 : f32
    %172 = vector.broadcast %cst_73 : f32 to vector<10x1xf32>
    %173 = arith.addf %169, %172 : vector<10x1xf32>
    %174 = math.rsqrt %173 : vector<10x1xf32>
    %175 = vector.broadcast %174 : vector<10x1xf32> to vector<10x32xf32>
    %176 = arith.mulf %171, %175 : vector<10x32xf32>
    %177 = vector.broadcast %13 : vector<1x32xf32> to vector<10x32xf32>
    %178 = arith.mulf %176, %177 : vector<10x32xf32>
    %179 = vector.broadcast %15 : vector<1x32xf32> to vector<10x32xf32>
    %180 = arith.addf %178, %179 : vector<10x32xf32>
    %181 = arith.truncf %180 : vector<10x32xf32> to vector<10x32xbf16>
    %cst_74 = arith.constant dense<0.000000e+00> : vector<10x128xf32>
    %182 = tpu.matmul %181, %17, %cst_74 {dimension_numbers = #tpu.dot_dimension_numbers<[1], [0], [0], [1], [0, 0, 1, 1], [], []>} : vector<10x32xbf16>, vector<32x128xbf16>, vector<10x128xf32> -> vector<10x128xf32>
    %183 = vector.broadcast %19 : vector<1x128xf32> to vector<10x128xf32>
    %184 = arith.addf %182, %183 : vector<10x128xf32>
    %cst_75 = arith.constant 5.000000e-01 : f32
    %185 = vector.broadcast %cst_75 : f32 to vector<10x128xf32>
    %186 = arith.mulf %185, %184 : vector<10x128xf32>
    %cst_76 = arith.constant 4.471500e-02 : f32
    %187 = vector.broadcast %cst_76 : f32 to vector<10x128xf32>
    %188 = arith.mulf %187, %184 : vector<10x128xf32>
    %189 = arith.mulf %188, %184 : vector<10x128xf32>
    %190 = arith.mulf %189, %184 : vector<10x128xf32>
    %191 = arith.addf %184, %190 : vector<10x128xf32>
    %cst_77 = arith.constant 0.797884583 : f32
    %192 = vector.broadcast %cst_77 : f32 to vector<10x128xf32>
    %193 = arith.mulf %192, %191 : vector<10x128xf32>
    %194 = math.tanh %193 : vector<10x128xf32>
    %cst_78 = arith.constant 1.000000e+00 : f32
    %195 = vector.broadcast %cst_78 : f32 to vector<10x128xf32>
    %196 = arith.addf %195, %194 : vector<10x128xf32>
    %197 = arith.mulf %186, %196 : vector<10x128xf32>
    %198 = arith.truncf %197 : vector<10x128xf32> to vector<10x128xbf16>
    %cst_79 = arith.constant dense<0.000000e+00> : vector<10x32xf32>
    %199 = tpu.matmul %198, %21, %cst_79 {dimension_numbers = #tpu.dot_dimension_numbers<[1], [0], [0], [1], [0, 0, 1, 1], [], []>} : vector<10x128xbf16>, vector<128x32xbf16>, vector<10x32xf32> -> vector<10x32xf32>
    %200 = vector.broadcast %23 : vector<1x32xf32> to vector<10x32xf32>
    %201 = arith.addf %199, %200 : vector<10x32xf32>
    %202 = arith.addf %158, %201 : vector<10x32xf32>
    %c0_80 = arith.constant 0 : index
    %c0_81 = arith.constant 0 : index
    %203 = vector.load %arg3[%c0_80, %c0_81] : memref<1x32xf32, #tpu.memory_space<vmem>>, vector<1x32xf32>
    %c0_82 = arith.constant 0 : index
    %c0_83 = arith.constant 0 : index
    %204 = vector.load %arg4[%c0_82, %c0_83] : memref<1x32xf32, #tpu.memory_space<vmem>>, vector<1x32xf32>
    %205 = vector.extract_strided_slice %202 {offsets = [0, 0], sizes = [1, 32], strides = [1, 1]} : vector<10x32xf32> to vector<1x32xf32>
    %cst_84 = arith.constant dense<0.000000e+00> : vector<1xf32>
    %206 = vector.multi_reduction <add>, %205, %cst_84 [1] : vector<1x32xf32> to vector<1xf32>
    %207 = vector.shape_cast %206 : vector<1xf32> to vector<1x1xf32>
    %cst_85 = arith.constant 3.200000e+01 : f32
    %208 = vector.broadcast %cst_85 : f32 to vector<1x1xf32>
    %209 = arith.divf %207, %208 : vector<1x1xf32>
    %210 = vector.broadcast %209 : vector<1x1xf32> to vector<1x32xf32>
    %211 = arith.subf %205, %210 : vector<1x32xf32>
    %212 = arith.mulf %211, %211 : vector<1x32xf32>
    %cst_86 = arith.constant dense<0.000000e+00> : vector<1xf32>
    %213 = vector.multi_reduction <add>, %212, %cst_86 [1] : vector<1x32xf32> to vector<1xf32>
    %214 = vector.shape_cast %213 : vector<1xf32> to vector<1x1xf32>
    %cst_87 = arith.constant 3.200000e+01 : f32
    %215 = vector.broadcast %cst_87 : f32 to vector<1x1xf32>
    %216 = arith.divf %214, %215 : vector<1x1xf32>
    %217 = vector.broadcast %209 : vector<1x1xf32> to vector<1x32xf32>
    %218 = arith.subf %205, %217 : vector<1x32xf32>
    %cst_88 = arith.constant 9.99999997E-7 : f32
    %219 = vector.broadcast %cst_88 : f32 to vector<1x1xf32>
    %220 = arith.addf %216, %219 : vector<1x1xf32>
    %221 = math.rsqrt %220 : vector<1x1xf32>
    %222 = vector.broadcast %221 : vector<1x1xf32> to vector<1x32xf32>
    %223 = arith.mulf %218, %222 : vector<1x32xf32>
    %224 = arith.mulf %223, %203 : vector<1x32xf32>
    %225 = arith.addf %224, %204 : vector<1x32xf32>
    %c0_89 = arith.constant 0 : index
    %c0_90 = arith.constant 0 : index
    %c0_91 = arith.constant 0 : index
    %226 = vector.load %arg17[%c0_89, %c0_90, %c0_91] : memref<1x2x32xf32, #tpu.memory_space<vmem>>, vector<1x1x32xf32>
    %227 = vector.shape_cast %226 : vector<1x1x32xf32> to vector<1x32xf32>
    %228 = vector.shape_cast %225 : vector<1x32xf32> to vector<1x1x32xf32>
    tpu.vector_store %arg17[%c0_89, %c0_90, %c0_91], %228 {strides = array<i32>} : memref<1x2x32xf32, #tpu.memory_space<vmem>>, vector<1x1x32xf32>,
    %229 = vector.extract_strided_slice %202 {offsets = [5, 0], sizes = [1, 32], strides = [1, 1]} : vector<10x32xf32> to vector<1x32xf32>
    %cst_92 = arith.constant dense<0.000000e+00> : vector<1xf32>
    %230 = vector.multi_reduction <add>, %229, %cst_92 [1] : vector<1x32xf32> to vector<1xf32>
    %231 = vector.shape_cast %230 : vector<1xf32> to vector<1x1xf32>
    %cst_93 = arith.constant 3.200000e+01 : f32
    %232 = vector.broadcast %cst_93 : f32 to vector<1x1xf32>
    %233 = arith.divf %231, %232 : vector<1x1xf32>
    %234 = vector.broadcast %233 : vector<1x1xf32> to vector<1x32xf32>
    %235 = arith.subf %229, %234 : vector<1x32xf32>
    %236 = arith.mulf %235, %235 : vector<1x32xf32>
    %cst_94 = arith.constant dense<0.000000e+00> : vector<1xf32>
    %237 = vector.multi_reduction <add>, %236, %cst_94 [1] : vector<1x32xf32> to vector<1xf32>
    %238 = vector.shape_cast %237 : vector<1xf32> to vector<1x1xf32>
    %cst_95 = arith.constant 3.200000e+01 : f32
    %239 = vector.broadcast %cst_95 : f32 to vector<1x1xf32>
    %240 = arith.divf %238, %239 : vector<1x1xf32>
    %241 = vector.broadcast %233 : vector<1x1xf32> to vector<1x32xf32>
    %242 = arith.subf %229, %241 : vector<1x32xf32>
    %cst_96 = arith.constant 9.99999997E-7 : f32
    %243 = vector.broadcast %cst_96 : f32 to vector<1x1xf32>
    %244 = arith.addf %240, %243 : vector<1x1xf32>
    %245 = math.rsqrt %244 : vector<1x1xf32>
    %246 = vector.broadcast %245 : vector<1x1xf32> to vector<1x32xf32>
    %247 = arith.mulf %242, %246 : vector<1x32xf32>
    %248 = arith.mulf %247, %203 : vector<1x32xf32>
    %249 = arith.addf %248, %204 : vector<1x32xf32>
    %c0_97 = arith.constant 0 : index
    %c1 = arith.constant 1 : index
    %c0_98 = arith.constant 0 : index
    %250 = vector.load %arg17[%c0_97, %c1, %c0_98] : memref<1x2x32xf32, #tpu.memory_space<vmem>>, vector<1x1x32xf32>
    %251 = vector.shape_cast %250 : vector<1x1x32xf32> to vector<1x32xf32>
    %252 = vector.shape_cast %249 : vector<1x32xf32> to vector<1x1x32xf32>
    tpu.vector_store %arg17[%c0_97, %c1, %c0_98], %252 {strides = array<i32>} : memref<1x2x32xf32, #tpu.memory_space<vmem>>, vector<1x1x32xf32>,
    return
  }
  func.func @transform_0(%arg0: i32) -> (i32, i32, i32) {
    %c0_i32 = arith.constant 0 : i32
    %c0_i32_0 = arith.constant 0 : i32
    %c0_i32_1 = arith.constant 0 : i32
    return %arg0, %c0_i32, %c0_i32_0 : i32, i32, i32
  }
  func.func @transform_1(%arg0: i32) -> (i32, i32) {
    %c0_i32 = arith.constant 0 : i32
    %c0_i32_0 = arith.constant 0 : i32
    %c0_i32_1 = arith.constant 0 : i32
    return %c0_i32, %c0_i32_0 : i32, i32
  }
  func.func @transform_2(%arg0: i32) -> (i32, i32) {
    %c0_i32 = arith.constant 0 : i32
    %c0_i32_0 = arith.constant 0 : i32
    %c0_i32_1 = arith.constant 0 : i32
    return %c0_i32, %c0_i32_0 : i32, i32
  }
  func.func @transform_3(%arg0: i32) -> (i32, i32) {
    %c0_i32 = arith.constant 0 : i32
    %c0_i32_0 = arith.constant 0 : i32
    %c0_i32_1 = arith.constant 0 : i32
    return %c0_i32, %c0_i32_0 : i32, i32
  }
  func.func @transform_4(%arg0: i32) -> (i32, i32, i32) {
    %c0_i32 = arith.constant 0 : i32
    %c0_i32_0 = arith.constant 0 : i32
    %c0_i32_1 = arith.constant 0 : i32
    return %arg0, %c0_i32, %c0_i32_0 : i32, i32, i32
  }
  func.func @transform_5(%arg0: i32) -> (i32, i32, i32) {
    %c0_i32 = arith.constant 0 : i32
    %c0_i32_0 = arith.constant 0 : i32
    %c0_i32_1 = arith.constant 0 : i32
    return %arg0, %c0_i32, %c0_i32_0 : i32, i32, i32
  }
  func.func @transform_6(%arg0: i32) -> (i32, i32, i32) {
    %c0_i32 = arith.constant 0 : i32
    %c0_i32_0 = arith.constant 0 : i32
    %c0_i32_1 = arith.constant 0 : i32
    return %arg0, %c0_i32, %c0_i32_0 : i32, i32, i32
  }
  func.func @transform_7(%arg0: i32) -> (i32, i32, i32) {
    %c0_i32 = arith.constant 0 : i32
    %c0_i32_0 = arith.constant 0 : i32
    %c0_i32_1 = arith.constant 0 : i32
    return %arg0, %c0_i32, %c0_i32_0 : i32, i32, i32
  }
  func.func @transform_8(%arg0: i32) -> (i32, i32, i32) {
    %c0_i32 = arith.constant 0 : i32
    %c0_i32_0 = arith.constant 0 : i32
    %c0_i32_1 = arith.constant 0 : i32
    return %arg0, %c0_i32, %c0_i32_0 : i32, i32, i32
  }
  func.func @transform_9(%arg0: i32) -> (i32, i32, i32) {
    %c0_i32 = arith.constant 0 : i32
    %c0_i32_0 = arith.constant 0 : i32
    %c0_i32_1 = arith.constant 0 : i32
    return %arg0, %c0_i32, %c0_i32_0 : i32, i32, i32
  }
  func.func @transform_10(%arg0: i32) -> (i32, i32, i32) {
    %c0_i32 = arith.constant 0 : i32
    %c0_i32_0 = arith.constant 0 : i32
    %c0_i32_1 = arith.constant 0 : i32
    return %arg0, %c0_i32, %c0_i32_0 : i32, i32, i32
  }
  func.func @transform_11(%arg0: i32) -> (i32, i32, i32) {
    %c0_i32 = arith.constant 0 : i32
    %c0_i32_0 = arith.constant 0 : i32
    %c0_i32_1 = arith.constant 0 : i32
    return %arg0, %c0_i32, %c0_i32_0 : i32, i32, i32
  }
  func.func @transform_12(%arg0: i32) -> (i32, i32, i32) {
    %c0_i32 = arith.constant 0 : i32
    %c0_i32_0 = arith.constant 0 : i32
    %c0_i32_1 = arith.constant 0 : i32
    return %arg0, %c0_i32, %c0_i32_0 : i32, i32, i32
  }
  func.func @transform_13(%arg0: i32) -> (i32, i32, i32) {
    %c0_i32 = arith.constant 0 : i32
    %c0_i32_0 = arith.constant 0 : i32
    %c0_i32_1 = arith.constant 0 : i32
    return %arg0, %c0_i32, %c0_i32_0 : i32, i32, i32
  }
  func.func @transform_14(%arg0: i32) -> (i32, i32, i32) {
    %c0_i32 = arith.constant 0 : i32
    %c0_i32_0 = arith.constant 0 : i32
    %c0_i32_1 = arith.constant 0 : i32
    return %arg0, %c0_i32, %c0_i32_0 : i32, i32, i32
  }
  func.func @transform_15(%arg0: i32) -> (i32, i32, i32) {
    %c0_i32 = arith.constant 0 : i32
    %c0_i32_0 = arith.constant 0 : i32
    %c0_i32_1 = arith.constant 0 : i32
    return %arg0, %c0_i32, %c0_i32_0 : i32, i32, i32
  }
  func.func @transform_16(%arg0: i32) -> (i32, i32, i32) {
    %c0_i32 = arith.constant 0 : i32
    %c0_i32_0 = arith.constant 0 : i32
    %c0_i32_1 = arith.constant 0 : i32
    return %arg0, %c0_i32, %c0_i32_0 : i32, i32, i32
  }
}

module attributes {stable_mosaic.version = 11 : i64} {
  func.func @_bert_stack_kernel(%arg0: i32, %arg1: memref<16x32xf32, #tpu.memory_space<vmem>>, %arg2: memref<16x16xf32, #tpu.memory_space<vmem>>, %arg3: memref<32x32xbf16, #tpu.memory_space<vmem>>, %arg4: memref<1x32xf32, #tpu.memory_space<vmem>>, %arg5: memref<32x192xbf16, #tpu.memory_space<vmem>>, %arg6: memref<1x192xf32, #tpu.memory_space<vmem>>, %arg7: memref<1x1x32xf32, #tpu.memory_space<vmem>>, %arg8: memref<1x1x32xf32, #tpu.memory_space<vmem>>, %arg9: memref<1x32x128xbf16, #tpu.memory_space<vmem>>, %arg10: memref<1x1x128xf32, #tpu.memory_space<vmem>>, %arg11: memref<1x32x32xbf16, #tpu.memory_space<vmem>>, %arg12: memref<1x1x32xf32, #tpu.memory_space<vmem>>, %arg13: memref<1x1x32xf32, #tpu.memory_space<vmem>>, %arg14: memref<1x1x32xf32, #tpu.memory_space<vmem>>, %arg15: memref<1x32x128xbf16, #tpu.memory_space<vmem>>, %arg16: memref<1x1x128xf32, #tpu.memory_space<vmem>>, %arg17: memref<1x128x32xbf16, #tpu.memory_space<vmem>>, %arg18: memref<1x1x32xf32, #tpu.memory_space<vmem>>, %arg19: memref<2x32xf32, #tpu.memory_space<vmem>>, %arg20: memref<2x192xf32, #tpu.memory_space<vmem>>, %arg21: memref<16x32xf32, #tpu.memory_space<vmem>>) attributes {dimension_semantics = [#tpu.dimension_semantics<arbitrary>], iteration_bounds = array<i64: 2>, scalar_prefetch = 0 : i64, scratch_operands = 1 : i64, tpu.core_type = #tpu.core_type<tc>, window_params = [{pipeline_mode = #tpu.pipeline_mode<synchronous>, transform_indices = @transform_0, window_bounds = array<i64: 16, 32>}, {pipeline_mode = #tpu.pipeline_mode<synchronous>, transform_indices = @transform_1, window_bounds = array<i64: 16, 16>}, {pipeline_mode = #tpu.pipeline_mode<synchronous>, transform_indices = @transform_2, window_bounds = array<i64: 32, 32>}, {pipeline_mode = #tpu.pipeline_mode<synchronous>, transform_indices = @transform_3, window_bounds = array<i64: 1, 32>}, {pipeline_mode = #tpu.pipeline_mode<synchronous>, transform_indices = @transform_4, window_bounds = array<i64: 32, 192>}, {pipeline_mode = #tpu.pipeline_mode<synchronous>, transform_indices = @transform_5, window_bounds = array<i64: 1, 192>}, {transform_indices = @transform_6, window_bounds = array<i64: 1, 1, 32>}, {transform_indices = @transform_7, window_bounds = array<i64: 1, 1, 32>}, {transform_indices = @transform_8, window_bounds = array<i64: 1, 32, 128>}, {transform_indices = @transform_9, window_bounds = array<i64: 1, 1, 128>}, {transform_indices = @transform_10, window_bounds = array<i64: 1, 32, 32>}, {transform_indices = @transform_11, window_bounds = array<i64: 1, 1, 32>}, {transform_indices = @transform_12, window_bounds = array<i64: 1, 1, 32>}, {transform_indices = @transform_13, window_bounds = array<i64: 1, 1, 32>}, {transform_indices = @transform_14, window_bounds = array<i64: 1, 32, 128>}, {transform_indices = @transform_15, window_bounds = array<i64: 1, 1, 128>}, {transform_indices = @transform_16, window_bounds = array<i64: 1, 128, 32>}, {transform_indices = @transform_17, window_bounds = array<i64: 1, 1, 32>}, {pipeline_mode = #tpu.pipeline_mode<synchronous>, transform_indices = @transform_18, window_bounds = array<i64: 2, 32>}, {pipeline_mode = #tpu.pipeline_mode<synchronous>, transform_indices = @transform_19, window_bounds = array<i64: 2, 192>}]} {
    %c0_i32 = arith.constant 0 : i32
    %0 = arith.cmpi eq, %arg0, %c0_i32 : i32
    %1 = arith.extui %0 : i1 to i32
    %c0_i32_0 = arith.constant 0 : i32
    %2 = arith.cmpi ne, %1, %c0_i32_0 : i32
    scf.if %2 {
      %c0_83 = arith.constant 0 : index
      %c0_84 = arith.constant 0 : index
      %209 = vector.load %arg1[%c0_83, %c0_84] : memref<16x32xf32, #tpu.memory_space<vmem>>, vector<16x32xf32>
      %c0_85 = arith.constant 0 : index
      %c0_86 = arith.constant 0 : index
      %210 = vector.load %arg21[%c0_85, %c0_86] : memref<16x32xf32, #tpu.memory_space<vmem>>, vector<16x32xf32>
      tpu.vector_store %arg21[%c0_85, %c0_86], %209 {strides = array<i32>} : memref<16x32xf32, #tpu.memory_space<vmem>>, vector<16x32xf32>,
    } else {
    }
    %c0 = arith.constant 0 : index
    %c0_1 = arith.constant 0 : index
    %c0_2 = arith.constant 0 : index
    %3 = vector.load %arg7[%c0, %c0_1, %c0_2] : memref<1x1x32xf32, #tpu.memory_space<vmem>>, vector<1x1x32xf32>
    %4 = vector.shape_cast %3 : vector<1x1x32xf32> to vector<1x32xf32>
    %c0_3 = arith.constant 0 : index
    %c0_4 = arith.constant 0 : index
    %c0_5 = arith.constant 0 : index
    %5 = vector.load %arg8[%c0_3, %c0_4, %c0_5] : memref<1x1x32xf32, #tpu.memory_space<vmem>>, vector<1x1x32xf32>
    %6 = vector.shape_cast %5 : vector<1x1x32xf32> to vector<1x32xf32>
    %c0_6 = arith.constant 0 : index
    %c0_7 = arith.constant 0 : index
    %c0_8 = arith.constant 0 : index
    %7 = vector.load %arg9[%c0_6, %c0_7, %c0_8] : memref<1x32x128xbf16, #tpu.memory_space<vmem>>, vector<1x32x128xbf16>
    %8 = vector.shape_cast %7 : vector<1x32x128xbf16> to vector<32x128xbf16>
    %c0_9 = arith.constant 0 : index
    %c0_10 = arith.constant 0 : index
    %c0_11 = arith.constant 0 : index
    %9 = vector.load %arg10[%c0_9, %c0_10, %c0_11] : memref<1x1x128xf32, #tpu.memory_space<vmem>>, vector<1x1x128xf32>
    %10 = vector.shape_cast %9 : vector<1x1x128xf32> to vector<1x128xf32>
    %c0_12 = arith.constant 0 : index
    %c0_13 = arith.constant 0 : index
    %c0_14 = arith.constant 0 : index
    %11 = vector.load %arg11[%c0_12, %c0_13, %c0_14] : memref<1x32x32xbf16, #tpu.memory_space<vmem>>, vector<1x32x32xbf16>
    %12 = vector.shape_cast %11 : vector<1x32x32xbf16> to vector<32x32xbf16>
    %c0_15 = arith.constant 0 : index
    %c0_16 = arith.constant 0 : index
    %c0_17 = arith.constant 0 : index
    %13 = vector.load %arg12[%c0_15, %c0_16, %c0_17] : memref<1x1x32xf32, #tpu.memory_space<vmem>>, vector<1x1x32xf32>
    %14 = vector.shape_cast %13 : vector<1x1x32xf32> to vector<1x32xf32>
    %c0_18 = arith.constant 0 : index
    %c0_19 = arith.constant 0 : index
    %c0_20 = arith.constant 0 : index
    %15 = vector.load %arg13[%c0_18, %c0_19, %c0_20] : memref<1x1x32xf32, #tpu.memory_space<vmem>>, vector<1x1x32xf32>
    %16 = vector.shape_cast %15 : vector<1x1x32xf32> to vector<1x32xf32>
    %c0_21 = arith.constant 0 : index
    %c0_22 = arith.constant 0 : index
    %c0_23 = arith.constant 0 : index
    %17 = vector.load %arg14[%c0_21, %c0_22, %c0_23] : memref<1x1x32xf32, #tpu.memory_space<vmem>>, vector<1x1x32xf32>
    %18 = vector.shape_cast %17 : vector<1x1x32xf32> to vector<1x32xf32>
    %c0_24 = arith.constant 0 : index
    %c0_25 = arith.constant 0 : index
    %c0_26 = arith.constant 0 : index
    %19 = vector.load %arg15[%c0_24, %c0_25, %c0_26] : memref<1x32x128xbf16, #tpu.memory_space<vmem>>, vector<1x32x128xbf16>
    %20 = vector.shape_cast %19 : vector<1x32x128xbf16> to vector<32x128xbf16>
    %c0_27 = arith.constant 0 : index
    %c0_28 = arith.constant 0 : index
    %c0_29 = arith.constant 0 : index
    %21 = vector.load %arg16[%c0_27, %c0_28, %c0_29] : memref<1x1x128xf32, #tpu.memory_space<vmem>>, vector<1x1x128xf32>
    %22 = vector.shape_cast %21 : vector<1x1x128xf32> to vector<1x128xf32>
    %c0_30 = arith.constant 0 : index
    %c0_31 = arith.constant 0 : index
    %c0_32 = arith.constant 0 : index
    %23 = vector.load %arg17[%c0_30, %c0_31, %c0_32] : memref<1x128x32xbf16, #tpu.memory_space<vmem>>, vector<1x128x32xbf16>
    %24 = vector.shape_cast %23 : vector<1x128x32xbf16> to vector<128x32xbf16>
    %c0_33 = arith.constant 0 : index
    %c0_34 = arith.constant 0 : index
    %c0_35 = arith.constant 0 : index
    %25 = vector.load %arg18[%c0_33, %c0_34, %c0_35] : memref<1x1x32xf32, #tpu.memory_space<vmem>>, vector<1x1x32xf32>
    %26 = vector.shape_cast %25 : vector<1x1x32xf32> to vector<1x32xf32>
    %c0_36 = arith.constant 0 : index
    %c0_37 = arith.constant 0 : index
    %27 = vector.load %arg21[%c0_36, %c0_37] : memref<16x32xf32, #tpu.memory_space<vmem>>, vector<16x32xf32>
    %c0_38 = arith.constant 0 : index
    %c0_39 = arith.constant 0 : index
    %28 = vector.load %arg2[%c0_38, %c0_39] : memref<16x16xf32, #tpu.memory_space<vmem>>, vector<16x16xf32>
    %29 = arith.truncf %27 : vector<16x32xf32> to vector<16x32xbf16>
    %cst = arith.constant dense<0.000000e+00> : vector<16x128xf32>
    %30 = tpu.matmul %29, %8, %cst {dimension_numbers = #tpu.dot_dimension_numbers<[1], [0], [0], [1], [0, 0, 1, 1], [], []>} : vector<16x32xbf16>, vector<32x128xbf16>, vector<16x128xf32> -> vector<16x128xf32>
    %31 = vector.broadcast %10 : vector<1x128xf32> to vector<16x128xf32>
    %32 = arith.addf %30, %31 : vector<16x128xf32>
    %33 = vector.extract_strided_slice %32 {offsets = [0, 0], sizes = [16, 8], strides = [1, 1]} : vector<16x128xf32> to vector<16x8xf32>
    %34 = vector.extract_strided_slice %32 {offsets = [0, 32], sizes = [16, 8], strides = [1, 1]} : vector<16x128xf32> to vector<16x8xf32>
    %35 = vector.extract_strided_slice %32 {offsets = [0, 64], sizes = [16, 8], strides = [1, 1]} : vector<16x128xf32> to vector<16x8xf32>
    %36 = arith.truncf %33 : vector<16x8xf32> to vector<16x8xbf16>
    %37 = arith.truncf %34 : vector<16x8xf32> to vector<16x8xbf16>
    %cst_40 = arith.constant dense<0.000000e+00> : vector<16x16xf32>
    %38 = tpu.matmul %36, %37, %cst_40 {dimension_numbers = #tpu.dot_dimension_numbers<[1], [1], [0], [0], [0, 0, 1, 0], [], []>} : vector<16x8xbf16>, vector<16x8xbf16>, vector<16x16xf32> -> vector<16x16xf32>
    %cst_41 = arith.constant 0.353553385 : f32
    %39 = vector.broadcast %cst_41 : f32 to vector<16x16xf32>
    %40 = arith.mulf %38, %39 : vector<16x16xf32>
    %41 = arith.addf %40, %28 : vector<16x16xf32>
    %cst_42 = arith.constant dense<0xFF800000> : vector<16xf32>
    %42 = vector.multi_reduction <maximumf>, %41, %cst_42 [1] : vector<16x16xf32> to vector<16xf32>
    %43 = vector.shape_cast %42 : vector<16xf32> to vector<16x1xf32>
    %44 = vector.broadcast %43 : vector<16x1xf32> to vector<16x16xf32>
    %45 = arith.subf %41, %44 : vector<16x16xf32>
    %46 = math.exp %45 : vector<16x16xf32>
    %cst_43 = arith.constant dense<0.000000e+00> : vector<16xf32>
    %47 = vector.multi_reduction <add>, %46, %cst_43 [1] : vector<16x16xf32> to vector<16xf32>
    %48 = vector.shape_cast %47 : vector<16xf32> to vector<16x1xf32>
    %49 = tpu.reciprocal %48 {approx = true} : vector<16x1xf32> -> vector<16x1xf32>
    %50 = vector.broadcast %49 : vector<16x1xf32> to vector<16x16xf32>
    %51 = arith.mulf %46, %50 : vector<16x16xf32>
    %52 = arith.truncf %51 : vector<16x16xf32> to vector<16x16xbf16>
    %53 = arith.truncf %35 : vector<16x8xf32> to vector<16x8xbf16>
    %cst_44 = arith.constant dense<0.000000e+00> : vector<16x8xf32>
    %54 = tpu.matmul %52, %53, %cst_44 {dimension_numbers = #tpu.dot_dimension_numbers<[1], [0], [0], [1], [0, 0, 1, 1], [], []>} : vector<16x16xbf16>, vector<16x8xbf16>, vector<16x8xf32> -> vector<16x8xf32>
    %55 = vector.extract_strided_slice %12 {offsets = [0, 0], sizes = [8, 32], strides = [1, 1]} : vector<32x32xbf16> to vector<8x32xbf16>
    %56 = arith.truncf %54 : vector<16x8xf32> to vector<16x8xbf16>
    %cst_45 = arith.constant dense<0.000000e+00> : vector<16x32xf32>
    %57 = tpu.matmul %56, %55, %cst_45 {dimension_numbers = #tpu.dot_dimension_numbers<[1], [0], [0], [1], [0, 0, 1, 1], [], []>} : vector<16x8xbf16>, vector<8x32xbf16>, vector<16x32xf32> -> vector<16x32xf32>
    %58 = vector.extract_strided_slice %32 {offsets = [0, 8], sizes = [16, 8], strides = [1, 1]} : vector<16x128xf32> to vector<16x8xf32>
    %59 = vector.extract_strided_slice %32 {offsets = [0, 40], sizes = [16, 8], strides = [1, 1]} : vector<16x128xf32> to vector<16x8xf32>
    %60 = vector.extract_strided_slice %32 {offsets = [0, 72], sizes = [16, 8], strides = [1, 1]} : vector<16x128xf32> to vector<16x8xf32>
    %61 = arith.truncf %58 : vector<16x8xf32> to vector<16x8xbf16>
    %62 = arith.truncf %59 : vector<16x8xf32> to vector<16x8xbf16>
    %cst_46 = arith.constant dense<0.000000e+00> : vector<16x16xf32>
    %63 = tpu.matmul %61, %62, %cst_46 {dimension_numbers = #tpu.dot_dimension_numbers<[1], [1], [0], [0], [0, 0, 1, 0], [], []>} : vector<16x8xbf16>, vector<16x8xbf16>, vector<16x16xf32> -> vector<16x16xf32>
    %cst_47 = arith.constant 0.353553385 : f32
    %64 = vector.broadcast %cst_47 : f32 to vector<16x16xf32>
    %65 = arith.mulf %63, %64 : vector<16x16xf32>
    %66 = arith.addf %65, %28 : vector<16x16xf32>
    %cst_48 = arith.constant dense<0xFF800000> : vector<16xf32>
    %67 = vector.multi_reduction <maximumf>, %66, %cst_48 [1] : vector<16x16xf32> to vector<16xf32>
    %68 = vector.shape_cast %67 : vector<16xf32> to vector<16x1xf32>
    %69 = vector.broadcast %68 : vector<16x1xf32> to vector<16x16xf32>
    %70 = arith.subf %66, %69 : vector<16x16xf32>
    %71 = math.exp %70 : vector<16x16xf32>
    %cst_49 = arith.constant dense<0.000000e+00> : vector<16xf32>
    %72 = vector.multi_reduction <add>, %71, %cst_49 [1] : vector<16x16xf32> to vector<16xf32>
    %73 = vector.shape_cast %72 : vector<16xf32> to vector<16x1xf32>
    %74 = tpu.reciprocal %73 {approx = true} : vector<16x1xf32> -> vector<16x1xf32>
    %75 = vector.broadcast %74 : vector<16x1xf32> to vector<16x16xf32>
    %76 = arith.mulf %71, %75 : vector<16x16xf32>
    %77 = arith.truncf %76 : vector<16x16xf32> to vector<16x16xbf16>
    %78 = arith.truncf %60 : vector<16x8xf32> to vector<16x8xbf16>
    %cst_50 = arith.constant dense<0.000000e+00> : vector<16x8xf32>
    %79 = tpu.matmul %77, %78, %cst_50 {dimension_numbers = #tpu.dot_dimension_numbers<[1], [0], [0], [1], [0, 0, 1, 1], [], []>} : vector<16x16xbf16>, vector<16x8xbf16>, vector<16x8xf32> -> vector<16x8xf32>
    %80 = vector.extract_strided_slice %12 {offsets = [8, 0], sizes = [8, 32], strides = [1, 1]} : vector<32x32xbf16> to vector<8x32xbf16>
    %81 = arith.truncf %79 : vector<16x8xf32> to vector<16x8xbf16>
    %cst_51 = arith.constant dense<0.000000e+00> : vector<16x32xf32>
    %82 = tpu.matmul %81, %80, %cst_51 {dimension_numbers = #tpu.dot_dimension_numbers<[1], [0], [0], [1], [0, 0, 1, 1], [], []>} : vector<16x8xbf16>, vector<8x32xbf16>, vector<16x32xf32> -> vector<16x32xf32>
    %83 = arith.addf %57, %82 : vector<16x32xf32>
    %84 = vector.extract_strided_slice %32 {offsets = [0, 16], sizes = [16, 8], strides = [1, 1]} : vector<16x128xf32> to vector<16x8xf32>
    %85 = vector.extract_strided_slice %32 {offsets = [0, 48], sizes = [16, 8], strides = [1, 1]} : vector<16x128xf32> to vector<16x8xf32>
    %86 = vector.extract_strided_slice %32 {offsets = [0, 80], sizes = [16, 8], strides = [1, 1]} : vector<16x128xf32> to vector<16x8xf32>
    %87 = arith.truncf %84 : vector<16x8xf32> to vector<16x8xbf16>
    %88 = arith.truncf %85 : vector<16x8xf32> to vector<16x8xbf16>
    %cst_52 = arith.constant dense<0.000000e+00> : vector<16x16xf32>
    %89 = tpu.matmul %87, %88, %cst_52 {dimension_numbers = #tpu.dot_dimension_numbers<[1], [1], [0], [0], [0, 0, 1, 0], [], []>} : vector<16x8xbf16>, vector<16x8xbf16>, vector<16x16xf32> -> vector<16x16xf32>
    %cst_53 = arith.constant 0.353553385 : f32
    %90 = vector.broadcast %cst_53 : f32 to vector<16x16xf32>
    %91 = arith.mulf %89, %90 : vector<16x16xf32>
    %92 = arith.addf %91, %28 : vector<16x16xf32>
    %cst_54 = arith.constant dense<0xFF800000> : vector<16xf32>
    %93 = vector.multi_reduction <maximumf>, %92, %cst_54 [1] : vector<16x16xf32> to vector<16xf32>
    %94 = vector.shape_cast %93 : vector<16xf32> to vector<16x1xf32>
    %95 = vector.broadcast %94 : vector<16x1xf32> to vector<16x16xf32>
    %96 = arith.subf %92, %95 : vector<16x16xf32>
    %97 = math.exp %96 : vector<16x16xf32>
    %cst_55 = arith.constant dense<0.000000e+00> : vector<16xf32>
    %98 = vector.multi_reduction <add>, %97, %cst_55 [1] : vector<16x16xf32> to vector<16xf32>
    %99 = vector.shape_cast %98 : vector<16xf32> to vector<16x1xf32>
    %100 = tpu.reciprocal %99 {approx = true} : vector<16x1xf32> -> vector<16x1xf32>
    %101 = vector.broadcast %100 : vector<16x1xf32> to vector<16x16xf32>
    %102 = arith.mulf %97, %101 : vector<16x16xf32>
    %103 = arith.truncf %102 : vector<16x16xf32> to vector<16x16xbf16>
    %104 = arith.truncf %86 : vector<16x8xf32> to vector<16x8xbf16>
    %cst_56 = arith.constant dense<0.000000e+00> : vector<16x8xf32>
    %105 = tpu.matmul %103, %104, %cst_56 {dimension_numbers = #tpu.dot_dimension_numbers<[1], [0], [0], [1], [0, 0, 1, 1], [], []>} : vector<16x16xbf16>, vector<16x8xbf16>, vector<16x8xf32> -> vector<16x8xf32>
    %106 = vector.extract_strided_slice %12 {offsets = [16, 0], sizes = [8, 32], strides = [1, 1]} : vector<32x32xbf16> to vector<8x32xbf16>
    %107 = arith.truncf %105 : vector<16x8xf32> to vector<16x8xbf16>
    %cst_57 = arith.constant dense<0.000000e+00> : vector<16x32xf32>
    %108 = tpu.matmul %107, %106, %cst_57 {dimension_numbers = #tpu.dot_dimension_numbers<[1], [0], [0], [1], [0, 0, 1, 1], [], []>} : vector<16x8xbf16>, vector<8x32xbf16>, vector<16x32xf32> -> vector<16x32xf32>
    %109 = arith.addf %83, %108 : vector<16x32xf32>
    %110 = vector.extract_strided_slice %32 {offsets = [0, 24], sizes = [16, 8], strides = [1, 1]} : vector<16x128xf32> to vector<16x8xf32>
    %111 = vector.extract_strided_slice %32 {offsets = [0, 56], sizes = [16, 8], strides = [1, 1]} : vector<16x128xf32> to vector<16x8xf32>
    %112 = vector.extract_strided_slice %32 {offsets = [0, 88], sizes = [16, 8], strides = [1, 1]} : vector<16x128xf32> to vector<16x8xf32>
    %113 = arith.truncf %110 : vector<16x8xf32> to vector<16x8xbf16>
    %114 = arith.truncf %111 : vector<16x8xf32> to vector<16x8xbf16>
    %cst_58 = arith.constant dense<0.000000e+00> : vector<16x16xf32>
    %115 = tpu.matmul %113, %114, %cst_58 {dimension_numbers = #tpu.dot_dimension_numbers<[1], [1], [0], [0], [0, 0, 1, 0], [], []>} : vector<16x8xbf16>, vector<16x8xbf16>, vector<16x16xf32> -> vector<16x16xf32>
    %cst_59 = arith.constant 0.353553385 : f32
    %116 = vector.broadcast %cst_59 : f32 to vector<16x16xf32>
    %117 = arith.mulf %115, %116 : vector<16x16xf32>
    %118 = arith.addf %117, %28 : vector<16x16xf32>
    %cst_60 = arith.constant dense<0xFF800000> : vector<16xf32>
    %119 = vector.multi_reduction <maximumf>, %118, %cst_60 [1] : vector<16x16xf32> to vector<16xf32>
    %120 = vector.shape_cast %119 : vector<16xf32> to vector<16x1xf32>
    %121 = vector.broadcast %120 : vector<16x1xf32> to vector<16x16xf32>
    %122 = arith.subf %118, %121 : vector<16x16xf32>
    %123 = math.exp %122 : vector<16x16xf32>
    %cst_61 = arith.constant dense<0.000000e+00> : vector<16xf32>
    %124 = vector.multi_reduction <add>, %123, %cst_61 [1] : vector<16x16xf32> to vector<16xf32>
    %125 = vector.shape_cast %124 : vector<16xf32> to vector<16x1xf32>
    %126 = tpu.reciprocal %125 {approx = true} : vector<16x1xf32> -> vector<16x1xf32>
    %127 = vector.broadcast %126 : vector<16x1xf32> to vector<16x16xf32>
    %128 = arith.mulf %123, %127 : vector<16x16xf32>
    %129 = arith.truncf %128 : vector<16x16xf32> to vector<16x16xbf16>
    %130 = arith.truncf %112 : vector<16x8xf32> to vector<16x8xbf16>
    %cst_62 = arith.constant dense<0.000000e+00> : vector<16x8xf32>
    %131 = tpu.matmul %129, %130, %cst_62 {dimension_numbers = #tpu.dot_dimension_numbers<[1], [0], [0], [1], [0, 0, 1, 1], [], []>} : vector<16x16xbf16>, vector<16x8xbf16>, vector<16x8xf32> -> vector<16x8xf32>
    %132 = vector.extract_strided_slice %12 {offsets = [24, 0], sizes = [8, 32], strides = [1, 1]} : vector<32x32xbf16> to vector<8x32xbf16>
    %133 = arith.truncf %131 : vector<16x8xf32> to vector<16x8xbf16>
    %cst_63 = arith.constant dense<0.000000e+00> : vector<16x32xf32>
    %134 = tpu.matmul %133, %132, %cst_63 {dimension_numbers = #tpu.dot_dimension_numbers<[1], [0], [0], [1], [0, 0, 1, 1], [], []>} : vector<16x8xbf16>, vector<8x32xbf16>, vector<16x32xf32> -> vector<16x32xf32>
    %135 = arith.addf %109, %134 : vector<16x32xf32>
    %136 = vector.broadcast %14 : vector<1x32xf32> to vector<16x32xf32>
    %137 = arith.addf %135, %136 : vector<16x32xf32>
    %138 = arith.addf %27, %137 : vector<16x32xf32>
    %cst_64 = arith.constant dense<0.000000e+00> : vector<16xf32>
    %139 = vector.multi_reduction <add>, %138, %cst_64 [1] : vector<16x32xf32> to vector<16xf32>
    %140 = vector.shape_cast %139 : vector<16xf32> to vector<16x1xf32>
    %cst_65 = arith.constant 3.200000e+01 : f32
    %141 = vector.broadcast %cst_65 : f32 to vector<16x1xf32>
    %142 = arith.divf %140, %141 : vector<16x1xf32>
    %143 = vector.broadcast %142 : vector<16x1xf32> to vector<16x32xf32>
    %144 = arith.subf %138, %143 : vector<16x32xf32>
    %145 = arith.mulf %144, %144 : vector<16x32xf32>
    %cst_66 = arith.constant dense<0.000000e+00> : vector<16xf32>
    %146 = vector.multi_reduction <add>, %145, %cst_66 [1] : vector<16x32xf32> to vector<16xf32>
    %147 = vector.shape_cast %146 : vector<16xf32> to vector<16x1xf32>
    %cst_67 = arith.constant 3.200000e+01 : f32
    %148 = vector.broadcast %cst_67 : f32 to vector<16x1xf32>
    %149 = arith.divf %147, %148 : vector<16x1xf32>
    %150 = vector.broadcast %142 : vector<16x1xf32> to vector<16x32xf32>
    %151 = arith.subf %138, %150 : vector<16x32xf32>
    %cst_68 = arith.constant 9.99999996E-13 : f32
    %152 = vector.broadcast %cst_68 : f32 to vector<16x1xf32>
    %153 = arith.addf %149, %152 : vector<16x1xf32>
    %154 = math.rsqrt %153 : vector<16x1xf32>
    %155 = vector.broadcast %154 : vector<16x1xf32> to vector<16x32xf32>
    %156 = arith.mulf %151, %155 : vector<16x32xf32>
    %157 = vector.broadcast %4 : vector<1x32xf32> to vector<16x32xf32>
    %158 = arith.mulf %156, %157 : vector<16x32xf32>
    %159 = vector.broadcast %6 : vector<1x32xf32> to vector<16x32xf32>
    %160 = arith.addf %158, %159 : vector<16x32xf32>
    %161 = arith.truncf %160 : vector<16x32xf32> to vector<16x32xbf16>
    %cst_69 = arith.constant dense<0.000000e+00> : vector<16x128xf32>
    %162 = tpu.matmul %161, %20, %cst_69 {dimension_numbers = #tpu.dot_dimension_numbers<[1], [0], [0], [1], [0, 0, 1, 1], [], []>} : vector<16x32xbf16>, vector<32x128xbf16>, vector<16x128xf32> -> vector<16x128xf32>
    %163 = vector.broadcast %22 : vector<1x128xf32> to vector<16x128xf32>
    %164 = arith.addf %162, %163 : vector<16x128xf32>
    %cst_70 = arith.constant 5.000000e-01 : f32
    %165 = vector.broadcast %cst_70 : f32 to vector<16x128xf32>
    %166 = arith.mulf %165, %164 : vector<16x128xf32>
    %cst_71 = arith.constant 4.471500e-02 : f32
    %167 = vector.broadcast %cst_71 : f32 to vector<16x128xf32>
    %168 = arith.mulf %167, %164 : vector<16x128xf32>
    %169 = arith.mulf %168, %164 : vector<16x128xf32>
    %170 = arith.mulf %169, %164 : vector<16x128xf32>
    %171 = arith.addf %164, %170 : vector<16x128xf32>
    %cst_72 = arith.constant 0.797884583 : f32
    %172 = vector.broadcast %cst_72 : f32 to vector<16x128xf32>
    %173 = arith.mulf %172, %171 : vector<16x128xf32>
    %174 = math.tanh %173 : vector<16x128xf32>
    %cst_73 = arith.constant 1.000000e+00 : f32
    %175 = vector.broadcast %cst_73 : f32 to vector<16x128xf32>
    %176 = arith.addf %175, %174 : vector<16x128xf32>
    %177 = arith.mulf %166, %176 : vector<16x128xf32>
    %178 = arith.truncf %177 : vector<16x128xf32> to vector<16x128xbf16>
    %cst_74 = arith.constant dense<0.000000e+00> : vector<16x32xf32>
    %179 = tpu.matmul %178, %24, %cst_74 {dimension_numbers = #tpu.dot_dimension_numbers<[1], [0], [0], [1], [0, 0, 1, 1], [], []>} : vector<16x128xbf16>, vector<128x32xbf16>, vector<16x32xf32> -> vector<16x32xf32>
    %180 = vector.broadcast %26 : vector<1x32xf32> to vector<16x32xf32>
    %181 = arith.addf %179, %180 : vector<16x32xf32>
    %182 = arith.addf %160, %181 : vector<16x32xf32>
    %cst_75 = arith.constant dense<0.000000e+00> : vector<16xf32>
    %183 = vector.multi_reduction <add>, %182, %cst_75 [1] : vector<16x32xf32> to vector<16xf32>
    %184 = vector.shape_cast %183 : vector<16xf32> to vector<16x1xf32>
    %cst_76 = arith.constant 3.200000e+01 : f32
    %185 = vector.broadcast %cst_76 : f32 to vector<16x1xf32>
    %186 = arith.divf %184, %185 : vector<16x1xf32>
    %187 = vector.broadcast %186 : vector<16x1xf32> to vector<16x32xf32>
    %188 = arith.subf %182, %187 : vector<16x32xf32>
    %189 = arith.mulf %188, %188 : vector<16x32xf32>
    %cst_77 = arith.constant dense<0.000000e+00> : vector<16xf32>
    %190 = vector.multi_reduction <add>, %189, %cst_77 [1] : vector<16x32xf32> to vector<16xf32>
    %191 = vector.shape_cast %190 : vector<16xf32> to vector<16x1xf32>
    %cst_78 = arith.constant 3.200000e+01 : f32
    %192 = vector.broadcast %cst_78 : f32 to vector<16x1xf32>
    %193 = arith.divf %191, %192 : vector<16x1xf32>
    %194 = vector.broadcast %186 : vector<16x1xf32> to vector<16x32xf32>
    %195 = arith.subf %182, %194 : vector<16x32xf32>
    %cst_79 = arith.constant 9.99999996E-13 : f32
    %196 = vector.broadcast %cst_79 : f32 to vector<16x1xf32>
    %197 = arith.addf %193, %196 : vector<16x1xf32>
    %198 = math.rsqrt %197 : vector<16x1xf32>
    %199 = vector.broadcast %198 : vector<16x1xf32> to vector<16x32xf32>
    %200 = arith.mulf %195, %199 : vector<16x32xf32>
    %201 = vector.broadcast %16 : vector<1x32xf32> to vector<16x32xf32>
    %202 = arith.mulf %200, %201 : vector<16x32xf32>
    %203 = vector.broadcast %18 : vector<1x32xf32> to vector<16x32xf32>
    %204 = arith.addf %202, %203 : vector<16x32xf32>
    %c0_80 = arith.constant 0 : index
    %c0_81 = arith.constant 0 : index
    %205 = vector.load %arg21[%c0_80, %c0_81] : memref<16x32xf32, #tpu.memory_space<vmem>>, vector<16x32xf32>
    tpu.vector_store %arg21[%c0_80, %c0_81], %204 {strides = array<i32>} : memref<16x32xf32, #tpu.memory_space<vmem>>, vector<16x32xf32>,
    %c1_i32 = arith.constant 1 : i32
    %206 = arith.cmpi eq, %arg0, %c1_i32 : i32
    %207 = arith.extui %206 : i1 to i32
    %c0_i32_82 = arith.constant 0 : i32
    %208 = arith.cmpi ne, %207, %c0_i32_82 : i32
    scf.if %208 {
      %c0_83 = arith.constant 0 : index
      %c0_84 = arith.constant 0 : index
      %209 = vector.load %arg3[%c0_83, %c0_84] : memref<32x32xbf16, #tpu.memory_space<vmem>>, vector<32x32xbf16>
      %c0_85 = arith.constant 0 : index
      %c0_86 = arith.constant 0 : index
      %210 = vector.load %arg4[%c0_85, %c0_86] : memref<1x32xf32, #tpu.memory_space<vmem>>, vector<1x32xf32>
      %c0_87 = arith.constant 0 : index
      %c0_88 = arith.constant 0 : index
      %211 = vector.load %arg5[%c0_87, %c0_88] : memref<32x192xbf16, #tpu.memory_space<vmem>>, vector<32x192xbf16>
      %c0_89 = arith.constant 0 : index
      %c0_90 = arith.constant 0 : index
      %212 = vector.load %arg6[%c0_89, %c0_90] : memref<1x192xf32, #tpu.memory_space<vmem>>, vector<1x192xf32>
      %213 = vector.extract_strided_slice %204 {offsets = [0, 0], sizes = [1, 32], strides = [1, 1]} : vector<16x32xf32> to vector<1x32xf32>
      %214 = arith.truncf %213 : vector<1x32xf32> to vector<1x32xbf16>
      %cst_91 = arith.constant dense<0.000000e+00> : vector<1x32xf32>
      %215 = tpu.matmul %214, %209, %cst_91 {dimension_numbers = #tpu.dot_dimension_numbers<[1], [0], [0], [1], [0, 0, 1, 1], [], []>} : vector<1x32xbf16>, vector<32x32xbf16>, vector<1x32xf32> -> vector<1x32xf32>
      %216 = arith.addf %215, %210 : vector<1x32xf32>
      %217 = math.tanh %216 : vector<1x32xf32>
      %c0_92 = arith.constant 0 : index
      %c0_93 = arith.constant 0 : index
      %218 = vector.load %arg19[%c0_92, %c0_93] : memref<2x32xf32, #tpu.memory_space<vmem>>, vector<1x32xf32>
      tpu.vector_store %arg19[%c0_92, %c0_93], %217 {strides = array<i32>} : memref<2x32xf32, #tpu.memory_space<vmem>>, vector<1x32xf32>,
      %219 = arith.truncf %217 : vector<1x32xf32> to vector<1x32xbf16>
      %cst_94 = arith.constant dense<0.000000e+00> : vector<1x192xf32>
      %220 = tpu.matmul %219, %211, %cst_94 {dimension_numbers = #tpu.dot_dimension_numbers<[1], [0], [0], [1], [0, 0, 1, 1], [], []>} : vector<1x32xbf16>, vector<32x192xbf16>, vector<1x192xf32> -> vector<1x192xf32>
      %221 = arith.addf %220, %212 : vector<1x192xf32>
      %222 = math.tanh %221 : vector<1x192xf32>
      %c0_95 = arith.constant 0 : index
      %c0_96 = arith.constant 0 : index
      %223 = vector.load %arg20[%c0_95, %c0_96] : memref<2x192xf32, #tpu.memory_space<vmem>>, vector<1x192xf32>
      tpu.vector_store %arg20[%c0_95, %c0_96], %222 {strides = array<i32>} : memref<2x192xf32, #tpu.memory_space<vmem>>, vector<1x192xf32>,
      %224 = vector.extract_strided_slice %204 {offsets = [8, 0], sizes = [1, 32], strides = [1, 1]} : vector<16x32xf32> to vector<1x32xf32>
      %225 = arith.truncf %224 : vector<1x32xf32> to vector<1x32xbf16>
      %cst_97 = arith.constant dense<0.000000e+00> : vector<1x32xf32>
      %226 = tpu.matmul %225, %209, %cst_97 {dimension_numbers = #tpu.dot_dimension_numbers<[1], [0], [0], [1], [0, 0, 1, 1], [], []>} : vector<1x32xbf16>, vector<32x32xbf16>, vector<1x32xf32> -> vector<1x32xf32>
      %227 = arith.addf %226, %210 : vector<1x32xf32>
      %228 = math.tanh %227 : vector<1x32xf32>
      %c1 = arith.constant 1 : index
      %c0_98 = arith.constant 0 : index
      %229 = vector.load %arg19[%c1, %c0_98] : memref<2x32xf32, #tpu.memory_space<vmem>>, vector<1x32xf32>
      tpu.vector_store %arg19[%c1, %c0_98], %228 {strides = array<i32>} : memref<2x32xf32, #tpu.memory_space<vmem>>, vector<1x32xf32>,
      %230 = arith.truncf %228 : vector<1x32xf32> to vector<1x32xbf16>
      %cst_99 = arith.constant dense<0.000000e+00> : vector<1x192xf32>
      %231 = tpu.matmul %230, %211, %cst_99 {dimension_numbers = #tpu.dot_dimension_numbers<[1], [0], [0], [1], [0, 0, 1, 1], [], []>} : vector<1x32xbf16>, vector<32x192xbf16>, vector<1x192xf32> -> vector<1x192xf32>
      %232 = arith.addf %231, %212 : vector<1x192xf32>
      %233 = math.tanh %232 : vector<1x192xf32>
      %c1_100 = arith.constant 1 : index
      %c0_101 = arith.constant 0 : index
      %234 = vector.load %arg20[%c1_100, %c0_101] : memref<2x192xf32, #tpu.memory_space<vmem>>, vector<1x192xf32>
      tpu.vector_store %arg20[%c1_100, %c0_101], %233 {strides = array<i32>} : memref<2x192xf32, #tpu.memory_space<vmem>>, vector<1x192xf32>,
    } else {
    }
    return
  }
  func.func @transform_0(%arg0: i32) -> (i32, i32) {
    %c0_i32 = arith.constant 0 : i32
    %c0_i32_0 = arith.constant 0 : i32
    %c0_i32_1 = arith.constant 0 : i32
    return %c0_i32, %c0_i32_0 : i32, i32
  }
  func.func @transform_1(%arg0: i32) -> (i32, i32) {
    %c0_i32 = arith.constant 0 : i32
    %c0_i32_0 = arith.constant 0 : i32
    %c0_i32_1 = arith.constant 0 : i32
    return %c0_i32, %c0_i32_0 : i32, i32
  }
  func.func @transform_2(%arg0: i32) -> (i32, i32) {
    %c0_i32 = arith.constant 0 : i32
    %c0_i32_0 = arith.constant 0 : i32
    %c0_i32_1 = arith.constant 0 : i32
    return %c0_i32, %c0_i32_0 : i32, i32
  }
  func.func @transform_3(%arg0: i32) -> (i32, i32) {
    %c0_i32 = arith.constant 0 : i32
    %c0_i32_0 = arith.constant 0 : i32
    %c0_i32_1 = arith.constant 0 : i32
    return %c0_i32, %c0_i32_0 : i32, i32
  }
  func.func @transform_4(%arg0: i32) -> (i32, i32) {
    %c0_i32 = arith.constant 0 : i32
    %c0_i32_0 = arith.constant 0 : i32
    %c0_i32_1 = arith.constant 0 : i32
    return %c0_i32, %c0_i32_0 : i32, i32
  }
  func.func @transform_5(%arg0: i32) -> (i32, i32) {
    %c0_i32 = arith.constant 0 : i32
    %c0_i32_0 = arith.constant 0 : i32
    %c0_i32_1 = arith.constant 0 : i32
    return %c0_i32, %c0_i32_0 : i32, i32
  }
  func.func @transform_6(%arg0: i32) -> (i32, i32, i32) {
    %c0_i32 = arith.constant 0 : i32
    %c0_i32_0 = arith.constant 0 : i32
    %c0_i32_1 = arith.constant 0 : i32
    return %arg0, %c0_i32, %c0_i32_0 : i32, i32, i32
  }
  func.func @transform_7(%arg0: i32) -> (i32, i32, i32) {
    %c0_i32 = arith.constant 0 : i32
    %c0_i32_0 = arith.constant 0 : i32
    %c0_i32_1 = arith.constant 0 : i32
    return %arg0, %c0_i32, %c0_i32_0 : i32, i32, i32
  }
  func.func @transform_8(%arg0: i32) -> (i32, i32, i32) {
    %c0_i32 = arith.constant 0 : i32
    %c0_i32_0 = arith.constant 0 : i32
    %c0_i32_1 = arith.constant 0 : i32
    return %arg0, %c0_i32, %c0_i32_0 : i32, i32, i32
  }
  func.func @transform_9(%arg0: i32) -> (i32, i32, i32) {
    %c0_i32 = arith.constant 0 : i32
    %c0_i32_0 = arith.constant 0 : i32
    %c0_i32_1 = arith.constant 0 : i32
    return %arg0, %c0_i32, %c0_i32_0 : i32, i32, i32
  }
  func.func @transform_10(%arg0: i32) -> (i32, i32, i32) {
    %c0_i32 = arith.constant 0 : i32
    %c0_i32_0 = arith.constant 0 : i32
    %c0_i32_1 = arith.constant 0 : i32
    return %arg0, %c0_i32, %c0_i32_0 : i32, i32, i32
  }
  func.func @transform_11(%arg0: i32) -> (i32, i32, i32) {
    %c0_i32 = arith.constant 0 : i32
    %c0_i32_0 = arith.constant 0 : i32
    %c0_i32_1 = arith.constant 0 : i32
    return %arg0, %c0_i32, %c0_i32_0 : i32, i32, i32
  }
  func.func @transform_12(%arg0: i32) -> (i32, i32, i32) {
    %c0_i32 = arith.constant 0 : i32
    %c0_i32_0 = arith.constant 0 : i32
    %c0_i32_1 = arith.constant 0 : i32
    return %arg0, %c0_i32, %c0_i32_0 : i32, i32, i32
  }
  func.func @transform_13(%arg0: i32) -> (i32, i32, i32) {
    %c0_i32 = arith.constant 0 : i32
    %c0_i32_0 = arith.constant 0 : i32
    %c0_i32_1 = arith.constant 0 : i32
    return %arg0, %c0_i32, %c0_i32_0 : i32, i32, i32
  }
  func.func @transform_14(%arg0: i32) -> (i32, i32, i32) {
    %c0_i32 = arith.constant 0 : i32
    %c0_i32_0 = arith.constant 0 : i32
    %c0_i32_1 = arith.constant 0 : i32
    return %arg0, %c0_i32, %c0_i32_0 : i32, i32, i32
  }
  func.func @transform_15(%arg0: i32) -> (i32, i32, i32) {
    %c0_i32 = arith.constant 0 : i32
    %c0_i32_0 = arith.constant 0 : i32
    %c0_i32_1 = arith.constant 0 : i32
    return %arg0, %c0_i32, %c0_i32_0 : i32, i32, i32
  }
  func.func @transform_16(%arg0: i32) -> (i32, i32, i32) {
    %c0_i32 = arith.constant 0 : i32
    %c0_i32_0 = arith.constant 0 : i32
    %c0_i32_1 = arith.constant 0 : i32
    return %arg0, %c0_i32, %c0_i32_0 : i32, i32, i32
  }
  func.func @transform_17(%arg0: i32) -> (i32, i32, i32) {
    %c0_i32 = arith.constant 0 : i32
    %c0_i32_0 = arith.constant 0 : i32
    %c0_i32_1 = arith.constant 0 : i32
    return %arg0, %c0_i32, %c0_i32_0 : i32, i32, i32
  }
  func.func @transform_18(%arg0: i32) -> (i32, i32) {
    %c0_i32 = arith.constant 0 : i32
    %c0_i32_0 = arith.constant 0 : i32
    %c0_i32_1 = arith.constant 0 : i32
    return %c0_i32, %c0_i32_0 : i32, i32
  }
  func.func @transform_19(%arg0: i32) -> (i32, i32) {
    %c0_i32 = arith.constant 0 : i32
    %c0_i32_0 = arith.constant 0 : i32
    %c0_i32_1 = arith.constant 0 : i32
    return %c0_i32, %c0_i32_0 : i32, i32
  }
}

</mosaic_0001>

<llo_original>
// kernel: vit_bert_plus_forward.3
$region0: #{vit_bert_plus_forward.3}
  #allocation0 [shape = 'u32[]', space=smem, size = 0x4, offset = 0x4, fixed_abs, tag = 'smem constant byte address 0x4 - core index']
  #allocation1 [shape = 'u32[72,128]{1,0:T(1,128)}', space=vmem, size = 0x9000, scoped, tag = 'internal scratch']
  #allocation2 [shape = 'f32[50,32]{1,0:T(8,128)}', space=vmem, size = 0x7000, scoped, tag = 'scratch operand']
  %s0 = inlined_call_operand.vmem [shape: f32[50,32], index: 0, kind: input, shape index: {}]
  %s1 = inlined_call_operand.vmem [shape: f32[50,50], index: 1, kind: input, shape index: {}]
  %s2 = inlined_call_operand.vmem [shape: f32[1,32], index: 2, kind: input, shape index: {}]
  %s3 = inlined_call_operand.vmem [shape: f32[1,32], index: 3, kind: input, shape index: {}]
  %s4 = inlined_call_operand.vmem [shape: f32[2,1,32], index: 4, kind: input, shape index: {}]
  %s5 = inlined_call_operand.vmem [shape: f32[2,1,32], index: 5, kind: input, shape index: {}]
  %s6 = inlined_call_operand.vmem [shape: bf16[2,32,128], index: 6, kind: input, shape index: {}]
  %s7 = inlined_call_operand.vmem [shape: f32[2,1,128], index: 7, kind: input, shape index: {}]
  %s8 = inlined_call_operand.vmem [shape: bf16[2,32,32], index: 8, kind: input, shape index: {}]
  %s9 = inlined_call_operand.vmem [shape: f32[2,1,32], index: 9, kind: input, shape index: {}]
  %s10 = inlined_call_operand.vmem [shape: f32[2,1,32], index: 10, kind: input, shape index: {}]
  %s11 = inlined_call_operand.vmem [shape: f32[2,1,32], index: 11, kind: input, shape index: {}]
  %s12 = inlined_call_operand.vmem [shape: bf16[2,32,128], index: 12, kind: input, shape index: {}]
  %s13 = inlined_call_operand.vmem [shape: f32[2,1,128], index: 13, kind: input, shape index: {}]
  %s14 = inlined_call_operand.vmem [shape: bf16[2,128,32], index: 14, kind: input, shape index: {}]
  %s15 = inlined_call_operand.vmem [shape: f32[2,1,32], index: 15, kind: input, shape index: {}]
  %s16 = inlined_call_operand.vmem [shape: f32[50,32], index: 16, kind: output, shape index: {0}]
  %s17 = inlined_call_operand.hbm [shape: f32[2,32], index: 17, kind: output, shape index: {1}]
  %18 = xla_tuple %s16, %s17
  %s19 = sld [smem:[#allocation0]]
  $region113: #{vit_bert_plus_forward.3} parent=0
    _
  %s21 = ssub.s32 1, %s19
  %s22 = scalar_select 0, %s21, %s19
  $region1: #{vit_bert_plus_forward.3} parent=0
    #allocation3 [shape = 'u8[1024]{0}', space=vmem, size = 0x400, scoped, tag = 'output window, operand 1, single buffered']
    #allocation4 [shape = 's32[2]{0}', space=sflag, size = 0x8, scoped, tag = 'scoped memory for vit_bert_plus_forward.3']
    %23 = vsyncpa [#allocation4], 0
    loop: start=0, step=1, limit=4
    $region2: #{vit_bert_plus_forward.3} parent=1 // loop_pre_header
      _
    $region3: #{vit_bert_plus_forward.3} parent=1 // loop_header
      %s25 = sphi 0, %s29
      %p26 = scmp.ge.s32.totalorder %s25, 4
      %s33 = sphi 0, %s33
      %s35 = sphi 0, %s33
      %s36 = sphi 0, %s35
      %s50 = sphi 0, %s36
      %s54 = sphi 0, %s54
      %s56 = sphi 0, %s54
      %s57 = sphi 0, %s56
      %s71 = sphi 0, %s57
      %s75 = sphi 0, %s75
      %s77 = sphi 0, %s75
      %s78 = sphi 0, %s77
      %s92 = sphi 0, %s78
      %s96 = sphi 0, %s96
      %s98 = sphi 0, %s96
      %s99 = sphi 0, %s98
      %s113 = sphi 0, %s99
      %s119 = sphi 0, %s121
      %s122 = sphi 0, %s119
      %s123 = sphi 0, %s122
      %s139 = sphi 0, %s123
      %s145 = sphi 0, %s147
      %s148 = sphi 0, %s145
      %s149 = sphi 0, %s148
      %s165 = sphi 0, %s149
      %s171 = sphi 0, %s173
      %s174 = sphi 0, %s171
      %s175 = sphi 0, %s174
      %s191 = sphi 0, %s175
      %s197 = sphi 0, %s199
      %s200 = sphi 0, %s197
      %s201 = sphi 0, %s200
      %s217 = sphi 0, %s201
      %s223 = sphi 0, %s225
      %s226 = sphi 0, %s223
      %s227 = sphi 0, %s226
      %s243 = sphi 0, %s227
      %s249 = sphi 0, %s251
      %s252 = sphi 0, %s249
      %s253 = sphi 0, %s252
      %s269 = sphi 0, %s253
      %s275 = sphi 0, %s277
      %s278 = sphi 0, %s275
      %s279 = sphi 0, %s278
      %s295 = sphi 0, %s279
      %s301 = sphi 0, %s303
      %s304 = sphi 0, %s301
      %s305 = sphi 0, %s304
      %s321 = sphi 0, %s305
      %s327 = sphi 0, %s329
      %s330 = sphi 0, %s327
      %s331 = sphi 0, %s330
      %s347 = sphi 0, %s331
      %s353 = sphi 0, %s355
      %s356 = sphi 0, %s353
      %s357 = sphi 0, %s356
      %s373 = sphi 0, %s357
      %s379 = sphi 0, %s381
      %s382 = sphi 0, %s379
      %s383 = sphi 0, %s382
      %s399 = sphi 0, %s383
      %s405 = sphi 0, %s407
      %s408 = sphi 0, %s405
      %s409 = sphi 0, %s408
      %s425 = sphi 0, %s409
      %s429 = sphi 0, %s429
      %s431 = sphi 0, %s429
      %s432 = sphi 0, %s431
      %s446 = sphi 0, %s432
      %s450 = sphi 0, %s450
      %s452 = sphi 0, %s450
      %s453 = sphi 0, %s452
      %s467 = sphi 0, %s453
    $region4: #{vit_bert_plus_forward.3} parent=1 // loop_header_branch
      %28 = sbr.rel (%p26) target = $region8
    $region5: #{vit_bert_plus_forward.3} parent=1 // loop_body
      %s30 = ssub.s32 %s25, 1
      %s31 = ssub.s32 %s25, 2
      %s32 = sadd.s32 %s25, 1
      %s34 = sadd.s32 %s33, 1
      %p37 = scmp.eq.s32.totalorder %s25, 1
      %p38 = scmp.ne.s32.totalorder %s33, %s35
      %p39 = scmp.eq.s32.totalorder %s25, 0
      %p40 = por %p38, %p39
      %p41 = scmp.ne.s32.totalorder %s33, %s35
      %p42 = scmp.eq.s32.totalorder %s30, 1
      %p43 = por %p41, %p42
      %p44 = scmp.ne.s32.totalorder %s35, %s36
      %p45 = scmp.eq.s32.totalorder %s30, 0
      %p46 = por %p44, %p45
      %p47 = scmp.ne.s32.totalorder %s35, %s36
      %p48 = scmp.eq.s32.totalorder %s31, 1
      %p49 = por %p47, %p48
      %p51 = scmp.ne.s32.totalorder %s36, %s50
      %p52 = scmp.eq.s32.totalorder %s31, 0
      %p53 = por %p51, %p52
      %s55 = sadd.s32 %s54, 1
      %p58 = scmp.eq.s32.totalorder %s25, 1
      %p59 = scmp.ne.s32.totalorder %s54, %s56
      %p60 = scmp.eq.s32.totalorder %s25, 0
      %p61 = por %p59, %p60
      %p62 = scmp.ne.s32.totalorder %s54, %s56
      %p63 = scmp.eq.s32.totalorder %s30, 1
      %p64 = por %p62, %p63
      %p65 = scmp.ne.s32.totalorder %s56, %s57
      %p66 = scmp.eq.s32.totalorder %s30, 0
      %p67 = por %p65, %p66
      %p68 = scmp.ne.s32.totalorder %s56, %s57
      %p69 = scmp.eq.s32.totalorder %s31, 1
      %p70 = por %p68, %p69
      %p72 = scmp.ne.s32.totalorder %s57, %s71
      %p73 = scmp.eq.s32.totalorder %s31, 0
      %p74 = por %p72, %p73
      %s76 = sadd.s32 %s75, 1
      %p79 = scmp.eq.s32.totalorder %s25, 1
      %p80 = scmp.ne.s32.totalorder %s75, %s77
      %p81 = scmp.eq.s32.totalorder %s25, 0
      %p82 = por %p80, %p81
      %p83 = scmp.ne.s32.totalorder %s75, %s77
      %p84 = scmp.eq.s32.totalorder %s30, 1
      %p85 = por %p83, %p84
      %p86 = scmp.ne.s32.totalorder %s77, %s78
      %p87 = scmp.eq.s32.totalorder %s30, 0
      %p88 = por %p86, %p87
      %p89 = scmp.ne.s32.totalorder %s77, %s78
      %p90 = scmp.eq.s32.totalorder %s31, 1
      %p91 = por %p89, %p90
      %p93 = scmp.ne.s32.totalorder %s78, %s92
      %p94 = scmp.eq.s32.totalorder %s31, 0
      %p95 = por %p93, %p94
      %s97 = sadd.s32 %s96, 1
      %p100 = scmp.eq.s32.totalorder %s25, 1
      %p101 = scmp.ne.s32.totalorder %s96, %s98
      %p102 = scmp.eq.s32.totalorder %s25, 0
      %p103 = por %p101, %p102
      %p104 = scmp.ne.s32.totalorder %s96, %s98
      %p105 = scmp.eq.s32.totalorder %s30, 1
      %p106 = por %p104, %p105
      %p107 = scmp.ne.s32.totalorder %s98, %s99
      %p108 = scmp.eq.s32.totalorder %s30, 0
      %p109 = por %p107, %p108
      %p110 = scmp.ne.s32.totalorder %s98, %s99
      %p111 = scmp.eq.s32.totalorder %s31, 1
      %p112 = por %p110, %p111
      %p114 = scmp.ne.s32.totalorder %s99, %s113
      %p115 = scmp.eq.s32.totalorder %s31, 0
      %p116 = por %p114, %p115
      %s117 = ssub.s32 %s25, %s32
      %p118 = scmp.eq.s32.totalorder %s117, 0
      %s120 = sadd.s32 %s119, 1
      %s121 = scalar_select %p118, %s119, %s120
      %p124 = pneg %p118
      %p125 = scmp.eq.s32.totalorder %s25, 1
      %p126 = por %p124, %p125
      %p127 = scmp.ne.s32.totalorder %s119, %s122
      %p128 = scmp.eq.s32.totalorder %s25, 0
      %p129 = por %p127, %p128
      %p130 = scmp.ne.s32.totalorder %s119, %s122
      %p131 = scmp.eq.s32.totalorder %s30, 1
      %p132 = por %p130, %p131
      %p133 = scmp.ne.s32.totalorder %s122, %s123
      %p134 = scmp.eq.s32.totalorder %s30, 0
      %p135 = por %p133, %p134
      %p136 = scmp.ne.s32.totalorder %s122, %s123
      %p137 = scmp.eq.s32.totalorder %s31, 1
      %p138 = por %p136, %p137
      %p140 = scmp.ne.s32.totalorder %s123, %s139
      %p141 = scmp.eq.s32.totalorder %s31, 0
      %p142 = por %p140, %p141
      %s143 = ssub.s32 %s25, %s32
      %p144 = scmp.eq.s32.totalorder %s143, 0
      %s146 = sadd.s32 %s145, 1
      %s147 = scalar_select %p144, %s145, %s146
      %p150 = pneg %p144
      %p151 = scmp.eq.s32.totalorder %s25, 1
      %p152 = por %p150, %p151
      %p153 = scmp.ne.s32.totalorder %s145, %s148
      %p154 = scmp.eq.s32.totalorder %s25, 0
      %p155 = por %p153, %p154
      %p156 = scmp.ne.s32.totalorder %s145, %s148
      %p157 = scmp.eq.s32.totalorder %s30, 1
      %p158 = por %p156, %p157
      %p159 = scmp.ne.s32.totalorder %s148, %s149
      %p160 = scmp.eq.s32.totalorder %s30, 0
      %p161 = por %p159, %p160
      %p162 = scmp.ne.s32.totalorder %s148, %s149
      %p163 = scmp.eq.s32.totalorder %s31, 1
      %p164 = por %p162, %p163
      %p166 = scmp.ne.s32.totalorder %s149, %s165
      %p167 = scmp.eq.s32.totalorder %s31, 0
      %p168 = por %p166, %p167
      %s169 = ssub.s32 %s25, %s32
      %p170 = scmp.eq.s32.totalorder %s169, 0
      %s172 = sadd.s32 %s171, 1
      %s173 = scalar_select %p170, %s171, %s172
      %p176 = pneg %p170
      %p177 = scmp.eq.s32.totalorder %s25, 1
      %p178 = por %p176, %p177
      %p179 = scmp.ne.s32.totalorder %s171, %s174
      %p180 = scmp.eq.s32.totalorder %s25, 0
      %p181 = por %p179, %p180
      %p182 = scmp.ne.s32.totalorder %s171, %s174
      %p183 = scmp.eq.s32.totalorder %s30, 1
      %p184 = por %p182, %p183
      %p185 = scmp.ne.s32.totalorder %s174, %s175
      %p186 = scmp.eq.s32.totalorder %s30, 0
      %p187 = por %p185, %p186
      %p188 = scmp.ne.s32.totalorder %s174, %s175
      %p189 = scmp.eq.s32.totalorder %s31, 1
      %p190 = por %p188, %p189
      %p192 = scmp.ne.s32.totalorder %s175, %s191
      %p193 = scmp.eq.s32.totalorder %s31, 0
      %p194 = por %p192, %p193
      %s195 = ssub.s32 %s25, %s32
      %p196 = scmp.eq.s32.totalorder %s195, 0
      %s198 = sadd.s32 %s197, 1
      %s199 = scalar_select %p196, %s197, %s198
      %p202 = pneg %p196
      %p203 = scmp.eq.s32.totalorder %s25, 1
      %p204 = por %p202, %p203
      %p205 = scmp.ne.s32.totalorder %s197, %s200
      %p206 = scmp.eq.s32.totalorder %s25, 0
      %p207 = por %p205, %p206
      %p208 = scmp.ne.s32.totalorder %s197, %s200
      %p209 = scmp.eq.s32.totalorder %s30, 1
      %p210 = por %p208, %p209
      %p211 = scmp.ne.s32.totalorder %s200, %s201
      %p212 = scmp.eq.s32.totalorder %s30, 0
      %p213 = por %p211, %p212
      %p214 = scmp.ne.s32.totalorder %s200, %s201
      %p215 = scmp.eq.s32.totalorder %s31, 1
      %p216 = por %p214, %p215
      %p218 = scmp.ne.s32.totalorder %s201, %s217
      %p219 = scmp.eq.s32.totalorder %s31, 0
      %p220 = por %p218, %p219
      %s221 = ssub.s32 %s25, %s32
      %p222 = scmp.eq.s32.totalorder %s221, 0
      %s224 = sadd.s32 %s223, 1
      %s225 = scalar_select %p222, %s223, %s224
      %p228 = pneg %p222
      %p229 = scmp.eq.s32.totalorder %s25, 1
      %p230 = por %p228, %p229
      %p231 = scmp.ne.s32.totalorder %s223, %s226
      %p232 = scmp.eq.s32.totalorder %s25, 0
      %p233 = por %p231, %p232
      %p234 = scmp.ne.s32.totalorder %s223, %s226
      %p235 = scmp.eq.s32.totalorder %s30, 1
      %p236 = por %p234, %p235
      %p237 = scmp.ne.s32.totalorder %s226, %s227
      %p238 = scmp.eq.s32.totalorder %s30, 0
      %p239 = por %p237, %p238
      %p240 = scmp.ne.s32.totalorder %s226, %s227
      %p241 = scmp.eq.s32.totalorder %s31, 1
      %p242 = por %p240, %p241
      %p244 = scmp.ne.s32.totalorder %s227, %s243
      %p245 = scmp.eq.s32.totalorder %s31, 0
      %p246 = por %p244, %p245
      %s247 = ssub.s32 %s25, %s32
      %p248 = scmp.eq.s32.totalorder %s247, 0
      %s250 = sadd.s32 %s249, 1
      %s251 = scalar_select %p248, %s249, %s250
      %p254 = pneg %p248
      %p255 = scmp.eq.s32.totalorder %s25, 1
      %p256 = por %p254, %p255
      %p257 = scmp.ne.s32.totalorder %s249, %s252
      %p258 = scmp.eq.s32.totalorder %s25, 0
      %p259 = por %p257, %p258
      %p260 = scmp.ne.s32.totalorder %s249, %s252
      %p261 = scmp.eq.s32.totalorder %s30, 1
      %p262 = por %p260, %p261
      %p263 = scmp.ne.s32.totalorder %s252, %s253
      %p264 = scmp.eq.s32.totalorder %s30, 0
      %p265 = por %p263, %p264
      %p266 = scmp.ne.s32.totalorder %s252, %s253
      %p267 = scmp.eq.s32.totalorder %s31, 1
      %p268 = por %p266, %p267
      %p270 = scmp.ne.s32.totalorder %s253, %s269
      %p271 = scmp.eq.s32.totalorder %s31, 0
      %p272 = por %p270, %p271
      %s273 = ssub.s32 %s25, %s32
      %p274 = scmp.eq.s32.totalorder %s273, 0
      %s276 = sadd.s32 %s275, 1
      %s277 = scalar_select %p274, %s275, %s276
      %p280 = pneg %p274
      %p281 = scmp.eq.s32.totalorder %s25, 1
      %p282 = por %p280, %p281
      %p283 = scmp.ne.s32.totalorder %s275, %s278
      %p284 = scmp.eq.s32.totalorder %s25, 0
      %p285 = por %p283, %p284
      %p286 = scmp.ne.s32.totalorder %s275, %s278
      %p287 = scmp.eq.s32.totalorder %s30, 1
      %p288 = por %p286, %p287
      %p289 = scmp.ne.s32.totalorder %s278, %s279
      %p290 = scmp.eq.s32.totalorder %s30, 0
      %p291 = por %p289, %p290
      %p292 = scmp.ne.s32.totalorder %s278, %s279
      %p293 = scmp.eq.s32.totalorder %s31, 1
      %p294 = por %p292, %p293
      %p296 = scmp.ne.s32.totalorder %s279, %s295
      %p297 = scmp.eq.s32.totalorder %s31, 0
      %p298 = por %p296, %p297
      %s299 = ssub.s32 %s25, %s32
      %p300 = scmp.eq.s32.totalorder %s299, 0
      %s302 = sadd.s32 %s301, 1
      %s303 = scalar_select %p300, %s301, %s302
      %p306 = pneg %p300
      %p307 = scmp.eq.s32.totalorder %s25, 1
      %p308 = por %p306, %p307
      %p309 = scmp.ne.s32.totalorder %s301, %s304
      %p310 = scmp.eq.s32.totalorder %s25, 0
      %p311 = por %p309, %p310
      %p312 = scmp.ne.s32.totalorder %s301, %s304
      %p313 = scmp.eq.s32.totalorder %s30, 1
      %p314 = por %p312, %p313
      %p315 = scmp.ne.s32.totalorder %s304, %s305
      %p316 = scmp.eq.s32.totalorder %s30, 0
      %p317 = por %p315, %p316
      %p318 = scmp.ne.s32.totalorder %s304, %s305
      %p319 = scmp.eq.s32.totalorder %s31, 1
      %p320 = por %p318, %p319
      %p322 = scmp.ne.s32.totalorder %s305, %s321
      %p323 = scmp.eq.s32.totalorder %s31, 0
      %p324 = por %p322, %p323
      %s325 = ssub.s32 %s25, %s32
      %p326 = scmp.eq.s32.totalorder %s325, 0
      %s328 = sadd.s32 %s327, 1
      %s329 = scalar_select %p326, %s327, %s328
      %p332 = pneg %p326
      %p333 = scmp.eq.s32.totalorder %s25, 1
      %p334 = por %p332, %p333
      %p335 = scmp.ne.s32.totalorder %s327, %s330
      %p336 = scmp.eq.s32.totalorder %s25, 0
      %p337 = por %p335, %p336
      %p338 = scmp.ne.s32.totalorder %s327, %s330
      %p339 = scmp.eq.s32.totalorder %s30, 1
      %p340 = por %p338, %p339
      %p341 = scmp.ne.s32.totalorder %s330, %s331
      %p342 = scmp.eq.s32.totalorder %s30, 0
      %p343 = por %p341, %p342
      %p344 = scmp.ne.s32.totalorder %s330, %s331
      %p345 = scmp.eq.s32.totalorder %s31, 1
      %p346 = por %p344, %p345
      %p348 = scmp.ne.s32.totalorder %s331, %s347
      %p349 = scmp.eq.s32.totalorder %s31, 0
      %p350 = por %p348, %p349
      %s351 = ssub.s32 %s25, %s32
      %p352 = scmp.eq.s32.totalorder %s351, 0
      %s354 = sadd.s32 %s353, 1
      %s355 = scalar_select %p352, %s353, %s354
      %p358 = pneg %p352
      %p359 = scmp.eq.s32.totalorder %s25, 1
      %p360 = por %p358, %p359
      %p361 = scmp.ne.s32.totalorder %s353, %s356
      %p362 = scmp.eq.s32.totalorder %s25, 0
      %p363 = por %p361, %p362
      %p364 = scmp.ne.s32.totalorder %s353, %s356
      %p365 = scmp.eq.s32.totalorder %s30, 1
      %p366 = por %p364, %p365
      %p367 = scmp.ne.s32.totalorder %s356, %s357
      %p368 = scmp.eq.s32.totalorder %s30, 0
      %p369 = por %p367, %p368
      %p370 = scmp.ne.s32.totalorder %s356, %s357
      %p371 = scmp.eq.s32.totalorder %s31, 1
      %p372 = por %p370, %p371
      %p374 = scmp.ne.s32.totalorder %s357, %s373
      %p375 = scmp.eq.s32.totalorder %s31, 0
      %p376 = por %p374, %p375
      %s377 = ssub.s32 %s25, %s32
      %p378 = scmp.eq.s32.totalorder %s377, 0
      %s380 = sadd.s32 %s379, 1
      %s381 = scalar_select %p378, %s379, %s380
      %p384 = pneg %p378
      %p385 = scmp.eq.s32.totalorder %s25, 1
      %p386 = por %p384, %p385
      %p387 = scmp.ne.s32.totalorder %s379, %s382
      %p388 = scmp.eq.s32.totalorder %s25, 0
      %p389 = por %p387, %p388
      %p390 = scmp.ne.s32.totalorder %s379, %s382
      %p391 = scmp.eq.s32.totalorder %s30, 1
      %p392 = por %p390, %p391
      %p393 = scmp.ne.s32.totalorder %s382, %s383
      %p394 = scmp.eq.s32.totalorder %s30, 0
      %p395 = por %p393, %p394
      %p396 = scmp.ne.s32.totalorder %s382, %s383
      %p397 = scmp.eq.s32.totalorder %s31, 1
      %p398 = por %p396, %p397
      %p400 = scmp.ne.s32.totalorder %s383, %s399
      %p401 = scmp.eq.s32.totalorder %s31, 0
      %p402 = por %p400, %p401
      %s403 = ssub.s32 %s25, %s32
      %p404 = scmp.eq.s32.totalorder %s403, 0
      %s406 = sadd.s32 %s405, 1
      %s407 = scalar_select %p404, %s405, %s406
      %p410 = pneg %p404
      %p411 = scmp.eq.s32.totalorder %s25, 1
      %p412 = por %p410, %p411
      %p413 = scmp.ne.s32.totalorder %s405, %s408
      %p414 = scmp.eq.s32.totalorder %s25, 0
      %p415 = por %p413, %p414
      %p416 = scmp.ne.s32.totalorder %s405, %s408
      %p417 = scmp.eq.s32.totalorder %s30, 1
      %p418 = por %p416, %p417
      %p419 = scmp.ne.s32.totalorder %s408, %s409
      %p420 = scmp.eq.s32.totalorder %s30, 0
      %p421 = por %p419, %p420
      %p422 = scmp.ne.s32.totalorder %s408, %s409
      %p423 = scmp.eq.s32.totalorder %s31, 1
      %p424 = por %p422, %p423
      %p426 = scmp.ne.s32.totalorder %s409, %s425
      %p427 = scmp.eq.s32.totalorder %s31, 0
      %p428 = por %p426, %p427
      %s430 = sadd.s32 %s429, 1
      %p433 = scmp.eq.s32.totalorder %s25, 1
      %p434 = scmp.ne.s32.totalorder %s429, %s431
      %p435 = scmp.eq.s32.totalorder %s25, 0
      %p436 = por %p434, %p435
      %p437 = scmp.ne.s32.totalorder %s429, %s431
      %p438 = scmp.eq.s32.totalorder %s30, 1
      %p439 = por %p437, %p438
      %p440 = scmp.ne.s32.totalorder %s431, %s432
      %p441 = scmp.eq.s32.totalorder %s30, 0
      %p442 = por %p440, %p441
      %p443 = scmp.ne.s32.totalorder %s431, %s432
      %p444 = scmp.eq.s32.totalorder %s31, 1
      %p445 = por %p443, %p444
      %p447 = scmp.ne.s32.totalorder %s432, %s446
      %p448 = scmp.eq.s32.totalorder %s31, 0
      %p449 = por %p447, %p448
      %s451 = sadd.s32 %s450, 1
      %p454 = scmp.eq.s32.totalorder %s25, 1
      %p455 = scmp.ne.s32.totalorder %s450, %s452
      %p456 = scmp.eq.s32.totalorder %s25, 0
      %p457 = por %p455, %p456
      %p458 = scmp.ne.s32.totalorder %s450, %s452
      %p459 = scmp.eq.s32.totalorder %s30, 1
      %p460 = por %p458, %p459
      %p461 = scmp.ne.s32.totalorder %s452, %s453
      %p462 = scmp.eq.s32.totalorder %s30, 0
      %p463 = por %p461, %p462
      %p464 = scmp.ne.s32.totalorder %s452, %s453
      %p465 = scmp.eq.s32.totalorder %s31, 1
      %p466 = por %p464, %p465
      %p468 = scmp.ne.s32.totalorder %s453, %s467
      %p469 = scmp.eq.s32.totalorder %s31, 0
      %p470 = por %p468, %p469
      %p471 = scmp.le.s32.totalorder 1, %s25
      %p472 = scmp.lt.s32.totalorder %s25, 3
      %p473 = pnand %p471, %p472
      %p474 = pneg %p473
      // Predicated region
      $region9: #{vit_bert_plus_forward.3} parent=5 // pred_check
        _
      $region10: #{vit_bert_plus_forward.3} parent=5 // pred_check_branch
        %476 = sbr.rel (%p473) target = $region12
      $region11: #{vit_bert_plus_forward.3} parent=5 // pred_region
        %s477 = ssub.s32 %s25, 1
        // Predicated region
        $region13: #{vit_bert_plus_forward.3} parent=11 // pred_check
          %p478 = pneg %p46
        $region14: #{vit_bert_plus_forward.3} parent=11 // pred_check_branch
          %480 = sbr.rel (%p478) target = $region16
        $region15: #{vit_bert_plus_forward.3} parent=11 // pred_region
          _
        $region16: #{vit_bert_plus_forward.3} parent=11 // pred_fallthru
          _
        // Predicated region
        $region17: #{vit_bert_plus_forward.3} parent=11 // pred_check
          %p481 = pneg %p67
        $region18: #{vit_bert_plus_forward.3} parent=11 // pred_check_branch
          %483 = sbr.rel (%p481) target = $region20
        $region19: #{vit_bert_plus_forward.3} parent=11 // pred_region
          _
        $region20: #{vit_bert_plus_forward.3} parent=11 // pred_fallthru
          _
        // Predicated region
        $region21: #{vit_bert_plus_forward.3} parent=11 // pred_check
          %p484 = pneg %p88
        $region22: #{vit_bert_plus_forward.3} parent=11 // pred_check_branch
          %486 = sbr.rel (%p484) target = $region24
        $region23: #{vit_bert_plus_forward.3} parent=11 // pred_region
          _
        $region24: #{vit_bert_plus_forward.3} parent=11 // pred_fallthru
          _
        // Predicated region
        $region25: #{vit_bert_plus_forward.3} parent=11 // pred_check
          %p487 = pneg %p109
        $region26: #{vit_bert_plus_forward.3} parent=11 // pred_check_branch
          %489 = sbr.rel (%p487) target = $region28
        $region27: #{vit_bert_plus_forward.3} parent=11 // pred_region
          _
        $region28: #{vit_bert_plus_forward.3} parent=11 // pred_fallthru
          _
      $region12: #{vit_bert_plus_forward.3} parent=5 // pred_fallthru
        _
      %p490 = scmp.lt.s32.totalorder %s25, 2
      // Predicated region
      $region29: #{vit_bert_plus_forward.3} parent=5 // pred_check
        %p491 = pneg %p490
      $region30: #{vit_bert_plus_forward.3} parent=5 // pred_check_branch
        %493 = sbr.rel (%p491) target = $region32
      $region31: #{vit_bert_plus_forward.3} parent=5 // pred_region
        // Predicated region
        $region33: #{vit_bert_plus_forward.3} parent=31 // pred_check
          %p494 = pneg %p129
        $region34: #{vit_bert_plus_forward.3} parent=31 // pred_check_branch
          %496 = sbr.rel (%p494) target = $region36
        $region35: #{vit_bert_plus_forward.3} parent=31 // pred_region
          %p497 = scmp.lt.s32.totalorder %s25, 1
          %s498 = scalar_select %p497, %s25, 1
          %s499 = scalar_lea.vmem %s4, %s498
        $region36: #{vit_bert_plus_forward.3} parent=31 // pred_fallthru
          _
        // Predicated region
        $region37: #{vit_bert_plus_forward.3} parent=31 // pred_check
          %p500 = pneg %p155
        $region38: #{vit_bert_plus_forward.3} parent=31 // pred_check_branch
          %502 = sbr.rel (%p500) target = $region40
        $region39: #{vit_bert_plus_forward.3} parent=31 // pred_region
          %p503 = scmp.lt.s32.totalorder %s25, 1
          %s504 = scalar_select %p503, %s25, 1
          %s505 = scalar_lea.vmem %s5, %s504
        $region40: #{vit_bert_plus_forward.3} parent=31 // pred_fallthru
          _
        // Predicated region
        $region41: #{vit_bert_plus_forward.3} parent=31 // pred_check
          %p506 = pneg %p181
        $region42: #{vit_bert_plus_forward.3} parent=31 // pred_check_branch
          %508 = sbr.rel (%p506) target = $region44
        $region43: #{vit_bert_plus_forward.3} parent=31 // pred_region
          %p509 = scmp.lt.s32.totalorder %s25, 1
          %s510 = scalar_select %p509, %s25, 1
          %s511 = smul.addr %s510, 4
          %s512 = smul.addr %s511, 4
          %s513 = scalar_lea.vmem %s6, %s512
        $region44: #{vit_bert_plus_forward.3} parent=31 // pred_fallthru
          _
        // Predicated region
        $region45: #{vit_bert_plus_forward.3} parent=31 // pred_check
          %p514 = pneg %p207
        $region46: #{vit_bert_plus_forward.3} parent=31 // pred_check_branch
          %516 = sbr.rel (%p514) target = $region48
        $region47: #{vit_bert_plus_forward.3} parent=31 // pred_region
          %p517 = scmp.lt.s32.totalorder %s25, 1
          %s518 = scalar_select %p517, %s25, 1
          %s519 = scalar_lea.vmem %s7, %s518
        $region48: #{vit_bert_plus_forward.3} parent=31 // pred_fallthru
          _
        // Predicated region
        $region49: #{vit_bert_plus_forward.3} parent=31 // pred_check
          %p520 = pneg %p233
        $region50: #{vit_bert_plus_forward.3} parent=31 // pred_check_branch
          %522 = sbr.rel (%p520) target = $region52
        $region51: #{vit_bert_plus_forward.3} parent=31 // pred_region
          %p523 = scmp.lt.s32.totalorder %s25, 1
          %s524 = scalar_select %p523, %s25, 1
          %s525 = smul.addr %s524, 4
          %s526 = smul.addr %s525, 4
          %s527 = scalar_lea.vmem %s8, %s526
        $region52: #{vit_bert_plus_forward.3} parent=31 // pred_fallthru
          _
        // Predicated region
        $region53: #{vit_bert_plus_forward.3} parent=31 // pred_check
          %p528 = pneg %p259
        $region54: #{vit_bert_plus_forward.3} parent=31 // pred_check_branch
          %530 = sbr.rel (%p528) target = $region56
        $region55: #{vit_bert_plus_forward.3} parent=31 // pred_region
          %p531 = scmp.lt.s32.totalorder %s25, 1
          %s532 = scalar_select %p531, %s25, 1
          %s533 = scalar_lea.vmem %s9, %s532
        $region56: #{vit_bert_plus_forward.3} parent=31 // pred_fallthru
          _
        // Predicated region
        $region57: #{vit_bert_plus_forward.3} parent=31 // pred_check
          %p534 = pneg %p285
        $region58: #{vit_bert_plus_forward.3} parent=31 // pred_check_branch
          %536 = sbr.rel (%p534) target = $region60
        $region59: #{vit_bert_plus_forward.3} parent=31 // pred_region
          %p537 = scmp.lt.s32.totalorder %s25, 1
          %s538 = scalar_select %p537, %s25, 1
          %s539 = scalar_lea.vmem %s10, %s538
        $region60: #{vit_bert_plus_forward.3} parent=31 // pred_fallthru
          _
        // Predicated region
        $region61: #{vit_bert_plus_forward.3} parent=31 // pred_check
          %p540 = pneg %p311
        $region62: #{vit_bert_plus_forward.3} parent=31 // pred_check_branch
          %542 = sbr.rel (%p540) target = $region64
        $region63: #{vit_bert_plus_forward.3} parent=31 // pred_region
          %p543 = scmp.lt.s32.totalorder %s25, 1
          %s544 = scalar_select %p543, %s25, 1
          %s545 = scalar_lea.vmem %s11, %s544
        $region64: #{vit_bert_plus_forward.3} parent=31 // pred_fallthru
          _
        // Predicated region
        $region65: #{vit_bert_plus_forward.3} parent=31 // pred_check
          %p546 = pneg %p337
        $region66: #{vit_bert_plus_forward.3} parent=31 // pred_check_branch
          %548 = sbr.rel (%p546) target = $region68
        $region67: #{vit_bert_plus_forward.3} parent=31 // pred_region
          %p549 = scmp.lt.s32.totalorder %s25, 1
          %s550 = scalar_select %p549, %s25, 1
          %s551 = smul.addr %s550, 4
          %s552 = smul.addr %s551, 4
          %s553 = scalar_lea.vmem %s12, %s552
        $region68: #{vit_bert_plus_forward.3} parent=31 // pred_fallthru
          _
        // Predicated region
        $region69: #{vit_bert_plus_forward.3} parent=31 // pred_check
          %p554 = pneg %p363
        $region70: #{vit_bert_plus_forward.3} parent=31 // pred_check_branch
          %556 = sbr.rel (%p554) target = $region72
        $region71: #{vit_bert_plus_forward.3} parent=31 // pred_region
          %p557 = scmp.lt.s32.totalorder %s25, 1
          %s558 = scalar_select %p557, %s25, 1
          %s559 = scalar_lea.vmem %s13, %s558
        $region72: #{vit_bert_plus_forward.3} parent=31 // pred_fallthru
          _
        // Predicated region
        $region73: #{vit_bert_plus_forward.3} parent=31 // pred_check
          %p560 = pneg %p389
        $region74: #{vit_bert_plus_forward.3} parent=31 // pred_check_branch
          %562 = sbr.rel (%p560) target = $region76
        $region75: #{vit_bert_plus_forward.3} parent=31 // pred_region
          %p563 = scmp.lt.s32.totalorder %s25, 1
          %s564 = scalar_select %p563, %s25, 1
          %s565 = smul.addr %s564, 16
          %s566 = smul.addr %s565, 4
          %s567 = scalar_lea.vmem %s14, %s566
        $region76: #{vit_bert_plus_forward.3} parent=31 // pred_fallthru
          _
        // Predicated region
        $region77: #{vit_bert_plus_forward.3} parent=31 // pred_check
          %p568 = pneg %p415
        $region78: #{vit_bert_plus_forward.3} parent=31 // pred_check_branch
          %570 = sbr.rel (%p568) target = $region80
        $region79: #{vit_bert_plus_forward.3} parent=31 // pred_region
          %p571 = scmp.lt.s32.totalorder %s25, 1
          %s572 = scalar_select %p571, %s25, 1
          %s573 = scalar_lea.vmem %s15, %s572
        $region80: #{vit_bert_plus_forward.3} parent=31 // pred_fallthru
          _
      $region32: #{vit_bert_plus_forward.3} parent=5 // pred_fallthru
        _
      %p574 = scmp.le.s32.totalorder 1, %s25
      %p575 = scmp.lt.s32.totalorder %s25, 3
      %p576 = pnand %p574, %p575
      %p577 = pneg %p576
      // Predicated region
      $region81: #{vit_bert_plus_forward.3} parent=5 // pred_check
        _
      $region82: #{vit_bert_plus_forward.3} parent=5 // pred_check_branch
        %579 = sbr.rel (%p576) target = $region84
      $region83: #{vit_bert_plus_forward.3} parent=5 // pred_region
        %s580 = ssub.s32 %s25, 1
        %p581 = pneg %p46
        %p582 = pneg %p43
        %p583 = pneg %p67
        %p584 = pneg %p64
        %p585 = pneg %p88
        %p586 = pneg %p85
        %p587 = pneg %p109
        %p588 = pneg %p106
        %p589 = scmp.lt.s32.totalorder %s30, 1
        %s590 = scalar_select %p589, %s30, 1
        %s591 = scalar_lea.vmem %s4, %s590
        %p592 = pneg %p135
        %p593 = pneg %p132
        %p594 = scmp.lt.s32.totalorder %s30, 1
        %s595 = scalar_select %p594, %s30, 1
        %s596 = scalar_lea.vmem %s5, %s595
        %p597 = pneg %p161
        %p598 = pneg %p158
        %p599 = scmp.lt.s32.totalorder %s30, 1
        %s600 = scalar_select %p599, %s30, 1
        %s601 = smul.addr %s600, 4
        %s602 = smul.addr %s601, 4
        %s603 = scalar_lea.vmem %s6, %s602
        %p604 = pneg %p187
        %p605 = pneg %p184
        %p606 = scmp.lt.s32.totalorder %s30, 1
        %s607 = scalar_select %p606, %s30, 1
        %s608 = scalar_lea.vmem %s7, %s607
        %p609 = pneg %p213
        %p610 = pneg %p210
        %p611 = scmp.lt.s32.totalorder %s30, 1
        %s612 = scalar_select %p611, %s30, 1
        %s613 = smul.addr %s612, 4
        %s614 = smul.addr %s613, 4
        %s615 = scalar_lea.vmem %s8, %s614
        %p616 = pneg %p239
        %p617 = pneg %p236
        %p618 = scmp.lt.s32.totalorder %s30, 1
        %s619 = scalar_select %p618, %s30, 1
        %s620 = scalar_lea.vmem %s9, %s619
        %p621 = pneg %p265
        %p622 = pneg %p262
        %p623 = scmp.lt.s32.totalorder %s30, 1
        %s624 = scalar_select %p623, %s30, 1
        %s625 = scalar_lea.vmem %s10, %s624
        %p626 = pneg %p291
        %p627 = pneg %p288
        %p628 = scmp.lt.s32.totalorder %s30, 1
        %s629 = scalar_select %p628, %s30, 1
        %s630 = scalar_lea.vmem %s11, %s629
        %p631 = pneg %p317
        %p632 = pneg %p314
        %p633 = scmp.lt.s32.totalorder %s30, 1
        %s634 = scalar_select %p633, %s30, 1
        %s635 = smul.addr %s634, 4
        %s636 = smul.addr %s635, 4
        %s637 = scalar_lea.vmem %s12, %s636
        %p638 = pneg %p343
        %p639 = pneg %p340
        %p640 = scmp.lt.s32.totalorder %s30, 1
        %s641 = scalar_select %p640, %s30, 1
        %s642 = scalar_lea.vmem %s13, %s641
        %p643 = pneg %p369
        %p644 = pneg %p366
        %p645 = scmp.lt.s32.totalorder %s30, 1
        %s646 = scalar_select %p645, %s30, 1
        %s647 = smul.addr %s646, 16
        %s648 = smul.addr %s647, 4
        %s649 = scalar_lea.vmem %s14, %s648
        %p650 = pneg %p395
        %p651 = pneg %p392
        %p652 = scmp.lt.s32.totalorder %s30, 1
        %s653 = scalar_select %p652, %s30, 1
        %s654 = scalar_lea.vmem %s15, %s653
        %p655 = pneg %p421
        %p656 = pneg %p418
        %p657 = pneg %p442
        %p658 = pneg %p439
        %p659 = pneg %p463
        %p660 = pneg %p460
        %p661 = scmp.lt.s32.totalorder %s30, 1
        %s662 = scalar_select %p661, %s30, 1
        %s663 = scalar_lea.vmem %s4, %s662
        %p664 = scmp.lt.s32.totalorder %s30, 1
        %s665 = scalar_select %p664, %s30, 1
        %s666 = scalar_lea.vmem %s5, %s665
        %p667 = scmp.lt.s32.totalorder %s30, 1
        %s668 = scalar_select %p667, %s30, 1
        %s669 = smul.addr %s668, 4
        %s670 = smul.addr %s669, 4
        %s671 = scalar_lea.vmem %s6, %s670
        %p672 = scmp.lt.s32.totalorder %s30, 1
        %s673 = scalar_select %p672, %s30, 1
        %s674 = scalar_lea.vmem %s7, %s673
        %p675 = scmp.lt.s32.totalorder %s30, 1
        %s676 = scalar_select %p675, %s30, 1
        %s677 = smul.addr %s676, 4
        %s678 = smul.addr %s677, 4
        %s679 = scalar_lea.vmem %s8, %s678
        %p680 = scmp.lt.s32.totalorder %s30, 1
        %s681 = scalar_select %p680, %s30, 1
        %s682 = scalar_lea.vmem %s9, %s681
        %p683 = scmp.lt.s32.totalorder %s30, 1
        %s684 = scalar_select %p683, %s30, 1
        %s685 = scalar_lea.vmem %s10, %s684
        %p686 = scmp.lt.s32.totalorder %s30, 1
        %s687 = scalar_select %p686, %s30, 1
        %s688 = scalar_lea.vmem %s11, %s687
        %p689 = scmp.lt.s32.totalorder %s30, 1
        %s690 = scalar_select %p689, %s30, 1
        %s691 = smul.addr %s690, 4
        %s692 = smul.addr %s691, 4
        %s693 = scalar_lea.vmem %s12, %s692
        %p694 = scmp.lt.s32.totalorder %s30, 1
        %s695 = scalar_select %p694, %s30, 1
        %s696 = scalar_lea.vmem %s13, %s695
        %p697 = scmp.lt.s32.totalorder %s30, 1
        %s698 = scalar_select %p697, %s30, 1
        %s699 = smul.addr %s698, 16
        %s700 = smul.addr %s699, 4
        %s701 = scalar_lea.vmem %s14, %s700
        %p702 = scmp.lt.s32.totalorder %s30, 1
        %s703 = scalar_select %p702, %s30, 1
        %s704 = scalar_lea.vmem %s15, %s703
        %p706 = scmp.eq.s32.totalorder %s30, 0
        // Predicated region
        $region85: #{vit_bert_plus_forward.3} parent=83 // pred_check
          %p707 = pneg %p706
        $region86: #{vit_bert_plus_forward.3} parent=83 // pred_check_branch
          %709 = sbr.rel (%p707) target = $region88
        $region87: #{vit_bert_plus_forward.3} parent=83 // pred_region
          %v710 = vld [vmem:[%s0] sm:$0xff]
          %v711 = vld [vmem:[%s0 + $0x8] sm:$0xff]
          %v712 = vld [vmem:[%s0 + $0x10] sm:$0xff]
          %v713 = vld [vmem:[%s0 + $0x18] sm:$0xff]
          %v714 = vld [vmem:[%s0 + $0x20] sm:$0xff]
          %v715 = vld [vmem:[%s0 + $0x28] sm:$0xff]
          %v716 = vld [vmem:[%s0 + $0x30] sm:$0x3]
          %vm717 = vcmask 261120
          %718 = vst.msk [vmem:[#allocation2] sm:$0xff] %vm717, %v710
          %719 = vst.msk [vmem:[#allocation2 + $0x8] sm:$0xff] %vm717, %v711
          %720 = vst.msk [vmem:[#allocation2 + $0x10] sm:$0xff] %vm717, %v712
          %721 = vst.msk [vmem:[#allocation2 + $0x18] sm:$0xff] %vm717, %v713
          %722 = vst.msk [vmem:[#allocation2 + $0x20] sm:$0xff] %vm717, %v714
          %723 = vst.msk [vmem:[#allocation2 + $0x28] sm:$0xff] %vm717, %v715
          %vm724 = vcmask 254976
          %725 = vst.msk [vmem:[#allocation2 + $0x30] sm:$0x3] %vm724, %v716
        $region88: #{vit_bert_plus_forward.3} parent=83 // pred_fallthru
          _
        %v726 = vld [vmem:[%s663] sm:$0x1]
        %v727 = vld [vmem:[%s666] sm:$0x1]
        %v728 = vld [vmem:[%s671] sm:$0xf]
        %v729 = vld [vmem:[%s671 + $0x4] sm:$0xf]
        %v730 = vld [vmem:[%s671 + $0x8] sm:$0xf]
        %v731 = vld [vmem:[%s671 + $0xc] sm:$0xf]
        %v732 = vld [vmem:[%s674] sm:$0x1]
        %v733 = vld [vmem:[%s679] sm:$0xf]
        %v734 = vld [vmem:[%s679 + $0x4] sm:$0xf]
        %v735 = vld [vmem:[%s679 + $0x8] sm:$0xf]
        %v736 = vld [vmem:[%s679 + $0xc] sm:$0xf]
        %v737 = vld [vmem:[%s682] sm:$0x1]
        %v738 = vld [vmem:[%s685] sm:$0x1]
        %v739 = vld [vmem:[%s688] sm:$0x1]
        %v740 = vld [vmem:[%s693] sm:$0xf]
        %v741 = vld [vmem:[%s693 + $0x4] sm:$0xf]
        %v742 = vld [vmem:[%s693 + $0x8] sm:$0xf]
        %v743 = vld [vmem:[%s693 + $0xc] sm:$0xf]
        %v744 = vld [vmem:[%s696] sm:$0x1]
        %v745 = vld [vmem:[%s701] sm:$0xf]
        %v746 = vld [vmem:[%s701 + $0x4] sm:$0xf]
        %v747 = vld [vmem:[%s701 + $0x8] sm:$0xf]
        %v748 = vld [vmem:[%s701 + $0xc] sm:$0xf]
        %v749 = vld [vmem:[%s701 + $0x10] sm:$0xf]
        %v750 = vld [vmem:[%s701 + $0x14] sm:$0xf]
        %v751 = vld [vmem:[%s701 + $0x18] sm:$0xf]
        %v752 = vld [vmem:[%s701 + $0x1c] sm:$0xf]
        %v753 = vld [vmem:[%s701 + $0x20] sm:$0xf]
        %v754 = vld [vmem:[%s701 + $0x24] sm:$0xf]
        %v755 = vld [vmem:[%s701 + $0x28] sm:$0xf]
        %v756 = vld [vmem:[%s701 + $0x2c] sm:$0xf]
        %v757 = vld [vmem:[%s701 + $0x30] sm:$0xf]
        %v758 = vld [vmem:[%s701 + $0x34] sm:$0xf]
        %v759 = vld [vmem:[%s701 + $0x38] sm:$0xf]
        %v760 = vld [vmem:[%s701 + $0x3c] sm:$0xf]
        %v761 = vld [vmem:[%s704] sm:$0x1]
        %v762 = vld [vmem:[#allocation2] sm:$0xff]
        %v763 = vld [vmem:[#allocation2 + $0x8] sm:$0xff]
        %v764 = vld [vmem:[#allocation2 + $0x10] sm:$0xff]
        %v765 = vld [vmem:[#allocation2 + $0x18] sm:$0xff]
        %v766 = vld [vmem:[#allocation2 + $0x20] sm:$0xff]
        %v767 = vld [vmem:[#allocation2 + $0x28] sm:$0xff]
        %v768 = vld [vmem:[#allocation2 + $0x30] sm:$0x3]
        %v769 = vld [vmem:[%s1] sm:$0xff]
        %v770 = vld [vmem:[%s1 + $0x8] sm:$0xff]
        %v771 = vld [vmem:[%s1 + $0x10] sm:$0xff]
        %v772 = vld [vmem:[%s1 + $0x18] sm:$0xff]
        %v773 = vld [vmem:[%s1 + $0x20] sm:$0xff]
        %v774 = vld [vmem:[%s1 + $0x28] sm:$0xff]
        %v775 = vld [vmem:[%s1 + $0x30] sm:$0x3]
        %vm776 = vcmask 261120
        %v777 = vsel %vm776, %v762, 0.0
        %778 = vadd.xlane.f32.xlu0 %v777
        %v779 = vpop.xlane.xlu0 %778
        %v780 = vsel %vm776, %v763, 0.0
        %781 = vadd.xlane.f32.xlu0 %v780
        %v782 = vpop.xlane.xlu0 %781
        %v783 = vsel %vm776, %v764, 0.0
        %784 = vadd.xlane.f32.xlu0 %v783
        %v785 = vpop.xlane.xlu0 %784
        %v786 = vsel %vm776, %v765, 0.0
        %787 = vadd.xlane.f32.xlu0 %v786
        %v788 = vpop.xlane.xlu0 %787
        %v789 = vsel %vm776, %v766, 0.0
        %790 = vadd.xlane.f32.xlu0 %v789
        %v791 = vpop.xlane.xlu0 %790
        %v792 = vsel %vm776, %v767, 0.0
        %793 = vadd.xlane.f32.xlu0 %v792
        %v794 = vpop.xlane.xlu0 %793
        %vm795 = vcmask 254976
        %v796 = vsel %vm795, %v768, 0.0
        %797 = vadd.xlane.f32.xlu0 %v796
        %v798 = vpop.xlane.xlu0 %797
        %v799 = vrcp.pop 32.0
        %v800 = vmul.f32 32.0, %v799
        %v801 = vsub.f32 1.0, %v800
        %v802 = vmul.f32 %v799, %v801
        %v803 = vadd.f32 %v799, %v802
        %vm804 = vweird.f32 %v799
        %v805 = vsel %vm804, %v799, %v803
        %v806 = vmul.f32 %v779, %v805
        %v807 = vmul.f32 %v782, %v805
        %v808 = vmul.f32 %v785, %v805
        %v809 = vmul.f32 %v788, %v805
        %v810 = vmul.f32 %v791, %v805
        %v811 = vmul.f32 %v794, %v805
        %v812 = vmul.f32 %v798, %v805
        %v813 = vsub.f32 %v762, %v806
        %v814 = vsub.f32 %v763, %v807
        %v815 = vsub.f32 %v764, %v808
        %v816 = vsub.f32 %v765, %v809
        %v817 = vsub.f32 %v766, %v810
        %v818 = vsub.f32 %v767, %v811
        %v819 = vsub.f32 %v768, %v812
        %v820 = vmul.f32 %v813, %v813
        %v821 = vmul.f32 %v814, %v814
        %v822 = vmul.f32 %v815, %v815
        %v823 = vmul.f32 %v816, %v816
        %v824 = vmul.f32 %v817, %v817
        %v825 = vmul.f32 %v818, %v818
        %v826 = vmul.f32 %v819, %v819
        %v827 = vsel %vm776, %v820, 0.0
        %828 = vadd.xlane.f32.xlu0 %v827
        %v829 = vpop.xlane.xlu0 %828
        %v830 = vsel %vm776, %v821, 0.0
        %831 = vadd.xlane.f32.xlu0 %v830
        %v832 = vpop.xlane.xlu0 %831
        %v833 = vsel %vm776, %v822, 0.0
        %834 = vadd.xlane.f32.xlu0 %v833
        %v835 = vpop.xlane.xlu0 %834
        %v836 = vsel %vm776, %v823, 0.0
        %837 = vadd.xlane.f32.xlu0 %v836
        %v838 = vpop.xlane.xlu0 %837
        %v839 = vsel %vm776, %v824, 0.0
        %840 = vadd.xlane.f32.xlu0 %v839
        %v841 = vpop.xlane.xlu0 %840
        %v842 = vsel %vm776, %v825, 0.0
        %843 = vadd.xlane.f32.xlu0 %v842
        %v844 = vpop.xlane.xlu0 %843
        %v845 = vsel %vm795, %v826, 0.0
        %846 = vadd.xlane.f32.xlu0 %v845
        %v847 = vpop.xlane.xlu0 %846
        %v848 = vmul.f32 %v829, %v805
        %v849 = vmul.f32 %v832, %v805
        %v850 = vmul.f32 %v835, %v805
        %v851 = vmul.f32 %v838, %v805
        %v852 = vmul.f32 %v841, %v805
        %v853 = vmul.f32 %v844, %v805
        %v854 = vmul.f32 %v847, %v805
        %v855 = vadd.f32 %v848, 1e-06
        %v856 = vadd.f32 %v849, 1e-06
        %v857 = vadd.f32 %v850, 1e-06
        %v858 = vadd.f32 %v851, 1e-06
        %v859 = vadd.f32 %v852, 1e-06
        %v860 = vadd.f32 %v853, 1e-06
        %v861 = vadd.f32 %v854, 1e-06
        %v862 = vrsqrt.pop %v855
        %v863 = vmul.f32 %v862, %v855
        %v864 = vmul.f32 %v863, %v862
        %v865 = vmul.f32 0.5, %v864
        %v866 = vsub.f32 1.5, %v865
        %v867 = vmul.f32 %v862, %v866
        %vm868 = vweird.f32 %v855
        %vm869 = vweird.f32 %v862
        %vm870 = vmor %vm868, %vm869
        %v871 = vsel %vm870, %v862, %v867
        %v872 = vrsqrt.pop %v856
        %v873 = vmul.f32 %v872, %v856
        %v874 = vmul.f32 %v873, %v872
        %v875 = vmul.f32 0.5, %v874
        %v876 = vsub.f32 1.5, %v875
        %v877 = vmul.f32 %v872, %v876
        %vm878 = vweird.f32 %v856
        %vm879 = vweird.f32 %v872
        %vm880 = vmor %vm878, %vm879
        %v881 = vsel %vm880, %v872, %v877
        %v882 = vrsqrt.pop %v857
        %v883 = vmul.f32 %v882, %v857
        %v884 = vmul.f32 %v883, %v882
        %v885 = vmul.f32 0.5, %v884
        %v886 = vsub.f32 1.5, %v885
        %v887 = vmul.f32 %v882, %v886
        %vm888 = vweird.f32 %v857
        %vm889 = vweird.f32 %v882
        %vm890 = vmor %vm888, %vm889
        %v891 = vsel %vm890, %v882, %v887
        %v892 = vrsqrt.pop %v858
        %v893 = vmul.f32 %v892, %v858
        %v894 = vmul.f32 %v893, %v892
        %v895 = vmul.f32 0.5, %v894
        %v896 = vsub.f32 1.5, %v895
        %v897 = vmul.f32 %v892, %v896
        %vm898 = vweird.f32 %v858
        %vm899 = vweird.f32 %v892
        %vm900 = vmor %vm898, %vm899
        %v901 = vsel %vm900, %v892, %v897
        %v902 = vrsqrt.pop %v859
        %v903 = vmul.f32 %v902, %v859
        %v904 = vmul.f32 %v903, %v902
        %v905 = vmul.f32 0.5, %v904
        %v906 = vsub.f32 1.5, %v905
        %v907 = vmul.f32 %v902, %v906
        %vm908 = vweird.f32 %v859
        %vm909 = vweird.f32 %v902
        %vm910 = vmor %vm908, %vm909
        %v911 = vsel %vm910, %v902, %v907
        %v912 = vrsqrt.pop %v860
        %v913 = vmul.f32 %v912, %v860
        %v914 = vmul.f32 %v913, %v912
        %v915 = vmul.f32 0.5, %v914
        %v916 = vsub.f32 1.5, %v915
        %v917 = vmul.f32 %v912, %v916
        %vm918 = vweird.f32 %v860
        %vm919 = vweird.f32 %v912
        %vm920 = vmor %vm918, %vm919
        %v921 = vsel %vm920, %v912, %v917
        %v922 = vrsqrt.pop %v861
        %v923 = vmul.f32 %v922, %v861
        %v924 = vmul.f32 %v923, %v922
        %v925 = vmul.f32 0.5, %v924
        %v926 = vsub.f32 1.5, %v925
        %v927 = vmul.f32 %v922, %v926
        %vm928 = vweird.f32 %v861
        %vm929 = vweird.f32 %v922
        %vm930 = vmor %vm928, %vm929
        %v931 = vsel %vm930, %v922, %v927
        %v932 = vmul.f32 %v813, %v871
        %v933 = vmul.f32 %v814, %v881
        %v934 = vmul.f32 %v815, %v891
        %v935 = vmul.f32 %v816, %v901
        %v936 = vmul.f32 %v817, %v911
        %v937 = vmul.f32 %v818, %v921
        %v938 = vmul.f32 %v819, %v931
        %v940 = vperm.slane %v726, 0
        %v942 = vmul.f32 %v932, %v940
        %v943 = vmul.f32 %v933, %v940
        %v944 = vmul.f32 %v934, %v940
        %v945 = vmul.f32 %v935, %v940
        %v946 = vmul.f32 %v936, %v940
        %v947 = vmul.f32 %v937, %v940
        %v948 = vmul.f32 %v938, %v940
        %v950 = vperm.slane %v727, 0
        %v952 = vadd.f32 %v942, %v950
        %v953 = vadd.f32 %v943, %v950
        %v954 = vadd.f32 %v944, %v950
        %v955 = vadd.f32 %v945, %v950
        %v956 = vadd.f32 %v946, %v950
        %v957 = vadd.f32 %v947, %v950
        %v958 = vadd.f32 %v948, %v950
        %v959 = vpack.c.bf16 %v953, %v952
        %v960 = vpack.c.bf16 %v955, %v954
        %v961 = vpack.c.bf16 %v957, %v956
        %v962 = vpack.c.bf16 %v958, %v958
        %v964 = vperm.slane %v732, 0
        %v970 = vunpack.c.l.b16 %v728
        %v971 = vunpack.c.l.b16 %v729
        %v972 = vunpack.c.l.b16 %v730
        %v973 = vunpack.c.l.b16 %v731
        %v974 = vpack.c.b16 %v971, %v970
        %v975 = vpack.c.b16 %v973, %v972
        %v979 = vsel %vm776, %v959, 0
        %v982 = vsel %vm776, %v960, 0
        %v985 = vsel %vm776, %v961, 0
        %v988 = vsel %vm776, %v962, 0
        %990 = vmatpush.bf16.msra.mxu0 0
        %991 = vmatpush.bf16.msra.mxu0 0
        %992 = vmatpush.bf16.msra.mxu0 0
        %993 = vmatpush.bf16.msra.mxu0 0
        %994 = vmatpush.bf16.msra.mxu0 0
        %995 = vmatpush.bf16.msra.mxu0 0
        %996 = vmatpush.bf16.msra.mxu0 %v975
        %997 = vmatpush.bf16.msra.mxu0 %v974
        %998 = vmatmul.bf16.gmra.mxu0 %v979
        %v999 = vpop.f32.mrf.mxu0
        %v1000 = vadd.f32 %v964, %v999
        %v1001 = vpop.f32.mrf.mxu0
        %v1002 = vadd.f32 %v964, %v1001
        %1003 = vmatmul.bf16.gmra.mxu0 %v982
        %v1004 = vpop.f32.mrf.mxu0
        %v1005 = vadd.f32 %v964, %v1004
        %v1006 = vpop.f32.mrf.mxu0
        %v1007 = vadd.f32 %v964, %v1006
        %1008 = vmatmul.bf16.gmra.mxu0 %v985
        %v1009 = vpop.f32.mrf.mxu0
        %v1010 = vadd.f32 %v964, %v1009
        %v1011 = vpop.f32.mrf.mxu0
        %v1012 = vadd.f32 %v964, %v1011
        %1013 = vmatmul.bf16.gmra.mxu0 %v988
        %v1014 = vpop.f32.mrf.mxu0
        %v1015 = vadd.f32 %v964, %v1014
        %v1016 = vpop.f32.mrf.mxu0
        %1017 = vdwg.mxu0
        %v1018 = vpack.c.bf16 %v1002, %v1000
        %v1019 = vpack.c.bf16 %v1007, %v1005
        %v1020 = vpack.c.bf16 %v1012, %v1010
        %v1021 = vpack.c.bf16 %v1015, %v1015
        %1026 = vrot.lane.b32.xlu0 %v1018, 96
        %v1027 = vpop.permute.xlu0 %1026
        %1028 = vrot.lane.b32.xlu0 %v1019, 96
        %v1029 = vpop.permute.xlu0 %1028
        %1030 = vrot.lane.b32.xlu0 %v1020, 96
        %v1031 = vpop.permute.xlu0 %1030
        %1032 = vrot.lane.b32.xlu0 %v1021, 96
        %v1033 = vpop.permute.xlu0 %1032
        %vm1034 = vcmask 64512
        %v1036 = vsel %vm1034, %v1018, 0
        %v1039 = vsel %vm1034, %v1019, 0
        %v1042 = vsel %vm1034, %v1020, 0
        %v1045 = vsel %vm1034, %v1021, 0
        %v1048 = vsel %vm1034, %v1027, 0
        %v1051 = vsel %vm1034, %v1029, 0
        %v1054 = vsel %vm1034, %v1031, 0
        %v1057 = vsel %vm1034, %v1033, 0
        %1059 = vmatpush.bf16.xpose.msra.mxu0 0
        %1060 = vmatpush.bf16.xpose.msra.mxu0 0
        %1061 = vmatpush.bf16.xpose.msra.mxu0 0
        %1062 = vmatpush.bf16.xpose.msra.mxu0 0
        %1063 = vmatpush.bf16.xpose.msra.mxu0 %v1057
        %1064 = vmatpush.bf16.xpose.msra.mxu0 %v1054
        %1065 = vmatpush.bf16.xpose.msra.mxu0 %v1051
        %1066 = vmatpush.bf16.xpose.msra.mxu0 %v1048
        %1067 = vmatmul.bf16.gmra.mxu0 %v1036
        %v1068 = vpop.f32.mrf.mxu0
        %v1069 = vadd.f32 0.0, %v1068
        %v1070 = vpop.f32.mrf.mxu0
        %v1071 = vadd.f32 0.0, %v1070
        %1072 = vmatmul.bf16.gmra.mxu0 %v1039
        %v1073 = vpop.f32.mrf.mxu0
        %v1074 = vadd.f32 0.0, %v1073
        %v1075 = vpop.f32.mrf.mxu0
        %v1076 = vadd.f32 0.0, %v1075
        %1077 = vmatmul.bf16.gmra.mxu0 %v1042
        %v1078 = vpop.f32.mrf.mxu0
        %v1079 = vadd.f32 0.0, %v1078
        %v1080 = vpop.f32.mrf.mxu0
        %v1081 = vadd.f32 0.0, %v1080
        %1082 = vmatmul.bf16.gmra.mxu0 %v1045
        %v1083 = vpop.f32.mrf.mxu0
        %v1084 = vadd.f32 0.0, %v1083
        %v1085 = vpop.f32.mrf.mxu0
        %1086 = vdwg.mxu0
        %v1087 = vmul.f32 %v1069, 0.35355338
        %v1088 = vmul.f32 %v1071, 0.35355338
        %v1089 = vmul.f32 %v1074, 0.35355338
        %v1090 = vmul.f32 %v1076, 0.35355338
        %v1091 = vmul.f32 %v1079, 0.35355338
        %v1092 = vmul.f32 %v1081, 0.35355338
        %v1093 = vmul.f32 %v1084, 0.35355338
        %v1094 = vadd.f32 %v1087, %v769
        %v1095 = vadd.f32 %v1088, %v770
        %v1096 = vadd.f32 %v1089, %v771
        %v1097 = vadd.f32 %v1090, %v772
        %v1098 = vadd.f32 %v1091, %v773
        %v1099 = vadd.f32 %v1092, %v774
        %v1100 = vadd.f32 %v1093, %v775
        %vm1101 = vcmask 408576
        %v1102 = vsel %vm1101, %v1094, -inf
        %1103 = vmax.xlane.f32.xlu0 %v1102
        %v1104 = vpop.xlane.xlu0 %1103
        %v1105 = vsel %vm1101, %v1095, -inf
        %1106 = vmax.xlane.f32.xlu0 %v1105
        %v1107 = vpop.xlane.xlu0 %1106
        %v1108 = vsel %vm1101, %v1096, -inf
        %1109 = vmax.xlane.f32.xlu0 %v1108
        %v1110 = vpop.xlane.xlu0 %1109
        %v1111 = vsel %vm1101, %v1097, -inf
        %1112 = vmax.xlane.f32.xlu0 %v1111
        %v1113 = vpop.xlane.xlu0 %1112
        %v1114 = vsel %vm1101, %v1098, -inf
        %1115 = vmax.xlane.f32.xlu0 %v1114
        %v1116 = vpop.xlane.xlu0 %1115
        %v1117 = vsel %vm1101, %v1099, -inf
        %1118 = vmax.xlane.f32.xlu0 %v1117
        %v1119 = vpop.xlane.xlu0 %1118
        %vm1120 = vcmask 402432
        %v1121 = vsel %vm1120, %v1100, -inf
        %1122 = vmax.xlane.f32.xlu0 %v1121
        %v1123 = vpop.xlane.xlu0 %1122
        %v1124 = vsub.f32 %v1094, %v1104
        %v1125 = vsub.f32 %v1095, %v1107
        %v1126 = vsub.f32 %v1096, %v1110
        %v1127 = vsub.f32 %v1097, %v1113
        %v1128 = vsub.f32 %v1098, %v1116
        %v1129 = vsub.f32 %v1099, %v1119
        %v1130 = vsub.f32 %v1100, %v1123
        %v1131 = vmul.f32 %v1124, 1.442695
        %v1132 = vpow.pop %v1131
        %v1133 = vmul.f32 %v1125, 1.442695
        %v1134 = vpow.pop %v1133
        %v1135 = vmul.f32 %v1126, 1.442695
        %v1136 = vpow.pop %v1135
        %v1137 = vmul.f32 %v1127, 1.442695
        %v1138 = vpow.pop %v1137
        %v1139 = vmul.f32 %v1128, 1.442695
        %v1140 = vpow.pop %v1139
        %v1141 = vmul.f32 %v1129, 1.442695
        %v1142 = vpow.pop %v1141
        %v1143 = vmul.f32 %v1130, 1.442695
        %v1144 = vpow.pop %v1143
        %v1145 = vsel %vm1101, %v1132, 0.0
        %1146 = vadd.xlane.f32.xlu0 %v1145
        %v1147 = vpop.xlane.xlu0 %1146
        %v1148 = vsel %vm1101, %v1134, 0.0
        %1149 = vadd.xlane.f32.xlu0 %v1148
        %v1150 = vpop.xlane.xlu0 %1149
        %v1151 = vsel %vm1101, %v1136, 0.0
        %1152 = vadd.xlane.f32.xlu0 %v1151
        %v1153 = vpop.xlane.xlu0 %1152
        %v1154 = vsel %vm1101, %v1138, 0.0
        %1155 = vadd.xlane.f32.xlu0 %v1154
        %v1156 = vpop.xlane.xlu0 %1155
        %v1157 = vsel %vm1101, %v1140, 0.0
        %1158 = vadd.xlane.f32.xlu0 %v1157
        %v1159 = vpop.xlane.xlu0 %1158
        %v1160 = vsel %vm1101, %v1142, 0.0
        %1161 = vadd.xlane.f32.xlu0 %v1160
        %v1162 = vpop.xlane.xlu0 %1161
        %v1163 = vsel %vm1120, %v1144, 0.0
        %1164 = vadd.xlane.f32.xlu0 %v1163
        %v1165 = vpop.xlane.xlu0 %1164
        %v1166 = vrcp.pop %v1147
        %v1167 = vrcp.pop %v1150
        %v1168 = vrcp.pop %v1153
        %v1169 = vrcp.pop %v1156
        %v1170 = vrcp.pop %v1159
        %v1171 = vrcp.pop %v1162
        %v1172 = vrcp.pop %v1165
        %v1173 = vmul.f32 %v1132, %v1166
        %v1174 = vmul.f32 %v1134, %v1167
        %v1175 = vmul.f32 %v1136, %v1168
        %v1176 = vmul.f32 %v1138, %v1169
        %v1177 = vmul.f32 %v1140, %v1170
        %v1178 = vmul.f32 %v1142, %v1171
        %v1179 = vmul.f32 %v1144, %v1172
        %v1180 = vpack.c.bf16 %v1174, %v1173
        %v1181 = vpack.c.bf16 %v1176, %v1175
        %v1182 = vpack.c.bf16 %v1178, %v1177
        %v1183 = vpack.c.bf16 %v1179, %v1179
        %1184 = vrot.lane.b32.xlu0 %v1018, 64
        %v1185 = vpop.permute.xlu0 %1184
        %1186 = vrot.lane.b32.xlu0 %v1019, 64
        %v1187 = vpop.permute.xlu0 %1186
        %1188 = vrot.lane.b32.xlu0 %v1020, 64
        %v1189 = vpop.permute.xlu0 %1188
        %1190 = vrot.lane.b32.xlu0 %v1021, 64
        %v1191 = vpop.permute.xlu0 %1190
        %v1196 = vsel %vm1101, %v1180, 0
        %v1199 = vsel %vm1101, %v1181, 0
        %v1202 = vsel %vm1101, %v1182, 0
        %v1205 = vsel %vm1101, %v1183, 0
        %vm1207 = vcmask 1040384
        %v1209 = vsel %vm1207, %v1191, 0
        %1211 = vmatpush.bf16.msra.mxu0 0
        %1212 = vmatpush.bf16.msra.mxu0 0
        %1213 = vmatpush.bf16.msra.mxu0 0
        %1214 = vmatpush.bf16.msra.mxu0 0
        %1215 = vmatpush.bf16.msra.mxu0 %v1209
        %1216 = vmatpush.bf16.msra.mxu0 %v1189
        %1217 = vmatpush.bf16.msra.mxu0 %v1187
        %1218 = vmatpush.bf16.msra.mxu0 %v1185
        %1219 = vmatmul.bf16.gmra.mxu0 %v1196
        %v1220 = vpop.f32.mrf.mxu0
        %v1221 = vadd.f32 0.0, %v1220
        %v1222 = vpop.f32.mrf.mxu0
        %v1223 = vadd.f32 0.0, %v1222
        %1224 = vmatmul.bf16.gmra.mxu0 %v1199
        %v1225 = vpop.f32.mrf.mxu0
        %v1226 = vadd.f32 0.0, %v1225
        %v1227 = vpop.f32.mrf.mxu0
        %v1228 = vadd.f32 0.0, %v1227
        %1229 = vmatmul.bf16.gmra.mxu0 %v1202
        %v1230 = vpop.f32.mrf.mxu0
        %v1231 = vadd.f32 0.0, %v1230
        %v1232 = vpop.f32.mrf.mxu0
        %v1233 = vadd.f32 0.0, %v1232
        %1234 = vmatmul.bf16.gmra.mxu0 %v1205
        %v1235 = vpop.f32.mrf.mxu0
        %v1236 = vadd.f32 0.0, %v1235
        %v1237 = vpop.f32.mrf.mxu0
        %1238 = vdwg.mxu0
        %v1239 = vpack.c.bf16 %v1223, %v1221
        %v1240 = vpack.c.bf16 %v1228, %v1226
        %v1241 = vpack.c.bf16 %v1233, %v1231
        %v1242 = vpack.c.bf16 %v1236, %v1236
        %1243 = vrot.lane.b32.xlu0 %v1018, 120
        %v1244 = vpop.permute.xlu0 %1243
        %1245 = vrot.lane.b32.xlu0 %v1019, 120
        %v1246 = vpop.permute.xlu0 %1245
        %1247 = vrot.lane.b32.xlu0 %v1020, 120
        %v1248 = vpop.permute.xlu0 %1247
        %1249 = vrot.lane.b32.xlu0 %v1021, 120
        %v1250 = vpop.permute.xlu0 %1249
        %1251 = vrot.lane.b32.xlu0 %v1018, 88
        %v1252 = vpop.permute.xlu0 %1251
        %1253 = vrot.lane.b32.xlu0 %v1019, 88
        %v1254 = vpop.permute.xlu0 %1253
        %1255 = vrot.lane.b32.xlu0 %v1020, 88
        %v1256 = vpop.permute.xlu0 %1255
        %1257 = vrot.lane.b32.xlu0 %v1021, 88
        %v1258 = vpop.permute.xlu0 %1257
        %v1260 = vsel %vm1034, %v1244, 0
        %v1263 = vsel %vm1034, %v1246, 0
        %v1266 = vsel %vm1034, %v1248, 0
        %v1269 = vsel %vm1034, %v1250, 0
        %v1272 = vsel %vm1034, %v1252, 0
        %v1275 = vsel %vm1034, %v1254, 0
        %v1278 = vsel %vm1034, %v1256, 0
        %v1281 = vsel %vm1034, %v1258, 0
        %1283 = vmatpush.bf16.xpose.msra.mxu0 0
        %1284 = vmatpush.bf16.xpose.msra.mxu0 0
        %1285 = vmatpush.bf16.xpose.msra.mxu0 0
        %1286 = vmatpush.bf16.xpose.msra.mxu0 0
        %1287 = vmatpush.bf16.xpose.msra.mxu0 %v1281
        %1288 = vmatpush.bf16.xpose.msra.mxu0 %v1278
        %1289 = vmatpush.bf16.xpose.msra.mxu0 %v1275
        %1290 = vmatpush.bf16.xpose.msra.mxu0 %v1272
        %1291 = vmatmul.bf16.gmra.mxu0 %v1260
        %v1292 = vpop.f32.mrf.mxu0
        %v1293 = vadd.f32 0.0, %v1292
        %v1294 = vpop.f32.mrf.mxu0
        %v1295 = vadd.f32 0.0, %v1294
        %1296 = vmatmul.bf16.gmra.mxu0 %v1263
        %v1297 = vpop.f32.mrf.mxu0
        %v1298 = vadd.f32 0.0, %v1297
        %v1299 = vpop.f32.mrf.mxu0
        %v1300 = vadd.f32 0.0, %v1299
        %1301 = vmatmul.bf16.gmra.mxu0 %v1266
        %v1302 = vpop.f32.mrf.mxu0
        %v1303 = vadd.f32 0.0, %v1302
        %v1304 = vpop.f32.mrf.mxu0
        %v1305 = vadd.f32 0.0, %v1304
        %1306 = vmatmul.bf16.gmra.mxu0 %v1269
        %v1307 = vpop.f32.mrf.mxu0
        %v1308 = vadd.f32 0.0, %v1307
        %v1309 = vpop.f32.mrf.mxu0
        %1310 = vdwg.mxu0
        %v1311 = vmul.f32 %v1293, 0.35355338
        %v1312 = vmul.f32 %v1295, 0.35355338
        %v1313 = vmul.f32 %v1298, 0.35355338
        %v1314 = vmul.f32 %v1300, 0.35355338
        %v1315 = vmul.f32 %v1303, 0.35355338
        %v1316 = vmul.f32 %v1305, 0.35355338
        %v1317 = vmul.f32 %v1308, 0.35355338
        %v1318 = vadd.f32 %v1311, %v769
        %v1319 = vadd.f32 %v1312, %v770
        %v1320 = vadd.f32 %v1313, %v771
        %v1321 = vadd.f32 %v1314, %v772
        %v1322 = vadd.f32 %v1315, %v773
        %v1323 = vadd.f32 %v1316, %v774
        %v1324 = vadd.f32 %v1317, %v775
        %v1325 = vsel %vm1101, %v1318, -inf
        %1326 = vmax.xlane.f32.xlu0 %v1325
        %v1327 = vpop.xlane.xlu0 %1326
        %v1328 = vsel %vm1101, %v1319, -inf
        %1329 = vmax.xlane.f32.xlu0 %v1328
        %v1330 = vpop.xlane.xlu0 %1329
        %v1331 = vsel %vm1101, %v1320, -inf
        %1332 = vmax.xlane.f32.xlu0 %v1331
        %v1333 = vpop.xlane.xlu0 %1332
        %v1334 = vsel %vm1101, %v1321, -inf
        %1335 = vmax.xlane.f32.xlu0 %v1334
        %v1336 = vpop.xlane.xlu0 %1335
        %v1337 = vsel %vm1101, %v1322, -inf
        %1338 = vmax.xlane.f32.xlu0 %v1337
        %v1339 = vpop.xlane.xlu0 %1338
        %v1340 = vsel %vm1101, %v1323, -inf
        %1341 = vmax.xlane.f32.xlu0 %v1340
        %v1342 = vpop.xlane.xlu0 %1341
        %v1343 = vsel %vm1120, %v1324, -inf
        %1344 = vmax.xlane.f32.xlu0 %v1343
        %v1345 = vpop.xlane.xlu0 %1344
        %v1346 = vsub.f32 %v1318, %v1327
        %v1347 = vsub.f32 %v1319, %v1330
        %v1348 = vsub.f32 %v1320, %v1333
        %v1349 = vsub.f32 %v1321, %v1336
        %v1350 = vsub.f32 %v1322, %v1339
        %v1351 = vsub.f32 %v1323, %v1342
        %v1352 = vsub.f32 %v1324, %v1345
        %v1353 = vmul.f32 %v1346, 1.442695
        %v1354 = vpow.pop %v1353
        %v1355 = vmul.f32 %v1347, 1.442695
        %v1356 = vpow.pop %v1355
        %v1357 = vmul.f32 %v1348, 1.442695
        %v1358 = vpow.pop %v1357
        %v1359 = vmul.f32 %v1349, 1.442695
        %v1360 = vpow.pop %v1359
        %v1361 = vmul.f32 %v1350, 1.442695
        %v1362 = vpow.pop %v1361
        %v1363 = vmul.f32 %v1351, 1.442695
        %v1364 = vpow.pop %v1363
        %v1365 = vmul.f32 %v1352, 1.442695
        %v1366 = vpow.pop %v1365
        %v1367 = vsel %vm1101, %v1354, 0.0
        %1368 = vadd.xlane.f32.xlu0 %v1367
        %v1369 = vpop.xlane.xlu0 %1368
        %v1370 = vsel %vm1101, %v1356, 0.0
        %1371 = vadd.xlane.f32.xlu0 %v1370
        %v1372 = vpop.xlane.xlu0 %1371
        %v1373 = vsel %vm1101, %v1358, 0.0
        %1374 = vadd.xlane.f32.xlu0 %v1373
        %v1375 = vpop.xlane.xlu0 %1374
        %v1376 = vsel %vm1101, %v1360, 0.0
        %1377 = vadd.xlane.f32.xlu0 %v1376
        %v1378 = vpop.xlane.xlu0 %1377
        %v1379 = vsel %vm1101, %v1362, 0.0
        %1380 = vadd.xlane.f32.xlu0 %v1379
        %v1381 = vpop.xlane.xlu0 %1380
        %v1382 = vsel %vm1101, %v1364, 0.0
        %1383 = vadd.xlane.f32.xlu0 %v1382
        %v1384 = vpop.xlane.xlu0 %1383
        %v1385 = vsel %vm1120, %v1366, 0.0
        %1386 = vadd.xlane.f32.xlu0 %v1385
        %v1387 = vpop.xlane.xlu0 %1386
        %v1388 = vrcp.pop %v1369
        %v1389 = vrcp.pop %v1372
        %v1390 = vrcp.pop %v1375
        %v1391 = vrcp.pop %v1378
        %v1392 = vrcp.pop %v1381
        %v1393 = vrcp.pop %v1384
        %v1394 = vrcp.pop %v1387
        %v1395 = vmul.f32 %v1354, %v1388
        %v1396 = vmul.f32 %v1356, %v1389
        %v1397 = vmul.f32 %v1358, %v1390
        %v1398 = vmul.f32 %v1360, %v1391
        %v1399 = vmul.f32 %v1362, %v1392
        %v1400 = vmul.f32 %v1364, %v1393
        %v1401 = vmul.f32 %v1366, %v1394
        %v1402 = vpack.c.bf16 %v1396, %v1395
        %v1403 = vpack.c.bf16 %v1398, %v1397
        %v1404 = vpack.c.bf16 %v1400, %v1399
        %v1405 = vpack.c.bf16 %v1401, %v1401
        %1406 = vrot.lane.b32.xlu0 %v1018, 56
        %v1407 = vpop.permute.xlu0 %1406
        %1408 = vrot.lane.b32.xlu0 %v1019, 56
        %v1409 = vpop.permute.xlu0 %1408
        %1410 = vrot.lane.b32.xlu0 %v1020, 56
        %v1411 = vpop.permute.xlu0 %1410
        %1412 = vrot.lane.b32.xlu0 %v1021, 56
        %v1413 = vpop.permute.xlu0 %1412
        %v1418 = vsel %vm1101, %v1402, 0
        %v1421 = vsel %vm1101, %v1403, 0
        %v1424 = vsel %vm1101, %v1404, 0
        %v1427 = vsel %vm1101, %v1405, 0
        %v1430 = vsel %vm1207, %v1413, 0
        %1432 = vmatpush.bf16.msra.mxu0 0
        %1433 = vmatpush.bf16.msra.mxu0 0
        %1434 = vmatpush.bf16.msra.mxu0 0
        %1435 = vmatpush.bf16.msra.mxu0 0
        %1436 = vmatpush.bf16.msra.mxu0 %v1430
        %1437 = vmatpush.bf16.msra.mxu0 %v1411
        %1438 = vmatpush.bf16.msra.mxu0 %v1409
        %1439 = vmatpush.bf16.msra.mxu0 %v1407
        %1440 = vmatmul.bf16.gmra.mxu0 %v1418
        %v1441 = vpop.f32.mrf.mxu0
        %v1442 = vadd.f32 0.0, %v1441
        %v1443 = vpop.f32.mrf.mxu0
        %v1444 = vadd.f32 0.0, %v1443
        %1445 = vmatmul.bf16.gmra.mxu0 %v1421
        %v1446 = vpop.f32.mrf.mxu0
        %v1447 = vadd.f32 0.0, %v1446
        %v1448 = vpop.f32.mrf.mxu0
        %v1449 = vadd.f32 0.0, %v1448
        %1450 = vmatmul.bf16.gmra.mxu0 %v1424
        %v1451 = vpop.f32.mrf.mxu0
        %v1452 = vadd.f32 0.0, %v1451
        %v1453 = vpop.f32.mrf.mxu0
        %v1454 = vadd.f32 0.0, %v1453
        %1455 = vmatmul.bf16.gmra.mxu0 %v1427
        %v1456 = vpop.f32.mrf.mxu0
        %v1457 = vadd.f32 0.0, %v1456
        %v1458 = vpop.f32.mrf.mxu0
        %1459 = vdwg.mxu0
        %v1460 = vpack.c.bf16 %v1444, %v1442
        %v1461 = vpack.c.bf16 %v1449, %v1447
        %v1462 = vpack.c.bf16 %v1454, %v1452
        %v1463 = vpack.c.bf16 %v1457, %v1457
        %v1465 = vsel %vm1034, %v1460, 0
        %v1468 = vsel %vm1034, %v1461, 0
        %v1471 = vsel %vm1034, %v1462, 0
        %v1474 = vsel %vm1034, %v1463, 0
        %vm1476 = vcmask 1043456
        %v1478 = vsel %vm1476, %v734, 0
        %1480 = vmatpush.bf16.msra.mxu0 0
        %1481 = vmatpush.bf16.msra.mxu0 0
        %1482 = vmatpush.bf16.msra.mxu0 0
        %1483 = vmatpush.bf16.msra.mxu0 0
        %1484 = vmatpush.bf16.msra.mxu0 0
        %1485 = vmatpush.bf16.msra.mxu0 0
        %1486 = vmatpush.bf16.msra.mxu0 0
        %1487 = vmatpush.bf16.msra.mxu0 %v1478
        %1488 = vmatmul.bf16.gmra.mxu0 %v1465
        %v1489 = vpop.f32.mrf.mxu0
        %v1490 = vadd.f32 0.0, %v1489
        %v1491 = vpop.f32.mrf.mxu0
        %v1492 = vadd.f32 0.0, %v1491
        %1493 = vmatmul.bf16.gmra.mxu0 %v1468
        %v1494 = vpop.f32.mrf.mxu0
        %v1495 = vadd.f32 0.0, %v1494
        %v1496 = vpop.f32.mrf.mxu0
        %v1497 = vadd.f32 0.0, %v1496
        %1498 = vmatmul.bf16.gmra.mxu0 %v1471
        %v1499 = vpop.f32.mrf.mxu0
        %v1500 = vadd.f32 0.0, %v1499
        %v1501 = vpop.f32.mrf.mxu0
        %v1502 = vadd.f32 0.0, %v1501
        %1503 = vmatmul.bf16.gmra.mxu0 %v1474
        %v1504 = vpop.f32.mrf.mxu0
        %v1505 = vadd.f32 0.0, %v1504
        %v1506 = vpop.f32.mrf.mxu0
        %1507 = vdwg.mxu0
        %v1509 = vsel %vm1034, %v1239, 0
        %v1512 = vsel %vm1034, %v1240, 0
        %v1515 = vsel %vm1034, %v1241, 0
        %v1518 = vsel %vm1034, %v1242, 0
        %v1521 = vsel %vm1476, %v733, 0
        %1523 = vmatpush.bf16.msra.mxu0 0
        %1524 = vmatpush.bf16.msra.mxu0 0
        %1525 = vmatpush.bf16.msra.mxu0 0
        %1526 = vmatpush.bf16.msra.mxu0 0
        %1527 = vmatpush.bf16.msra.mxu0 0
        %1528 = vmatpush.bf16.msra.mxu0 0
        %1529 = vmatpush.bf16.msra.mxu0 0
        %1530 = vmatpush.bf16.msra.mxu0 %v1521
        %1531 = vmatmul.bf16.gmra.mxu0 %v1509
        %v1532 = vpop.f32.mrf.mxu0
        %v1533 = vadd.f32 %v1490, %v1532
        %v1534 = vpop.f32.mrf.mxu0
        %v1535 = vadd.f32 %v1492, %v1534
        %1536 = vmatmul.bf16.gmra.mxu0 %v1512
        %v1537 = vpop.f32.mrf.mxu0
        %v1538 = vadd.f32 %v1495, %v1537
        %v1539 = vpop.f32.mrf.mxu0
        %v1540 = vadd.f32 %v1497, %v1539
        %1541 = vmatmul.bf16.gmra.mxu0 %v1515
        %v1542 = vpop.f32.mrf.mxu0
        %v1543 = vadd.f32 %v1500, %v1542
        %v1544 = vpop.f32.mrf.mxu0
        %v1545 = vadd.f32 %v1502, %v1544
        %1546 = vmatmul.bf16.gmra.mxu0 %v1518
        %v1547 = vpop.f32.mrf.mxu0
        %v1548 = vadd.f32 %v1505, %v1547
        %v1549 = vpop.f32.mrf.mxu0
        %1550 = vdwg.mxu0
        %1551 = vrot.lane.b32.xlu0 %v1018, 112
        %v1552 = vpop.permute.xlu0 %1551
        %1553 = vrot.lane.b32.xlu0 %v1019, 112
        %v1554 = vpop.permute.xlu0 %1553
        %1555 = vrot.lane.b32.xlu0 %v1020, 112
        %v1556 = vpop.permute.xlu0 %1555
        %1557 = vrot.lane.b32.xlu0 %v1021, 112
        %v1558 = vpop.permute.xlu0 %1557
        %1559 = vrot.lane.b32.xlu0 %v1018, 80
        %v1560 = vpop.permute.xlu0 %1559
        %1561 = vrot.lane.b32.xlu0 %v1019, 80
        %v1562 = vpop.permute.xlu0 %1561
        %1563 = vrot.lane.b32.xlu0 %v1020, 80
        %v1564 = vpop.permute.xlu0 %1563
        %1565 = vrot.lane.b32.xlu0 %v1021, 80
        %v1566 = vpop.permute.xlu0 %1565
        %v1568 = vsel %vm1034, %v1552, 0
        %v1571 = vsel %vm1034, %v1554, 0
        %v1574 = vsel %vm1034, %v1556, 0
        %v1577 = vsel %vm1034, %v1558, 0
        %v1580 = vsel %vm1034, %v1560, 0
        %v1583 = vsel %vm1034, %v1562, 0
        %v1586 = vsel %vm1034, %v1564, 0
        %v1589 = vsel %vm1034, %v1566, 0
        %1591 = vmatpush.bf16.xpose.msra.mxu0 0
        %1592 = vmatpush.bf16.xpose.msra.mxu0 0
        %1593 = vmatpush.bf16.xpose.msra.mxu0 0
        %1594 = vmatpush.bf16.xpose.msra.mxu0 0
        %1595 = vmatpush.bf16.xpose.msra.mxu0 %v1589
        %1596 = vmatpush.bf16.xpose.msra.mxu0 %v1586
        %1597 = vmatpush.bf16.xpose.msra.mxu0 %v1583
        %1598 = vmatpush.bf16.xpose.msra.mxu0 %v1580
        %1599 = vmatmul.bf16.gmra.mxu0 %v1568
        %v1600 = vpop.f32.mrf.mxu0
        %v1601 = vadd.f32 0.0, %v1600
        %v1602 = vpop.f32.mrf.mxu0
        %v1603 = vadd.f32 0.0, %v1602
        %1604 = vmatmul.bf16.gmra.mxu0 %v1571
        %v1605 = vpop.f32.mrf.mxu0
        %v1606 = vadd.f32 0.0, %v1605
        %v1607 = vpop.f32.mrf.mxu0
        %v1608 = vadd.f32 0.0, %v1607
        %1609 = vmatmul.bf16.gmra.mxu0 %v1574
        %v1610 = vpop.f32.mrf.mxu0
        %v1611 = vadd.f32 0.0, %v1610
        %v1612 = vpop.f32.mrf.mxu0
        %v1613 = vadd.f32 0.0, %v1612
        %1614 = vmatmul.bf16.gmra.mxu0 %v1577
        %v1615 = vpop.f32.mrf.mxu0
        %v1616 = vadd.f32 0.0, %v1615
        %v1617 = vpop.f32.mrf.mxu0
        %1618 = vdwg.mxu0
        %v1619 = vmul.f32 %v1601, 0.35355338
        %v1620 = vmul.f32 %v1603, 0.35355338
        %v1621 = vmul.f32 %v1606, 0.35355338
        %v1622 = vmul.f32 %v1608, 0.35355338
        %v1623 = vmul.f32 %v1611, 0.35355338
        %v1624 = vmul.f32 %v1613, 0.35355338
        %v1625 = vmul.f32 %v1616, 0.35355338
        %v1626 = vadd.f32 %v1619, %v769
        %v1627 = vadd.f32 %v1620, %v770
        %v1628 = vadd.f32 %v1621, %v771
        %v1629 = vadd.f32 %v1622, %v772
        %v1630 = vadd.f32 %v1623, %v773
        %v1631 = vadd.f32 %v1624, %v774
        %v1632 = vadd.f32 %v1625, %v775
        %v1633 = vsel %vm1101, %v1626, -inf
        %1634 = vmax.xlane.f32.xlu0 %v1633
        %v1635 = vpop.xlane.xlu0 %1634
        %v1636 = vsel %vm1101, %v1627, -inf
        %1637 = vmax.xlane.f32.xlu0 %v1636
        %v1638 = vpop.xlane.xlu0 %1637
        %v1639 = vsel %vm1101, %v1628, -inf
        %1640 = vmax.xlane.f32.xlu0 %v1639
        %v1641 = vpop.xlane.xlu0 %1640
        %v1642 = vsel %vm1101, %v1629, -inf
        %1643 = vmax.xlane.f32.xlu0 %v1642
        %v1644 = vpop.xlane.xlu0 %1643
        %v1645 = vsel %vm1101, %v1630, -inf
        %1646 = vmax.xlane.f32.xlu0 %v1645
        %v1647 = vpop.xlane.xlu0 %1646
        %v1648 = vsel %vm1101, %v1631, -inf
        %1649 = vmax.xlane.f32.xlu0 %v1648
        %v1650 = vpop.xlane.xlu0 %1649
        %v1651 = vsel %vm1120, %v1632, -inf
        %1652 = vmax.xlane.f32.xlu0 %v1651
        %v1653 = vpop.xlane.xlu0 %1652
        %v1654 = vsub.f32 %v1626, %v1635
        %v1655 = vsub.f32 %v1627, %v1638
        %v1656 = vsub.f32 %v1628, %v1641
        %v1657 = vsub.f32 %v1629, %v1644
        %v1658 = vsub.f32 %v1630, %v1647
        %v1659 = vsub.f32 %v1631, %v1650
        %v1660 = vsub.f32 %v1632, %v1653
        %v1661 = vmul.f32 %v1654, 1.442695
        %v1662 = vpow.pop %v1661
        %v1663 = vmul.f32 %v1655, 1.442695
        %v1664 = vpow.pop %v1663
        %v1665 = vmul.f32 %v1656, 1.442695
        %v1666 = vpow.pop %v1665
        %v1667 = vmul.f32 %v1657, 1.442695
        %v1668 = vpow.pop %v1667
        %v1669 = vmul.f32 %v1658, 1.442695
        %v1670 = vpow.pop %v1669
        %v1671 = vmul.f32 %v1659, 1.442695
        %v1672 = vpow.pop %v1671
        %v1673 = vmul.f32 %v1660, 1.442695
        %v1674 = vpow.pop %v1673
        %v1675 = vsel %vm1101, %v1662, 0.0
        %1676 = vadd.xlane.f32.xlu0 %v1675
        %v1677 = vpop.xlane.xlu0 %1676
        %v1678 = vsel %vm1101, %v1664, 0.0
        %1679 = vadd.xlane.f32.xlu0 %v1678
        %v1680 = vpop.xlane.xlu0 %1679
        %v1681 = vsel %vm1101, %v1666, 0.0
        %1682 = vadd.xlane.f32.xlu0 %v1681
        %v1683 = vpop.xlane.xlu0 %1682
        %v1684 = vsel %vm1101, %v1668, 0.0
        %1685 = vadd.xlane.f32.xlu0 %v1684
        %v1686 = vpop.xlane.xlu0 %1685
        %v1687 = vsel %vm1101, %v1670, 0.0
        %1688 = vadd.xlane.f32.xlu0 %v1687
        %v1689 = vpop.xlane.xlu0 %1688
        %v1690 = vsel %vm1101, %v1672, 0.0
        %1691 = vadd.xlane.f32.xlu0 %v1690
        %v1692 = vpop.xlane.xlu0 %1691
        %v1693 = vsel %vm1120, %v1674, 0.0
        %1694 = vadd.xlane.f32.xlu0 %v1693
        %v1695 = vpop.xlane.xlu0 %1694
        %v1696 = vrcp.pop %v1677
        %v1697 = vrcp.pop %v1680
        %v1698 = vrcp.pop %v1683
        %v1699 = vrcp.pop %v1686
        %v1700 = vrcp.pop %v1689
        %v1701 = vrcp.pop %v1692
        %v1702 = vrcp.pop %v1695
        %v1703 = vmul.f32 %v1662, %v1696
        %v1704 = vmul.f32 %v1664, %v1697
        %v1705 = vmul.f32 %v1666, %v1698
        %v1706 = vmul.f32 %v1668, %v1699
        %v1707 = vmul.f32 %v1670, %v1700
        %v1708 = vmul.f32 %v1672, %v1701
        %v1709 = vmul.f32 %v1674, %v1702
        %v1710 = vpack.c.bf16 %v1704, %v1703
        %v1711 = vpack.c.bf16 %v1706, %v1705
        %v1712 = vpack.c.bf16 %v1708, %v1707
        %v1713 = vpack.c.bf16 %v1709, %v1709
        %1714 = vrot.lane.b32.xlu0 %v1018, 48
        %v1715 = vpop.permute.xlu0 %1714
        %1716 = vrot.lane.b32.xlu0 %v1019, 48
        %v1717 = vpop.permute.xlu0 %1716
        %1718 = vrot.lane.b32.xlu0 %v1020, 48
        %v1719 = vpop.permute.xlu0 %1718
        %1720 = vrot.lane.b32.xlu0 %v1021, 48
        %v1721 = vpop.permute.xlu0 %1720
        %v1726 = vsel %vm1101, %v1710, 0
        %v1729 = vsel %vm1101, %v1711, 0
        %v1732 = vsel %vm1101, %v1712, 0
        %v1735 = vsel %vm1101, %v1713, 0
        %v1738 = vsel %vm1207, %v1721, 0
        %1740 = vmatpush.bf16.msra.mxu0 0
        %1741 = vmatpush.bf16.msra.mxu0 0
        %1742 = vmatpush.bf16.msra.mxu0 0
        %1743 = vmatpush.bf16.msra.mxu0 0
        %1744 = vmatpush.bf16.msra.mxu0 %v1738
        %1745 = vmatpush.bf16.msra.mxu0 %v1719
        %1746 = vmatpush.bf16.msra.mxu0 %v1717
        %1747 = vmatpush.bf16.msra.mxu0 %v1715
        %1748 = vmatmul.bf16.gmra.mxu0 %v1726
        %v1749 = vpop.f32.mrf.mxu0
        %v1750 = vadd.f32 0.0, %v1749
        %v1751 = vpop.f32.mrf.mxu0
        %v1752 = vadd.f32 0.0, %v1751
        %1753 = vmatmul.bf16.gmra.mxu0 %v1729
        %v1754 = vpop.f32.mrf.mxu0
        %v1755 = vadd.f32 0.0, %v1754
        %v1756 = vpop.f32.mrf.mxu0
        %v1757 = vadd.f32 0.0, %v1756
        %1758 = vmatmul.bf16.gmra.mxu0 %v1732
        %v1759 = vpop.f32.mrf.mxu0
        %v1760 = vadd.f32 0.0, %v1759
        %v1761 = vpop.f32.mrf.mxu0
        %v1762 = vadd.f32 0.0, %v1761
        %1763 = vmatmul.bf16.gmra.mxu0 %v1735
        %v1764 = vpop.f32.mrf.mxu0
        %v1765 = vadd.f32 0.0, %v1764
        %v1766 = vpop.f32.mrf.mxu0
        %1767 = vdwg.mxu0
        %v1768 = vpack.c.bf16 %v1752, %v1750
        %v1769 = vpack.c.bf16 %v1757, %v1755
        %v1770 = vpack.c.bf16 %v1762, %v1760
        %v1771 = vpack.c.bf16 %v1765, %v1765
        %v1773 = vsel %vm1034, %v1768, 0
        %v1776 = vsel %vm1034, %v1769, 0
        %v1779 = vsel %vm1034, %v1770, 0
        %v1782 = vsel %vm1034, %v1771, 0
        %v1785 = vsel %vm1476, %v735, 0
        %1787 = vmatpush.bf16.msra.mxu0 0
        %1788 = vmatpush.bf16.msra.mxu0 0
        %1789 = vmatpush.bf16.msra.mxu0 0
        %1790 = vmatpush.bf16.msra.mxu0 0
        %1791 = vmatpush.bf16.msra.mxu0 0
        %1792 = vmatpush.bf16.msra.mxu0 0
        %1793 = vmatpush.bf16.msra.mxu0 0
        %1794 = vmatpush.bf16.msra.mxu0 %v1785
        %1795 = vmatmul.bf16.gmra.mxu0 %v1773
        %v1796 = vpop.f32.mrf.mxu0
        %v1797 = vadd.f32 0.0, %v1796
        %v1798 = vpop.f32.mrf.mxu0
        %v1799 = vadd.f32 0.0, %v1798
        %1800 = vmatmul.bf16.gmra.mxu0 %v1776
        %v1801 = vpop.f32.mrf.mxu0
        %v1802 = vadd.f32 0.0, %v1801
        %v1803 = vpop.f32.mrf.mxu0
        %v1804 = vadd.f32 0.0, %v1803
        %1805 = vmatmul.bf16.gmra.mxu0 %v1779
        %v1806 = vpop.f32.mrf.mxu0
        %v1807 = vadd.f32 0.0, %v1806
        %v1808 = vpop.f32.mrf.mxu0
        %v1809 = vadd.f32 0.0, %v1808
        %1810 = vmatmul.bf16.gmra.mxu0 %v1782
        %v1811 = vpop.f32.mrf.mxu0
        %v1812 = vadd.f32 0.0, %v1811
        %v1813 = vpop.f32.mrf.mxu0
        %1814 = vdwg.mxu0
        %v1815 = vadd.f32 %v1533, %v1797
        %v1816 = vadd.f32 %v1535, %v1799
        %v1817 = vadd.f32 %v1538, %v1802
        %v1818 = vadd.f32 %v1540, %v1804
        %v1819 = vadd.f32 %v1543, %v1807
        %v1820 = vadd.f32 %v1545, %v1809
        %v1821 = vadd.f32 %v1548, %v1812
        %1822 = vrot.lane.b32.xlu0 %v1018, 104
        %v1823 = vpop.permute.xlu0 %1822
        %1824 = vrot.lane.b32.xlu0 %v1019, 104
        %v1825 = vpop.permute.xlu0 %1824
        %1826 = vrot.lane.b32.xlu0 %v1020, 104
        %v1827 = vpop.permute.xlu0 %1826
        %1828 = vrot.lane.b32.xlu0 %v1021, 104
        %v1829 = vpop.permute.xlu0 %1828
        %1830 = vrot.lane.b32.xlu0 %v1018, 72
        %v1831 = vpop.permute.xlu0 %1830
        %1832 = vrot.lane.b32.xlu0 %v1019, 72
        %v1833 = vpop.permute.xlu0 %1832
        %1834 = vrot.lane.b32.xlu0 %v1020, 72
        %v1835 = vpop.permute.xlu0 %1834
        %1836 = vrot.lane.b32.xlu0 %v1021, 72
        %v1837 = vpop.permute.xlu0 %1836
        %v1839 = vsel %vm1034, %v1823, 0
        %v1842 = vsel %vm1034, %v1825, 0
        %v1845 = vsel %vm1034, %v1827, 0
        %v1848 = vsel %vm1034, %v1829, 0
        %v1851 = vsel %vm1034, %v1831, 0
        %v1854 = vsel %vm1034, %v1833, 0
        %v1857 = vsel %vm1034, %v1835, 0
        %v1860 = vsel %vm1034, %v1837, 0
        %1862 = vmatpush.bf16.xpose.msra.mxu0 0
        %1863 = vmatpush.bf16.xpose.msra.mxu0 0
        %1864 = vmatpush.bf16.xpose.msra.mxu0 0
        %1865 = vmatpush.bf16.xpose.msra.mxu0 0
        %1866 = vmatpush.bf16.xpose.msra.mxu0 %v1860
        %1867 = vmatpush.bf16.xpose.msra.mxu0 %v1857
        %1868 = vmatpush.bf16.xpose.msra.mxu0 %v1854
        %1869 = vmatpush.bf16.xpose.msra.mxu0 %v1851
        %1870 = vmatmul.bf16.gmra.mxu0 %v1839
        %v1871 = vpop.f32.mrf.mxu0
        %v1872 = vadd.f32 0.0, %v1871
        %v1873 = vpop.f32.mrf.mxu0
        %v1874 = vadd.f32 0.0, %v1873
        %1875 = vmatmul.bf16.gmra.mxu0 %v1842
        %v1876 = vpop.f32.mrf.mxu0
        %v1877 = vadd.f32 0.0, %v1876
        %v1878 = vpop.f32.mrf.mxu0
        %v1879 = vadd.f32 0.0, %v1878
        %1880 = vmatmul.bf16.gmra.mxu0 %v1845
        %v1881 = vpop.f32.mrf.mxu0
        %v1882 = vadd.f32 0.0, %v1881
        %v1883 = vpop.f32.mrf.mxu0
        %v1884 = vadd.f32 0.0, %v1883
        %1885 = vmatmul.bf16.gmra.mxu0 %v1848
        %v1886 = vpop.f32.mrf.mxu0
        %v1887 = vadd.f32 0.0, %v1886
        %v1888 = vpop.f32.mrf.mxu0
        %1889 = vdwg.mxu0
        %v1890 = vmul.f32 %v1872, 0.35355338
        %v1891 = vmul.f32 %v1874, 0.35355338
        %v1892 = vmul.f32 %v1877, 0.35355338
        %v1893 = vmul.f32 %v1879, 0.35355338
        %v1894 = vmul.f32 %v1882, 0.35355338
        %v1895 = vmul.f32 %v1884, 0.35355338
        %v1896 = vmul.f32 %v1887, 0.35355338
        %v1897 = vadd.f32 %v1890, %v769
        %v1898 = vadd.f32 %v1891, %v770
        %v1899 = vadd.f32 %v1892, %v771
        %v1900 = vadd.f32 %v1893, %v772
        %v1901 = vadd.f32 %v1894, %v773
        %v1902 = vadd.f32 %v1895, %v774
        %v1903 = vadd.f32 %v1896, %v775
        %v1904 = vsel %vm1101, %v1897, -inf
        %1905 = vmax.xlane.f32.xlu0 %v1904
        %v1906 = vpop.xlane.xlu0 %1905
        %v1907 = vsel %vm1101, %v1898, -inf
        %1908 = vmax.xlane.f32.xlu0 %v1907
        %v1909 = vpop.xlane.xlu0 %1908
        %v1910 = vsel %vm1101, %v1899, -inf
        %1911 = vmax.xlane.f32.xlu0 %v1910
        %v1912 = vpop.xlane.xlu0 %1911
        %v1913 = vsel %vm1101, %v1900, -inf
        %1914 = vmax.xlane.f32.xlu0 %v1913
        %v1915 = vpop.xlane.xlu0 %1914
        %v1916 = vsel %vm1101, %v1901, -inf
        %1917 = vmax.xlane.f32.xlu0 %v1916
        %v1918 = vpop.xlane.xlu0 %1917
        %v1919 = vsel %vm1101, %v1902, -inf
        %1920 = vmax.xlane.f32.xlu0 %v1919
        %v1921 = vpop.xlane.xlu0 %1920
        %v1922 = vsel %vm1120, %v1903, -inf
        %1923 = vmax.xlane.f32.xlu0 %v1922
        %v1924 = vpop.xlane.xlu0 %1923
        %v1925 = vsub.f32 %v1897, %v1906
        %v1926 = vsub.f32 %v1898, %v1909
        %v1927 = vsub.f32 %v1899, %v1912
        %v1928 = vsub.f32 %v1900, %v1915
        %v1929 = vsub.f32 %v1901, %v1918
        %v1930 = vsub.f32 %v1902, %v1921
        %v1931 = vsub.f32 %v1903, %v1924
        %v1932 = vmul.f32 %v1925, 1.442695
        %v1933 = vpow.pop %v1932
        %v1934 = vmul.f32 %v1926, 1.442695
        %v1935 = vpow.pop %v1934
        %v1936 = vmul.f32 %v1927, 1.442695
        %v1937 = vpow.pop %v1936
        %v1938 = vmul.f32 %v1928, 1.442695
        %v1939 = vpow.pop %v1938
        %v1940 = vmul.f32 %v1929, 1.442695
        %v1941 = vpow.pop %v1940
        %v1942 = vmul.f32 %v1930, 1.442695
        %v1943 = vpow.pop %v1942
        %v1944 = vmul.f32 %v1931, 1.442695
        %v1945 = vpow.pop %v1944
        %v1946 = vsel %vm1101, %v1933, 0.0
        %1947 = vadd.xlane.f32.xlu0 %v1946
        %v1948 = vpop.xlane.xlu0 %1947
        %v1949 = vsel %vm1101, %v1935, 0.0
        %1950 = vadd.xlane.f32.xlu0 %v1949
        %v1951 = vpop.xlane.xlu0 %1950
        %v1952 = vsel %vm1101, %v1937, 0.0
        %1953 = vadd.xlane.f32.xlu0 %v1952
        %v1954 = vpop.xlane.xlu0 %1953
        %v1955 = vsel %vm1101, %v1939, 0.0
        %1956 = vadd.xlane.f32.xlu0 %v1955
        %v1957 = vpop.xlane.xlu0 %1956
        %v1958 = vsel %vm1101, %v1941, 0.0
        %1959 = vadd.xlane.f32.xlu0 %v1958
        %v1960 = vpop.xlane.xlu0 %1959
        %v1961 = vsel %vm1101, %v1943, 0.0
        %1962 = vadd.xlane.f32.xlu0 %v1961
        %v1963 = vpop.xlane.xlu0 %1962
        %v1964 = vsel %vm1120, %v1945, 0.0
        %1965 = vadd.xlane.f32.xlu0 %v1964
        %v1966 = vpop.xlane.xlu0 %1965
        %v1967 = vrcp.pop %v1948
        %v1968 = vrcp.pop %v1951
        %v1969 = vrcp.pop %v1954
        %v1970 = vrcp.pop %v1957
        %v1971 = vrcp.pop %v1960
        %v1972 = vrcp.pop %v1963
        %v1973 = vrcp.pop %v1966
        %v1974 = vmul.f32 %v1933, %v1967
        %v1975 = vmul.f32 %v1935, %v1968
        %v1976 = vmul.f32 %v1937, %v1969
        %v1977 = vmul.f32 %v1939, %v1970
        %v1978 = vmul.f32 %v1941, %v1971
        %v1979 = vmul.f32 %v1943, %v1972
        %v1980 = vmul.f32 %v1945, %v1973
        %v1981 = vpack.c.bf16 %v1975, %v1974
        %v1982 = vpack.c.bf16 %v1977, %v1976
        %v1983 = vpack.c.bf16 %v1979, %v1978
        %v1984 = vpack.c.bf16 %v1980, %v1980
        %1985 = vrot.lane.b32.xlu0 %v1018, 40
        %v1986 = vpop.permute.xlu0 %1985
        %1987 = vrot.lane.b32.xlu0 %v1019, 40
        %v1988 = vpop.permute.xlu0 %1987
        %1989 = vrot.lane.b32.xlu0 %v1020, 40
        %v1990 = vpop.permute.xlu0 %1989
        %1991 = vrot.lane.b32.xlu0 %v1021, 40
        %v1992 = vpop.permute.xlu0 %1991
        %v1997 = vsel %vm1101, %v1981, 0
        %v2000 = vsel %vm1101, %v1982, 0
        %v2003 = vsel %vm1101, %v1983, 0
        %v2006 = vsel %vm1101, %v1984, 0
        %v2009 = vsel %vm1207, %v1992, 0
        %2011 = vmatpush.bf16.msra.mxu0 0
        %2012 = vmatpush.bf16.msra.mxu0 0
        %2013 = vmatpush.bf16.msra.mxu0 0
        %2014 = vmatpush.bf16.msra.mxu0 0
        %2015 = vmatpush.bf16.msra.mxu0 %v2009
        %2016 = vmatpush.bf16.msra.mxu0 %v1990
        %2017 = vmatpush.bf16.msra.mxu0 %v1988
        %2018 = vmatpush.bf16.msra.mxu0 %v1986
        %2019 = vmatmul.bf16.gmra.mxu0 %v1997
        %v2020 = vpop.f32.mrf.mxu0
        %v2021 = vadd.f32 0.0, %v2020
        %v2022 = vpop.f32.mrf.mxu0
        %v2023 = vadd.f32 0.0, %v2022
        %2024 = vmatmul.bf16.gmra.mxu0 %v2000
        %v2025 = vpop.f32.mrf.mxu0
        %v2026 = vadd.f32 0.0, %v2025
        %v2027 = vpop.f32.mrf.mxu0
        %v2028 = vadd.f32 0.0, %v2027
        %2029 = vmatmul.bf16.gmra.mxu0 %v2003
        %v2030 = vpop.f32.mrf.mxu0
        %v2031 = vadd.f32 0.0, %v2030
        %v2032 = vpop.f32.mrf.mxu0
        %v2033 = vadd.f32 0.0, %v2032
        %2034 = vmatmul.bf16.gmra.mxu0 %v2006
        %v2035 = vpop.f32.mrf.mxu0
        %v2036 = vadd.f32 0.0, %v2035
        %v2037 = vpop.f32.mrf.mxu0
        %2038 = vdwg.mxu0
        %v2039 = vpack.c.bf16 %v2023, %v2021
        %v2040 = vpack.c.bf16 %v2028, %v2026
        %v2041 = vpack.c.bf16 %v2033, %v2031
        %v2042 = vpack.c.bf16 %v2036, %v2036
        %v2044 = vsel %vm1034, %v2039, 0
        %v2047 = vsel %vm1034, %v2040, 0
        %v2050 = vsel %vm1034, %v2041, 0
        %v2053 = vsel %vm1034, %v2042, 0
        %v2056 = vsel %vm1476, %v736, 0
        %2058 = vmatpush.bf16.msra.mxu0 0
        %2059 = vmatpush.bf16.msra.mxu0 0
        %2060 = vmatpush.bf16.msra.mxu0 0
        %2061 = vmatpush.bf16.msra.mxu0 0
        %2062 = vmatpush.bf16.msra.mxu0 0
        %2063 = vmatpush.bf16.msra.mxu0 0
        %2064 = vmatpush.bf16.msra.mxu0 0
        %2065 = vmatpush.bf16.msra.mxu0 %v2056
        %2066 = vmatmul.bf16.gmra.mxu0 %v2044
        %v2067 = vpop.f32.mrf.mxu0
        %v2068 = vadd.f32 0.0, %v2067
        %v2069 = vpop.f32.mrf.mxu0
        %v2070 = vadd.f32 0.0, %v2069
        %2071 = vmatmul.bf16.gmra.mxu0 %v2047
        %v2072 = vpop.f32.mrf.mxu0
        %v2073 = vadd.f32 0.0, %v2072
        %v2074 = vpop.f32.mrf.mxu0
        %v2075 = vadd.f32 0.0, %v2074
        %2076 = vmatmul.bf16.gmra.mxu0 %v2050
        %v2077 = vpop.f32.mrf.mxu0
        %v2078 = vadd.f32 0.0, %v2077
        %v2079 = vpop.f32.mrf.mxu0
        %v2080 = vadd.f32 0.0, %v2079
        %2081 = vmatmul.bf16.gmra.mxu0 %v2053
        %v2082 = vpop.f32.mrf.mxu0
        %v2083 = vadd.f32 0.0, %v2082
        %v2084 = vpop.f32.mrf.mxu0
        %2085 = vdwg.mxu0
        %v2086 = vadd.f32 %v1815, %v2068
        %v2087 = vadd.f32 %v1816, %v2070
        %v2088 = vadd.f32 %v1817, %v2073
        %v2089 = vadd.f32 %v1818, %v2075
        %v2090 = vadd.f32 %v1819, %v2078
        %v2091 = vadd.f32 %v1820, %v2080
        %v2092 = vadd.f32 %v1821, %v2083
        %v2094 = vperm.slane %v737, 0
        %v2096 = vadd.f32 %v2086, %v2094
        %v2097 = vadd.f32 %v2087, %v2094
        %v2098 = vadd.f32 %v2088, %v2094
        %v2099 = vadd.f32 %v2089, %v2094
        %v2100 = vadd.f32 %v2090, %v2094
        %v2101 = vadd.f32 %v2091, %v2094
        %v2102 = vadd.f32 %v2092, %v2094
        %v2103 = vadd.f32 %v762, %v2096
        %v2104 = vadd.f32 %v763, %v2097
        %v2105 = vadd.f32 %v764, %v2098
        %v2106 = vadd.f32 %v765, %v2099
        %v2107 = vadd.f32 %v766, %v2100
        %v2108 = vadd.f32 %v767, %v2101
        %v2109 = vadd.f32 %v768, %v2102
        %v2110 = vsel %vm776, %v2103, 0.0
        %2111 = vadd.xlane.f32.xlu0 %v2110
        %v2112 = vpop.xlane.xlu0 %2111
        %v2113 = vsel %vm776, %v2104, 0.0
        %2114 = vadd.xlane.f32.xlu0 %v2113
        %v2115 = vpop.xlane.xlu0 %2114
        %v2116 = vsel %vm776, %v2105, 0.0
        %2117 = vadd.xlane.f32.xlu0 %v2116
        %v2118 = vpop.xlane.xlu0 %2117
        %v2119 = vsel %vm776, %v2106, 0.0
        %2120 = vadd.xlane.f32.xlu0 %v2119
        %v2121 = vpop.xlane.xlu0 %2120
        %v2122 = vsel %vm776, %v2107, 0.0
        %2123 = vadd.xlane.f32.xlu0 %v2122
        %v2124 = vpop.xlane.xlu0 %2123
        %v2125 = vsel %vm776, %v2108, 0.0
        %2126 = vadd.xlane.f32.xlu0 %v2125
        %v2127 = vpop.xlane.xlu0 %2126
        %v2128 = vsel %vm795, %v2109, 0.0
        %2129 = vadd.xlane.f32.xlu0 %v2128
        %v2130 = vpop.xlane.xlu0 %2129
        %v2131 = vmul.f32 %v2112, %v805
        %v2132 = vmul.f32 %v2115, %v805
        %v2133 = vmul.f32 %v2118, %v805
        %v2134 = vmul.f32 %v2121, %v805
        %v2135 = vmul.f32 %v2124, %v805
        %v2136 = vmul.f32 %v2127, %v805
        %v2137 = vmul.f32 %v2130, %v805
        %v2138 = vsub.f32 %v2103, %v2131
        %v2139 = vsub.f32 %v2104, %v2132
        %v2140 = vsub.f32 %v2105, %v2133
        %v2141 = vsub.f32 %v2106, %v2134
        %v2142 = vsub.f32 %v2107, %v2135
        %v2143 = vsub.f32 %v2108, %v2136
        %v2144 = vsub.f32 %v2109, %v2137
        %v2145 = vmul.f32 %v2138, %v2138
        %v2146 = vmul.f32 %v2139, %v2139
        %v2147 = vmul.f32 %v2140, %v2140
        %v2148 = vmul.f32 %v2141, %v2141
        %v2149 = vmul.f32 %v2142, %v2142
        %v2150 = vmul.f32 %v2143, %v2143
        %v2151 = vmul.f32 %v2144, %v2144
        %v2152 = vsel %vm776, %v2145, 0.0
        %2153 = vadd.xlane.f32.xlu0 %v2152
        %v2154 = vpop.xlane.xlu0 %2153
        %v2155 = vsel %vm776, %v2146, 0.0
        %2156 = vadd.xlane.f32.xlu0 %v2155
        %v2157 = vpop.xlane.xlu0 %2156
        %v2158 = vsel %vm776, %v2147, 0.0
        %2159 = vadd.xlane.f32.xlu0 %v2158
        %v2160 = vpop.xlane.xlu0 %2159
        %v2161 = vsel %vm776, %v2148, 0.0
        %2162 = vadd.xlane.f32.xlu0 %v2161
        %v2163 = vpop.xlane.xlu0 %2162
        %v2164 = vsel %vm776, %v2149, 0.0
        %2165 = vadd.xlane.f32.xlu0 %v2164
        %v2166 = vpop.xlane.xlu0 %2165
        %v2167 = vsel %vm776, %v2150, 0.0
        %2168 = vadd.xlane.f32.xlu0 %v2167
        %v2169 = vpop.xlane.xlu0 %2168
        %v2170 = vsel %vm795, %v2151, 0.0
        %2171 = vadd.xlane.f32.xlu0 %v2170
        %v2172 = vpop.xlane.xlu0 %2171
        %v2173 = vmul.f32 %v2154, %v805
        %v2174 = vmul.f32 %v2157, %v805
        %v2175 = vmul.f32 %v2160, %v805
        %v2176 = vmul.f32 %v2163, %v805
        %v2177 = vmul.f32 %v2166, %v805
        %v2178 = vmul.f32 %v2169, %v805
        %v2179 = vmul.f32 %v2172, %v805
        %v2180 = vadd.f32 %v2173, 1e-06
        %v2181 = vadd.f32 %v2174, 1e-06
        %v2182 = vadd.f32 %v2175, 1e-06
        %v2183 = vadd.f32 %v2176, 1e-06
        %v2184 = vadd.f32 %v2177, 1e-06
        %v2185 = vadd.f32 %v2178, 1e-06
        %v2186 = vadd.f32 %v2179, 1e-06
        %v2187 = vrsqrt.pop %v2180
        %v2188 = vmul.f32 %v2187, %v2180
        %v2189 = vmul.f32 %v2188, %v2187
        %v2190 = vmul.f32 0.5, %v2189
        %v2191 = vsub.f32 1.5, %v2190
        %v2192 = vmul.f32 %v2187, %v2191
        %vm2193 = vweird.f32 %v2180
        %vm2194 = vweird.f32 %v2187
        %vm2195 = vmor %vm2193, %vm2194
        %v2196 = vsel %vm2195, %v2187, %v2192
        %v2197 = vrsqrt.pop %v2181
        %v2198 = vmul.f32 %v2197, %v2181
        %v2199 = vmul.f32 %v2198, %v2197
        %v2200 = vmul.f32 0.5, %v2199
        %v2201 = vsub.f32 1.5, %v2200
        %v2202 = vmul.f32 %v2197, %v2201
        %vm2203 = vweird.f32 %v2181
        %vm2204 = vweird.f32 %v2197
        %vm2205 = vmor %vm2203, %vm2204
        %v2206 = vsel %vm2205, %v2197, %v2202
        %v2207 = vrsqrt.pop %v2182
        %v2208 = vmul.f32 %v2207, %v2182
        %v2209 = vmul.f32 %v2208, %v2207
        %v2210 = vmul.f32 0.5, %v2209
        %v2211 = vsub.f32 1.5, %v2210
        %v2212 = vmul.f32 %v2207, %v2211
        %vm2213 = vweird.f32 %v2182
        %vm2214 = vweird.f32 %v2207
        %vm2215 = vmor %vm2213, %vm2214
        %v2216 = vsel %vm2215, %v2207, %v2212
        %v2217 = vrsqrt.pop %v2183
        %v2218 = vmul.f32 %v2217, %v2183
        %v2219 = vmul.f32 %v2218, %v2217
        %v2220 = vmul.f32 0.5, %v2219
        %v2221 = vsub.f32 1.5, %v2220
        %v2222 = vmul.f32 %v2217, %v2221
        %vm2223 = vweird.f32 %v2183
        %vm2224 = vweird.f32 %v2217
        %vm2225 = vmor %vm2223, %vm2224
        %v2226 = vsel %vm2225, %v2217, %v2222
        %v2227 = vrsqrt.pop %v2184
        %v2228 = vmul.f32 %v2227, %v2184
        %v2229 = vmul.f32 %v2228, %v2227
        %v2230 = vmul.f32 0.5, %v2229
        %v2231 = vsub.f32 1.5, %v2230
        %v2232 = vmul.f32 %v2227, %v2231
        %vm2233 = vweird.f32 %v2184
        %vm2234 = vweird.f32 %v2227
        %vm2235 = vmor %vm2233, %vm2234
        %v2236 = vsel %vm2235, %v2227, %v2232
        %v2237 = vrsqrt.pop %v2185
        %v2238 = vmul.f32 %v2237, %v2185
        %v2239 = vmul.f32 %v2238, %v2237
        %v2240 = vmul.f32 0.5, %v2239
        %v2241 = vsub.f32 1.5, %v2240
        %v2242 = vmul.f32 %v2237, %v2241
        %vm2243 = vweird.f32 %v2185
        %vm2244 = vweird.f32 %v2237
        %vm2245 = vmor %vm2243, %vm2244
        %v2246 = vsel %vm2245, %v2237, %v2242
        %v2247 = vrsqrt.pop %v2186
        %v2248 = vmul.f32 %v2247, %v2186
        %v2249 = vmul.f32 %v2248, %v2247
        %v2250 = vmul.f32 0.5, %v2249
        %v2251 = vsub.f32 1.5, %v2250
        %v2252 = vmul.f32 %v2247, %v2251
        %vm2253 = vweird.f32 %v2186
        %vm2254 = vweird.f32 %v2247
        %vm2255 = vmor %vm2253, %vm2254
        %v2256 = vsel %vm2255, %v2247, %v2252
        %v2257 = vmul.f32 %v2138, %v2196
        %v2258 = vmul.f32 %v2139, %v2206
        %v2259 = vmul.f32 %v2140, %v2216
        %v2260 = vmul.f32 %v2141, %v2226
        %v2261 = vmul.f32 %v2142, %v2236
        %v2262 = vmul.f32 %v2143, %v2246
        %v2263 = vmul.f32 %v2144, %v2256
        %v2265 = vperm.slane %v738, 0
        %v2267 = vmul.f32 %v2257, %v2265
        %v2268 = vmul.f32 %v2258, %v2265
        %v2269 = vmul.f32 %v2259, %v2265
        %v2270 = vmul.f32 %v2260, %v2265
        %v2271 = vmul.f32 %v2261, %v2265
        %v2272 = vmul.f32 %v2262, %v2265
        %v2273 = vmul.f32 %v2263, %v2265
        %v2275 = vperm.slane %v739, 0
        %v2277 = vadd.f32 %v2267, %v2275
        %v2278 = vadd.f32 %v2268, %v2275
        %v2279 = vadd.f32 %v2269, %v2275
        %v2280 = vadd.f32 %v2270, %v2275
        %v2281 = vadd.f32 %v2271, %v2275
        %v2282 = vadd.f32 %v2272, %v2275
        %v2283 = vadd.f32 %v2273, %v2275
        %v2284 = vpack.c.bf16 %v2278, %v2277
        %v2285 = vpack.c.bf16 %v2280, %v2279
        %v2286 = vpack.c.bf16 %v2282, %v2281
        %v2287 = vpack.c.bf16 %v2283, %v2283
        %v2289 = vperm.slane %v744, 0
        %v2295 = vunpack.c.l.b16 %v740
        %v2296 = vunpack.c.l.b16 %v741
        %v2297 = vunpack.c.l.b16 %v742
        %v2298 = vunpack.c.l.b16 %v743
        %v2299 = vpack.c.b16 %v2296, %v2295
        %v2300 = vpack.c.b16 %v2298, %v2297
        %v2304 = vsel %vm776, %v2284, 0
        %v2307 = vsel %vm776, %v2285, 0
        %v2310 = vsel %vm776, %v2286, 0
        %v2313 = vsel %vm776, %v2287, 0
        %2315 = vmatpush.bf16.msra.mxu0 0
        %2316 = vmatpush.bf16.msra.mxu0 0
        %2317 = vmatpush.bf16.msra.mxu0 0
        %2318 = vmatpush.bf16.msra.mxu0 0
        %2319 = vmatpush.bf16.msra.mxu0 0
        %2320 = vmatpush.bf16.msra.mxu0 0
        %2321 = vmatpush.bf16.msra.mxu0 %v2300
        %2322 = vmatpush.bf16.msra.mxu0 %v2299
        %2323 = vmatmul.bf16.gmra.mxu0 %v2304
        %v2324 = vpop.f32.mrf.mxu0
        %v2325 = vadd.f32 %v2289, %v2324
        %v2326 = vpop.f32.mrf.mxu0
        %v2327 = vadd.f32 %v2289, %v2326
        %2328 = vmatmul.bf16.gmra.mxu0 %v2307
        %v2329 = vpop.f32.mrf.mxu0
        %v2330 = vadd.f32 %v2289, %v2329
        %v2331 = vpop.f32.mrf.mxu0
        %v2332 = vadd.f32 %v2289, %v2331
        %2333 = vmatmul.bf16.gmra.mxu0 %v2310
        %v2334 = vpop.f32.mrf.mxu0
        %v2335 = vadd.f32 %v2289, %v2334
        %v2336 = vpop.f32.mrf.mxu0
        %v2337 = vadd.f32 %v2289, %v2336
        %2338 = vmatmul.bf16.gmra.mxu0 %v2313
        %v2339 = vpop.f32.mrf.mxu0
        %v2340 = vadd.f32 %v2289, %v2339
        %v2341 = vpop.f32.mrf.mxu0
        %2342 = vdwg.mxu0
        %v2343 = vmul.f32 %v2325, 0.5
        %v2344 = vmul.f32 %v2327, 0.5
        %v2345 = vmul.f32 %v2330, 0.5
        %v2346 = vmul.f32 %v2332, 0.5
        %v2347 = vmul.f32 %v2335, 0.5
        %v2348 = vmul.f32 %v2337, 0.5
        %v2349 = vmul.f32 %v2340, 0.5
        %v2350 = vmul.f32 %v2325, 0.044715
        %v2351 = vmul.f32 %v2327, 0.044715
        %v2352 = vmul.f32 %v2330, 0.044715
        %v2353 = vmul.f32 %v2332, 0.044715
        %v2354 = vmul.f32 %v2335, 0.044715
        %v2355 = vmul.f32 %v2337, 0.044715
        %v2356 = vmul.f32 %v2340, 0.044715
        %v2357 = vmul.f32 %v2350, %v2325
        %v2358 = vmul.f32 %v2351, %v2327
        %v2359 = vmul.f32 %v2352, %v2330
        %v2360 = vmul.f32 %v2353, %v2332
        %v2361 = vmul.f32 %v2354, %v2335
        %v2362 = vmul.f32 %v2355, %v2337
        %v2363 = vmul.f32 %v2356, %v2340
        %v2364 = vmul.f32 %v2357, %v2325
        %v2365 = vmul.f32 %v2358, %v2327
        %v2366 = vmul.f32 %v2359, %v2330
        %v2367 = vmul.f32 %v2360, %v2332
        %v2368 = vmul.f32 %v2361, %v2335
        %v2369 = vmul.f32 %v2362, %v2337
        %v2370 = vmul.f32 %v2363, %v2340
        %v2371 = vadd.f32 %v2325, %v2364
        %v2372 = vadd.f32 %v2327, %v2365
        %v2373 = vadd.f32 %v2330, %v2366
        %v2374 = vadd.f32 %v2332, %v2367
        %v2375 = vadd.f32 %v2335, %v2368
        %v2376 = vadd.f32 %v2337, %v2369
        %v2377 = vadd.f32 %v2340, %v2370
        %v2378 = vmul.f32 %v2371, 0.7978846
        %v2379 = vmul.f32 %v2372, 0.7978846
        %v2380 = vmul.f32 %v2373, 0.7978846
        %v2381 = vmul.f32 %v2374, 0.7978846
        %v2382 = vmul.f32 %v2375, 0.7978846
        %v2383 = vmul.f32 %v2376, 0.7978846
        %v2384 = vmul.f32 %v2377, 0.7978846
        %v2385 = vtanh.pop %v2378
        %v2386 = vtanh.pop %v2379
        %v2387 = vtanh.pop %v2380
        %v2388 = vtanh.pop %v2381
        %v2389 = vtanh.pop %v2382
        %v2390 = vtanh.pop %v2383
        %v2391 = vtanh.pop %v2384
        %v2392 = vadd.f32 %v2385, 1.0
        %v2393 = vadd.f32 %v2386, 1.0
        %v2394 = vadd.f32 %v2387, 1.0
        %v2395 = vadd.f32 %v2388, 1.0
        %v2396 = vadd.f32 %v2389, 1.0
        %v2397 = vadd.f32 %v2390, 1.0
        %v2398 = vadd.f32 %v2391, 1.0
        %v2399 = vmul.f32 %v2343, %v2392
        %v2400 = vmul.f32 %v2344, %v2393
        %v2401 = vmul.f32 %v2345, %v2394
        %v2402 = vmul.f32 %v2346, %v2395
        %v2403 = vmul.f32 %v2347, %v2396
        %v2404 = vmul.f32 %v2348, %v2397
        %v2405 = vmul.f32 %v2349, %v2398
        %v2406 = vpack.c.bf16 %v2400, %v2399
        %v2407 = vpack.c.bf16 %v2402, %v2401
        %v2408 = vpack.c.bf16 %v2404, %v2403
        %v2409 = vpack.c.bf16 %v2405, %v2405
        %v2411 = vperm.slane %v761, 0
        %v2429 = vunpack.c.l.b16 %v745
        %v2430 = vunpack.c.l.b16 %v746
        %v2431 = vunpack.c.l.b16 %v747
        %v2432 = vunpack.c.l.b16 %v748
        %v2433 = vunpack.c.l.b16 %v749
        %v2434 = vunpack.c.l.b16 %v750
        %v2435 = vunpack.c.l.b16 %v751
        %v2436 = vunpack.c.l.b16 %v752
        %v2437 = vunpack.c.l.b16 %v753
        %v2438 = vunpack.c.l.b16 %v754
        %v2439 = vunpack.c.l.b16 %v755
        %v2440 = vunpack.c.l.b16 %v756
        %v2441 = vunpack.c.l.b16 %v757
        %v2442 = vunpack.c.l.b16 %v758
        %v2443 = vunpack.c.l.b16 %v759
        %v2444 = vunpack.c.l.b16 %v760
        %v2445 = vpack.c.b16 %v2430, %v2429
        %v2446 = vpack.c.b16 %v2432, %v2431
        %v2447 = vpack.c.b16 %v2434, %v2433
        %v2448 = vpack.c.b16 %v2436, %v2435
        %v2449 = vpack.c.b16 %v2438, %v2437
        %v2450 = vpack.c.b16 %v2440, %v2439
        %v2451 = vpack.c.b16 %v2442, %v2441
        %v2452 = vpack.c.b16 %v2444, %v2443
        %2461 = vmatpush.bf16.msra.mxu0 %v2452
        %2462 = vmatpush.bf16.msra.mxu0 %v2451
        %2463 = vmatpush.bf16.msra.mxu0 %v2450
        %2464 = vmatpush.bf16.msra.mxu0 %v2449
        %2465 = vmatpush.bf16.msra.mxu0 %v2448
        %2466 = vmatpush.bf16.msra.mxu0 %v2447
        %2467 = vmatpush.bf16.msra.mxu0 %v2446
        %2468 = vmatpush.bf16.msra.mxu0 %v2445
        %2469 = vmatmul.bf16.gmra.mxu0 %v2406
        %v2470 = vpop.f32.mrf.mxu0
        %v2471 = vadd.f32 %v2411, %v2470
        %v2472 = vpop.f32.mrf.mxu0
        %v2473 = vadd.f32 %v2411, %v2472
        %2474 = vmatmul.bf16.gmra.mxu0 %v2407
        %v2475 = vpop.f32.mrf.mxu0
        %v2476 = vadd.f32 %v2411, %v2475
        %v2477 = vpop.f32.mrf.mxu0
        %v2478 = vadd.f32 %v2411, %v2477
        %2479 = vmatmul.bf16.gmra.mxu0 %v2408
        %v2480 = vpop.f32.mrf.mxu0
        %v2481 = vadd.f32 %v2411, %v2480
        %v2482 = vpop.f32.mrf.mxu0
        %v2483 = vadd.f32 %v2411, %v2482
        %2484 = vmatmul.bf16.gmra.mxu0 %v2409
        %v2485 = vpop.f32.mrf.mxu0
        %v2486 = vadd.f32 %v2411, %v2485
        %v2487 = vpop.f32.mrf.mxu0
        %2488 = vdwg.mxu0
        %v2489 = vadd.f32 %v2103, %v2471
        %v2490 = vadd.f32 %v2104, %v2473
        %v2491 = vadd.f32 %v2105, %v2476
        %v2492 = vadd.f32 %v2106, %v2478
        %v2493 = vadd.f32 %v2107, %v2481
        %v2494 = vadd.f32 %v2108, %v2483
        %v2495 = vadd.f32 %v2109, %v2486
        %2496 = vst.msk [vmem:[#allocation2] sm:$0xff] %vm776, %v2489
        %2497 = vst.msk [vmem:[#allocation2 + $0x8] sm:$0xff] %vm776, %v2490
        %2498 = vst.msk [vmem:[#allocation2 + $0x10] sm:$0xff] %vm776, %v2491
        %2499 = vst.msk [vmem:[#allocation2 + $0x18] sm:$0xff] %vm776, %v2492
        %2500 = vst.msk [vmem:[#allocation2 + $0x20] sm:$0xff] %vm776, %v2493
        %2501 = vst.msk [vmem:[#allocation2 + $0x28] sm:$0xff] %vm776, %v2494
        %2502 = vst.msk [vmem:[#allocation2 + $0x30] sm:$0x3] %vm795, %v2495
        %p2503 = scmp.eq.s32.totalorder %s30, 1
        // Predicated region
        $region89: #{vit_bert_plus_forward.3} parent=83 // pred_check
          %p2504 = pneg %p2503
        $region90: #{vit_bert_plus_forward.3} parent=83 // pred_check_branch
          %2506 = sbr.rel (%p2504) target = $region92
        $region91: #{vit_bert_plus_forward.3} parent=83 // pred_region
          %2507 = vst.msk [vmem:[%s16] sm:$0xff] %vm776, %v2489
          %2508 = vst.msk [vmem:[%s16 + $0x8] sm:$0xff] %vm776, %v2490
          %2509 = vst.msk [vmem:[%s16 + $0x10] sm:$0xff] %vm776, %v2491
          %2510 = vst.msk [vmem:[%s16 + $0x18] sm:$0xff] %vm776, %v2492
          %2511 = vst.msk [vmem:[%s16 + $0x20] sm:$0xff] %vm776, %v2493
          %2512 = vst.msk [vmem:[%s16 + $0x28] sm:$0xff] %vm776, %v2494
          %2513 = vst.msk [vmem:[%s16 + $0x30] sm:$0x3] %vm795, %v2495
          %v2514 = vld [vmem:[%s2] sm:$0x1]
          %v2515 = vld [vmem:[%s3] sm:$0x1]
          %vm2516 = vcmask 253952
          %v2517 = vsel %vm2516, %v2489, 0.0
          %2518 = vadd.xlane.f32.xlu0 %v2517
          %v2519 = vpop.xlane.xlu0 %2518
          %v2520 = vmul.f32 %v2519, %v805
          %v2521 = vsub.f32 %v2489, %v2520
          %v2522 = vmul.f32 %v2521, %v2521
          %v2523 = vsel %vm2516, %v2522, 0.0
          %2524 = vadd.xlane.f32.xlu0 %v2523
          %v2525 = vpop.xlane.xlu0 %2524
          %v2526 = vmul.f32 %v2525, %v805
          %v2527 = vadd.f32 %v2526, 1e-06
          %v2528 = vrsqrt.pop %v2527
          %v2529 = vmul.f32 %v2528, %v2527
          %v2530 = vmul.f32 %v2529, %v2528
          %v2531 = vmul.f32 0.5, %v2530
          %v2532 = vsub.f32 1.5, %v2531
          %v2533 = vmul.f32 %v2528, %v2532
          %vm2534 = vweird.f32 %v2527
          %vm2535 = vweird.f32 %v2528
          %vm2536 = vmor %vm2534, %vm2535
          %v2537 = vsel %vm2536, %v2528, %v2533
          %v2538 = vmul.f32 %v2521, %v2537
          %v2539 = vmul.f32 %v2538, %v2514
          %v2540 = vadd.f32 %v2539, %v2515
          %2541 = vst.msk [vmem:[#allocation3] sm:$0x1] %vm2516, %v2540
          %vm2542 = vcmask 254977
          %v2543 = vsel %vm2542, %v2492, 0.0
          %2544 = vadd.xlane.f32.xlu0 %v2543
          %v2545 = vpop.xlane.xlu0 %2544
          %v2546 = vmul.f32 %v2545, %v805
          %v2547 = vsub.f32 %v2492, %v2546
          %v2548 = vmul.f32 %v2547, %v2547
          %v2549 = vsel %vm2542, %v2548, 0.0
          %2550 = vadd.xlane.f32.xlu0 %v2549
          %v2551 = vpop.xlane.xlu0 %2550
          %v2552 = vmul.f32 %v2551, %v805
          %v2553 = vadd.f32 %v2552, 1e-06
          %v2554 = vrsqrt.pop %v2553
          %v2555 = vmul.f32 %v2554, %v2553
          %v2556 = vmul.f32 %v2555, %v2554
          %v2557 = vmul.f32 0.5, %v2556
          %v2558 = vsub.f32 1.5, %v2557
          %v2559 = vmul.f32 %v2554, %v2558
          %vm2560 = vweird.f32 %v2553
          %vm2561 = vweird.f32 %v2554
          %vm2562 = vmor %vm2560, %vm2561
          %v2563 = vsel %vm2562, %v2554, %v2559
          %v2564 = vmul.f32 %v2547, %v2563
          %v2566 = vperm.slane %v2514, 0
          %v2568 = vmul.f32 %v2564, %v2566
          %v2570 = vperm.slane %v2515, 0
          %v2572 = vadd.f32 %v2568, %v2570
          %2573 = vst.msk [vmem:[#allocation3] sm:$0x2] %vm2542, %v2572
        $region92: #{vit_bert_plus_forward.3} parent=83 // pred_fallthru
          _
        // Predicated region
        $region93: #{vit_bert_plus_forward.3} parent=83 // pred_check
          %p2574 = pneg %p439
        $region94: #{vit_bert_plus_forward.3} parent=83 // pred_check_branch
          %2576 = sbr.rel (%p2574) target = $region96
        $region95: #{vit_bert_plus_forward.3} parent=83 // pred_region
          _
        $region96: #{vit_bert_plus_forward.3} parent=83 // pred_fallthru
          _
        // Predicated region
        $region97: #{vit_bert_plus_forward.3} parent=83 // pred_check
          %p2577 = pneg %p460
        $region98: #{vit_bert_plus_forward.3} parent=83 // pred_check_branch
          %2579 = sbr.rel (%p2577) target = $region100
        $region99: #{vit_bert_plus_forward.3} parent=83 // pred_region
          %2581 = vsyncadd [#allocation4], 0
          %s2583 = sshll.u32 [#allocation3], 4
          %s2584 = int_to_ptr.vmem [resolvable:$true] %s2583
          %s2585 = sshll.u32 %s17, 4
          %s2586 = int_to_ptr.hbm [resolvable:$true] %s2585
          %2588 = dma.vmem_to_hbm [thread:$0]  %s2584, 32, %s2586, [#allocation4]
        $region100: #{vit_bert_plus_forward.3} parent=83 // pred_fallthru
          _
        // Predicated region
        $region101: #{vit_bert_plus_forward.3} parent=83 // pred_check
          %p2589 = pneg %p439
        $region102: #{vit_bert_plus_forward.3} parent=83 // pred_check_branch
          %2591 = sbr.rel (%p2589) target = $region104
        $region103: #{vit_bert_plus_forward.3} parent=83 // pred_region
          _
        $region104: #{vit_bert_plus_forward.3} parent=83 // pred_fallthru
          _
        // Predicated region
        $region105: #{vit_bert_plus_forward.3} parent=83 // pred_check
          %p2592 = pneg %p460
        $region106: #{vit_bert_plus_forward.3} parent=83 // pred_check_branch
          %2594 = sbr.rel (%p2592) target = $region108
        $region107: #{vit_bert_plus_forward.3} parent=83 // pred_region
          %2596 = dma.done [#allocation4], 32
        $region108: #{vit_bert_plus_forward.3} parent=83 // pred_fallthru
          _
      $region84: #{vit_bert_plus_forward.3} parent=5 // pred_fallthru
        _
      %p2597 = scmp.le.s32.totalorder 2, %s25
      // Predicated region
      $region109: #{vit_bert_plus_forward.3} parent=5 // pred_check
        %p2598 = pneg %p2597
      $region110: #{vit_bert_plus_forward.3} parent=5 // pred_check_branch
        %2600 = sbr.rel (%p2598) target = $region112
      $region111: #{vit_bert_plus_forward.3} parent=5 // pred_region
        %s2601 = ssub.s32 %s25, 2
      $region112: #{vit_bert_plus_forward.3} parent=5 // pred_fallthru
        _
    $region6: #{vit_bert_plus_forward.3} parent=1 // loop_footer
      %s29 = sadd.s32 1, %s25
    $region7: #{vit_bert_plus_forward.3} parent=1 // loop_footer_branch
      %24 = sbr.rel target = $region3
    $region8: #{vit_bert_plus_forward.3} parent=1 // loop_exit
      _
    %2602 = vsyncpa [#allocation4], 1
    %s2603 = scalar_lea.sflag [#allocation4], 1
    %2604 = vsyncpa %s2603, 1

// kernel: vit_bert_plus_forward.4
$region0: #{vit_bert_plus_forward.4}
  #allocation0 [shape = 'u32[]', space=smem, size = 0x4, offset = 0x4, fixed_abs, tag = 'smem constant byte address 0x4 - core index']
  #allocation1 [shape = 'u32[72,128]{1,0:T(1,128)}', space=vmem, size = 0x9000, scoped, tag = 'internal scratch']
  %s0 = inlined_call_operand.vmem [shape: f32[6,10,32], index: 0, kind: input, shape index: {}]
  %s1 = inlined_call_operand.vmem [shape: f32[10,10], index: 1, kind: input, shape index: {}]
  %s2 = inlined_call_operand.vmem [shape: f32[1,32], index: 2, kind: input, shape index: {}]
  %s3 = inlined_call_operand.vmem [shape: f32[1,32], index: 3, kind: input, shape index: {}]
  %s4 = inlined_call_operand.vmem [shape: f32[6,1,32], index: 4, kind: input, shape index: {}]
  %s5 = inlined_call_operand.vmem [shape: f32[6,1,32], index: 5, kind: input, shape index: {}]
  %s6 = inlined_call_operand.vmem [shape: bf16[6,32,128], index: 6, kind: input, shape index: {}]
  %s7 = inlined_call_operand.vmem [shape: f32[6,1,128], index: 7, kind: input, shape index: {}]
  %s8 = inlined_call_operand.vmem [shape: bf16[6,32,32], index: 8, kind: input, shape index: {}]
  %s9 = inlined_call_operand.vmem [shape: f32[6,1,32], index: 9, kind: input, shape index: {}]
  %s10 = inlined_call_operand.vmem [shape: f32[6,1,32], index: 10, kind: input, shape index: {}]
  %s11 = inlined_call_operand.vmem [shape: f32[6,1,32], index: 11, kind: input, shape index: {}]
  %s12 = inlined_call_operand.vmem [shape: bf16[6,32,128], index: 12, kind: input, shape index: {}]
  %s13 = inlined_call_operand.vmem [shape: f32[6,1,128], index: 13, kind: input, shape index: {}]
  %s14 = inlined_call_operand.vmem [shape: bf16[6,128,32], index: 14, kind: input, shape index: {}]
  %s15 = inlined_call_operand.vmem [shape: f32[6,1,32], index: 15, kind: input, shape index: {}]
  %s16 = inlined_call_operand.vmem [shape: f32[6,2,32], index: 16, kind: output, shape index: {}]
  %s17 = sld [smem:[#allocation0]]
  $region97: #{vit_bert_plus_forward.4} parent=0
    _
  %s19 = ssub.s32 1, %s17
  %s20 = scalar_select 0, %s19, %s17
  loop: start=0, step=1, limit=8
  $region2: #{vit_bert_plus_forward.4} parent=0 // loop_pre_header
    _
  $region3: #{vit_bert_plus_forward.4} parent=0 // loop_header
    %s22 = sphi 0, %s26
    %p23 = scmp.ge.s32.totalorder %s22, 8
    %s32 = sphi 0, %s34
    %s35 = sphi 0, %s32
    %s36 = sphi 0, %s35
    %s52 = sphi 0, %s36
    %s56 = sphi 0, %s56
    %s58 = sphi 0, %s56
    %s59 = sphi 0, %s58
    %s73 = sphi 0, %s59
    %s77 = sphi 0, %s77
    %s79 = sphi 0, %s77
    %s80 = sphi 0, %s79
    %s94 = sphi 0, %s80
    %s98 = sphi 0, %s98
    %s100 = sphi 0, %s98
    %s101 = sphi 0, %s100
    %s115 = sphi 0, %s101
    %s121 = sphi 0, %s123
    %s124 = sphi 0, %s121
    %s125 = sphi 0, %s124
    %s141 = sphi 0, %s125
    %s147 = sphi 0, %s149
    %s150 = sphi 0, %s147
    %s151 = sphi 0, %s150
    %s167 = sphi 0, %s151
    %s173 = sphi 0, %s175
    %s176 = sphi 0, %s173
    %s177 = sphi 0, %s176
    %s193 = sphi 0, %s177
    %s199 = sphi 0, %s201
    %s202 = sphi 0, %s199
    %s203 = sphi 0, %s202
    %s219 = sphi 0, %s203
    %s225 = sphi 0, %s227
    %s228 = sphi 0, %s225
    %s229 = sphi 0, %s228
    %s245 = sphi 0, %s229
    %s251 = sphi 0, %s253
    %s254 = sphi 0, %s251
    %s255 = sphi 0, %s254
    %s271 = sphi 0, %s255
    %s277 = sphi 0, %s279
    %s280 = sphi 0, %s277
    %s281 = sphi 0, %s280
    %s297 = sphi 0, %s281
    %s303 = sphi 0, %s305
    %s306 = sphi 0, %s303
    %s307 = sphi 0, %s306
    %s323 = sphi 0, %s307
    %s329 = sphi 0, %s331
    %s332 = sphi 0, %s329
    %s333 = sphi 0, %s332
    %s349 = sphi 0, %s333
    %s355 = sphi 0, %s357
    %s358 = sphi 0, %s355
    %s359 = sphi 0, %s358
    %s375 = sphi 0, %s359
    %s381 = sphi 0, %s383
    %s384 = sphi 0, %s381
    %s385 = sphi 0, %s384
    %s401 = sphi 0, %s385
    %s407 = sphi 0, %s409
    %s410 = sphi 0, %s407
    %s411 = sphi 0, %s410
    %s427 = sphi 0, %s411
    %s433 = sphi 0, %s435
    %s436 = sphi 0, %s433
    %s437 = sphi 0, %s436
    %s453 = sphi 0, %s437
  $region4: #{vit_bert_plus_forward.4} parent=0 // loop_header_branch
    %25 = sbr.rel (%p23) target = $region8
  $region5: #{vit_bert_plus_forward.4} parent=0 // loop_body
    %s27 = ssub.s32 %s22, 1
    %s28 = ssub.s32 %s22, 2
    %s29 = sadd.s32 %s22, 1
    %s30 = ssub.s32 %s22, %s29
    %p31 = scmp.eq.s32.totalorder %s30, 0
    %s33 = sadd.s32 %s32, 1
    %s34 = scalar_select %p31, %s32, %s33
    %p37 = pneg %p31
    %p38 = scmp.eq.s32.totalorder %s22, 5
    %p39 = por %p37, %p38
    %p40 = scmp.ne.s32.totalorder %s32, %s35
    %p41 = scmp.eq.s32.totalorder %s22, 0
    %p42 = por %p40, %p41
    %p43 = scmp.ne.s32.totalorder %s32, %s35
    %p44 = scmp.eq.s32.totalorder %s27, 5
    %p45 = por %p43, %p44
    %p46 = scmp.ne.s32.totalorder %s35, %s36
    %p47 = scmp.eq.s32.totalorder %s27, 0
    %p48 = por %p46, %p47
    %p49 = scmp.ne.s32.totalorder %s35, %s36
    %p50 = scmp.eq.s32.totalorder %s28, 5
    %p51 = por %p49, %p50
    %p53 = scmp.ne.s32.totalorder %s36, %s52
    %p54 = scmp.eq.s32.totalorder %s28, 0
    %p55 = por %p53, %p54
    %s57 = sadd.s32 %s56, 1
    %p60 = scmp.eq.s32.totalorder %s22, 5
    %p61 = scmp.ne.s32.totalorder %s56, %s58
    %p62 = scmp.eq.s32.totalorder %s22, 0
    %p63 = por %p61, %p62
    %p64 = scmp.ne.s32.totalorder %s56, %s58
    %p65 = scmp.eq.s32.totalorder %s27, 5
    %p66 = por %p64, %p65
    %p67 = scmp.ne.s32.totalorder %s58, %s59
    %p68 = scmp.eq.s32.totalorder %s27, 0
    %p69 = por %p67, %p68
    %p70 = scmp.ne.s32.totalorder %s58, %s59
    %p71 = scmp.eq.s32.totalorder %s28, 5
    %p72 = por %p70, %p71
    %p74 = scmp.ne.s32.totalorder %s59, %s73
    %p75 = scmp.eq.s32.totalorder %s28, 0
    %p76 = por %p74, %p75
    %s78 = sadd.s32 %s77, 1
    %p81 = scmp.eq.s32.totalorder %s22, 5
    %p82 = scmp.ne.s32.totalorder %s77, %s79
    %p83 = scmp.eq.s32.totalorder %s22, 0
    %p84 = por %p82, %p83
    %p85 = scmp.ne.s32.totalorder %s77, %s79
    %p86 = scmp.eq.s32.totalorder %s27, 5
    %p87 = por %p85, %p86
    %p88 = scmp.ne.s32.totalorder %s79, %s80
    %p89 = scmp.eq.s32.totalorder %s27, 0
    %p90 = por %p88, %p89
    %p91 = scmp.ne.s32.totalorder %s79, %s80
    %p92 = scmp.eq.s32.totalorder %s28, 5
    %p93 = por %p91, %p92
    %p95 = scmp.ne.s32.totalorder %s80, %s94
    %p96 = scmp.eq.s32.totalorder %s28, 0
    %p97 = por %p95, %p96
    %s99 = sadd.s32 %s98, 1
    %p102 = scmp.eq.s32.totalorder %s22, 5
    %p103 = scmp.ne.s32.totalorder %s98, %s100
    %p104 = scmp.eq.s32.totalorder %s22, 0
    %p105 = por %p103, %p104
    %p106 = scmp.ne.s32.totalorder %s98, %s100
    %p107 = scmp.eq.s32.totalorder %s27, 5
    %p108 = por %p106, %p107
    %p109 = scmp.ne.s32.totalorder %s100, %s101
    %p110 = scmp.eq.s32.totalorder %s27, 0
    %p111 = por %p109, %p110
    %p112 = scmp.ne.s32.totalorder %s100, %s101
    %p113 = scmp.eq.s32.totalorder %s28, 5
    %p114 = por %p112, %p113
    %p116 = scmp.ne.s32.totalorder %s101, %s115
    %p117 = scmp.eq.s32.totalorder %s28, 0
    %p118 = por %p116, %p117
    %s119 = ssub.s32 %s22, %s29
    %p120 = scmp.eq.s32.totalorder %s119, 0
    %s122 = sadd.s32 %s121, 1
    %s123 = scalar_select %p120, %s121, %s122
    %p126 = pneg %p120
    %p127 = scmp.eq.s32.totalorder %s22, 5
    %p128 = por %p126, %p127
    %p129 = scmp.ne.s32.totalorder %s121, %s124
    %p130 = scmp.eq.s32.totalorder %s22, 0
    %p131 = por %p129, %p130
    %p132 = scmp.ne.s32.totalorder %s121, %s124
    %p133 = scmp.eq.s32.totalorder %s27, 5
    %p134 = por %p132, %p133
    %p135 = scmp.ne.s32.totalorder %s124, %s125
    %p136 = scmp.eq.s32.totalorder %s27, 0
    %p137 = por %p135, %p136
    %p138 = scmp.ne.s32.totalorder %s124, %s125
    %p139 = scmp.eq.s32.totalorder %s28, 5
    %p140 = por %p138, %p139
    %p142 = scmp.ne.s32.totalorder %s125, %s141
    %p143 = scmp.eq.s32.totalorder %s28, 0
    %p144 = por %p142, %p143
    %s145 = ssub.s32 %s22, %s29
    %p146 = scmp.eq.s32.totalorder %s145, 0
    %s148 = sadd.s32 %s147, 1
    %s149 = scalar_select %p146, %s147, %s148
    %p152 = pneg %p146
    %p153 = scmp.eq.s32.totalorder %s22, 5
    %p154 = por %p152, %p153
    %p155 = scmp.ne.s32.totalorder %s147, %s150
    %p156 = scmp.eq.s32.totalorder %s22, 0
    %p157 = por %p155, %p156
    %p158 = scmp.ne.s32.totalorder %s147, %s150
    %p159 = scmp.eq.s32.totalorder %s27, 5
    %p160 = por %p158, %p159
    %p161 = scmp.ne.s32.totalorder %s150, %s151
    %p162 = scmp.eq.s32.totalorder %s27, 0
    %p163 = por %p161, %p162
    %p164 = scmp.ne.s32.totalorder %s150, %s151
    %p165 = scmp.eq.s32.totalorder %s28, 5
    %p166 = por %p164, %p165
    %p168 = scmp.ne.s32.totalorder %s151, %s167
    %p169 = scmp.eq.s32.totalorder %s28, 0
    %p170 = por %p168, %p169
    %s171 = ssub.s32 %s22, %s29
    %p172 = scmp.eq.s32.totalorder %s171, 0
    %s174 = sadd.s32 %s173, 1
    %s175 = scalar_select %p172, %s173, %s174
    %p178 = pneg %p172
    %p179 = scmp.eq.s32.totalorder %s22, 5
    %p180 = por %p178, %p179
    %p181 = scmp.ne.s32.totalorder %s173, %s176
    %p182 = scmp.eq.s32.totalorder %s22, 0
    %p183 = por %p181, %p182
    %p184 = scmp.ne.s32.totalorder %s173, %s176
    %p185 = scmp.eq.s32.totalorder %s27, 5
    %p186 = por %p184, %p185
    %p187 = scmp.ne.s32.totalorder %s176, %s177
    %p188 = scmp.eq.s32.totalorder %s27, 0
    %p189 = por %p187, %p188
    %p190 = scmp.ne.s32.totalorder %s176, %s177
    %p191 = scmp.eq.s32.totalorder %s28, 5
    %p192 = por %p190, %p191
    %p194 = scmp.ne.s32.totalorder %s177, %s193
    %p195 = scmp.eq.s32.totalorder %s28, 0
    %p196 = por %p194, %p195
    %s197 = ssub.s32 %s22, %s29
    %p198 = scmp.eq.s32.totalorder %s197, 0
    %s200 = sadd.s32 %s199, 1
    %s201 = scalar_select %p198, %s199, %s200
    %p204 = pneg %p198
    %p205 = scmp.eq.s32.totalorder %s22, 5
    %p206 = por %p204, %p205
    %p207 = scmp.ne.s32.totalorder %s199, %s202
    %p208 = scmp.eq.s32.totalorder %s22, 0
    %p209 = por %p207, %p208
    %p210 = scmp.ne.s32.totalorder %s199, %s202
    %p211 = scmp.eq.s32.totalorder %s27, 5
    %p212 = por %p210, %p211
    %p213 = scmp.ne.s32.totalorder %s202, %s203
    %p214 = scmp.eq.s32.totalorder %s27, 0
    %p215 = por %p213, %p214
    %p216 = scmp.ne.s32.totalorder %s202, %s203
    %p217 = scmp.eq.s32.totalorder %s28, 5
    %p218 = por %p216, %p217
    %p220 = scmp.ne.s32.totalorder %s203, %s219
    %p221 = scmp.eq.s32.totalorder %s28, 0
    %p222 = por %p220, %p221
    %s223 = ssub.s32 %s22, %s29
    %p224 = scmp.eq.s32.totalorder %s223, 0
    %s226 = sadd.s32 %s225, 1
    %s227 = scalar_select %p224, %s225, %s226
    %p230 = pneg %p224
    %p231 = scmp.eq.s32.totalorder %s22, 5
    %p232 = por %p230, %p231
    %p233 = scmp.ne.s32.totalorder %s225, %s228
    %p234 = scmp.eq.s32.totalorder %s22, 0
    %p235 = por %p233, %p234
    %p236 = scmp.ne.s32.totalorder %s225, %s228
    %p237 = scmp.eq.s32.totalorder %s27, 5
    %p238 = por %p236, %p237
    %p239 = scmp.ne.s32.totalorder %s228, %s229
    %p240 = scmp.eq.s32.totalorder %s27, 0
    %p241 = por %p239, %p240
    %p242 = scmp.ne.s32.totalorder %s228, %s229
    %p243 = scmp.eq.s32.totalorder %s28, 5
    %p244 = por %p242, %p243
    %p246 = scmp.ne.s32.totalorder %s229, %s245
    %p247 = scmp.eq.s32.totalorder %s28, 0
    %p248 = por %p246, %p247
    %s249 = ssub.s32 %s22, %s29
    %p250 = scmp.eq.s32.totalorder %s249, 0
    %s252 = sadd.s32 %s251, 1
    %s253 = scalar_select %p250, %s251, %s252
    %p256 = pneg %p250
    %p257 = scmp.eq.s32.totalorder %s22, 5
    %p258 = por %p256, %p257
    %p259 = scmp.ne.s32.totalorder %s251, %s254
    %p260 = scmp.eq.s32.totalorder %s22, 0
    %p261 = por %p259, %p260
    %p262 = scmp.ne.s32.totalorder %s251, %s254
    %p263 = scmp.eq.s32.totalorder %s27, 5
    %p264 = por %p262, %p263
    %p265 = scmp.ne.s32.totalorder %s254, %s255
    %p266 = scmp.eq.s32.totalorder %s27, 0
    %p267 = por %p265, %p266
    %p268 = scmp.ne.s32.totalorder %s254, %s255
    %p269 = scmp.eq.s32.totalorder %s28, 5
    %p270 = por %p268, %p269
    %p272 = scmp.ne.s32.totalorder %s255, %s271
    %p273 = scmp.eq.s32.totalorder %s28, 0
    %p274 = por %p272, %p273
    %s275 = ssub.s32 %s22, %s29
    %p276 = scmp.eq.s32.totalorder %s275, 0
    %s278 = sadd.s32 %s277, 1
    %s279 = scalar_select %p276, %s277, %s278
    %p282 = pneg %p276
    %p283 = scmp.eq.s32.totalorder %s22, 5
    %p284 = por %p282, %p283
    %p285 = scmp.ne.s32.totalorder %s277, %s280
    %p286 = scmp.eq.s32.totalorder %s22, 0
    %p287 = por %p285, %p286
    %p288 = scmp.ne.s32.totalorder %s277, %s280
    %p289 = scmp.eq.s32.totalorder %s27, 5
    %p290 = por %p288, %p289
    %p291 = scmp.ne.s32.totalorder %s280, %s281
    %p292 = scmp.eq.s32.totalorder %s27, 0
    %p293 = por %p291, %p292
    %p294 = scmp.ne.s32.totalorder %s280, %s281
    %p295 = scmp.eq.s32.totalorder %s28, 5
    %p296 = por %p294, %p295
    %p298 = scmp.ne.s32.totalorder %s281, %s297
    %p299 = scmp.eq.s32.totalorder %s28, 0
    %p300 = por %p298, %p299
    %s301 = ssub.s32 %s22, %s29
    %p302 = scmp.eq.s32.totalorder %s301, 0
    %s304 = sadd.s32 %s303, 1
    %s305 = scalar_select %p302, %s303, %s304
    %p308 = pneg %p302
    %p309 = scmp.eq.s32.totalorder %s22, 5
    %p310 = por %p308, %p309
    %p311 = scmp.ne.s32.totalorder %s303, %s306
    %p312 = scmp.eq.s32.totalorder %s22, 0
    %p313 = por %p311, %p312
    %p314 = scmp.ne.s32.totalorder %s303, %s306
    %p315 = scmp.eq.s32.totalorder %s27, 5
    %p316 = por %p314, %p315
    %p317 = scmp.ne.s32.totalorder %s306, %s307
    %p318 = scmp.eq.s32.totalorder %s27, 0
    %p319 = por %p317, %p318
    %p320 = scmp.ne.s32.totalorder %s306, %s307
    %p321 = scmp.eq.s32.totalorder %s28, 5
    %p322 = por %p320, %p321
    %p324 = scmp.ne.s32.totalorder %s307, %s323
    %p325 = scmp.eq.s32.totalorder %s28, 0
    %p326 = por %p324, %p325
    %s327 = ssub.s32 %s22, %s29
    %p328 = scmp.eq.s32.totalorder %s327, 0
    %s330 = sadd.s32 %s329, 1
    %s331 = scalar_select %p328, %s329, %s330
    %p334 = pneg %p328
    %p335 = scmp.eq.s32.totalorder %s22, 5
    %p336 = por %p334, %p335
    %p337 = scmp.ne.s32.totalorder %s329, %s332
    %p338 = scmp.eq.s32.totalorder %s22, 0
    %p339 = por %p337, %p338
    %p340 = scmp.ne.s32.totalorder %s329, %s332
    %p341 = scmp.eq.s32.totalorder %s27, 5
    %p342 = por %p340, %p341
    %p343 = scmp.ne.s32.totalorder %s332, %s333
    %p344 = scmp.eq.s32.totalorder %s27, 0
    %p345 = por %p343, %p344
    %p346 = scmp.ne.s32.totalorder %s332, %s333
    %p347 = scmp.eq.s32.totalorder %s28, 5
    %p348 = por %p346, %p347
    %p350 = scmp.ne.s32.totalorder %s333, %s349
    %p351 = scmp.eq.s32.totalorder %s28, 0
    %p352 = por %p350, %p351
    %s353 = ssub.s32 %s22, %s29
    %p354 = scmp.eq.s32.totalorder %s353, 0
    %s356 = sadd.s32 %s355, 1
    %s357 = scalar_select %p354, %s355, %s356
    %p360 = pneg %p354
    %p361 = scmp.eq.s32.totalorder %s22, 5
    %p362 = por %p360, %p361
    %p363 = scmp.ne.s32.totalorder %s355, %s358
    %p364 = scmp.eq.s32.totalorder %s22, 0
    %p365 = por %p363, %p364
    %p366 = scmp.ne.s32.totalorder %s355, %s358
    %p367 = scmp.eq.s32.totalorder %s27, 5
    %p368 = por %p366, %p367
    %p369 = scmp.ne.s32.totalorder %s358, %s359
    %p370 = scmp.eq.s32.totalorder %s27, 0
    %p371 = por %p369, %p370
    %p372 = scmp.ne.s32.totalorder %s358, %s359
    %p373 = scmp.eq.s32.totalorder %s28, 5
    %p374 = por %p372, %p373
    %p376 = scmp.ne.s32.totalorder %s359, %s375
    %p377 = scmp.eq.s32.totalorder %s28, 0
    %p378 = por %p376, %p377
    %s379 = ssub.s32 %s22, %s29
    %p380 = scmp.eq.s32.totalorder %s379, 0
    %s382 = sadd.s32 %s381, 1
    %s383 = scalar_select %p380, %s381, %s382
    %p386 = pneg %p380
    %p387 = scmp.eq.s32.totalorder %s22, 5
    %p388 = por %p386, %p387
    %p389 = scmp.ne.s32.totalorder %s381, %s384
    %p390 = scmp.eq.s32.totalorder %s22, 0
    %p391 = por %p389, %p390
    %p392 = scmp.ne.s32.totalorder %s381, %s384
    %p393 = scmp.eq.s32.totalorder %s27, 5
    %p394 = por %p392, %p393
    %p395 = scmp.ne.s32.totalorder %s384, %s385
    %p396 = scmp.eq.s32.totalorder %s27, 0
    %p397 = por %p395, %p396
    %p398 = scmp.ne.s32.totalorder %s384, %s385
    %p399 = scmp.eq.s32.totalorder %s28, 5
    %p400 = por %p398, %p399
    %p402 = scmp.ne.s32.totalorder %s385, %s401
    %p403 = scmp.eq.s32.totalorder %s28, 0
    %p404 = por %p402, %p403
    %s405 = ssub.s32 %s22, %s29
    %p406 = scmp.eq.s32.totalorder %s405, 0
    %s408 = sadd.s32 %s407, 1
    %s409 = scalar_select %p406, %s407, %s408
    %p412 = pneg %p406
    %p413 = scmp.eq.s32.totalorder %s22, 5
    %p414 = por %p412, %p413
    %p415 = scmp.ne.s32.totalorder %s407, %s410
    %p416 = scmp.eq.s32.totalorder %s22, 0
    %p417 = por %p415, %p416
    %p418 = scmp.ne.s32.totalorder %s407, %s410
    %p419 = scmp.eq.s32.totalorder %s27, 5
    %p420 = por %p418, %p419
    %p421 = scmp.ne.s32.totalorder %s410, %s411
    %p422 = scmp.eq.s32.totalorder %s27, 0
    %p423 = por %p421, %p422
    %p424 = scmp.ne.s32.totalorder %s410, %s411
    %p425 = scmp.eq.s32.totalorder %s28, 5
    %p426 = por %p424, %p425
    %p428 = scmp.ne.s32.totalorder %s411, %s427
    %p429 = scmp.eq.s32.totalorder %s28, 0
    %p430 = por %p428, %p429
    %s431 = ssub.s32 %s22, %s29
    %p432 = scmp.eq.s32.totalorder %s431, 0
    %s434 = sadd.s32 %s433, 1
    %s435 = scalar_select %p432, %s433, %s434
    %p438 = pneg %p432
    %p439 = scmp.eq.s32.totalorder %s22, 5
    %p440 = por %p438, %p439
    %p441 = scmp.ne.s32.totalorder %s433, %s436
    %p442 = scmp.eq.s32.totalorder %s22, 0
    %p443 = por %p441, %p442
    %p444 = scmp.ne.s32.totalorder %s433, %s436
    %p445 = scmp.eq.s32.totalorder %s27, 5
    %p446 = por %p444, %p445
    %p447 = scmp.ne.s32.totalorder %s436, %s437
    %p448 = scmp.eq.s32.totalorder %s27, 0
    %p449 = por %p447, %p448
    %p450 = scmp.ne.s32.totalorder %s436, %s437
    %p451 = scmp.eq.s32.totalorder %s28, 5
    %p452 = por %p450, %p451
    %p454 = scmp.ne.s32.totalorder %s437, %s453
    %p455 = scmp.eq.s32.totalorder %s28, 0
    %p456 = por %p454, %p455
    %p457 = scmp.le.s32.totalorder 1, %s22
    %p458 = scmp.lt.s32.totalorder %s22, 7
    %p459 = pnand %p457, %p458
    %p460 = pneg %p459
    // Predicated region
    $region9: #{vit_bert_plus_forward.4} parent=5 // pred_check
      _
    $region10: #{vit_bert_plus_forward.4} parent=5 // pred_check_branch
      %462 = sbr.rel (%p459) target = $region12
    $region11: #{vit_bert_plus_forward.4} parent=5 // pred_region
      %s463 = ssub.s32 %s22, 1
      // Predicated region
      $region13: #{vit_bert_plus_forward.4} parent=11 // pred_check
        %p464 = pneg %p69
      $region14: #{vit_bert_plus_forward.4} parent=11 // pred_check_branch
        %466 = sbr.rel (%p464) target = $region16
      $region15: #{vit_bert_plus_forward.4} parent=11 // pred_region
        _
      $region16: #{vit_bert_plus_forward.4} parent=11 // pred_fallthru
        _
      // Predicated region
      $region17: #{vit_bert_plus_forward.4} parent=11 // pred_check
        %p467 = pneg %p90
      $region18: #{vit_bert_plus_forward.4} parent=11 // pred_check_branch
        %469 = sbr.rel (%p467) target = $region20
      $region19: #{vit_bert_plus_forward.4} parent=11 // pred_region
        _
      $region20: #{vit_bert_plus_forward.4} parent=11 // pred_fallthru
        _
      // Predicated region
      $region21: #{vit_bert_plus_forward.4} parent=11 // pred_check
        %p470 = pneg %p111
      $region22: #{vit_bert_plus_forward.4} parent=11 // pred_check_branch
        %472 = sbr.rel (%p470) target = $region24
      $region23: #{vit_bert_plus_forward.4} parent=11 // pred_region
        _
      $region24: #{vit_bert_plus_forward.4} parent=11 // pred_fallthru
        _
    $region12: #{vit_bert_plus_forward.4} parent=5 // pred_fallthru
      _
    %p473 = scmp.lt.s32.totalorder %s22, 6
    // Predicated region
    $region25: #{vit_bert_plus_forward.4} parent=5 // pred_check
      %p474 = pneg %p473
    $region26: #{vit_bert_plus_forward.4} parent=5 // pred_check_branch
      %476 = sbr.rel (%p474) target = $region28
    $region27: #{vit_bert_plus_forward.4} parent=5 // pred_region
      // Predicated region
      $region29: #{vit_bert_plus_forward.4} parent=27 // pred_check
        %p477 = pneg %p42
      $region30: #{vit_bert_plus_forward.4} parent=27 // pred_check_branch
        %479 = sbr.rel (%p477) target = $region32
      $region31: #{vit_bert_plus_forward.4} parent=27 // pred_region
        %p480 = scmp.lt.s32.totalorder %s22, 5
        %s481 = scalar_select %p480, %s22, 5
        %s482 = smul.addr %s481, 2
        %s483 = smul.addr %s482, 8
        %s484 = scalar_lea.vmem %s0, %s483
      $region32: #{vit_bert_plus_forward.4} parent=27 // pred_fallthru
        _
      // Predicated region
      $region33: #{vit_bert_plus_forward.4} parent=27 // pred_check
        %p485 = pneg %p131
      $region34: #{vit_bert_plus_forward.4} parent=27 // pred_check_branch
        %487 = sbr.rel (%p485) target = $region36
      $region35: #{vit_bert_plus_forward.4} parent=27 // pred_region
        %p488 = scmp.lt.s32.totalorder %s22, 5
        %s489 = scalar_select %p488, %s22, 5
        %s490 = scalar_lea.vmem %s4, %s489
      $region36: #{vit_bert_plus_forward.4} parent=27 // pred_fallthru
        _
      // Predicated region
      $region37: #{vit_bert_plus_forward.4} parent=27 // pred_check
        %p491 = pneg %p157
      $region38: #{vit_bert_plus_forward.4} parent=27 // pred_check_branch
        %493 = sbr.rel (%p491) target = $region40
      $region39: #{vit_bert_plus_forward.4} parent=27 // pred_region
        %p494 = scmp.lt.s32.totalorder %s22, 5
        %s495 = scalar_select %p494, %s22, 5
        %s496 = scalar_lea.vmem %s5, %s495
      $region40: #{vit_bert_plus_forward.4} parent=27 // pred_fallthru
        _
      // Predicated region
      $region41: #{vit_bert_plus_forward.4} parent=27 // pred_check
        %p497 = pneg %p183
      $region42: #{vit_bert_plus_forward.4} parent=27 // pred_check_branch
        %499 = sbr.rel (%p497) target = $region44
      $region43: #{vit_bert_plus_forward.4} parent=27 // pred_region
        %p500 = scmp.lt.s32.totalorder %s22, 5
        %s501 = scalar_select %p500, %s22, 5
        %s502 = smul.addr %s501, 4
        %s503 = smul.addr %s502, 4
        %s504 = scalar_lea.vmem %s6, %s503
      $region44: #{vit_bert_plus_forward.4} parent=27 // pred_fallthru
        _
      // Predicated region
      $region45: #{vit_bert_plus_forward.4} parent=27 // pred_check
        %p505 = pneg %p209
      $region46: #{vit_bert_plus_forward.4} parent=27 // pred_check_branch
        %507 = sbr.rel (%p505) target = $region48
      $region47: #{vit_bert_plus_forward.4} parent=27 // pred_region
        %p508 = scmp.lt.s32.totalorder %s22, 5
        %s509 = scalar_select %p508, %s22, 5
        %s510 = scalar_lea.vmem %s7, %s509
      $region48: #{vit_bert_plus_forward.4} parent=27 // pred_fallthru
        _
      // Predicated region
      $region49: #{vit_bert_plus_forward.4} parent=27 // pred_check
        %p511 = pneg %p235
      $region50: #{vit_bert_plus_forward.4} parent=27 // pred_check_branch
        %513 = sbr.rel (%p511) target = $region52
      $region51: #{vit_bert_plus_forward.4} parent=27 // pred_region
        %p514 = scmp.lt.s32.totalorder %s22, 5
        %s515 = scalar_select %p514, %s22, 5
        %s516 = smul.addr %s515, 4
        %s517 = smul.addr %s516, 4
        %s518 = scalar_lea.vmem %s8, %s517
      $region52: #{vit_bert_plus_forward.4} parent=27 // pred_fallthru
        _
      // Predicated region
      $region53: #{vit_bert_plus_forward.4} parent=27 // pred_check
        %p519 = pneg %p261
      $region54: #{vit_bert_plus_forward.4} parent=27 // pred_check_branch
        %521 = sbr.rel (%p519) target = $region56
      $region55: #{vit_bert_plus_forward.4} parent=27 // pred_region
        %p522 = scmp.lt.s32.totalorder %s22, 5
        %s523 = scalar_select %p522, %s22, 5
        %s524 = scalar_lea.vmem %s9, %s523
      $region56: #{vit_bert_plus_forward.4} parent=27 // pred_fallthru
        _
      // Predicated region
      $region57: #{vit_bert_plus_forward.4} parent=27 // pred_check
        %p525 = pneg %p287
      $region58: #{vit_bert_plus_forward.4} parent=27 // pred_check_branch
        %527 = sbr.rel (%p525) target = $region60
      $region59: #{vit_bert_plus_forward.4} parent=27 // pred_region
        %p528 = scmp.lt.s32.totalorder %s22, 5
        %s529 = scalar_select %p528, %s22, 5
        %s530 = scalar_lea.vmem %s10, %s529
      $region60: #{vit_bert_plus_forward.4} parent=27 // pred_fallthru
        _
      // Predicated region
      $region61: #{vit_bert_plus_forward.4} parent=27 // pred_check
        %p531 = pneg %p313
      $region62: #{vit_bert_plus_forward.4} parent=27 // pred_check_branch
        %533 = sbr.rel (%p531) target = $region64
      $region63: #{vit_bert_plus_forward.4} parent=27 // pred_region
        %p534 = scmp.lt.s32.totalorder %s22, 5
        %s535 = scalar_select %p534, %s22, 5
        %s536 = scalar_lea.vmem %s11, %s535
      $region64: #{vit_bert_plus_forward.4} parent=27 // pred_fallthru
        _
      // Predicated region
      $region65: #{vit_bert_plus_forward.4} parent=27 // pred_check
        %p537 = pneg %p339
      $region66: #{vit_bert_plus_forward.4} parent=27 // pred_check_branch
        %539 = sbr.rel (%p537) target = $region68
      $region67: #{vit_bert_plus_forward.4} parent=27 // pred_region
        %p540 = scmp.lt.s32.totalorder %s22, 5
        %s541 = scalar_select %p540, %s22, 5
        %s542 = smul.addr %s541, 4
        %s543 = smul.addr %s542, 4
        %s544 = scalar_lea.vmem %s12, %s543
      $region68: #{vit_bert_plus_forward.4} parent=27 // pred_fallthru
        _
      // Predicated region
      $region69: #{vit_bert_plus_forward.4} parent=27 // pred_check
        %p545 = pneg %p365
      $region70: #{vit_bert_plus_forward.4} parent=27 // pred_check_branch
        %547 = sbr.rel (%p545) target = $region72
      $region71: #{vit_bert_plus_forward.4} parent=27 // pred_region
        %p548 = scmp.lt.s32.totalorder %s22, 5
        %s549 = scalar_select %p548, %s22, 5
        %s550 = scalar_lea.vmem %s13, %s549
      $region72: #{vit_bert_plus_forward.4} parent=27 // pred_fallthru
        _
      // Predicated region
      $region73: #{vit_bert_plus_forward.4} parent=27 // pred_check
        %p551 = pneg %p391
      $region74: #{vit_bert_plus_forward.4} parent=27 // pred_check_branch
        %553 = sbr.rel (%p551) target = $region76
      $region75: #{vit_bert_plus_forward.4} parent=27 // pred_region
        %p554 = scmp.lt.s32.totalorder %s22, 5
        %s555 = scalar_select %p554, %s22, 5
        %s556 = smul.addr %s555, 16
        %s557 = smul.addr %s556, 4
        %s558 = scalar_lea.vmem %s14, %s557
      $region76: #{vit_bert_plus_forward.4} parent=27 // pred_fallthru
        _
      // Predicated region
      $region77: #{vit_bert_plus_forward.4} parent=27 // pred_check
        %p559 = pneg %p417
      $region78: #{vit_bert_plus_forward.4} parent=27 // pred_check_branch
        %561 = sbr.rel (%p559) target = $region80
      $region79: #{vit_bert_plus_forward.4} parent=27 // pred_region
        %p562 = scmp.lt.s32.totalorder %s22, 5
        %s563 = scalar_select %p562, %s22, 5
        %s564 = scalar_lea.vmem %s15, %s563
      $region80: #{vit_bert_plus_forward.4} parent=27 // pred_fallthru
        _
    $region28: #{vit_bert_plus_forward.4} parent=5 // pred_fallthru
      _
    %p565 = scmp.le.s32.totalorder 1, %s22
    %p566 = scmp.lt.s32.totalorder %s22, 7
    %p567 = pnand %p565, %p566
    %p568 = pneg %p567
    // Predicated region
    $region81: #{vit_bert_plus_forward.4} parent=5 // pred_check
      _
    $region82: #{vit_bert_plus_forward.4} parent=5 // pred_check_branch
      %570 = sbr.rel (%p567) target = $region84
    $region83: #{vit_bert_plus_forward.4} parent=5 // pred_region
      %s571 = ssub.s32 %s22, 1
      %p572 = scmp.lt.s32.totalorder %s27, 5
      %s573 = scalar_select %p572, %s27, 5
      %s574 = smul.addr %s573, 2
      %s575 = smul.addr %s574, 8
      %s576 = scalar_lea.vmem %s0, %s575
      %p577 = pneg %p48
      %p578 = pneg %p45
      %p579 = pneg %p69
      %p580 = pneg %p66
      %p581 = pneg %p90
      %p582 = pneg %p87
      %p583 = pneg %p111
      %p584 = pneg %p108
      %p585 = scmp.lt.s32.totalorder %s27, 5
      %s586 = scalar_select %p585, %s27, 5
      %s587 = scalar_lea.vmem %s4, %s586
      %p588 = pneg %p137
      %p589 = pneg %p134
      %p590 = scmp.lt.s32.totalorder %s27, 5
      %s591 = scalar_select %p590, %s27, 5
      %s592 = scalar_lea.vmem %s5, %s591
      %p593 = pneg %p163
      %p594 = pneg %p160
      %p595 = scmp.lt.s32.totalorder %s27, 5
      %s596 = scalar_select %p595, %s27, 5
      %s597 = smul.addr %s596, 4
      %s598 = smul.addr %s597, 4
      %s599 = scalar_lea.vmem %s6, %s598
      %p600 = pneg %p189
      %p601 = pneg %p186
      %p602 = scmp.lt.s32.totalorder %s27, 5
      %s603 = scalar_select %p602, %s27, 5
      %s604 = scalar_lea.vmem %s7, %s603
      %p605 = pneg %p215
      %p606 = pneg %p212
      %p607 = scmp.lt.s32.totalorder %s27, 5
      %s608 = scalar_select %p607, %s27, 5
      %s609 = smul.addr %s608, 4
      %s610 = smul.addr %s609, 4
      %s611 = scalar_lea.vmem %s8, %s610
      %p612 = pneg %p241
      %p613 = pneg %p238
      %p614 = scmp.lt.s32.totalorder %s27, 5
      %s615 = scalar_select %p614, %s27, 5
      %s616 = scalar_lea.vmem %s9, %s615
      %p617 = pneg %p267
      %p618 = pneg %p264
      %p619 = scmp.lt.s32.totalorder %s27, 5
      %s620 = scalar_select %p619, %s27, 5
      %s621 = scalar_lea.vmem %s10, %s620
      %p622 = pneg %p293
      %p623 = pneg %p290
      %p624 = scmp.lt.s32.totalorder %s27, 5
      %s625 = scalar_select %p624, %s27, 5
      %s626 = scalar_lea.vmem %s11, %s625
      %p627 = pneg %p319
      %p628 = pneg %p316
      %p629 = scmp.lt.s32.totalorder %s27, 5
      %s630 = scalar_select %p629, %s27, 5
      %s631 = smul.addr %s630, 4
      %s632 = smul.addr %s631, 4
      %s633 = scalar_lea.vmem %s12, %s632
      %p634 = pneg %p345
      %p635 = pneg %p342
      %p636 = scmp.lt.s32.totalorder %s27, 5
      %s637 = scalar_select %p636, %s27, 5
      %s638 = scalar_lea.vmem %s13, %s637
      %p639 = pneg %p371
      %p640 = pneg %p368
      %p641 = scmp.lt.s32.totalorder %s27, 5
      %s642 = scalar_select %p641, %s27, 5
      %s643 = smul.addr %s642, 16
      %s644 = smul.addr %s643, 4
      %s645 = scalar_lea.vmem %s14, %s644
      %p646 = pneg %p397
      %p647 = pneg %p394
      %p648 = scmp.lt.s32.totalorder %s27, 5
      %s649 = scalar_select %p648, %s27, 5
      %s650 = scalar_lea.vmem %s15, %s649
      %p651 = pneg %p423
      %p652 = pneg %p420
      %p653 = pneg %p449
      %p654 = pneg %p446
      %p655 = scmp.lt.s32.totalorder %s27, 5
      %s656 = scalar_select %p655, %s27, 5
      %s657 = smul.addr %s656, 2
      %s658 = scalar_lea.vmem %s16, %s657
      %p659 = scmp.lt.s32.totalorder %s27, 5
      %s660 = scalar_select %p659, %s27, 5
      %s661 = smul.addr %s660, 2
      %s662 = smul.addr %s661, 8
      %s663 = scalar_lea.vmem %s0, %s662
      %p664 = scmp.lt.s32.totalorder %s27, 5
      %s665 = scalar_select %p664, %s27, 5
      %s666 = scalar_lea.vmem %s4, %s665
      %p667 = scmp.lt.s32.totalorder %s27, 5
      %s668 = scalar_select %p667, %s27, 5
      %s669 = scalar_lea.vmem %s5, %s668
      %p670 = scmp.lt.s32.totalorder %s27, 5
      %s671 = scalar_select %p670, %s27, 5
      %s672 = smul.addr %s671, 4
      %s673 = smul.addr %s672, 4
      %s674 = scalar_lea.vmem %s6, %s673
      %p675 = scmp.lt.s32.totalorder %s27, 5
      %s676 = scalar_select %p675, %s27, 5
      %s677 = scalar_lea.vmem %s7, %s676
      %p678 = scmp.lt.s32.totalorder %s27, 5
      %s679 = scalar_select %p678, %s27, 5
      %s680 = smul.addr %s679, 4
      %s681 = smul.addr %s680, 4
      %s682 = scalar_lea.vmem %s8, %s681
      %p683 = scmp.lt.s32.totalorder %s27, 5
      %s684 = scalar_select %p683, %s27, 5
      %s685 = scalar_lea.vmem %s9, %s684
      %p686 = scmp.lt.s32.totalorder %s27, 5
      %s687 = scalar_select %p686, %s27, 5
      %s688 = scalar_lea.vmem %s10, %s687
      %p689 = scmp.lt.s32.totalorder %s27, 5
      %s690 = scalar_select %p689, %s27, 5
      %s691 = scalar_lea.vmem %s11, %s690
      %p692 = scmp.lt.s32.totalorder %s27, 5
      %s693 = scalar_select %p692, %s27, 5
      %s694 = smul.addr %s693, 4
      %s695 = smul.addr %s694, 4
      %s696 = scalar_lea.vmem %s12, %s695
      %p697 = scmp.lt.s32.totalorder %s27, 5
      %s698 = scalar_select %p697, %s27, 5
      %s699 = scalar_lea.vmem %s13, %s698
      %p700 = scmp.lt.s32.totalorder %s27, 5
      %s701 = scalar_select %p700, %s27, 5
      %s702 = smul.addr %s701, 16
      %s703 = smul.addr %s702, 4
      %s704 = scalar_lea.vmem %s14, %s703
      %p705 = scmp.lt.s32.totalorder %s27, 5
      %s706 = scalar_select %p705, %s27, 5
      %s707 = scalar_lea.vmem %s15, %s706
      %p708 = scmp.lt.s32.totalorder %s27, 5
      %s709 = scalar_select %p708, %s27, 5
      %s710 = smul.addr %s709, 2
      %s711 = scalar_lea.vmem %s16, %s710
      %v713 = vld [vmem:[%s666] sm:$0x1]
      %v714 = vld [vmem:[%s669] sm:$0x1]
      %v715 = vld [vmem:[%s674] sm:$0xf]
      %v716 = vld [vmem:[%s674 + $0x4] sm:$0xf]
      %v717 = vld [vmem:[%s674 + $0x8] sm:$0xf]
      %v718 = vld [vmem:[%s674 + $0xc] sm:$0xf]
      %v719 = vld [vmem:[%s677] sm:$0x1]
      %v720 = vld [vmem:[%s682] sm:$0xf]
      %v721 = vld [vmem:[%s682 + $0x4] sm:$0xf]
      %v722 = vld [vmem:[%s682 + $0x8] sm:$0xf]
      %v723 = vld [vmem:[%s682 + $0xc] sm:$0xf]
      %v724 = vld [vmem:[%s685] sm:$0x1]
      %v725 = vld [vmem:[%s688] sm:$0x1]
      %v726 = vld [vmem:[%s691] sm:$0x1]
      %v727 = vld [vmem:[%s696] sm:$0xf]
      %v728 = vld [vmem:[%s696 + $0x4] sm:$0xf]
      %v729 = vld [vmem:[%s696 + $0x8] sm:$0xf]
      %v730 = vld [vmem:[%s696 + $0xc] sm:$0xf]
      %v731 = vld [vmem:[%s699] sm:$0x1]
      %v732 = vld [vmem:[%s704] sm:$0xf]
      %v733 = vld [vmem:[%s704 + $0x4] sm:$0xf]
      %v734 = vld [vmem:[%s704 + $0x8] sm:$0xf]
      %v735 = vld [vmem:[%s704 + $0xc] sm:$0xf]
      %v736 = vld [vmem:[%s704 + $0x10] sm:$0xf]
      %v737 = vld [vmem:[%s704 + $0x14] sm:$0xf]
      %v738 = vld [vmem:[%s704 + $0x18] sm:$0xf]
      %v739 = vld [vmem:[%s704 + $0x1c] sm:$0xf]
      %v740 = vld [vmem:[%s704 + $0x20] sm:$0xf]
      %v741 = vld [vmem:[%s704 + $0x24] sm:$0xf]
      %v742 = vld [vmem:[%s704 + $0x28] sm:$0xf]
      %v743 = vld [vmem:[%s704 + $0x2c] sm:$0xf]
      %v744 = vld [vmem:[%s704 + $0x30] sm:$0xf]
      %v745 = vld [vmem:[%s704 + $0x34] sm:$0xf]
      %v746 = vld [vmem:[%s704 + $0x38] sm:$0xf]
      %v747 = vld [vmem:[%s704 + $0x3c] sm:$0xf]
      %v748 = vld [vmem:[%s707] sm:$0x1]
      %v749 = vld [vmem:[%s663] sm:$0xff]
      %v750 = vld [vmem:[%s663 + $0x8] sm:$0x3]
      %v751 = vld [vmem:[%s1] sm:$0xff]
      %v752 = vld [vmem:[%s1 + $0x8] sm:$0x3]
      %vm753 = vcmask 261120
      %v754 = vsel %vm753, %v749, 0.0
      %755 = vadd.xlane.f32.xlu0 %v754
      %v756 = vpop.xlane.xlu0 %755
      %vm757 = vcmask 254976
      %v758 = vsel %vm757, %v750, 0.0
      %759 = vadd.xlane.f32.xlu0 %v758
      %v760 = vpop.xlane.xlu0 %759
      %v761 = vrcp.pop 32.0
      %v762 = vmul.f32 32.0, %v761
      %v763 = vsub.f32 1.0, %v762
      %v764 = vmul.f32 %v761, %v763
      %v765 = vadd.f32 %v761, %v764
      %vm766 = vweird.f32 %v761
      %v767 = vsel %vm766, %v761, %v765
      %v768 = vmul.f32 %v756, %v767
      %v769 = vmul.f32 %v760, %v767
      %v770 = vsub.f32 %v749, %v768
      %v771 = vsub.f32 %v750, %v769
      %v772 = vmul.f32 %v770, %v770
      %v773 = vmul.f32 %v771, %v771
      %v774 = vsel %vm753, %v772, 0.0
      %775 = vadd.xlane.f32.xlu0 %v774
      %v776 = vpop.xlane.xlu0 %775
      %v777 = vsel %vm757, %v773, 0.0
      %778 = vadd.xlane.f32.xlu0 %v777
      %v779 = vpop.xlane.xlu0 %778
      %v780 = vmul.f32 %v776, %v767
      %v781 = vmul.f32 %v779, %v767
      %v782 = vadd.f32 %v780, 1e-06
      %v783 = vadd.f32 %v781, 1e-06
      %v784 = vrsqrt.pop %v782
      %v785 = vmul.f32 %v784, %v782
      %v786 = vmul.f32 %v785, %v784
      %v787 = vmul.f32 0.5, %v786
      %v788 = vsub.f32 1.5, %v787
      %v789 = vmul.f32 %v784, %v788
      %vm790 = vweird.f32 %v782
      %vm791 = vweird.f32 %v784
      %vm792 = vmor %vm790, %vm791
      %v793 = vsel %vm792, %v784, %v789
      %v794 = vrsqrt.pop %v783
      %v795 = vmul.f32 %v794, %v783
      %v796 = vmul.f32 %v795, %v794
      %v797 = vmul.f32 0.5, %v796
      %v798 = vsub.f32 1.5, %v797
      %v799 = vmul.f32 %v794, %v798
      %vm800 = vweird.f32 %v783
      %vm801 = vweird.f32 %v794
      %vm802 = vmor %vm800, %vm801
      %v803 = vsel %vm802, %v794, %v799
      %v804 = vmul.f32 %v770, %v793
      %v805 = vmul.f32 %v771, %v803
      %v807 = vperm.slane %v713, 0
      %v809 = vmul.f32 %v804, %v807
      %v810 = vmul.f32 %v805, %v807
      %v812 = vperm.slane %v714, 0
      %v814 = vadd.f32 %v809, %v812
      %v815 = vadd.f32 %v810, %v812
      %v816 = vpack.c.bf16 %v815, %v814
      %v818 = vperm.slane %v719, 0
      %v824 = vunpack.c.l.b16 %v715
      %v825 = vunpack.c.l.b16 %v716
      %v826 = vunpack.c.l.b16 %v717
      %v827 = vunpack.c.l.b16 %v718
      %v828 = vpack.c.b16 %v825, %v824
      %v829 = vpack.c.b16 %v827, %v826
      %v833 = vsel %vm753, %v816, 0
      %835 = vmatpush.bf16.msra.mxu0 0
      %836 = vmatpush.bf16.msra.mxu0 0
      %837 = vmatpush.bf16.msra.mxu0 0
      %838 = vmatpush.bf16.msra.mxu0 0
      %839 = vmatpush.bf16.msra.mxu0 0
      %840 = vmatpush.bf16.msra.mxu0 0
      %841 = vmatpush.bf16.msra.mxu0 %v829
      %842 = vmatpush.bf16.msra.mxu0 %v828
      %843 = vmatmul.bf16.gmra.mxu0 %v833
      %v844 = vpop.f32.mrf.mxu0
      %v845 = vadd.f32 %v818, %v844
      %v846 = vpop.f32.mrf.mxu0
      %v847 = vadd.f32 %v818, %v846
      %848 = vdwg.mxu0
      %v849 = vpack.c.bf16 %v847, %v845
      %851 = vrot.lane.b32.xlu0 %v849, 96
      %v852 = vpop.permute.xlu0 %851
      %vm853 = vcmask 64512
      %v855 = vsel %vm853, %v849, 0
      %v858 = vsel %vm853, %v852, 0
      %860 = vmatpush.bf16.xpose.msra.mxu0 0
      %861 = vmatpush.bf16.xpose.msra.mxu0 0
      %862 = vmatpush.bf16.xpose.msra.mxu0 0
      %863 = vmatpush.bf16.xpose.msra.mxu0 0
      %864 = vmatpush.bf16.xpose.msra.mxu0 0
      %865 = vmatpush.bf16.xpose.msra.mxu0 0
      %866 = vmatpush.bf16.xpose.msra.mxu0 0
      %867 = vmatpush.bf16.xpose.msra.mxu0 %v858
      %868 = vmatmul.bf16.gmra.mxu0 %v855
      %v869 = vpop.f32.mrf.mxu0
      %v870 = vadd.f32 0.0, %v869
      %v871 = vpop.f32.mrf.mxu0
      %v872 = vadd.f32 0.0, %v871
      %873 = vdwg.mxu0
      %v874 = vmul.f32 %v870, 0.35355338
      %v875 = vmul.f32 %v872, 0.35355338
      %v876 = vadd.f32 %v874, %v751
      %v877 = vadd.f32 %v875, %v752
      %vm878 = vcmask 80896
      %v879 = vsel %vm878, %v876, -inf
      %880 = vmax.xlane.f32.xlu0 %v879
      %v881 = vpop.xlane.xlu0 %880
      %vm882 = vcmask 74752
      %v883 = vsel %vm882, %v877, -inf
      %884 = vmax.xlane.f32.xlu0 %v883
      %v885 = vpop.xlane.xlu0 %884
      %v886 = vsub.f32 %v876, %v881
      %v887 = vsub.f32 %v877, %v885
      %v888 = vmul.f32 %v886, 1.442695
      %v889 = vpow.pop %v888
      %v890 = vmul.f32 %v887, 1.442695
      %v891 = vpow.pop %v890
      %v892 = vsel %vm878, %v889, 0.0
      %893 = vadd.xlane.f32.xlu0 %v892
      %v894 = vpop.xlane.xlu0 %893
      %v895 = vsel %vm882, %v891, 0.0
      %896 = vadd.xlane.f32.xlu0 %v895
      %v897 = vpop.xlane.xlu0 %896
      %v898 = vrcp.pop %v894
      %v899 = vrcp.pop %v897
      %v900 = vmul.f32 %v889, %v898
      %v901 = vmul.f32 %v891, %v899
      %v902 = vpack.c.bf16 %v901, %v900
      %903 = vrot.lane.b32.xlu0 %v849, 64
      %v904 = vpop.permute.xlu0 %903
      %v906 = vsel %vm878, %v902, 0
      %vm908 = vcmask 1044480
      %v910 = vsel %vm908, %v904, 0
      %912 = vmatpush.bf16.msra.mxu0 0
      %913 = vmatpush.bf16.msra.mxu0 0
      %914 = vmatpush.bf16.msra.mxu0 0
      %915 = vmatpush.bf16.msra.mxu0 0
      %916 = vmatpush.bf16.msra.mxu0 0
      %917 = vmatpush.bf16.msra.mxu0 0
      %918 = vmatpush.bf16.msra.mxu0 0
      %919 = vmatpush.bf16.msra.mxu0 %v910
      %920 = vmatmul.bf16.gmra.mxu0 %v906
      %v921 = vpop.f32.mrf.mxu0
      %v922 = vadd.f32 0.0, %v921
      %v923 = vpop.f32.mrf.mxu0
      %v924 = vadd.f32 0.0, %v923
      %925 = vdwg.mxu0
      %v926 = vpack.c.bf16 %v924, %v922
      %927 = vrot.lane.b32.xlu0 %v849, 120
      %v928 = vpop.permute.xlu0 %927
      %929 = vrot.lane.b32.xlu0 %v849, 88
      %v930 = vpop.permute.xlu0 %929
      %v932 = vsel %vm853, %v928, 0
      %v935 = vsel %vm853, %v930, 0
      %937 = vmatpush.bf16.xpose.msra.mxu0 0
      %938 = vmatpush.bf16.xpose.msra.mxu0 0
      %939 = vmatpush.bf16.xpose.msra.mxu0 0
      %940 = vmatpush.bf16.xpose.msra.mxu0 0
      %941 = vmatpush.bf16.xpose.msra.mxu0 0
      %942 = vmatpush.bf16.xpose.msra.mxu0 0
      %943 = vmatpush.bf16.xpose.msra.mxu0 0
      %944 = vmatpush.bf16.xpose.msra.mxu0 %v935
      %945 = vmatmul.bf16.gmra.mxu0 %v932
      %v946 = vpop.f32.mrf.mxu0
      %v947 = vadd.f32 0.0, %v946
      %v948 = vpop.f32.mrf.mxu0
      %v949 = vadd.f32 0.0, %v948
      %950 = vdwg.mxu0
      %v951 = vmul.f32 %v947, 0.35355338
      %v952 = vmul.f32 %v949, 0.35355338
      %v953 = vadd.f32 %v951, %v751
      %v954 = vadd.f32 %v952, %v752
      %v955 = vsel %vm878, %v953, -inf
      %956 = vmax.xlane.f32.xlu0 %v955
      %v957 = vpop.xlane.xlu0 %956
      %v958 = vsel %vm882, %v954, -inf
      %959 = vmax.xlane.f32.xlu0 %v958
      %v960 = vpop.xlane.xlu0 %959
      %v961 = vsub.f32 %v953, %v957
      %v962 = vsub.f32 %v954, %v960
      %v963 = vmul.f32 %v961, 1.442695
      %v964 = vpow.pop %v963
      %v965 = vmul.f32 %v962, 1.442695
      %v966 = vpow.pop %v965
      %v967 = vsel %vm878, %v964, 0.0
      %968 = vadd.xlane.f32.xlu0 %v967
      %v969 = vpop.xlane.xlu0 %968
      %v970 = vsel %vm882, %v966, 0.0
      %971 = vadd.xlane.f32.xlu0 %v970
      %v972 = vpop.xlane.xlu0 %971
      %v973 = vrcp.pop %v969
      %v974 = vrcp.pop %v972
      %v975 = vmul.f32 %v964, %v973
      %v976 = vmul.f32 %v966, %v974
      %v977 = vpack.c.bf16 %v976, %v975
      %978 = vrot.lane.b32.xlu0 %v849, 56
      %v979 = vpop.permute.xlu0 %978
      %v981 = vsel %vm878, %v977, 0
      %v984 = vsel %vm908, %v979, 0
      %986 = vmatpush.bf16.msra.mxu0 0
      %987 = vmatpush.bf16.msra.mxu0 0
      %988 = vmatpush.bf16.msra.mxu0 0
      %989 = vmatpush.bf16.msra.mxu0 0
      %990 = vmatpush.bf16.msra.mxu0 0
      %991 = vmatpush.bf16.msra.mxu0 0
      %992 = vmatpush.bf16.msra.mxu0 0
      %993 = vmatpush.bf16.msra.mxu0 %v984
      %994 = vmatmul.bf16.gmra.mxu0 %v981
      %v995 = vpop.f32.mrf.mxu0
      %v996 = vadd.f32 0.0, %v995
      %v997 = vpop.f32.mrf.mxu0
      %v998 = vadd.f32 0.0, %v997
      %999 = vdwg.mxu0
      %v1000 = vpack.c.bf16 %v998, %v996
      %v1002 = vsel %vm853, %v1000, 0
      %vm1004 = vcmask 1043456
      %v1006 = vsel %vm1004, %v721, 0
      %1008 = vmatpush.bf16.msra.mxu0 0
      %1009 = vmatpush.bf16.msra.mxu0 0
      %1010 = vmatpush.bf16.msra.mxu0 0
      %1011 = vmatpush.bf16.msra.mxu0 0
      %1012 = vmatpush.bf16.msra.mxu0 0
      %1013 = vmatpush.bf16.msra.mxu0 0
      %1014 = vmatpush.bf16.msra.mxu0 0
      %1015 = vmatpush.bf16.msra.mxu0 %v1006
      %1016 = vmatmul.bf16.gmra.mxu0 %v1002
      %v1017 = vpop.f32.mrf.mxu0
      %v1018 = vadd.f32 0.0, %v1017
      %v1019 = vpop.f32.mrf.mxu0
      %v1020 = vadd.f32 0.0, %v1019
      %1021 = vdwg.mxu0
      %v1023 = vsel %vm853, %v926, 0
      %v1026 = vsel %vm1004, %v720, 0
      %1028 = vmatpush.bf16.msra.mxu0 0
      %1029 = vmatpush.bf16.msra.mxu0 0
      %1030 = vmatpush.bf16.msra.mxu0 0
      %1031 = vmatpush.bf16.msra.mxu0 0
      %1032 = vmatpush.bf16.msra.mxu0 0
      %1033 = vmatpush.bf16.msra.mxu0 0
      %1034 = vmatpush.bf16.msra.mxu0 0
      %1035 = vmatpush.bf16.msra.mxu0 %v1026
      %1036 = vmatmul.bf16.gmra.mxu0 %v1023
      %v1037 = vpop.f32.mrf.mxu0
      %v1038 = vadd.f32 %v1018, %v1037
      %v1039 = vpop.f32.mrf.mxu0
      %v1040 = vadd.f32 %v1020, %v1039
      %1041 = vdwg.mxu0
      %1042 = vrot.lane.b32.xlu0 %v849, 112
      %v1043 = vpop.permute.xlu0 %1042
      %1044 = vrot.lane.b32.xlu0 %v849, 80
      %v1045 = vpop.permute.xlu0 %1044
      %v1047 = vsel %vm853, %v1043, 0
      %v1050 = vsel %vm853, %v1045, 0
      %1052 = vmatpush.bf16.xpose.msra.mxu0 0
      %1053 = vmatpush.bf16.xpose.msra.mxu0 0
      %1054 = vmatpush.bf16.xpose.msra.mxu0 0
      %1055 = vmatpush.bf16.xpose.msra.mxu0 0
      %1056 = vmatpush.bf16.xpose.msra.mxu0 0
      %1057 = vmatpush.bf16.xpose.msra.mxu0 0
      %1058 = vmatpush.bf16.xpose.msra.mxu0 0
      %1059 = vmatpush.bf16.xpose.msra.mxu0 %v1050
      %1060 = vmatmul.bf16.gmra.mxu0 %v1047
      %v1061 = vpop.f32.mrf.mxu0
      %v1062 = vadd.f32 0.0, %v1061
      %v1063 = vpop.f32.mrf.mxu0
      %v1064 = vadd.f32 0.0, %v1063
      %1065 = vdwg.mxu0
      %v1066 = vmul.f32 %v1062, 0.35355338
      %v1067 = vmul.f32 %v1064, 0.35355338
      %v1068 = vadd.f32 %v1066, %v751
      %v1069 = vadd.f32 %v1067, %v752
      %v1070 = vsel %vm878, %v1068, -inf
      %1071 = vmax.xlane.f32.xlu0 %v1070
      %v1072 = vpop.xlane.xlu0 %1071
      %v1073 = vsel %vm882, %v1069, -inf
      %1074 = vmax.xlane.f32.xlu0 %v1073
      %v1075 = vpop.xlane.xlu0 %1074
      %v1076 = vsub.f32 %v1068, %v1072
      %v1077 = vsub.f32 %v1069, %v1075
      %v1078 = vmul.f32 %v1076, 1.442695
      %v1079 = vpow.pop %v1078
      %v1080 = vmul.f32 %v1077, 1.442695
      %v1081 = vpow.pop %v1080
      %v1082 = vsel %vm878, %v1079, 0.0
      %1083 = vadd.xlane.f32.xlu0 %v1082
      %v1084 = vpop.xlane.xlu0 %1083
      %v1085 = vsel %vm882, %v1081, 0.0
      %1086 = vadd.xlane.f32.xlu0 %v1085
      %v1087 = vpop.xlane.xlu0 %1086
      %v1088 = vrcp.pop %v1084
      %v1089 = vrcp.pop %v1087
      %v1090 = vmul.f32 %v1079, %v1088
      %v1091 = vmul.f32 %v1081, %v1089
      %v1092 = vpack.c.bf16 %v1091, %v1090
      %1093 = vrot.lane.b32.xlu0 %v849, 48
      %v1094 = vpop.permute.xlu0 %1093
      %v1096 = vsel %vm878, %v1092, 0
      %v1099 = vsel %vm908, %v1094, 0
      %1101 = vmatpush.bf16.msra.mxu0 0
      %1102 = vmatpush.bf16.msra.mxu0 0
      %1103 = vmatpush.bf16.msra.mxu0 0
      %1104 = vmatpush.bf16.msra.mxu0 0
      %1105 = vmatpush.bf16.msra.mxu0 0
      %1106 = vmatpush.bf16.msra.mxu0 0
      %1107 = vmatpush.bf16.msra.mxu0 0
      %1108 = vmatpush.bf16.msra.mxu0 %v1099
      %1109 = vmatmul.bf16.gmra.mxu0 %v1096
      %v1110 = vpop.f32.mrf.mxu0
      %v1111 = vadd.f32 0.0, %v1110
      %v1112 = vpop.f32.mrf.mxu0
      %v1113 = vadd.f32 0.0, %v1112
      %1114 = vdwg.mxu0
      %v1115 = vpack.c.bf16 %v1113, %v1111
      %v1117 = vsel %vm853, %v1115, 0
      %v1120 = vsel %vm1004, %v722, 0
      %1122 = vmatpush.bf16.msra.mxu0 0
      %1123 = vmatpush.bf16.msra.mxu0 0
      %1124 = vmatpush.bf16.msra.mxu0 0
      %1125 = vmatpush.bf16.msra.mxu0 0
      %1126 = vmatpush.bf16.msra.mxu0 0
      %1127 = vmatpush.bf16.msra.mxu0 0
      %1128 = vmatpush.bf16.msra.mxu0 0
      %1129 = vmatpush.bf16.msra.mxu0 %v1120
      %1130 = vmatmul.bf16.gmra.mxu0 %v1117
      %v1131 = vpop.f32.mrf.mxu0
      %v1132 = vadd.f32 0.0, %v1131
      %v1133 = vpop.f32.mrf.mxu0
      %v1134 = vadd.f32 0.0, %v1133
      %1135 = vdwg.mxu0
      %v1136 = vadd.f32 %v1038, %v1132
      %v1137 = vadd.f32 %v1040, %v1134
      %1138 = vrot.lane.b32.xlu0 %v849, 104
      %v1139 = vpop.permute.xlu0 %1138
      %1140 = vrot.lane.b32.xlu0 %v849, 72
      %v1141 = vpop.permute.xlu0 %1140
      %v1143 = vsel %vm853, %v1139, 0
      %v1146 = vsel %vm853, %v1141, 0
      %1148 = vmatpush.bf16.xpose.msra.mxu0 0
      %1149 = vmatpush.bf16.xpose.msra.mxu0 0
      %1150 = vmatpush.bf16.xpose.msra.mxu0 0
      %1151 = vmatpush.bf16.xpose.msra.mxu0 0
      %1152 = vmatpush.bf16.xpose.msra.mxu0 0
      %1153 = vmatpush.bf16.xpose.msra.mxu0 0
      %1154 = vmatpush.bf16.xpose.msra.mxu0 0
      %1155 = vmatpush.bf16.xpose.msra.mxu0 %v1146
      %1156 = vmatmul.bf16.gmra.mxu0 %v1143
      %v1157 = vpop.f32.mrf.mxu0
      %v1158 = vadd.f32 0.0, %v1157
      %v1159 = vpop.f32.mrf.mxu0
      %v1160 = vadd.f32 0.0, %v1159
      %1161 = vdwg.mxu0
      %v1162 = vmul.f32 %v1158, 0.35355338
      %v1163 = vmul.f32 %v1160, 0.35355338
      %v1164 = vadd.f32 %v1162, %v751
      %v1165 = vadd.f32 %v1163, %v752
      %v1166 = vsel %vm878, %v1164, -inf
      %1167 = vmax.xlane.f32.xlu0 %v1166
      %v1168 = vpop.xlane.xlu0 %1167
      %v1169 = vsel %vm882, %v1165, -inf
      %1170 = vmax.xlane.f32.xlu0 %v1169
      %v1171 = vpop.xlane.xlu0 %1170
      %v1172 = vsub.f32 %v1164, %v1168
      %v1173 = vsub.f32 %v1165, %v1171
      %v1174 = vmul.f32 %v1172, 1.442695
      %v1175 = vpow.pop %v1174
      %v1176 = vmul.f32 %v1173, 1.442695
      %v1177 = vpow.pop %v1176
      %v1178 = vsel %vm878, %v1175, 0.0
      %1179 = vadd.xlane.f32.xlu0 %v1178
      %v1180 = vpop.xlane.xlu0 %1179
      %v1181 = vsel %vm882, %v1177, 0.0
      %1182 = vadd.xlane.f32.xlu0 %v1181
      %v1183 = vpop.xlane.xlu0 %1182
      %v1184 = vrcp.pop %v1180
      %v1185 = vrcp.pop %v1183
      %v1186 = vmul.f32 %v1175, %v1184
      %v1187 = vmul.f32 %v1177, %v1185
      %v1188 = vpack.c.bf16 %v1187, %v1186
      %1189 = vrot.lane.b32.xlu0 %v849, 40
      %v1190 = vpop.permute.xlu0 %1189
      %v1192 = vsel %vm878, %v1188, 0
      %v1195 = vsel %vm908, %v1190, 0
      %1197 = vmatpush.bf16.msra.mxu0 0
      %1198 = vmatpush.bf16.msra.mxu0 0
      %1199 = vmatpush.bf16.msra.mxu0 0
      %1200 = vmatpush.bf16.msra.mxu0 0
      %1201 = vmatpush.bf16.msra.mxu0 0
      %1202 = vmatpush.bf16.msra.mxu0 0
      %1203 = vmatpush.bf16.msra.mxu0 0
      %1204 = vmatpush.bf16.msra.mxu0 %v1195
      %1205 = vmatmul.bf16.gmra.mxu0 %v1192
      %v1206 = vpop.f32.mrf.mxu0
      %v1207 = vadd.f32 0.0, %v1206
      %v1208 = vpop.f32.mrf.mxu0
      %v1209 = vadd.f32 0.0, %v1208
      %1210 = vdwg.mxu0
      %v1211 = vpack.c.bf16 %v1209, %v1207
      %v1213 = vsel %vm853, %v1211, 0
      %v1216 = vsel %vm1004, %v723, 0
      %1218 = vmatpush.bf16.msra.mxu0 0
      %1219 = vmatpush.bf16.msra.mxu0 0
      %1220 = vmatpush.bf16.msra.mxu0 0
      %1221 = vmatpush.bf16.msra.mxu0 0
      %1222 = vmatpush.bf16.msra.mxu0 0
      %1223 = vmatpush.bf16.msra.mxu0 0
      %1224 = vmatpush.bf16.msra.mxu0 0
      %1225 = vmatpush.bf16.msra.mxu0 %v1216
      %1226 = vmatmul.bf16.gmra.mxu0 %v1213
      %v1227 = vpop.f32.mrf.mxu0
      %v1228 = vadd.f32 0.0, %v1227
      %v1229 = vpop.f32.mrf.mxu0
      %v1230 = vadd.f32 0.0, %v1229
      %1231 = vdwg.mxu0
      %v1232 = vadd.f32 %v1136, %v1228
      %v1233 = vadd.f32 %v1137, %v1230
      %v1235 = vperm.slane %v724, 0
      %v1237 = vadd.f32 %v1232, %v1235
      %v1238 = vadd.f32 %v1233, %v1235
      %v1239 = vadd.f32 %v749, %v1237
      %v1240 = vadd.f32 %v750, %v1238
      %v1241 = vsel %vm753, %v1239, 0.0
      %1242 = vadd.xlane.f32.xlu0 %v1241
      %v1243 = vpop.xlane.xlu0 %1242
      %v1244 = vsel %vm757, %v1240, 0.0
      %1245 = vadd.xlane.f32.xlu0 %v1244
      %v1246 = vpop.xlane.xlu0 %1245
      %v1247 = vmul.f32 %v1243, %v767
      %v1248 = vmul.f32 %v1246, %v767
      %v1249 = vsub.f32 %v1239, %v1247
      %v1250 = vsub.f32 %v1240, %v1248
      %v1251 = vmul.f32 %v1249, %v1249
      %v1252 = vmul.f32 %v1250, %v1250
      %v1253 = vsel %vm753, %v1251, 0.0
      %1254 = vadd.xlane.f32.xlu0 %v1253
      %v1255 = vpop.xlane.xlu0 %1254
      %v1256 = vsel %vm757, %v1252, 0.0
      %1257 = vadd.xlane.f32.xlu0 %v1256
      %v1258 = vpop.xlane.xlu0 %1257
      %v1259 = vmul.f32 %v1255, %v767
      %v1260 = vmul.f32 %v1258, %v767
      %v1261 = vadd.f32 %v1259, 1e-06
      %v1262 = vadd.f32 %v1260, 1e-06
      %v1263 = vrsqrt.pop %v1261
      %v1264 = vmul.f32 %v1263, %v1261
      %v1265 = vmul.f32 %v1264, %v1263
      %v1266 = vmul.f32 0.5, %v1265
      %v1267 = vsub.f32 1.5, %v1266
      %v1268 = vmul.f32 %v1263, %v1267
      %vm1269 = vweird.f32 %v1261
      %vm1270 = vweird.f32 %v1263
      %vm1271 = vmor %vm1269, %vm1270
      %v1272 = vsel %vm1271, %v1263, %v1268
      %v1273 = vrsqrt.pop %v1262
      %v1274 = vmul.f32 %v1273, %v1262
      %v1275 = vmul.f32 %v1274, %v1273
      %v1276 = vmul.f32 0.5, %v1275
      %v1277 = vsub.f32 1.5, %v1276
      %v1278 = vmul.f32 %v1273, %v1277
      %vm1279 = vweird.f32 %v1262
      %vm1280 = vweird.f32 %v1273
      %vm1281 = vmor %vm1279, %vm1280
      %v1282 = vsel %vm1281, %v1273, %v1278
      %v1283 = vmul.f32 %v1249, %v1272
      %v1284 = vmul.f32 %v1250, %v1282
      %v1286 = vperm.slane %v725, 0
      %v1288 = vmul.f32 %v1283, %v1286
      %v1289 = vmul.f32 %v1284, %v1286
      %v1291 = vperm.slane %v726, 0
      %v1293 = vadd.f32 %v1288, %v1291
      %v1294 = vadd.f32 %v1289, %v1291
      %v1295 = vpack.c.bf16 %v1294, %v1293
      %v1297 = vperm.slane %v731, 0
      %v1303 = vunpack.c.l.b16 %v727
      %v1304 = vunpack.c.l.b16 %v728
      %v1305 = vunpack.c.l.b16 %v729
      %v1306 = vunpack.c.l.b16 %v730
      %v1307 = vpack.c.b16 %v1304, %v1303
      %v1308 = vpack.c.b16 %v1306, %v1305
      %v1312 = vsel %vm753, %v1295, 0
      %1314 = vmatpush.bf16.msra.mxu0 0
      %1315 = vmatpush.bf16.msra.mxu0 0
      %1316 = vmatpush.bf16.msra.mxu0 0
      %1317 = vmatpush.bf16.msra.mxu0 0
      %1318 = vmatpush.bf16.msra.mxu0 0
      %1319 = vmatpush.bf16.msra.mxu0 0
      %1320 = vmatpush.bf16.msra.mxu0 %v1308
      %1321 = vmatpush.bf16.msra.mxu0 %v1307
      %1322 = vmatmul.bf16.gmra.mxu0 %v1312
      %v1323 = vpop.f32.mrf.mxu0
      %v1324 = vadd.f32 %v1297, %v1323
      %v1325 = vpop.f32.mrf.mxu0
      %v1326 = vadd.f32 %v1297, %v1325
      %1327 = vdwg.mxu0
      %v1328 = vmul.f32 %v1324, 0.5
      %v1329 = vmul.f32 %v1326, 0.5
      %v1330 = vmul.f32 %v1324, 0.044715
      %v1331 = vmul.f32 %v1326, 0.044715
      %v1332 = vmul.f32 %v1330, %v1324
      %v1333 = vmul.f32 %v1331, %v1326
      %v1334 = vmul.f32 %v1332, %v1324
      %v1335 = vmul.f32 %v1333, %v1326
      %v1336 = vadd.f32 %v1324, %v1334
      %v1337 = vadd.f32 %v1326, %v1335
      %v1338 = vmul.f32 %v1336, 0.7978846
      %v1339 = vmul.f32 %v1337, 0.7978846
      %v1340 = vtanh.pop %v1338
      %v1341 = vtanh.pop %v1339
      %v1342 = vadd.f32 %v1340, 1.0
      %v1343 = vadd.f32 %v1341, 1.0
      %v1344 = vmul.f32 %v1328, %v1342
      %v1345 = vmul.f32 %v1329, %v1343
      %v1346 = vpack.c.bf16 %v1345, %v1344
      %v1348 = vperm.slane %v748, 0
      %v1366 = vunpack.c.l.b16 %v732
      %v1367 = vunpack.c.l.b16 %v733
      %v1368 = vunpack.c.l.b16 %v734
      %v1369 = vunpack.c.l.b16 %v735
      %v1370 = vunpack.c.l.b16 %v736
      %v1371 = vunpack.c.l.b16 %v737
      %v1372 = vunpack.c.l.b16 %v738
      %v1373 = vunpack.c.l.b16 %v739
      %v1374 = vunpack.c.l.b16 %v740
      %v1375 = vunpack.c.l.b16 %v741
      %v1376 = vunpack.c.l.b16 %v742
      %v1377 = vunpack.c.l.b16 %v743
      %v1378 = vunpack.c.l.b16 %v744
      %v1379 = vunpack.c.l.b16 %v745
      %v1380 = vunpack.c.l.b16 %v746
      %v1381 = vunpack.c.l.b16 %v747
      %v1382 = vpack.c.b16 %v1367, %v1366
      %v1383 = vpack.c.b16 %v1369, %v1368
      %v1384 = vpack.c.b16 %v1371, %v1370
      %v1385 = vpack.c.b16 %v1373, %v1372
      %v1386 = vpack.c.b16 %v1375, %v1374
      %v1387 = vpack.c.b16 %v1377, %v1376
      %v1388 = vpack.c.b16 %v1379, %v1378
      %v1389 = vpack.c.b16 %v1381, %v1380
      %1398 = vmatpush.bf16.msra.mxu0 %v1389
      %1399 = vmatpush.bf16.msra.mxu0 %v1388
      %1400 = vmatpush.bf16.msra.mxu0 %v1387
      %1401 = vmatpush.bf16.msra.mxu0 %v1386
      %1402 = vmatpush.bf16.msra.mxu0 %v1385
      %1403 = vmatpush.bf16.msra.mxu0 %v1384
      %1404 = vmatpush.bf16.msra.mxu0 %v1383
      %1405 = vmatpush.bf16.msra.mxu0 %v1382
      %1406 = vmatmul.bf16.gmra.mxu0 %v1346
      %v1407 = vpop.f32.mrf.mxu0
      %v1408 = vadd.f32 %v1348, %v1407
      %v1409 = vpop.f32.mrf.mxu0
      %1410 = vdwg.mxu0
      %v1411 = vadd.f32 %v1239, %v1408
      %v1412 = vld [vmem:[%s2] sm:$0x1]
      %v1413 = vld [vmem:[%s3] sm:$0x1]
      %vm1414 = vcmask 253952
      %v1415 = vsel %vm1414, %v1411, 0.0
      %1416 = vadd.xlane.f32.xlu0 %v1415
      %v1417 = vpop.xlane.xlu0 %1416
      %v1418 = vmul.f32 %v1417, %v767
      %v1419 = vsub.f32 %v1411, %v1418
      %v1420 = vmul.f32 %v1419, %v1419
      %v1421 = vsel %vm1414, %v1420, 0.0
      %1422 = vadd.xlane.f32.xlu0 %v1421
      %v1423 = vpop.xlane.xlu0 %1422
      %v1424 = vmul.f32 %v1423, %v767
      %v1425 = vadd.f32 %v1424, 1e-06
      %v1426 = vrsqrt.pop %v1425
      %v1427 = vmul.f32 %v1426, %v1425
      %v1428 = vmul.f32 %v1427, %v1426
      %v1429 = vmul.f32 0.5, %v1428
      %v1430 = vsub.f32 1.5, %v1429
      %v1431 = vmul.f32 %v1426, %v1430
      %vm1432 = vweird.f32 %v1425
      %vm1433 = vweird.f32 %v1426
      %vm1434 = vmor %vm1432, %vm1433
      %v1435 = vsel %vm1434, %v1426, %v1431
      %v1436 = vmul.f32 %v1419, %v1435
      %v1437 = vmul.f32 %v1436, %v1412
      %v1438 = vadd.f32 %v1437, %v1413
      %1439 = vst.msk [vmem:[%s711] sm:$0x1] %vm1414, %v1438
      %vm1440 = vcmask 259077
      %v1441 = vsel %vm1440, %v1411, 0.0
      %1442 = vadd.xlane.f32.xlu0 %v1441
      %v1443 = vpop.xlane.xlu0 %1442
      %v1444 = vmul.f32 %v1443, %v767
      %v1445 = vsub.f32 %v1411, %v1444
      %v1446 = vmul.f32 %v1445, %v1445
      %v1447 = vsel %vm1440, %v1446, 0.0
      %1448 = vadd.xlane.f32.xlu0 %v1447
      %v1449 = vpop.xlane.xlu0 %1448
      %v1450 = vmul.f32 %v1449, %v767
      %v1451 = vadd.f32 %v1450, 1e-06
      %v1452 = vrsqrt.pop %v1451
      %v1453 = vmul.f32 %v1452, %v1451
      %v1454 = vmul.f32 %v1453, %v1452
      %v1455 = vmul.f32 0.5, %v1454
      %v1456 = vsub.f32 1.5, %v1455
      %v1457 = vmul.f32 %v1452, %v1456
      %vm1458 = vweird.f32 %v1451
      %vm1459 = vweird.f32 %v1452
      %vm1460 = vmor %vm1458, %vm1459
      %v1461 = vsel %vm1460, %v1452, %v1457
      %v1462 = vmul.f32 %v1445, %v1461
      %v1464 = vperm.slane %v1412, 0
      %v1466 = vmul.f32 %v1462, %v1464
      %v1468 = vperm.slane %v1413, 0
      %v1470 = vadd.f32 %v1466, %v1468
      %1471 = vst.msk [vmem:[%s711 - $0x4] sm:$0x20] %vm1440, %v1470
      %p1472 = scmp.lt.s32.totalorder %s27, 5
      %s1473 = scalar_select %p1472, %s27, 5
      %s1474 = smul.addr %s1473, 2
      %s1475 = scalar_lea.vmem %s16, %s1474
      // Predicated region
      $region85: #{vit_bert_plus_forward.4} parent=83 // pred_check
        %p1476 = pneg %p446
      $region86: #{vit_bert_plus_forward.4} parent=83 // pred_check_branch
        %1478 = sbr.rel (%p1476) target = $region88
      $region87: #{vit_bert_plus_forward.4} parent=83 // pred_region
        _
      $region88: #{vit_bert_plus_forward.4} parent=83 // pred_fallthru
        _
    $region84: #{vit_bert_plus_forward.4} parent=5 // pred_fallthru
      _
    %p1479 = scmp.le.s32.totalorder 2, %s22
    // Predicated region
    $region89: #{vit_bert_plus_forward.4} parent=5 // pred_check
      %p1480 = pneg %p1479
    $region90: #{vit_bert_plus_forward.4} parent=5 // pred_check_branch
      %1482 = sbr.rel (%p1480) target = $region92
    $region91: #{vit_bert_plus_forward.4} parent=5 // pred_region
      %s1483 = ssub.s32 %s22, 2
      // Predicated region
      $region93: #{vit_bert_plus_forward.4} parent=91 // pred_check
        %p1484 = pneg %p452
      $region94: #{vit_bert_plus_forward.4} parent=91 // pred_check_branch
        %1486 = sbr.rel (%p1484) target = $region96
      $region95: #{vit_bert_plus_forward.4} parent=91 // pred_region
        %p1487 = scmp.lt.s32.totalorder %s28, 5
        %s1488 = scalar_select %p1487, %s28, 5
        %s1489 = smul.addr %s1488, 2
        %s1490 = scalar_lea.vmem %s16, %s1489
      $region96: #{vit_bert_plus_forward.4} parent=91 // pred_fallthru
        _
    $region92: #{vit_bert_plus_forward.4} parent=5 // pred_fallthru
      _
  $region6: #{vit_bert_plus_forward.4} parent=0 // loop_footer
    %s26 = sadd.s32 1, %s22
  $region7: #{vit_bert_plus_forward.4} parent=0 // loop_footer_branch
    %21 = sbr.rel target = $region3
  $region8: #{vit_bert_plus_forward.4} parent=0 // loop_exit
    _

// kernel: vit_bert_plus_forward.5
$region0: #{vit_bert_plus_forward.5}
  #allocation0 [shape = 'u32[]', space=smem, size = 0x4, offset = 0x4, fixed_abs, tag = 'smem constant byte address 0x4 - core index']
  #allocation1 [shape = 'u32[72,128]{1,0:T(1,128)}', space=vmem, size = 0x9000, scoped, tag = 'internal scratch']
  #allocation2 [shape = 'f32[16,32]{1,0:T(8,128)}', space=vmem, size = 0x2000, scoped, tag = 'scratch operand']
  %s0 = inlined_call_operand.vmem [shape: f32[16,32], index: 0, kind: input, shape index: {}]
  %s1 = inlined_call_operand.vmem [shape: f32[16,16], index: 1, kind: input, shape index: {}]
  %s2 = inlined_call_operand.vmem [shape: bf16[32,32], index: 2, kind: input, shape index: {}]
  %s3 = inlined_call_operand.vmem [shape: f32[1,32], index: 3, kind: input, shape index: {}]
  %s4 = inlined_call_operand.vmem [shape: bf16[32,192], index: 4, kind: input, shape index: {}]
  %s5 = inlined_call_operand.vmem [shape: f32[1,192], index: 5, kind: input, shape index: {}]
  %s6 = inlined_call_operand.vmem [shape: f32[2,1,32], index: 6, kind: input, shape index: {}]
  %s7 = inlined_call_operand.vmem [shape: f32[2,1,32], index: 7, kind: input, shape index: {}]
  %s8 = inlined_call_operand.vmem [shape: bf16[2,32,128], index: 8, kind: input, shape index: {}]
  %s9 = inlined_call_operand.vmem [shape: f32[2,1,128], index: 9, kind: input, shape index: {}]
  %s10 = inlined_call_operand.vmem [shape: bf16[2,32,32], index: 10, kind: input, shape index: {}]
  %s11 = inlined_call_operand.vmem [shape: f32[2,1,32], index: 11, kind: input, shape index: {}]
  %s12 = inlined_call_operand.vmem [shape: f32[2,1,32], index: 12, kind: input, shape index: {}]
  %s13 = inlined_call_operand.vmem [shape: f32[2,1,32], index: 13, kind: input, shape index: {}]
  %s14 = inlined_call_operand.vmem [shape: bf16[2,32,128], index: 14, kind: input, shape index: {}]
  %s15 = inlined_call_operand.vmem [shape: f32[2,1,128], index: 15, kind: input, shape index: {}]
  %s16 = inlined_call_operand.vmem [shape: bf16[2,128,32], index: 16, kind: input, shape index: {}]
  %s17 = inlined_call_operand.vmem [shape: f32[2,1,32], index: 17, kind: input, shape index: {}]
  %s18 = inlined_call_operand.hbm [shape: f32[2,32], index: 18, kind: output, shape index: {0}]
  %s19 = inlined_call_operand.vmem [shape: f32[2,192], index: 19, kind: output, shape index: {1}]
  %20 = xla_tuple %s18, %s19
  %s21 = sld [smem:[#allocation0]]
  $region121: #{vit_bert_plus_forward.5} parent=0
    _
  %s23 = ssub.s32 1, %s21
  %s24 = scalar_select 0, %s23, %s21
  $region1: #{vit_bert_plus_forward.5} parent=0
    #allocation3 [shape = 'u8[1024]{0}', space=vmem, size = 0x400, scoped, tag = 'output window, operand 0, single buffered']
    #allocation4 [shape = 's32[2]{0}', space=sflag, size = 0x8, scoped, tag = 'scoped memory for vit_bert_plus_forward.5']
    %25 = vsyncpa [#allocation4], 0
    loop: start=0, step=1, limit=4
    $region2: #{vit_bert_plus_forward.5} parent=1 // loop_pre_header
      _
    $region3: #{vit_bert_plus_forward.5} parent=1 // loop_header
      %s27 = sphi 0, %s31
      %p28 = scmp.ge.s32.totalorder %s27, 4
      %s35 = sphi 0, %s35
      %s37 = sphi 0, %s35
      %s38 = sphi 0, %s37
      %s52 = sphi 0, %s38
      %s56 = sphi 0, %s56
      %s58 = sphi 0, %s56
      %s59 = sphi 0, %s58
      %s73 = sphi 0, %s59
      %s77 = sphi 0, %s77
      %s79 = sphi 0, %s77
      %s80 = sphi 0, %s79
      %s94 = sphi 0, %s80
      %s98 = sphi 0, %s98
      %s100 = sphi 0, %s98
      %s101 = sphi 0, %s100
      %s115 = sphi 0, %s101
      %s119 = sphi 0, %s119
      %s121 = sphi 0, %s119
      %s122 = sphi 0, %s121
      %s136 = sphi 0, %s122
      %s140 = sphi 0, %s140
      %s142 = sphi 0, %s140
      %s143 = sphi 0, %s142
      %s157 = sphi 0, %s143
      %s163 = sphi 0, %s165
      %s166 = sphi 0, %s163
      %s167 = sphi 0, %s166
      %s183 = sphi 0, %s167
      %s189 = sphi 0, %s191
      %s192 = sphi 0, %s189
      %s193 = sphi 0, %s192
      %s209 = sphi 0, %s193
      %s215 = sphi 0, %s217
      %s218 = sphi 0, %s215
      %s219 = sphi 0, %s218
      %s235 = sphi 0, %s219
      %s241 = sphi 0, %s243
      %s244 = sphi 0, %s241
      %s245 = sphi 0, %s244
      %s261 = sphi 0, %s245
      %s267 = sphi 0, %s269
      %s270 = sphi 0, %s267
      %s271 = sphi 0, %s270
      %s287 = sphi 0, %s271
      %s293 = sphi 0, %s295
      %s296 = sphi 0, %s293
      %s297 = sphi 0, %s296
      %s313 = sphi 0, %s297
      %s319 = sphi 0, %s321
      %s322 = sphi 0, %s319
      %s323 = sphi 0, %s322
      %s339 = sphi 0, %s323
      %s345 = sphi 0, %s347
      %s348 = sphi 0, %s345
      %s349 = sphi 0, %s348
      %s365 = sphi 0, %s349
      %s371 = sphi 0, %s373
      %s374 = sphi 0, %s371
      %s375 = sphi 0, %s374
      %s391 = sphi 0, %s375
      %s397 = sphi 0, %s399
      %s400 = sphi 0, %s397
      %s401 = sphi 0, %s400
      %s417 = sphi 0, %s401
      %s423 = sphi 0, %s425
      %s426 = sphi 0, %s423
      %s427 = sphi 0, %s426
      %s443 = sphi 0, %s427
      %s449 = sphi 0, %s451
      %s452 = sphi 0, %s449
      %s453 = sphi 0, %s452
      %s469 = sphi 0, %s453
      %s473 = sphi 0, %s473
      %s475 = sphi 0, %s473
      %s476 = sphi 0, %s475
      %s490 = sphi 0, %s476
      %s494 = sphi 0, %s494
      %s496 = sphi 0, %s494
      %s497 = sphi 0, %s496
      %s511 = sphi 0, %s497
    $region4: #{vit_bert_plus_forward.5} parent=1 // loop_header_branch
      %30 = sbr.rel (%p28) target = $region8
    $region5: #{vit_bert_plus_forward.5} parent=1 // loop_body
      %s32 = ssub.s32 %s27, 1
      %s33 = ssub.s32 %s27, 2
      %s34 = sadd.s32 %s27, 1
      %s36 = sadd.s32 %s35, 1
      %p39 = scmp.eq.s32.totalorder %s27, 1
      %p40 = scmp.ne.s32.totalorder %s35, %s37
      %p41 = scmp.eq.s32.totalorder %s27, 0
      %p42 = por %p40, %p41
      %p43 = scmp.ne.s32.totalorder %s35, %s37
      %p44 = scmp.eq.s32.totalorder %s32, 1
      %p45 = por %p43, %p44
      %p46 = scmp.ne.s32.totalorder %s37, %s38
      %p47 = scmp.eq.s32.totalorder %s32, 0
      %p48 = por %p46, %p47
      %p49 = scmp.ne.s32.totalorder %s37, %s38
      %p50 = scmp.eq.s32.totalorder %s33, 1
      %p51 = por %p49, %p50
      %p53 = scmp.ne.s32.totalorder %s38, %s52
      %p54 = scmp.eq.s32.totalorder %s33, 0
      %p55 = por %p53, %p54
      %s57 = sadd.s32 %s56, 1
      %p60 = scmp.eq.s32.totalorder %s27, 1
      %p61 = scmp.ne.s32.totalorder %s56, %s58
      %p62 = scmp.eq.s32.totalorder %s27, 0
      %p63 = por %p61, %p62
      %p64 = scmp.ne.s32.totalorder %s56, %s58
      %p65 = scmp.eq.s32.totalorder %s32, 1
      %p66 = por %p64, %p65
      %p67 = scmp.ne.s32.totalorder %s58, %s59
      %p68 = scmp.eq.s32.totalorder %s32, 0
      %p69 = por %p67, %p68
      %p70 = scmp.ne.s32.totalorder %s58, %s59
      %p71 = scmp.eq.s32.totalorder %s33, 1
      %p72 = por %p70, %p71
      %p74 = scmp.ne.s32.totalorder %s59, %s73
      %p75 = scmp.eq.s32.totalorder %s33, 0
      %p76 = por %p74, %p75
      %s78 = sadd.s32 %s77, 1
      %p81 = scmp.eq.s32.totalorder %s27, 1
      %p82 = scmp.ne.s32.totalorder %s77, %s79
      %p83 = scmp.eq.s32.totalorder %s27, 0
      %p84 = por %p82, %p83
      %p85 = scmp.ne.s32.totalorder %s77, %s79
      %p86 = scmp.eq.s32.totalorder %s32, 1
      %p87 = por %p85, %p86
      %p88 = scmp.ne.s32.totalorder %s79, %s80
      %p89 = scmp.eq.s32.totalorder %s32, 0
      %p90 = por %p88, %p89
      %p91 = scmp.ne.s32.totalorder %s79, %s80
      %p92 = scmp.eq.s32.totalorder %s33, 1
      %p93 = por %p91, %p92
      %p95 = scmp.ne.s32.totalorder %s80, %s94
      %p96 = scmp.eq.s32.totalorder %s33, 0
      %p97 = por %p95, %p96
      %s99 = sadd.s32 %s98, 1
      %p102 = scmp.eq.s32.totalorder %s27, 1
      %p103 = scmp.ne.s32.totalorder %s98, %s100
      %p104 = scmp.eq.s32.totalorder %s27, 0
      %p105 = por %p103, %p104
      %p106 = scmp.ne.s32.totalorder %s98, %s100
      %p107 = scmp.eq.s32.totalorder %s32, 1
      %p108 = por %p106, %p107
      %p109 = scmp.ne.s32.totalorder %s100, %s101
      %p110 = scmp.eq.s32.totalorder %s32, 0
      %p111 = por %p109, %p110
      %p112 = scmp.ne.s32.totalorder %s100, %s101
      %p113 = scmp.eq.s32.totalorder %s33, 1
      %p114 = por %p112, %p113
      %p116 = scmp.ne.s32.totalorder %s101, %s115
      %p117 = scmp.eq.s32.totalorder %s33, 0
      %p118 = por %p116, %p117
      %s120 = sadd.s32 %s119, 1
      %p123 = scmp.eq.s32.totalorder %s27, 1
      %p124 = scmp.ne.s32.totalorder %s119, %s121
      %p125 = scmp.eq.s32.totalorder %s27, 0
      %p126 = por %p124, %p125
      %p127 = scmp.ne.s32.totalorder %s119, %s121
      %p128 = scmp.eq.s32.totalorder %s32, 1
      %p129 = por %p127, %p128
      %p130 = scmp.ne.s32.totalorder %s121, %s122
      %p131 = scmp.eq.s32.totalorder %s32, 0
      %p132 = por %p130, %p131
      %p133 = scmp.ne.s32.totalorder %s121, %s122
      %p134 = scmp.eq.s32.totalorder %s33, 1
      %p135 = por %p133, %p134
      %p137 = scmp.ne.s32.totalorder %s122, %s136
      %p138 = scmp.eq.s32.totalorder %s33, 0
      %p139 = por %p137, %p138
      %s141 = sadd.s32 %s140, 1
      %p144 = scmp.eq.s32.totalorder %s27, 1
      %p145 = scmp.ne.s32.totalorder %s140, %s142
      %p146 = scmp.eq.s32.totalorder %s27, 0
      %p147 = por %p145, %p146
      %p148 = scmp.ne.s32.totalorder %s140, %s142
      %p149 = scmp.eq.s32.totalorder %s32, 1
      %p150 = por %p148, %p149
      %p151 = scmp.ne.s32.totalorder %s142, %s143
      %p152 = scmp.eq.s32.totalorder %s32, 0
      %p153 = por %p151, %p152
      %p154 = scmp.ne.s32.totalorder %s142, %s143
      %p155 = scmp.eq.s32.totalorder %s33, 1
      %p156 = por %p154, %p155
      %p158 = scmp.ne.s32.totalorder %s143, %s157
      %p159 = scmp.eq.s32.totalorder %s33, 0
      %p160 = por %p158, %p159
      %s161 = ssub.s32 %s27, %s34
      %p162 = scmp.eq.s32.totalorder %s161, 0
      %s164 = sadd.s32 %s163, 1
      %s165 = scalar_select %p162, %s163, %s164
      %p168 = pneg %p162
      %p169 = scmp.eq.s32.totalorder %s27, 1
      %p170 = por %p168, %p169
      %p171 = scmp.ne.s32.totalorder %s163, %s166
      %p172 = scmp.eq.s32.totalorder %s27, 0
      %p173 = por %p171, %p172
      %p174 = scmp.ne.s32.totalorder %s163, %s166
      %p175 = scmp.eq.s32.totalorder %s32, 1
      %p176 = por %p174, %p175
      %p177 = scmp.ne.s32.totalorder %s166, %s167
      %p178 = scmp.eq.s32.totalorder %s32, 0
      %p179 = por %p177, %p178
      %p180 = scmp.ne.s32.totalorder %s166, %s167
      %p181 = scmp.eq.s32.totalorder %s33, 1
      %p182 = por %p180, %p181
      %p184 = scmp.ne.s32.totalorder %s167, %s183
      %p185 = scmp.eq.s32.totalorder %s33, 0
      %p186 = por %p184, %p185
      %s187 = ssub.s32 %s27, %s34
      %p188 = scmp.eq.s32.totalorder %s187, 0
      %s190 = sadd.s32 %s189, 1
      %s191 = scalar_select %p188, %s189, %s190
      %p194 = pneg %p188
      %p195 = scmp.eq.s32.totalorder %s27, 1
      %p196 = por %p194, %p195
      %p197 = scmp.ne.s32.totalorder %s189, %s192
      %p198 = scmp.eq.s32.totalorder %s27, 0
      %p199 = por %p197, %p198
      %p200 = scmp.ne.s32.totalorder %s189, %s192
      %p201 = scmp.eq.s32.totalorder %s32, 1
      %p202 = por %p200, %p201
      %p203 = scmp.ne.s32.totalorder %s192, %s193
      %p204 = scmp.eq.s32.totalorder %s32, 0
      %p205 = por %p203, %p204
      %p206 = scmp.ne.s32.totalorder %s192, %s193
      %p207 = scmp.eq.s32.totalorder %s33, 1
      %p208 = por %p206, %p207
      %p210 = scmp.ne.s32.totalorder %s193, %s209
      %p211 = scmp.eq.s32.totalorder %s33, 0
      %p212 = por %p210, %p211
      %s213 = ssub.s32 %s27, %s34
      %p214 = scmp.eq.s32.totalorder %s213, 0
      %s216 = sadd.s32 %s215, 1
      %s217 = scalar_select %p214, %s215, %s216
      %p220 = pneg %p214
      %p221 = scmp.eq.s32.totalorder %s27, 1
      %p222 = por %p220, %p221
      %p223 = scmp.ne.s32.totalorder %s215, %s218
      %p224 = scmp.eq.s32.totalorder %s27, 0
      %p225 = por %p223, %p224
      %p226 = scmp.ne.s32.totalorder %s215, %s218
      %p227 = scmp.eq.s32.totalorder %s32, 1
      %p228 = por %p226, %p227
      %p229 = scmp.ne.s32.totalorder %s218, %s219
      %p230 = scmp.eq.s32.totalorder %s32, 0
      %p231 = por %p229, %p230
      %p232 = scmp.ne.s32.totalorder %s218, %s219
      %p233 = scmp.eq.s32.totalorder %s33, 1
      %p234 = por %p232, %p233
      %p236 = scmp.ne.s32.totalorder %s219, %s235
      %p237 = scmp.eq.s32.totalorder %s33, 0
      %p238 = por %p236, %p237
      %s239 = ssub.s32 %s27, %s34
      %p240 = scmp.eq.s32.totalorder %s239, 0
      %s242 = sadd.s32 %s241, 1
      %s243 = scalar_select %p240, %s241, %s242
      %p246 = pneg %p240
      %p247 = scmp.eq.s32.totalorder %s27, 1
      %p248 = por %p246, %p247
      %p249 = scmp.ne.s32.totalorder %s241, %s244
      %p250 = scmp.eq.s32.totalorder %s27, 0
      %p251 = por %p249, %p250
      %p252 = scmp.ne.s32.totalorder %s241, %s244
      %p253 = scmp.eq.s32.totalorder %s32, 1
      %p254 = por %p252, %p253
      %p255 = scmp.ne.s32.totalorder %s244, %s245
      %p256 = scmp.eq.s32.totalorder %s32, 0
      %p257 = por %p255, %p256
      %p258 = scmp.ne.s32.totalorder %s244, %s245
      %p259 = scmp.eq.s32.totalorder %s33, 1
      %p260 = por %p258, %p259
      %p262 = scmp.ne.s32.totalorder %s245, %s261
      %p263 = scmp.eq.s32.totalorder %s33, 0
      %p264 = por %p262, %p263
      %s265 = ssub.s32 %s27, %s34
      %p266 = scmp.eq.s32.totalorder %s265, 0
      %s268 = sadd.s32 %s267, 1
      %s269 = scalar_select %p266, %s267, %s268
      %p272 = pneg %p266
      %p273 = scmp.eq.s32.totalorder %s27, 1
      %p274 = por %p272, %p273
      %p275 = scmp.ne.s32.totalorder %s267, %s270
      %p276 = scmp.eq.s32.totalorder %s27, 0
      %p277 = por %p275, %p276
      %p278 = scmp.ne.s32.totalorder %s267, %s270
      %p279 = scmp.eq.s32.totalorder %s32, 1
      %p280 = por %p278, %p279
      %p281 = scmp.ne.s32.totalorder %s270, %s271
      %p282 = scmp.eq.s32.totalorder %s32, 0
      %p283 = por %p281, %p282
      %p284 = scmp.ne.s32.totalorder %s270, %s271
      %p285 = scmp.eq.s32.totalorder %s33, 1
      %p286 = por %p284, %p285
      %p288 = scmp.ne.s32.totalorder %s271, %s287
      %p289 = scmp.eq.s32.totalorder %s33, 0
      %p290 = por %p288, %p289
      %s291 = ssub.s32 %s27, %s34
      %p292 = scmp.eq.s32.totalorder %s291, 0
      %s294 = sadd.s32 %s293, 1
      %s295 = scalar_select %p292, %s293, %s294
      %p298 = pneg %p292
      %p299 = scmp.eq.s32.totalorder %s27, 1
      %p300 = por %p298, %p299
      %p301 = scmp.ne.s32.totalorder %s293, %s296
      %p302 = scmp.eq.s32.totalorder %s27, 0
      %p303 = por %p301, %p302
      %p304 = scmp.ne.s32.totalorder %s293, %s296
      %p305 = scmp.eq.s32.totalorder %s32, 1
      %p306 = por %p304, %p305
      %p307 = scmp.ne.s32.totalorder %s296, %s297
      %p308 = scmp.eq.s32.totalorder %s32, 0
      %p309 = por %p307, %p308
      %p310 = scmp.ne.s32.totalorder %s296, %s297
      %p311 = scmp.eq.s32.totalorder %s33, 1
      %p312 = por %p310, %p311
      %p314 = scmp.ne.s32.totalorder %s297, %s313
      %p315 = scmp.eq.s32.totalorder %s33, 0
      %p316 = por %p314, %p315
      %s317 = ssub.s32 %s27, %s34
      %p318 = scmp.eq.s32.totalorder %s317, 0
      %s320 = sadd.s32 %s319, 1
      %s321 = scalar_select %p318, %s319, %s320
      %p324 = pneg %p318
      %p325 = scmp.eq.s32.totalorder %s27, 1
      %p326 = por %p324, %p325
      %p327 = scmp.ne.s32.totalorder %s319, %s322
      %p328 = scmp.eq.s32.totalorder %s27, 0
      %p329 = por %p327, %p328
      %p330 = scmp.ne.s32.totalorder %s319, %s322
      %p331 = scmp.eq.s32.totalorder %s32, 1
      %p332 = por %p330, %p331
      %p333 = scmp.ne.s32.totalorder %s322, %s323
      %p334 = scmp.eq.s32.totalorder %s32, 0
      %p335 = por %p333, %p334
      %p336 = scmp.ne.s32.totalorder %s322, %s323
      %p337 = scmp.eq.s32.totalorder %s33, 1
      %p338 = por %p336, %p337
      %p340 = scmp.ne.s32.totalorder %s323, %s339
      %p341 = scmp.eq.s32.totalorder %s33, 0
      %p342 = por %p340, %p341
      %s343 = ssub.s32 %s27, %s34
      %p344 = scmp.eq.s32.totalorder %s343, 0
      %s346 = sadd.s32 %s345, 1
      %s347 = scalar_select %p344, %s345, %s346
      %p350 = pneg %p344
      %p351 = scmp.eq.s32.totalorder %s27, 1
      %p352 = por %p350, %p351
      %p353 = scmp.ne.s32.totalorder %s345, %s348
      %p354 = scmp.eq.s32.totalorder %s27, 0
      %p355 = por %p353, %p354
      %p356 = scmp.ne.s32.totalorder %s345, %s348
      %p357 = scmp.eq.s32.totalorder %s32, 1
      %p358 = por %p356, %p357
      %p359 = scmp.ne.s32.totalorder %s348, %s349
      %p360 = scmp.eq.s32.totalorder %s32, 0
      %p361 = por %p359, %p360
      %p362 = scmp.ne.s32.totalorder %s348, %s349
      %p363 = scmp.eq.s32.totalorder %s33, 1
      %p364 = por %p362, %p363
      %p366 = scmp.ne.s32.totalorder %s349, %s365
      %p367 = scmp.eq.s32.totalorder %s33, 0
      %p368 = por %p366, %p367
      %s369 = ssub.s32 %s27, %s34
      %p370 = scmp.eq.s32.totalorder %s369, 0
      %s372 = sadd.s32 %s371, 1
      %s373 = scalar_select %p370, %s371, %s372
      %p376 = pneg %p370
      %p377 = scmp.eq.s32.totalorder %s27, 1
      %p378 = por %p376, %p377
      %p379 = scmp.ne.s32.totalorder %s371, %s374
      %p380 = scmp.eq.s32.totalorder %s27, 0
      %p381 = por %p379, %p380
      %p382 = scmp.ne.s32.totalorder %s371, %s374
      %p383 = scmp.eq.s32.totalorder %s32, 1
      %p384 = por %p382, %p383
      %p385 = scmp.ne.s32.totalorder %s374, %s375
      %p386 = scmp.eq.s32.totalorder %s32, 0
      %p387 = por %p385, %p386
      %p388 = scmp.ne.s32.totalorder %s374, %s375
      %p389 = scmp.eq.s32.totalorder %s33, 1
      %p390 = por %p388, %p389
      %p392 = scmp.ne.s32.totalorder %s375, %s391
      %p393 = scmp.eq.s32.totalorder %s33, 0
      %p394 = por %p392, %p393
      %s395 = ssub.s32 %s27, %s34
      %p396 = scmp.eq.s32.totalorder %s395, 0
      %s398 = sadd.s32 %s397, 1
      %s399 = scalar_select %p396, %s397, %s398
      %p402 = pneg %p396
      %p403 = scmp.eq.s32.totalorder %s27, 1
      %p404 = por %p402, %p403
      %p405 = scmp.ne.s32.totalorder %s397, %s400
      %p406 = scmp.eq.s32.totalorder %s27, 0
      %p407 = por %p405, %p406
      %p408 = scmp.ne.s32.totalorder %s397, %s400
      %p409 = scmp.eq.s32.totalorder %s32, 1
      %p410 = por %p408, %p409
      %p411 = scmp.ne.s32.totalorder %s400, %s401
      %p412 = scmp.eq.s32.totalorder %s32, 0
      %p413 = por %p411, %p412
      %p414 = scmp.ne.s32.totalorder %s400, %s401
      %p415 = scmp.eq.s32.totalorder %s33, 1
      %p416 = por %p414, %p415
      %p418 = scmp.ne.s32.totalorder %s401, %s417
      %p419 = scmp.eq.s32.totalorder %s33, 0
      %p420 = por %p418, %p419
      %s421 = ssub.s32 %s27, %s34
      %p422 = scmp.eq.s32.totalorder %s421, 0
      %s424 = sadd.s32 %s423, 1
      %s425 = scalar_select %p422, %s423, %s424
      %p428 = pneg %p422
      %p429 = scmp.eq.s32.totalorder %s27, 1
      %p430 = por %p428, %p429
      %p431 = scmp.ne.s32.totalorder %s423, %s426
      %p432 = scmp.eq.s32.totalorder %s27, 0
      %p433 = por %p431, %p432
      %p434 = scmp.ne.s32.totalorder %s423, %s426
      %p435 = scmp.eq.s32.totalorder %s32, 1
      %p436 = por %p434, %p435
      %p437 = scmp.ne.s32.totalorder %s426, %s427
      %p438 = scmp.eq.s32.totalorder %s32, 0
      %p439 = por %p437, %p438
      %p440 = scmp.ne.s32.totalorder %s426, %s427
      %p441 = scmp.eq.s32.totalorder %s33, 1
      %p442 = por %p440, %p441
      %p444 = scmp.ne.s32.totalorder %s427, %s443
      %p445 = scmp.eq.s32.totalorder %s33, 0
      %p446 = por %p444, %p445
      %s447 = ssub.s32 %s27, %s34
      %p448 = scmp.eq.s32.totalorder %s447, 0
      %s450 = sadd.s32 %s449, 1
      %s451 = scalar_select %p448, %s449, %s450
      %p454 = pneg %p448
      %p455 = scmp.eq.s32.totalorder %s27, 1
      %p456 = por %p454, %p455
      %p457 = scmp.ne.s32.totalorder %s449, %s452
      %p458 = scmp.eq.s32.totalorder %s27, 0
      %p459 = por %p457, %p458
      %p460 = scmp.ne.s32.totalorder %s449, %s452
      %p461 = scmp.eq.s32.totalorder %s32, 1
      %p462 = por %p460, %p461
      %p463 = scmp.ne.s32.totalorder %s452, %s453
      %p464 = scmp.eq.s32.totalorder %s32, 0
      %p465 = por %p463, %p464
      %p466 = scmp.ne.s32.totalorder %s452, %s453
      %p467 = scmp.eq.s32.totalorder %s33, 1
      %p468 = por %p466, %p467
      %p470 = scmp.ne.s32.totalorder %s453, %s469
      %p471 = scmp.eq.s32.totalorder %s33, 0
      %p472 = por %p470, %p471
      %s474 = sadd.s32 %s473, 1
      %p477 = scmp.eq.s32.totalorder %s27, 1
      %p478 = scmp.ne.s32.totalorder %s473, %s475
      %p479 = scmp.eq.s32.totalorder %s27, 0
      %p480 = por %p478, %p479
      %p481 = scmp.ne.s32.totalorder %s473, %s475
      %p482 = scmp.eq.s32.totalorder %s32, 1
      %p483 = por %p481, %p482
      %p484 = scmp.ne.s32.totalorder %s475, %s476
      %p485 = scmp.eq.s32.totalorder %s32, 0
      %p486 = por %p484, %p485
      %p487 = scmp.ne.s32.totalorder %s475, %s476
      %p488 = scmp.eq.s32.totalorder %s33, 1
      %p489 = por %p487, %p488
      %p491 = scmp.ne.s32.totalorder %s476, %s490
      %p492 = scmp.eq.s32.totalorder %s33, 0
      %p493 = por %p491, %p492
      %s495 = sadd.s32 %s494, 1
      %p498 = scmp.eq.s32.totalorder %s27, 1
      %p499 = scmp.ne.s32.totalorder %s494, %s496
      %p500 = scmp.eq.s32.totalorder %s27, 0
      %p501 = por %p499, %p500
      %p502 = scmp.ne.s32.totalorder %s494, %s496
      %p503 = scmp.eq.s32.totalorder %s32, 1
      %p504 = por %p502, %p503
      %p505 = scmp.ne.s32.totalorder %s496, %s497
      %p506 = scmp.eq.s32.totalorder %s32, 0
      %p507 = por %p505, %p506
      %p508 = scmp.ne.s32.totalorder %s496, %s497
      %p509 = scmp.eq.s32.totalorder %s33, 1
      %p510 = por %p508, %p509
      %p512 = scmp.ne.s32.totalorder %s497, %s511
      %p513 = scmp.eq.s32.totalorder %s33, 0
      %p514 = por %p512, %p513
      %p515 = scmp.le.s32.totalorder 1, %s27
      %p516 = scmp.lt.s32.totalorder %s27, 3
      %p517 = pnand %p515, %p516
      %p518 = pneg %p517
      // Predicated region
      $region9: #{vit_bert_plus_forward.5} parent=5 // pred_check
        _
      $region10: #{vit_bert_plus_forward.5} parent=5 // pred_check_branch
        %520 = sbr.rel (%p517) target = $region12
      $region11: #{vit_bert_plus_forward.5} parent=5 // pred_region
        %s521 = ssub.s32 %s27, 1
        // Predicated region
        $region13: #{vit_bert_plus_forward.5} parent=11 // pred_check
          %p522 = pneg %p48
        $region14: #{vit_bert_plus_forward.5} parent=11 // pred_check_branch
          %524 = sbr.rel (%p522) target = $region16
        $region15: #{vit_bert_plus_forward.5} parent=11 // pred_region
          _
        $region16: #{vit_bert_plus_forward.5} parent=11 // pred_fallthru
          _
        // Predicated region
        $region17: #{vit_bert_plus_forward.5} parent=11 // pred_check
          %p525 = pneg %p69
        $region18: #{vit_bert_plus_forward.5} parent=11 // pred_check_branch
          %527 = sbr.rel (%p525) target = $region20
        $region19: #{vit_bert_plus_forward.5} parent=11 // pred_region
          _
        $region20: #{vit_bert_plus_forward.5} parent=11 // pred_fallthru
          _
        // Predicated region
        $region21: #{vit_bert_plus_forward.5} parent=11 // pred_check
          %p528 = pneg %p90
        $region22: #{vit_bert_plus_forward.5} parent=11 // pred_check_branch
          %530 = sbr.rel (%p528) target = $region24
        $region23: #{vit_bert_plus_forward.5} parent=11 // pred_region
          _
        $region24: #{vit_bert_plus_forward.5} parent=11 // pred_fallthru
          _
        // Predicated region
        $region25: #{vit_bert_plus_forward.5} parent=11 // pred_check
          %p531 = pneg %p111
        $region26: #{vit_bert_plus_forward.5} parent=11 // pred_check_branch
          %533 = sbr.rel (%p531) target = $region28
        $region27: #{vit_bert_plus_forward.5} parent=11 // pred_region
          _
        $region28: #{vit_bert_plus_forward.5} parent=11 // pred_fallthru
          _
        // Predicated region
        $region29: #{vit_bert_plus_forward.5} parent=11 // pred_check
          %p534 = pneg %p132
        $region30: #{vit_bert_plus_forward.5} parent=11 // pred_check_branch
          %536 = sbr.rel (%p534) target = $region32
        $region31: #{vit_bert_plus_forward.5} parent=11 // pred_region
          _
        $region32: #{vit_bert_plus_forward.5} parent=11 // pred_fallthru
          _
        // Predicated region
        $region33: #{vit_bert_plus_forward.5} parent=11 // pred_check
          %p537 = pneg %p153
        $region34: #{vit_bert_plus_forward.5} parent=11 // pred_check_branch
          %539 = sbr.rel (%p537) target = $region36
        $region35: #{vit_bert_plus_forward.5} parent=11 // pred_region
          _
        $region36: #{vit_bert_plus_forward.5} parent=11 // pred_fallthru
          _
      $region12: #{vit_bert_plus_forward.5} parent=5 // pred_fallthru
        _
      %p540 = scmp.lt.s32.totalorder %s27, 2
      // Predicated region
      $region37: #{vit_bert_plus_forward.5} parent=5 // pred_check
        %p541 = pneg %p540
      $region38: #{vit_bert_plus_forward.5} parent=5 // pred_check_branch
        %543 = sbr.rel (%p541) target = $region40
      $region39: #{vit_bert_plus_forward.5} parent=5 // pred_region
        // Predicated region
        $region41: #{vit_bert_plus_forward.5} parent=39 // pred_check
          %p544 = pneg %p173
        $region42: #{vit_bert_plus_forward.5} parent=39 // pred_check_branch
          %546 = sbr.rel (%p544) target = $region44
        $region43: #{vit_bert_plus_forward.5} parent=39 // pred_region
          %p547 = scmp.lt.s32.totalorder %s27, 1
          %s548 = scalar_select %p547, %s27, 1
          %s549 = scalar_lea.vmem %s6, %s548
        $region44: #{vit_bert_plus_forward.5} parent=39 // pred_fallthru
          _
        // Predicated region
        $region45: #{vit_bert_plus_forward.5} parent=39 // pred_check
          %p550 = pneg %p199
        $region46: #{vit_bert_plus_forward.5} parent=39 // pred_check_branch
          %552 = sbr.rel (%p550) target = $region48
        $region47: #{vit_bert_plus_forward.5} parent=39 // pred_region
          %p553 = scmp.lt.s32.totalorder %s27, 1
          %s554 = scalar_select %p553, %s27, 1
          %s555 = scalar_lea.vmem %s7, %s554
        $region48: #{vit_bert_plus_forward.5} parent=39 // pred_fallthru
          _
        // Predicated region
        $region49: #{vit_bert_plus_forward.5} parent=39 // pred_check
          %p556 = pneg %p225
        $region50: #{vit_bert_plus_forward.5} parent=39 // pred_check_branch
          %558 = sbr.rel (%p556) target = $region52
        $region51: #{vit_bert_plus_forward.5} parent=39 // pred_region
          %p559 = scmp.lt.s32.totalorder %s27, 1
          %s560 = scalar_select %p559, %s27, 1
          %s561 = smul.addr %s560, 4
          %s562 = smul.addr %s561, 4
          %s563 = scalar_lea.vmem %s8, %s562
        $region52: #{vit_bert_plus_forward.5} parent=39 // pred_fallthru
          _
        // Predicated region
        $region53: #{vit_bert_plus_forward.5} parent=39 // pred_check
          %p564 = pneg %p251
        $region54: #{vit_bert_plus_forward.5} parent=39 // pred_check_branch
          %566 = sbr.rel (%p564) target = $region56
        $region55: #{vit_bert_plus_forward.5} parent=39 // pred_region
          %p567 = scmp.lt.s32.totalorder %s27, 1
          %s568 = scalar_select %p567, %s27, 1
          %s569 = scalar_lea.vmem %s9, %s568
        $region56: #{vit_bert_plus_forward.5} parent=39 // pred_fallthru
          _
        // Predicated region
        $region57: #{vit_bert_plus_forward.5} parent=39 // pred_check
          %p570 = pneg %p277
        $region58: #{vit_bert_plus_forward.5} parent=39 // pred_check_branch
          %572 = sbr.rel (%p570) target = $region60
        $region59: #{vit_bert_plus_forward.5} parent=39 // pred_region
          %p573 = scmp.lt.s32.totalorder %s27, 1
          %s574 = scalar_select %p573, %s27, 1
          %s575 = smul.addr %s574, 4
          %s576 = smul.addr %s575, 4
          %s577 = scalar_lea.vmem %s10, %s576
        $region60: #{vit_bert_plus_forward.5} parent=39 // pred_fallthru
          _
        // Predicated region
        $region61: #{vit_bert_plus_forward.5} parent=39 // pred_check
          %p578 = pneg %p303
        $region62: #{vit_bert_plus_forward.5} parent=39 // pred_check_branch
          %580 = sbr.rel (%p578) target = $region64
        $region63: #{vit_bert_plus_forward.5} parent=39 // pred_region
          %p581 = scmp.lt.s32.totalorder %s27, 1
          %s582 = scalar_select %p581, %s27, 1
          %s583 = scalar_lea.vmem %s11, %s582
        $region64: #{vit_bert_plus_forward.5} parent=39 // pred_fallthru
          _
        // Predicated region
        $region65: #{vit_bert_plus_forward.5} parent=39 // pred_check
          %p584 = pneg %p329
        $region66: #{vit_bert_plus_forward.5} parent=39 // pred_check_branch
          %586 = sbr.rel (%p584) target = $region68
        $region67: #{vit_bert_plus_forward.5} parent=39 // pred_region
          %p587 = scmp.lt.s32.totalorder %s27, 1
          %s588 = scalar_select %p587, %s27, 1
          %s589 = scalar_lea.vmem %s12, %s588
        $region68: #{vit_bert_plus_forward.5} parent=39 // pred_fallthru
          _
        // Predicated region
        $region69: #{vit_bert_plus_forward.5} parent=39 // pred_check
          %p590 = pneg %p355
        $region70: #{vit_bert_plus_forward.5} parent=39 // pred_check_branch
          %592 = sbr.rel (%p590) target = $region72
        $region71: #{vit_bert_plus_forward.5} parent=39 // pred_region
          %p593 = scmp.lt.s32.totalorder %s27, 1
          %s594 = scalar_select %p593, %s27, 1
          %s595 = scalar_lea.vmem %s13, %s594
        $region72: #{vit_bert_plus_forward.5} parent=39 // pred_fallthru
          _
        // Predicated region
        $region73: #{vit_bert_plus_forward.5} parent=39 // pred_check
          %p596 = pneg %p381
        $region74: #{vit_bert_plus_forward.5} parent=39 // pred_check_branch
          %598 = sbr.rel (%p596) target = $region76
        $region75: #{vit_bert_plus_forward.5} parent=39 // pred_region
          %p599 = scmp.lt.s32.totalorder %s27, 1
          %s600 = scalar_select %p599, %s27, 1
          %s601 = smul.addr %s600, 4
          %s602 = smul.addr %s601, 4
          %s603 = scalar_lea.vmem %s14, %s602
        $region76: #{vit_bert_plus_forward.5} parent=39 // pred_fallthru
          _
        // Predicated region
        $region77: #{vit_bert_plus_forward.5} parent=39 // pred_check
          %p604 = pneg %p407
        $region78: #{vit_bert_plus_forward.5} parent=39 // pred_check_branch
          %606 = sbr.rel (%p604) target = $region80
        $region79: #{vit_bert_plus_forward.5} parent=39 // pred_region
          %p607 = scmp.lt.s32.totalorder %s27, 1
          %s608 = scalar_select %p607, %s27, 1
          %s609 = scalar_lea.vmem %s15, %s608
        $region80: #{vit_bert_plus_forward.5} parent=39 // pred_fallthru
          _
        // Predicated region
        $region81: #{vit_bert_plus_forward.5} parent=39 // pred_check
          %p610 = pneg %p433
        $region82: #{vit_bert_plus_forward.5} parent=39 // pred_check_branch
          %612 = sbr.rel (%p610) target = $region84
        $region83: #{vit_bert_plus_forward.5} parent=39 // pred_region
          %p613 = scmp.lt.s32.totalorder %s27, 1
          %s614 = scalar_select %p613, %s27, 1
          %s615 = smul.addr %s614, 16
          %s616 = smul.addr %s615, 4
          %s617 = scalar_lea.vmem %s16, %s616
        $region84: #{vit_bert_plus_forward.5} parent=39 // pred_fallthru
          _
        // Predicated region
        $region85: #{vit_bert_plus_forward.5} parent=39 // pred_check
          %p618 = pneg %p459
        $region86: #{vit_bert_plus_forward.5} parent=39 // pred_check_branch
          %620 = sbr.rel (%p618) target = $region88
        $region87: #{vit_bert_plus_forward.5} parent=39 // pred_region
          %p621 = scmp.lt.s32.totalorder %s27, 1
          %s622 = scalar_select %p621, %s27, 1
          %s623 = scalar_lea.vmem %s17, %s622
        $region88: #{vit_bert_plus_forward.5} parent=39 // pred_fallthru
          _
      $region40: #{vit_bert_plus_forward.5} parent=5 // pred_fallthru
        _
      %p624 = scmp.le.s32.totalorder 1, %s27
      %p625 = scmp.lt.s32.totalorder %s27, 3
      %p626 = pnand %p624, %p625
      %p627 = pneg %p626
      // Predicated region
      $region89: #{vit_bert_plus_forward.5} parent=5 // pred_check
        _
      $region90: #{vit_bert_plus_forward.5} parent=5 // pred_check_branch
        %629 = sbr.rel (%p626) target = $region92
      $region91: #{vit_bert_plus_forward.5} parent=5 // pred_region
        %s630 = ssub.s32 %s27, 1
        %p631 = pneg %p48
        %p632 = pneg %p45
        %p633 = pneg %p69
        %p634 = pneg %p66
        %p635 = pneg %p90
        %p636 = pneg %p87
        %p637 = pneg %p111
        %p638 = pneg %p108
        %p639 = pneg %p132
        %p640 = pneg %p129
        %p641 = pneg %p153
        %p642 = pneg %p150
        %p643 = scmp.lt.s32.totalorder %s32, 1
        %s644 = scalar_select %p643, %s32, 1
        %s645 = scalar_lea.vmem %s6, %s644
        %p646 = pneg %p179
        %p647 = pneg %p176
        %p648 = scmp.lt.s32.totalorder %s32, 1
        %s649 = scalar_select %p648, %s32, 1
        %s650 = scalar_lea.vmem %s7, %s649
        %p651 = pneg %p205
        %p652 = pneg %p202
        %p653 = scmp.lt.s32.totalorder %s32, 1
        %s654 = scalar_select %p653, %s32, 1
        %s655 = smul.addr %s654, 4
        %s656 = smul.addr %s655, 4
        %s657 = scalar_lea.vmem %s8, %s656
        %p658 = pneg %p231
        %p659 = pneg %p228
        %p660 = scmp.lt.s32.totalorder %s32, 1
        %s661 = scalar_select %p660, %s32, 1
        %s662 = scalar_lea.vmem %s9, %s661
        %p663 = pneg %p257
        %p664 = pneg %p254
        %p665 = scmp.lt.s32.totalorder %s32, 1
        %s666 = scalar_select %p665, %s32, 1
        %s667 = smul.addr %s666, 4
        %s668 = smul.addr %s667, 4
        %s669 = scalar_lea.vmem %s10, %s668
        %p670 = pneg %p283
        %p671 = pneg %p280
        %p672 = scmp.lt.s32.totalorder %s32, 1
        %s673 = scalar_select %p672, %s32, 1
        %s674 = scalar_lea.vmem %s11, %s673
        %p675 = pneg %p309
        %p676 = pneg %p306
        %p677 = scmp.lt.s32.totalorder %s32, 1
        %s678 = scalar_select %p677, %s32, 1
        %s679 = scalar_lea.vmem %s12, %s678
        %p680 = pneg %p335
        %p681 = pneg %p332
        %p682 = scmp.lt.s32.totalorder %s32, 1
        %s683 = scalar_select %p682, %s32, 1
        %s684 = scalar_lea.vmem %s13, %s683
        %p685 = pneg %p361
        %p686 = pneg %p358
        %p687 = scmp.lt.s32.totalorder %s32, 1
        %s688 = scalar_select %p687, %s32, 1
        %s689 = smul.addr %s688, 4
        %s690 = smul.addr %s689, 4
        %s691 = scalar_lea.vmem %s14, %s690
        %p692 = pneg %p387
        %p693 = pneg %p384
        %p694 = scmp.lt.s32.totalorder %s32, 1
        %s695 = scalar_select %p694, %s32, 1
        %s696 = scalar_lea.vmem %s15, %s695
        %p697 = pneg %p413
        %p698 = pneg %p410
        %p699 = scmp.lt.s32.totalorder %s32, 1
        %s700 = scalar_select %p699, %s32, 1
        %s701 = smul.addr %s700, 16
        %s702 = smul.addr %s701, 4
        %s703 = scalar_lea.vmem %s16, %s702
        %p704 = pneg %p439
        %p705 = pneg %p436
        %p706 = scmp.lt.s32.totalorder %s32, 1
        %s707 = scalar_select %p706, %s32, 1
        %s708 = scalar_lea.vmem %s17, %s707
        %p709 = pneg %p465
        %p710 = pneg %p462
        %p711 = pneg %p486
        %p712 = pneg %p483
        %p713 = pneg %p507
        %p714 = pneg %p504
        %p715 = scmp.lt.s32.totalorder %s32, 1
        %s716 = scalar_select %p715, %s32, 1
        %s717 = scalar_lea.vmem %s6, %s716
        %p718 = scmp.lt.s32.totalorder %s32, 1
        %s719 = scalar_select %p718, %s32, 1
        %s720 = scalar_lea.vmem %s7, %s719
        %p721 = scmp.lt.s32.totalorder %s32, 1
        %s722 = scalar_select %p721, %s32, 1
        %s723 = smul.addr %s722, 4
        %s724 = smul.addr %s723, 4
        %s725 = scalar_lea.vmem %s8, %s724
        %p726 = scmp.lt.s32.totalorder %s32, 1
        %s727 = scalar_select %p726, %s32, 1
        %s728 = scalar_lea.vmem %s9, %s727
        %p729 = scmp.lt.s32.totalorder %s32, 1
        %s730 = scalar_select %p729, %s32, 1
        %s731 = smul.addr %s730, 4
        %s732 = smul.addr %s731, 4
        %s733 = scalar_lea.vmem %s10, %s732
        %p734 = scmp.lt.s32.totalorder %s32, 1
        %s735 = scalar_select %p734, %s32, 1
        %s736 = scalar_lea.vmem %s11, %s735
        %p737 = scmp.lt.s32.totalorder %s32, 1
        %s738 = scalar_select %p737, %s32, 1
        %s739 = scalar_lea.vmem %s12, %s738
        %p740 = scmp.lt.s32.totalorder %s32, 1
        %s741 = scalar_select %p740, %s32, 1
        %s742 = scalar_lea.vmem %s13, %s741
        %p743 = scmp.lt.s32.totalorder %s32, 1
        %s744 = scalar_select %p743, %s32, 1
        %s745 = smul.addr %s744, 4
        %s746 = smul.addr %s745, 4
        %s747 = scalar_lea.vmem %s14, %s746
        %p748 = scmp.lt.s32.totalorder %s32, 1
        %s749 = scalar_select %p748, %s32, 1
        %s750 = scalar_lea.vmem %s15, %s749
        %p751 = scmp.lt.s32.totalorder %s32, 1
        %s752 = scalar_select %p751, %s32, 1
        %s753 = smul.addr %s752, 16
        %s754 = smul.addr %s753, 4
        %s755 = scalar_lea.vmem %s16, %s754
        %p756 = scmp.lt.s32.totalorder %s32, 1
        %s757 = scalar_select %p756, %s32, 1
        %s758 = scalar_lea.vmem %s17, %s757
        %p760 = scmp.eq.s32.totalorder %s32, 0
        // Predicated region
        $region93: #{vit_bert_plus_forward.5} parent=91 // pred_check
          %p761 = pneg %p760
        $region94: #{vit_bert_plus_forward.5} parent=91 // pred_check_branch
          %763 = sbr.rel (%p761) target = $region96
        $region95: #{vit_bert_plus_forward.5} parent=91 // pred_region
          %v764 = vld [vmem:[%s0] sm:$0xff]
          %v765 = vld [vmem:[%s0 + $0x8] sm:$0xff]
          %vm766 = vcmask 261120
          %767 = vst.msk [vmem:[#allocation2] sm:$0xff] %vm766, %v764
          %768 = vst.msk [vmem:[#allocation2 + $0x8] sm:$0xff] %vm766, %v765
        $region96: #{vit_bert_plus_forward.5} parent=91 // pred_fallthru
          _
        %v769 = vld [vmem:[%s717] sm:$0x1]
        %v770 = vld [vmem:[%s720] sm:$0x1]
        %v771 = vld [vmem:[%s725] sm:$0xf]
        %v772 = vld [vmem:[%s725 + $0x4] sm:$0xf]
        %v773 = vld [vmem:[%s725 + $0x8] sm:$0xf]
        %v774 = vld [vmem:[%s725 + $0xc] sm:$0xf]
        %v775 = vld [vmem:[%s728] sm:$0x1]
        %v776 = vld [vmem:[%s733] sm:$0xf]
        %v777 = vld [vmem:[%s733 + $0x4] sm:$0xf]
        %v778 = vld [vmem:[%s733 + $0x8] sm:$0xf]
        %v779 = vld [vmem:[%s733 + $0xc] sm:$0xf]
        %v780 = vld [vmem:[%s736] sm:$0x1]
        %v781 = vld [vmem:[%s739] sm:$0x1]
        %v782 = vld [vmem:[%s742] sm:$0x1]
        %v783 = vld [vmem:[%s747] sm:$0xf]
        %v784 = vld [vmem:[%s747 + $0x4] sm:$0xf]
        %v785 = vld [vmem:[%s747 + $0x8] sm:$0xf]
        %v786 = vld [vmem:[%s747 + $0xc] sm:$0xf]
        %v787 = vld [vmem:[%s750] sm:$0x1]
        %v788 = vld [vmem:[%s755] sm:$0xf]
        %v789 = vld [vmem:[%s755 + $0x4] sm:$0xf]
        %v790 = vld [vmem:[%s755 + $0x8] sm:$0xf]
        %v791 = vld [vmem:[%s755 + $0xc] sm:$0xf]
        %v792 = vld [vmem:[%s755 + $0x10] sm:$0xf]
        %v793 = vld [vmem:[%s755 + $0x14] sm:$0xf]
        %v794 = vld [vmem:[%s755 + $0x18] sm:$0xf]
        %v795 = vld [vmem:[%s755 + $0x1c] sm:$0xf]
        %v796 = vld [vmem:[%s755 + $0x20] sm:$0xf]
        %v797 = vld [vmem:[%s755 + $0x24] sm:$0xf]
        %v798 = vld [vmem:[%s755 + $0x28] sm:$0xf]
        %v799 = vld [vmem:[%s755 + $0x2c] sm:$0xf]
        %v800 = vld [vmem:[%s755 + $0x30] sm:$0xf]
        %v801 = vld [vmem:[%s755 + $0x34] sm:$0xf]
        %v802 = vld [vmem:[%s755 + $0x38] sm:$0xf]
        %v803 = vld [vmem:[%s755 + $0x3c] sm:$0xf]
        %v804 = vld [vmem:[%s758] sm:$0x1]
        %v805 = vld [vmem:[#allocation2] sm:$0xff]
        %v806 = vld [vmem:[#allocation2 + $0x8] sm:$0xff]
        %v807 = vld [vmem:[%s1] sm:$0xff]
        %v808 = vld [vmem:[%s1 + $0x8] sm:$0xff]
        %v809 = vpack.c.bf16 %v806, %v805
        %v811 = vperm.slane %v775, 0
        %v817 = vunpack.c.l.b16 %v771
        %v818 = vunpack.c.l.b16 %v772
        %v819 = vunpack.c.l.b16 %v773
        %v820 = vunpack.c.l.b16 %v774
        %v821 = vpack.c.b16 %v818, %v817
        %v822 = vpack.c.b16 %v820, %v819
        %vm825 = vcmask 261120
        %v827 = vsel %vm825, %v809, 0
        %829 = vmatpush.bf16.msra.mxu0 0
        %830 = vmatpush.bf16.msra.mxu0 0
        %831 = vmatpush.bf16.msra.mxu0 0
        %832 = vmatpush.bf16.msra.mxu0 0
        %833 = vmatpush.bf16.msra.mxu0 0
        %834 = vmatpush.bf16.msra.mxu0 0
        %835 = vmatpush.bf16.msra.mxu0 %v822
        %836 = vmatpush.bf16.msra.mxu0 %v821
        %837 = vmatmul.bf16.gmra.mxu0 %v827
        %v838 = vpop.f32.mrf.mxu0
        %v839 = vadd.f32 %v811, %v838
        %v840 = vpop.f32.mrf.mxu0
        %v841 = vadd.f32 %v811, %v840
        %842 = vdwg.mxu0
        %v843 = vpack.c.bf16 %v841, %v839
        %845 = vrot.lane.b32.xlu0 %v843, 96
        %v846 = vpop.permute.xlu0 %845
        %vm847 = vcmask 64512
        %v849 = vsel %vm847, %v843, 0
        %v852 = vsel %vm847, %v846, 0
        %854 = vmatpush.bf16.xpose.msra.mxu0 0
        %855 = vmatpush.bf16.xpose.msra.mxu0 0
        %856 = vmatpush.bf16.xpose.msra.mxu0 0
        %857 = vmatpush.bf16.xpose.msra.mxu0 0
        %858 = vmatpush.bf16.xpose.msra.mxu0 0
        %859 = vmatpush.bf16.xpose.msra.mxu0 0
        %860 = vmatpush.bf16.xpose.msra.mxu0 0
        %861 = vmatpush.bf16.xpose.msra.mxu0 %v852
        %862 = vmatmul.bf16.gmra.mxu0 %v849
        %v863 = vpop.f32.mrf.mxu0
        %v864 = vadd.f32 0.0, %v863
        %v865 = vpop.f32.mrf.mxu0
        %v866 = vadd.f32 0.0, %v865
        %867 = vdwg.mxu0
        %v868 = vmul.f32 %v864, 0.35355338
        %v869 = vmul.f32 %v866, 0.35355338
        %v870 = vadd.f32 %v868, %v807
        %v871 = vadd.f32 %v869, %v808
        %vm872 = vcmask 130048
        %v873 = vsel %vm872, %v870, -inf
        %874 = vmax.xlane.f32.xlu0 %v873
        %v875 = vpop.xlane.xlu0 %874
        %v876 = vsel %vm872, %v871, -inf
        %877 = vmax.xlane.f32.xlu0 %v876
        %v878 = vpop.xlane.xlu0 %877
        %v879 = vsub.f32 %v870, %v875
        %v880 = vsub.f32 %v871, %v878
        %v881 = vmul.f32 %v879, 1.442695
        %v882 = vpow.pop %v881
        %v883 = vmul.f32 %v880, 1.442695
        %v884 = vpow.pop %v883
        %v885 = vsel %vm872, %v882, 0.0
        %886 = vadd.xlane.f32.xlu0 %v885
        %v887 = vpop.xlane.xlu0 %886
        %v888 = vsel %vm872, %v884, 0.0
        %889 = vadd.xlane.f32.xlu0 %v888
        %v890 = vpop.xlane.xlu0 %889
        %v891 = vrcp.pop %v887
        %v892 = vrcp.pop %v890
        %v893 = vmul.f32 %v882, %v891
        %v894 = vmul.f32 %v884, %v892
        %v895 = vpack.c.bf16 %v894, %v893
        %896 = vrot.lane.b32.xlu0 %v843, 64
        %v897 = vpop.permute.xlu0 %896
        %v900 = vsel %vm872, %v895, 0
        %902 = vmatpush.bf16.msra.mxu0 0
        %903 = vmatpush.bf16.msra.mxu0 0
        %904 = vmatpush.bf16.msra.mxu0 0
        %905 = vmatpush.bf16.msra.mxu0 0
        %906 = vmatpush.bf16.msra.mxu0 0
        %907 = vmatpush.bf16.msra.mxu0 0
        %908 = vmatpush.bf16.msra.mxu0 0
        %909 = vmatpush.bf16.msra.mxu0 %v897
        %910 = vmatmul.bf16.gmra.mxu0 %v900
        %v911 = vpop.f32.mrf.mxu0
        %v912 = vadd.f32 0.0, %v911
        %v913 = vpop.f32.mrf.mxu0
        %v914 = vadd.f32 0.0, %v913
        %915 = vdwg.mxu0
        %v916 = vpack.c.bf16 %v914, %v912
        %917 = vrot.lane.b32.xlu0 %v843, 120
        %v918 = vpop.permute.xlu0 %917
        %919 = vrot.lane.b32.xlu0 %v843, 88
        %v920 = vpop.permute.xlu0 %919
        %v922 = vsel %vm847, %v918, 0
        %v925 = vsel %vm847, %v920, 0
        %927 = vmatpush.bf16.xpose.msra.mxu0 0
        %928 = vmatpush.bf16.xpose.msra.mxu0 0
        %929 = vmatpush.bf16.xpose.msra.mxu0 0
        %930 = vmatpush.bf16.xpose.msra.mxu0 0
        %931 = vmatpush.bf16.xpose.msra.mxu0 0
        %932 = vmatpush.bf16.xpose.msra.mxu0 0
        %933 = vmatpush.bf16.xpose.msra.mxu0 0
        %934 = vmatpush.bf16.xpose.msra.mxu0 %v925
        %935 = vmatmul.bf16.gmra.mxu0 %v922
        %v936 = vpop.f32.mrf.mxu0
        %v937 = vadd.f32 0.0, %v936
        %v938 = vpop.f32.mrf.mxu0
        %v939 = vadd.f32 0.0, %v938
        %940 = vdwg.mxu0
        %v941 = vmul.f32 %v937, 0.35355338
        %v942 = vmul.f32 %v939, 0.35355338
        %v943 = vadd.f32 %v941, %v807
        %v944 = vadd.f32 %v942, %v808
        %v945 = vsel %vm872, %v943, -inf
        %946 = vmax.xlane.f32.xlu0 %v945
        %v947 = vpop.xlane.xlu0 %946
        %v948 = vsel %vm872, %v944, -inf
        %949 = vmax.xlane.f32.xlu0 %v948
        %v950 = vpop.xlane.xlu0 %949
        %v951 = vsub.f32 %v943, %v947
        %v952 = vsub.f32 %v944, %v950
        %v953 = vmul.f32 %v951, 1.442695
        %v954 = vpow.pop %v953
        %v955 = vmul.f32 %v952, 1.442695
        %v956 = vpow.pop %v955
        %v957 = vsel %vm872, %v954, 0.0
        %958 = vadd.xlane.f32.xlu0 %v957
        %v959 = vpop.xlane.xlu0 %958
        %v960 = vsel %vm872, %v956, 0.0
        %961 = vadd.xlane.f32.xlu0 %v960
        %v962 = vpop.xlane.xlu0 %961
        %v963 = vrcp.pop %v959
        %v964 = vrcp.pop %v962
        %v965 = vmul.f32 %v954, %v963
        %v966 = vmul.f32 %v956, %v964
        %v967 = vpack.c.bf16 %v966, %v965
        %968 = vrot.lane.b32.xlu0 %v843, 56
        %v969 = vpop.permute.xlu0 %968
        %v972 = vsel %vm872, %v967, 0
        %974 = vmatpush.bf16.msra.mxu0 0
        %975 = vmatpush.bf16.msra.mxu0 0
        %976 = vmatpush.bf16.msra.mxu0 0
        %977 = vmatpush.bf16.msra.mxu0 0
        %978 = vmatpush.bf16.msra.mxu0 0
        %979 = vmatpush.bf16.msra.mxu0 0
        %980 = vmatpush.bf16.msra.mxu0 0
        %981 = vmatpush.bf16.msra.mxu0 %v969
        %982 = vmatmul.bf16.gmra.mxu0 %v972
        %v983 = vpop.f32.mrf.mxu0
        %v984 = vadd.f32 0.0, %v983
        %v985 = vpop.f32.mrf.mxu0
        %v986 = vadd.f32 0.0, %v985
        %987 = vdwg.mxu0
        %v988 = vpack.c.bf16 %v986, %v984
        %v990 = vsel %vm847, %v988, 0
        %vm992 = vcmask 1043456
        %v994 = vsel %vm992, %v777, 0
        %996 = vmatpush.bf16.msra.mxu0 0
        %997 = vmatpush.bf16.msra.mxu0 0
        %998 = vmatpush.bf16.msra.mxu0 0
        %999 = vmatpush.bf16.msra.mxu0 0
        %1000 = vmatpush.bf16.msra.mxu0 0
        %1001 = vmatpush.bf16.msra.mxu0 0
        %1002 = vmatpush.bf16.msra.mxu0 0
        %1003 = vmatpush.bf16.msra.mxu0 %v994
        %1004 = vmatmul.bf16.gmra.mxu0 %v990
        %v1005 = vpop.f32.mrf.mxu0
        %v1006 = vadd.f32 0.0, %v1005
        %v1007 = vpop.f32.mrf.mxu0
        %v1008 = vadd.f32 0.0, %v1007
        %1009 = vdwg.mxu0
        %v1011 = vsel %vm847, %v916, 0
        %v1014 = vsel %vm992, %v776, 0
        %1016 = vmatpush.bf16.msra.mxu0 0
        %1017 = vmatpush.bf16.msra.mxu0 0
        %1018 = vmatpush.bf16.msra.mxu0 0
        %1019 = vmatpush.bf16.msra.mxu0 0
        %1020 = vmatpush.bf16.msra.mxu0 0
        %1021 = vmatpush.bf16.msra.mxu0 0
        %1022 = vmatpush.bf16.msra.mxu0 0
        %1023 = vmatpush.bf16.msra.mxu0 %v1014
        %1024 = vmatmul.bf16.gmra.mxu0 %v1011
        %v1025 = vpop.f32.mrf.mxu0
        %v1026 = vadd.f32 %v1006, %v1025
        %v1027 = vpop.f32.mrf.mxu0
        %v1028 = vadd.f32 %v1008, %v1027
        %1029 = vdwg.mxu0
        %1030 = vrot.lane.b32.xlu0 %v843, 112
        %v1031 = vpop.permute.xlu0 %1030
        %1032 = vrot.lane.b32.xlu0 %v843, 80
        %v1033 = vpop.permute.xlu0 %1032
        %v1035 = vsel %vm847, %v1031, 0
        %v1038 = vsel %vm847, %v1033, 0
        %1040 = vmatpush.bf16.xpose.msra.mxu0 0
        %1041 = vmatpush.bf16.xpose.msra.mxu0 0
        %1042 = vmatpush.bf16.xpose.msra.mxu0 0
        %1043 = vmatpush.bf16.xpose.msra.mxu0 0
        %1044 = vmatpush.bf16.xpose.msra.mxu0 0
        %1045 = vmatpush.bf16.xpose.msra.mxu0 0
        %1046 = vmatpush.bf16.xpose.msra.mxu0 0
        %1047 = vmatpush.bf16.xpose.msra.mxu0 %v1038
        %1048 = vmatmul.bf16.gmra.mxu0 %v1035
        %v1049 = vpop.f32.mrf.mxu0
        %v1050 = vadd.f32 0.0, %v1049
        %v1051 = vpop.f32.mrf.mxu0
        %v1052 = vadd.f32 0.0, %v1051
        %1053 = vdwg.mxu0
        %v1054 = vmul.f32 %v1050, 0.35355338
        %v1055 = vmul.f32 %v1052, 0.35355338
        %v1056 = vadd.f32 %v1054, %v807
        %v1057 = vadd.f32 %v1055, %v808
        %v1058 = vsel %vm872, %v1056, -inf
        %1059 = vmax.xlane.f32.xlu0 %v1058
        %v1060 = vpop.xlane.xlu0 %1059
        %v1061 = vsel %vm872, %v1057, -inf
        %1062 = vmax.xlane.f32.xlu0 %v1061
        %v1063 = vpop.xlane.xlu0 %1062
        %v1064 = vsub.f32 %v1056, %v1060
        %v1065 = vsub.f32 %v1057, %v1063
        %v1066 = vmul.f32 %v1064, 1.442695
        %v1067 = vpow.pop %v1066
        %v1068 = vmul.f32 %v1065, 1.442695
        %v1069 = vpow.pop %v1068
        %v1070 = vsel %vm872, %v1067, 0.0
        %1071 = vadd.xlane.f32.xlu0 %v1070
        %v1072 = vpop.xlane.xlu0 %1071
        %v1073 = vsel %vm872, %v1069, 0.0
        %1074 = vadd.xlane.f32.xlu0 %v1073
        %v1075 = vpop.xlane.xlu0 %1074
        %v1076 = vrcp.pop %v1072
        %v1077 = vrcp.pop %v1075
        %v1078 = vmul.f32 %v1067, %v1076
        %v1079 = vmul.f32 %v1069, %v1077
        %v1080 = vpack.c.bf16 %v1079, %v1078
        %1081 = vrot.lane.b32.xlu0 %v843, 48
        %v1082 = vpop.permute.xlu0 %1081
        %v1085 = vsel %vm872, %v1080, 0
        %1087 = vmatpush.bf16.msra.mxu0 0
        %1088 = vmatpush.bf16.msra.mxu0 0
        %1089 = vmatpush.bf16.msra.mxu0 0
        %1090 = vmatpush.bf16.msra.mxu0 0
        %1091 = vmatpush.bf16.msra.mxu0 0
        %1092 = vmatpush.bf16.msra.mxu0 0
        %1093 = vmatpush.bf16.msra.mxu0 0
        %1094 = vmatpush.bf16.msra.mxu0 %v1082
        %1095 = vmatmul.bf16.gmra.mxu0 %v1085
        %v1096 = vpop.f32.mrf.mxu0
        %v1097 = vadd.f32 0.0, %v1096
        %v1098 = vpop.f32.mrf.mxu0
        %v1099 = vadd.f32 0.0, %v1098
        %1100 = vdwg.mxu0
        %v1101 = vpack.c.bf16 %v1099, %v1097
        %v1103 = vsel %vm847, %v1101, 0
        %v1106 = vsel %vm992, %v778, 0
        %1108 = vmatpush.bf16.msra.mxu0 0
        %1109 = vmatpush.bf16.msra.mxu0 0
        %1110 = vmatpush.bf16.msra.mxu0 0
        %1111 = vmatpush.bf16.msra.mxu0 0
        %1112 = vmatpush.bf16.msra.mxu0 0
        %1113 = vmatpush.bf16.msra.mxu0 0
        %1114 = vmatpush.bf16.msra.mxu0 0
        %1115 = vmatpush.bf16.msra.mxu0 %v1106
        %1116 = vmatmul.bf16.gmra.mxu0 %v1103
        %v1117 = vpop.f32.mrf.mxu0
        %v1118 = vadd.f32 0.0, %v1117
        %v1119 = vpop.f32.mrf.mxu0
        %v1120 = vadd.f32 0.0, %v1119
        %1121 = vdwg.mxu0
        %v1122 = vadd.f32 %v1026, %v1118
        %v1123 = vadd.f32 %v1028, %v1120
        %1124 = vrot.lane.b32.xlu0 %v843, 104
        %v1125 = vpop.permute.xlu0 %1124
        %1126 = vrot.lane.b32.xlu0 %v843, 72
        %v1127 = vpop.permute.xlu0 %1126
        %v1129 = vsel %vm847, %v1125, 0
        %v1132 = vsel %vm847, %v1127, 0
        %1134 = vmatpush.bf16.xpose.msra.mxu0 0
        %1135 = vmatpush.bf16.xpose.msra.mxu0 0
        %1136 = vmatpush.bf16.xpose.msra.mxu0 0
        %1137 = vmatpush.bf16.xpose.msra.mxu0 0
        %1138 = vmatpush.bf16.xpose.msra.mxu0 0
        %1139 = vmatpush.bf16.xpose.msra.mxu0 0
        %1140 = vmatpush.bf16.xpose.msra.mxu0 0
        %1141 = vmatpush.bf16.xpose.msra.mxu0 %v1132
        %1142 = vmatmul.bf16.gmra.mxu0 %v1129
        %v1143 = vpop.f32.mrf.mxu0
        %v1144 = vadd.f32 0.0, %v1143
        %v1145 = vpop.f32.mrf.mxu0
        %v1146 = vadd.f32 0.0, %v1145
        %1147 = vdwg.mxu0
        %v1148 = vmul.f32 %v1144, 0.35355338
        %v1149 = vmul.f32 %v1146, 0.35355338
        %v1150 = vadd.f32 %v1148, %v807
        %v1151 = vadd.f32 %v1149, %v808
        %v1152 = vsel %vm872, %v1150, -inf
        %1153 = vmax.xlane.f32.xlu0 %v1152
        %v1154 = vpop.xlane.xlu0 %1153
        %v1155 = vsel %vm872, %v1151, -inf
        %1156 = vmax.xlane.f32.xlu0 %v1155
        %v1157 = vpop.xlane.xlu0 %1156
        %v1158 = vsub.f32 %v1150, %v1154
        %v1159 = vsub.f32 %v1151, %v1157
        %v1160 = vmul.f32 %v1158, 1.442695
        %v1161 = vpow.pop %v1160
        %v1162 = vmul.f32 %v1159, 1.442695
        %v1163 = vpow.pop %v1162
        %v1164 = vsel %vm872, %v1161, 0.0
        %1165 = vadd.xlane.f32.xlu0 %v1164
        %v1166 = vpop.xlane.xlu0 %1165
        %v1167 = vsel %vm872, %v1163, 0.0
        %1168 = vadd.xlane.f32.xlu0 %v1167
        %v1169 = vpop.xlane.xlu0 %1168
        %v1170 = vrcp.pop %v1166
        %v1171 = vrcp.pop %v1169
        %v1172 = vmul.f32 %v1161, %v1170
        %v1173 = vmul.f32 %v1163, %v1171
        %v1174 = vpack.c.bf16 %v1173, %v1172
        %1175 = vrot.lane.b32.xlu0 %v843, 40
        %v1176 = vpop.permute.xlu0 %1175
        %v1179 = vsel %vm872, %v1174, 0
        %1181 = vmatpush.bf16.msra.mxu0 0
        %1182 = vmatpush.bf16.msra.mxu0 0
        %1183 = vmatpush.bf16.msra.mxu0 0
        %1184 = vmatpush.bf16.msra.mxu0 0
        %1185 = vmatpush.bf16.msra.mxu0 0
        %1186 = vmatpush.bf16.msra.mxu0 0
        %1187 = vmatpush.bf16.msra.mxu0 0
        %1188 = vmatpush.bf16.msra.mxu0 %v1176
        %1189 = vmatmul.bf16.gmra.mxu0 %v1179
        %v1190 = vpop.f32.mrf.mxu0
        %v1191 = vadd.f32 0.0, %v1190
        %v1192 = vpop.f32.mrf.mxu0
        %v1193 = vadd.f32 0.0, %v1192
        %1194 = vdwg.mxu0
        %v1195 = vpack.c.bf16 %v1193, %v1191
        %v1197 = vsel %vm847, %v1195, 0
        %v1200 = vsel %vm992, %v779, 0
        %1202 = vmatpush.bf16.msra.mxu0 0
        %1203 = vmatpush.bf16.msra.mxu0 0
        %1204 = vmatpush.bf16.msra.mxu0 0
        %1205 = vmatpush.bf16.msra.mxu0 0
        %1206 = vmatpush.bf16.msra.mxu0 0
        %1207 = vmatpush.bf16.msra.mxu0 0
        %1208 = vmatpush.bf16.msra.mxu0 0
        %1209 = vmatpush.bf16.msra.mxu0 %v1200
        %1210 = vmatmul.bf16.gmra.mxu0 %v1197
        %v1211 = vpop.f32.mrf.mxu0
        %v1212 = vadd.f32 0.0, %v1211
        %v1213 = vpop.f32.mrf.mxu0
        %v1214 = vadd.f32 0.0, %v1213
        %1215 = vdwg.mxu0
        %v1216 = vadd.f32 %v1122, %v1212
        %v1217 = vadd.f32 %v1123, %v1214
        %v1219 = vperm.slane %v780, 0
        %v1221 = vadd.f32 %v1216, %v1219
        %v1222 = vadd.f32 %v1217, %v1219
        %v1223 = vadd.f32 %v805, %v1221
        %v1224 = vadd.f32 %v806, %v1222
        %v1225 = vsel %vm825, %v1223, 0.0
        %1226 = vadd.xlane.f32.xlu0 %v1225
        %v1227 = vpop.xlane.xlu0 %1226
        %v1228 = vsel %vm825, %v1224, 0.0
        %1229 = vadd.xlane.f32.xlu0 %v1228
        %v1230 = vpop.xlane.xlu0 %1229
        %v1231 = vrcp.pop 32.0
        %v1232 = vmul.f32 32.0, %v1231
        %v1233 = vsub.f32 1.0, %v1232
        %v1234 = vmul.f32 %v1231, %v1233
        %v1235 = vadd.f32 %v1231, %v1234
        %vm1236 = vweird.f32 %v1231
        %v1237 = vsel %vm1236, %v1231, %v1235
        %v1238 = vmul.f32 %v1227, %v1237
        %v1239 = vmul.f32 %v1230, %v1237
        %v1240 = vsub.f32 %v1223, %v1238
        %v1241 = vsub.f32 %v1224, %v1239
        %v1242 = vmul.f32 %v1240, %v1240
        %v1243 = vmul.f32 %v1241, %v1241
        %v1244 = vsel %vm825, %v1242, 0.0
        %1245 = vadd.xlane.f32.xlu0 %v1244
        %v1246 = vpop.xlane.xlu0 %1245
        %v1247 = vsel %vm825, %v1243, 0.0
        %1248 = vadd.xlane.f32.xlu0 %v1247
        %v1249 = vpop.xlane.xlu0 %1248
        %v1250 = vmul.f32 %v1246, %v1237
        %v1251 = vmul.f32 %v1249, %v1237
        %v1252 = vadd.f32 %v1250, 1e-12
        %v1253 = vadd.f32 %v1251, 1e-12
        %v1254 = vrsqrt.pop %v1252
        %v1255 = vmul.f32 %v1254, %v1252
        %v1256 = vmul.f32 %v1255, %v1254
        %v1257 = vmul.f32 0.5, %v1256
        %v1258 = vsub.f32 1.5, %v1257
        %v1259 = vmul.f32 %v1254, %v1258
        %vm1260 = vweird.f32 %v1252
        %vm1261 = vweird.f32 %v1254
        %vm1262 = vmor %vm1260, %vm1261
        %v1263 = vsel %vm1262, %v1254, %v1259
        %v1264 = vrsqrt.pop %v1253
        %v1265 = vmul.f32 %v1264, %v1253
        %v1266 = vmul.f32 %v1265, %v1264
        %v1267 = vmul.f32 0.5, %v1266
        %v1268 = vsub.f32 1.5, %v1267
        %v1269 = vmul.f32 %v1264, %v1268
        %vm1270 = vweird.f32 %v1253
        %vm1271 = vweird.f32 %v1264
        %vm1272 = vmor %vm1270, %vm1271
        %v1273 = vsel %vm1272, %v1264, %v1269
        %v1274 = vmul.f32 %v1240, %v1263
        %v1275 = vmul.f32 %v1241, %v1273
        %v1277 = vperm.slane %v769, 0
        %v1279 = vmul.f32 %v1274, %v1277
        %v1280 = vmul.f32 %v1275, %v1277
        %v1282 = vperm.slane %v770, 0
        %v1284 = vadd.f32 %v1279, %v1282
        %v1285 = vadd.f32 %v1280, %v1282
        %v1286 = vpack.c.bf16 %v1285, %v1284
        %v1288 = vperm.slane %v787, 0
        %v1294 = vunpack.c.l.b16 %v783
        %v1295 = vunpack.c.l.b16 %v784
        %v1296 = vunpack.c.l.b16 %v785
        %v1297 = vunpack.c.l.b16 %v786
        %v1298 = vpack.c.b16 %v1295, %v1294
        %v1299 = vpack.c.b16 %v1297, %v1296
        %v1303 = vsel %vm825, %v1286, 0
        %1305 = vmatpush.bf16.msra.mxu0 0
        %1306 = vmatpush.bf16.msra.mxu0 0
        %1307 = vmatpush.bf16.msra.mxu0 0
        %1308 = vmatpush.bf16.msra.mxu0 0
        %1309 = vmatpush.bf16.msra.mxu0 0
        %1310 = vmatpush.bf16.msra.mxu0 0
        %1311 = vmatpush.bf16.msra.mxu0 %v1299
        %1312 = vmatpush.bf16.msra.mxu0 %v1298
        %1313 = vmatmul.bf16.gmra.mxu0 %v1303
        %v1314 = vpop.f32.mrf.mxu0
        %v1315 = vadd.f32 %v1288, %v1314
        %v1316 = vpop.f32.mrf.mxu0
        %v1317 = vadd.f32 %v1288, %v1316
        %1318 = vdwg.mxu0
        %v1319 = vmul.f32 %v1315, 0.5
        %v1320 = vmul.f32 %v1317, 0.5
        %v1321 = vmul.f32 %v1315, 0.044715
        %v1322 = vmul.f32 %v1317, 0.044715
        %v1323 = vmul.f32 %v1321, %v1315
        %v1324 = vmul.f32 %v1322, %v1317
        %v1325 = vmul.f32 %v1323, %v1315
        %v1326 = vmul.f32 %v1324, %v1317
        %v1327 = vadd.f32 %v1315, %v1325
        %v1328 = vadd.f32 %v1317, %v1326
        %v1329 = vmul.f32 %v1327, 0.7978846
        %v1330 = vmul.f32 %v1328, 0.7978846
        %v1331 = vtanh.pop %v1329
        %v1332 = vtanh.pop %v1330
        %v1333 = vadd.f32 %v1331, 1.0
        %v1334 = vadd.f32 %v1332, 1.0
        %v1335 = vmul.f32 %v1319, %v1333
        %v1336 = vmul.f32 %v1320, %v1334
        %v1337 = vpack.c.bf16 %v1336, %v1335
        %v1339 = vperm.slane %v804, 0
        %v1357 = vunpack.c.l.b16 %v788
        %v1358 = vunpack.c.l.b16 %v789
        %v1359 = vunpack.c.l.b16 %v790
        %v1360 = vunpack.c.l.b16 %v791
        %v1361 = vunpack.c.l.b16 %v792
        %v1362 = vunpack.c.l.b16 %v793
        %v1363 = vunpack.c.l.b16 %v794
        %v1364 = vunpack.c.l.b16 %v795
        %v1365 = vunpack.c.l.b16 %v796
        %v1366 = vunpack.c.l.b16 %v797
        %v1367 = vunpack.c.l.b16 %v798
        %v1368 = vunpack.c.l.b16 %v799
        %v1369 = vunpack.c.l.b16 %v800
        %v1370 = vunpack.c.l.b16 %v801
        %v1371 = vunpack.c.l.b16 %v802
        %v1372 = vunpack.c.l.b16 %v803
        %v1373 = vpack.c.b16 %v1358, %v1357
        %v1374 = vpack.c.b16 %v1360, %v1359
        %v1375 = vpack.c.b16 %v1362, %v1361
        %v1376 = vpack.c.b16 %v1364, %v1363
        %v1377 = vpack.c.b16 %v1366, %v1365
        %v1378 = vpack.c.b16 %v1368, %v1367
        %v1379 = vpack.c.b16 %v1370, %v1369
        %v1380 = vpack.c.b16 %v1372, %v1371
        %1389 = vmatpush.bf16.msra.mxu0 %v1380
        %1390 = vmatpush.bf16.msra.mxu0 %v1379
        %1391 = vmatpush.bf16.msra.mxu0 %v1378
        %1392 = vmatpush.bf16.msra.mxu0 %v1377
        %1393 = vmatpush.bf16.msra.mxu0 %v1376
        %1394 = vmatpush.bf16.msra.mxu0 %v1375
        %1395 = vmatpush.bf16.msra.mxu0 %v1374
        %1396 = vmatpush.bf16.msra.mxu0 %v1373
        %1397 = vmatmul.bf16.gmra.mxu0 %v1337
        %v1398 = vpop.f32.mrf.mxu0
        %v1399 = vadd.f32 %v1339, %v1398
        %v1400 = vpop.f32.mrf.mxu0
        %v1401 = vadd.f32 %v1339, %v1400
        %1402 = vdwg.mxu0
        %v1403 = vadd.f32 %v1284, %v1399
        %v1404 = vadd.f32 %v1285, %v1401
        %v1405 = vsel %vm825, %v1403, 0.0
        %1406 = vadd.xlane.f32.xlu0 %v1405
        %v1407 = vpop.xlane.xlu0 %1406
        %v1408 = vsel %vm825, %v1404, 0.0
        %1409 = vadd.xlane.f32.xlu0 %v1408
        %v1410 = vpop.xlane.xlu0 %1409
        %v1411 = vmul.f32 %v1407, %v1237
        %v1412 = vmul.f32 %v1410, %v1237
        %v1413 = vsub.f32 %v1403, %v1411
        %v1414 = vsub.f32 %v1404, %v1412
        %v1415 = vmul.f32 %v1413, %v1413
        %v1416 = vmul.f32 %v1414, %v1414
        %v1417 = vsel %vm825, %v1415, 0.0
        %1418 = vadd.xlane.f32.xlu0 %v1417
        %v1419 = vpop.xlane.xlu0 %1418
        %v1420 = vsel %vm825, %v1416, 0.0
        %1421 = vadd.xlane.f32.xlu0 %v1420
        %v1422 = vpop.xlane.xlu0 %1421
        %v1423 = vmul.f32 %v1419, %v1237
        %v1424 = vmul.f32 %v1422, %v1237
        %v1425 = vadd.f32 %v1423, 1e-12
        %v1426 = vadd.f32 %v1424, 1e-12
        %v1427 = vrsqrt.pop %v1425
        %v1428 = vmul.f32 %v1427, %v1425
        %v1429 = vmul.f32 %v1428, %v1427
        %v1430 = vmul.f32 0.5, %v1429
        %v1431 = vsub.f32 1.5, %v1430
        %v1432 = vmul.f32 %v1427, %v1431
        %vm1433 = vweird.f32 %v1425
        %vm1434 = vweird.f32 %v1427
        %vm1435 = vmor %vm1433, %vm1434
        %v1436 = vsel %vm1435, %v1427, %v1432
        %v1437 = vrsqrt.pop %v1426
        %v1438 = vmul.f32 %v1437, %v1426
        %v1439 = vmul.f32 %v1438, %v1437
        %v1440 = vmul.f32 0.5, %v1439
        %v1441 = vsub.f32 1.5, %v1440
        %v1442 = vmul.f32 %v1437, %v1441
        %vm1443 = vweird.f32 %v1426
        %vm1444 = vweird.f32 %v1437
        %vm1445 = vmor %vm1443, %vm1444
        %v1446 = vsel %vm1445, %v1437, %v1442
        %v1447 = vmul.f32 %v1413, %v1436
        %v1448 = vmul.f32 %v1414, %v1446
        %v1450 = vperm.slane %v781, 0
        %v1452 = vmul.f32 %v1447, %v1450
        %v1453 = vmul.f32 %v1448, %v1450
        %v1455 = vperm.slane %v782, 0
        %v1457 = vadd.f32 %v1452, %v1455
        %v1458 = vadd.f32 %v1453, %v1455
        %1459 = vst.msk [vmem:[#allocation2] sm:$0xff] %vm825, %v1457
        %1460 = vst.msk [vmem:[#allocation2 + $0x8] sm:$0xff] %vm825, %v1458
        %p1461 = scmp.eq.s32.totalorder %s32, 1
        // Predicated region
        $region97: #{vit_bert_plus_forward.5} parent=91 // pred_check
          %p1462 = pneg %p1461
        $region98: #{vit_bert_plus_forward.5} parent=91 // pred_check_branch
          %1464 = sbr.rel (%p1462) target = $region100
        $region99: #{vit_bert_plus_forward.5} parent=91 // pred_region
          %v1465 = vld [vmem:[%s2] sm:$0xf]
          %v1466 = vld [vmem:[%s2 + $0x4] sm:$0xf]
          %v1467 = vld [vmem:[%s2 + $0x8] sm:$0xf]
          %v1468 = vld [vmem:[%s2 + $0xc] sm:$0xf]
          %v1469 = vld [vmem:[%s3] sm:$0x1]
          %v1470 = vld [vmem:[%s4] sm:$0xff]
          %v1471 = vld [vmem:[%s4 + $0x8] sm:$0xff]
          %v1472 = vld [vmem:[%s4 + $0x10] sm:$0xff]
          %v1473 = vld [vmem:[%s4 + $0x18] sm:$0xff]
          %v1474 = vld [vmem:[%s5] sm:$0x3]
          %v1475 = vpack.c.bf16 %v1457, %v1457
          %v1480 = vunpack.c.l.b16 %v1465
          %v1481 = vunpack.c.l.b16 %v1466
          %v1482 = vunpack.c.l.b16 %v1467
          %v1483 = vunpack.c.l.b16 %v1468
          %v1484 = vpack.c.b16 %v1481, %v1480
          %v1485 = vpack.c.b16 %v1483, %v1482
          %v1489 = vsel %vm825, %v1475, 0
          %1491 = vmatpush.bf16.msra.mxu0 0
          %1492 = vmatpush.bf16.msra.mxu0 0
          %1493 = vmatpush.bf16.msra.mxu0 0
          %1494 = vmatpush.bf16.msra.mxu0 0
          %1495 = vmatpush.bf16.msra.mxu0 0
          %1496 = vmatpush.bf16.msra.mxu0 0
          %1497 = vmatpush.bf16.msra.mxu0 %v1485
          %1498 = vmatpush.bf16.msra.mxu0 %v1484
          %1499 = vmatmul.bf16.gmra.mxu0 %v1489
          %v1500 = vpop.f32.mrf.mxu0
          %v1501 = vadd.f32 %v1469, %v1500
          %v1502 = vpop.f32.mrf.mxu0
          %1503 = vdwg.mxu0
          %v1504 = vtanh.pop %v1501
          %vm1505 = vcmask 253952
          %1506 = vst.msk [vmem:[#allocation3] sm:$0x1] %vm1505, %v1504
          %v1507 = vpack.c.bf16 %v1504, %v1504
          %v1512 = vunpack.c.l.b16 %v1470
          %v1513 = vunpack.c.h.b16 %v1470
          %v1514 = vunpack.c.l.b16 %v1471
          %v1515 = vunpack.c.h.b16 %v1471
          %v1516 = vunpack.c.l.b16 %v1472
          %v1517 = vunpack.c.h.b16 %v1472
          %v1518 = vunpack.c.l.b16 %v1473
          %v1519 = vunpack.c.h.b16 %v1473
          %v1520 = vpack.c.b16 %v1514, %v1512
          %v1521 = vpack.c.b16 %v1515, %v1513
          %v1522 = vpack.c.b16 %v1518, %v1516
          %v1523 = vpack.c.b16 %v1519, %v1517
          %v1529 = vperm.slane %v1474, 0
          %v1530 = vperm.slane %v1474, 1
          %v1534 = vsel %vm825, %v1507, 0
          %1536 = vmatpush.bf16.msra.mxu0 0
          %1537 = vmatpush.bf16.msra.mxu0 0
          %1538 = vmatpush.bf16.msra.mxu0 0
          %1539 = vmatpush.bf16.msra.mxu0 0
          %1540 = vmatpush.bf16.msra.mxu0 0
          %1541 = vmatpush.bf16.msra.mxu0 0
          %1542 = vmatpush.bf16.msra.mxu0 %v1522
          %1543 = vmatpush.bf16.msra.mxu0 %v1520
          %1544 = vmatmul.bf16.gmra.mxu0 %v1534
          %v1545 = vpop.f32.mrf.mxu0
          %v1546 = vadd.f32 %v1529, %v1545
          %v1547 = vpop.f32.mrf.mxu0
          %1548 = vdwg.mxu0
          %1549 = vmatpush.bf16.msra.mxu0 0
          %1550 = vmatpush.bf16.msra.mxu0 0
          %1551 = vmatpush.bf16.msra.mxu0 0
          %1552 = vmatpush.bf16.msra.mxu0 0
          %1553 = vmatpush.bf16.msra.mxu0 0
          %1554 = vmatpush.bf16.msra.mxu0 0
          %1555 = vmatpush.bf16.msra.mxu0 %v1523
          %1556 = vmatpush.bf16.msra.mxu0 %v1521
          %1557 = vmatmul.bf16.gmra.mxu0 %v1534
          %v1558 = vpop.f32.mrf.mxu0
          %v1559 = vadd.f32 %v1530, %v1558
          %v1560 = vpop.f32.mrf.mxu0
          %1561 = vdwg.mxu0
          %v1562 = vtanh.pop %v1546
          %v1563 = vtanh.pop %v1559
          %v1566 = vrot.slane %v1563, 7
          %vm1567 = vcmask 1040384
          %v1568 = vsel %vm1567, %v1562, %v1566
          %v1570 = vlaneseq
          %vm1571 = vcmp.ge.s32.totalorder %v1570, 0
          %vm1572 = vcmp.lt.s32.totalorder %v1570, 192
          %vm1573 = vmand %vm1571, %vm1572
          %1574 = vst.msk [vmem:[%s19] ss:$2 sm:$0x3] %vm1573, %v1568
          %v1575 = vpack.c.bf16 %v1458, %v1458
          %v1577 = vsel %vm825, %v1575, 0
          %1579 = vmatpush.bf16.msra.mxu0 0
          %1580 = vmatpush.bf16.msra.mxu0 0
          %1581 = vmatpush.bf16.msra.mxu0 0
          %1582 = vmatpush.bf16.msra.mxu0 0
          %1583 = vmatpush.bf16.msra.mxu0 0
          %1584 = vmatpush.bf16.msra.mxu0 0
          %1585 = vmatpush.bf16.msra.mxu0 %v1485
          %1586 = vmatpush.bf16.msra.mxu0 %v1484
          %1587 = vmatmul.bf16.gmra.mxu0 %v1577
          %v1588 = vpop.f32.mrf.mxu0
          %v1589 = vadd.f32 %v1469, %v1588
          %v1590 = vpop.f32.mrf.mxu0
          %1591 = vdwg.mxu0
          %v1592 = vtanh.pop %v1589
          %1593 = vst.msk [vmem:[#allocation3 + $0x1] sm:$0x1] %vm1505, %v1592
          %v1594 = vpack.c.bf16 %v1592, %v1592
          %v1596 = vsel %vm825, %v1594, 0
          %1598 = vmatpush.bf16.msra.mxu0 0
          %1599 = vmatpush.bf16.msra.mxu0 0
          %1600 = vmatpush.bf16.msra.mxu0 0
          %1601 = vmatpush.bf16.msra.mxu0 0
          %1602 = vmatpush.bf16.msra.mxu0 0
          %1603 = vmatpush.bf16.msra.mxu0 0
          %1604 = vmatpush.bf16.msra.mxu0 %v1522
          %1605 = vmatpush.bf16.msra.mxu0 %v1520
          %1606 = vmatmul.bf16.gmra.mxu0 %v1596
          %v1607 = vpop.f32.mrf.mxu0
          %v1608 = vadd.f32 %v1529, %v1607
          %v1609 = vpop.f32.mrf.mxu0
          %1610 = vdwg.mxu0
          %1611 = vmatpush.bf16.msra.mxu0 0
          %1612 = vmatpush.bf16.msra.mxu0 0
          %1613 = vmatpush.bf16.msra.mxu0 0
          %1614 = vmatpush.bf16.msra.mxu0 0
          %1615 = vmatpush.bf16.msra.mxu0 0
          %1616 = vmatpush.bf16.msra.mxu0 0
          %1617 = vmatpush.bf16.msra.mxu0 %v1523
          %1618 = vmatpush.bf16.msra.mxu0 %v1521
          %1619 = vmatmul.bf16.gmra.mxu0 %v1596
          %v1620 = vpop.f32.mrf.mxu0
          %v1621 = vadd.f32 %v1530, %v1620
          %v1622 = vpop.f32.mrf.mxu0
          %1623 = vdwg.mxu0
          %v1624 = vtanh.pop %v1608
          %v1625 = vtanh.pop %v1621
          %v1628 = vrot.slane %v1625, 7
          %v1629 = vsel %vm1567, %v1624, %v1628
          %s1631 = scalar_lea.vmem %s19, 1
          %1632 = vst.msk [vmem:[%s1631] ss:$2 sm:$0x3] %vm1573, %v1629
        $region100: #{vit_bert_plus_forward.5} parent=91 // pred_fallthru
          _
        // Predicated region
        $region101: #{vit_bert_plus_forward.5} parent=91 // pred_check
          %p1633 = pneg %p483
        $region102: #{vit_bert_plus_forward.5} parent=91 // pred_check_branch
          %1635 = sbr.rel (%p1633) target = $region104
        $region103: #{vit_bert_plus_forward.5} parent=91 // pred_region
          %1637 = vsyncadd [#allocation4], 0
          %s1639 = sshll.u32 [#allocation3], 4
          %s1640 = int_to_ptr.vmem [resolvable:$true] %s1639
          %s1641 = sshll.u32 %s18, 4
          %s1642 = int_to_ptr.hbm [resolvable:$true] %s1641
          %1644 = dma.vmem_to_hbm [thread:$0]  %s1640, 32, %s1642, [#allocation4]
        $region104: #{vit_bert_plus_forward.5} parent=91 // pred_fallthru
          _
        // Predicated region
        $region105: #{vit_bert_plus_forward.5} parent=91 // pred_check
          %p1645 = pneg %p504
        $region106: #{vit_bert_plus_forward.5} parent=91 // pred_check_branch
          %1647 = sbr.rel (%p1645) target = $region108
        $region107: #{vit_bert_plus_forward.5} parent=91 // pred_region
          _
        $region108: #{vit_bert_plus_forward.5} parent=91 // pred_fallthru
          _
        // Predicated region
        $region109: #{vit_bert_plus_forward.5} parent=91 // pred_check
          %p1648 = pneg %p483
        $region110: #{vit_bert_plus_forward.5} parent=91 // pred_check_branch
          %1650 = sbr.rel (%p1648) target = $region112
        $region111: #{vit_bert_plus_forward.5} parent=91 // pred_region
          %1652 = dma.done [#allocation4], 32
        $region112: #{vit_bert_plus_forward.5} parent=91 // pred_fallthru
          _
        // Predicated region
        $region113: #{vit_bert_plus_forward.5} parent=91 // pred_check
          %p1653 = pneg %p504
        $region114: #{vit_bert_plus_forward.5} parent=91 // pred_check_branch
          %1655 = sbr.rel (%p1653) target = $region116
        $region115: #{vit_bert_plus_forward.5} parent=91 // pred_region
          _
        $region116: #{vit_bert_plus_forward.5} parent=91 // pred_fallthru
          _
      $region92: #{vit_bert_plus_forward.5} parent=5 // pred_fallthru
        _
      %p1656 = scmp.le.s32.totalorder 2, %s27
      // Predicated region
      $region117: #{vit_bert_plus_forward.5} parent=5 // pred_check
        %p1657 = pneg %p1656
      $region118: #{vit_bert_plus_forward.5} parent=5 // pred_check_branch
        %1659 = sbr.rel (%p1657) target = $region120
      $region119: #{vit_bert_plus_forward.5} parent=5 // pred_region
        %s1660 = ssub.s32 %s27, 2
      $region120: #{vit_bert_plus_forward.5} parent=5 // pred_fallthru
        _
    $region6: #{vit_bert_plus_forward.5} parent=1 // loop_footer
      %s31 = sadd.s32 1, %s27
    $region7: #{vit_bert_plus_forward.5} parent=1 // loop_footer_branch
      %26 = sbr.rel target = $region3
    $region8: #{vit_bert_plus_forward.5} parent=1 // loop_exit
      _
    %1661 = vsyncpa [#allocation4], 1
    %s1662 = scalar_lea.sflag [#allocation4], 1
    %1663 = vsyncpa %s1662, 1

</llo_original>
